<compile_context>
chip_gen: v7x
topology: tpu7x:2x2x1
jax: 0.10.0
libtpu: 0.0.40
codegen_flags: <defaults>
</compile_context>

<pallas_src>
import functools

import jax
import jax.numpy as jnp
from jax import lax
from jax.experimental import pallas as pl
from jax.experimental.pallas import tpu as pltpu


# --------------------------- fused whole-model kernel --------------------------- #

def _fused_transformer_kernel(x_ref, wqkv_ref, bqkv_ref, wout_ref, bout_ref,
                              ln1g_ref, ln1b_ref, w1_ref, b1_ref, w2_ref, b2_ref,
                              ln2g_ref, ln2b_ref, fcw_ref, fcb_ref,
                              o_ref, attn_ref,
                              *, num_layers, num_heads, seq_len, batch, eps):
    """Entire forward for x flattened to (N*S, E); output (S, C_pad)."""
    S, N, H = seq_len, batch, num_heads
    y = x_ref[...].astype(jnp.float32)                      # (T, E), f32 throughout
    T, E = y.shape
    Dh = E // H
    scale = 1.0 / float(Dh) ** 0.5

    def layer_norm(v, g, b):
        mu = jnp.mean(v, axis=-1, keepdims=True)
        var = jnp.mean((v - mu) * (v - mu), axis=-1, keepdims=True)
        return (v - mu) * lax.rsqrt(var + eps) * g + b

    for l in range(num_layers):                             # static unroll over layers
        # ---------------- multi-head self-attention ----------------
        xb = y.astype(jnp.bfloat16)
        # Fused QKV projection: ONE MXU pass over all N*S token rows.
        qkv = jnp.dot(xb, wqkv_ref[l],
                      preferred_element_type=jnp.float32) + bqkv_ref[l]   # (T, 3E) f32
        # Per (batch, head): tiny (S,S) score / softmax / PV path.  q/k/v come from
        # static 8-wide lane slices of the fused QKV result; per-head outputs are
        # scattered into a small VMEM scratch so out-projection is ONE matmul.
        for n in range(N):
            r0 = n * S
            for h in range(H):
                q = qkv[r0:r0 + S, h * Dh:(h + 1) * Dh] * scale
                k = qkv[r0:r0 + S, E + h * Dh:E + (h + 1) * Dh]
                v = qkv[r0:r0 + S, 2 * E + h * Dh:2 * E + (h + 1) * Dh]
                s = lax.dot_general(q.astype(jnp.bfloat16), k.astype(jnp.bfloat16),
                                    (((1,), (1,)), ((), ())),
                                    preferred_element_type=jnp.float32)   # (S, S)
                m = jnp.max(s, axis=-1, keepdims=True)
                p = jnp.exp(s - m)
                p = p / jnp.sum(p, axis=-1, keepdims=True)                # exact softmax
                o_h = jnp.dot(p.astype(jnp.bfloat16), v.astype(jnp.bfloat16),
                              preferred_element_type=jnp.float32)          # (S, Dh)
                attn_ref[r0:r0 + S, h * Dh:(h + 1) * Dh] = o_h
        # Fused out-projection (one matmul) + bias + residual + LayerNorm1.
        proj = jnp.dot(attn_ref[...].astype(jnp.bfloat16), wout_ref[l],
                       preferred_element_type=jnp.float32) + bout_ref[l]   # (T, E)
        y = layer_norm(proj + y, ln1g_ref[l], ln1b_ref[l])

        # ---------------- feed-forward (linear1 + ReLU + linear2) ----------------
        # The (T, 2048) f32 intermediate never leaves on-chip memory.
        hid = jnp.dot(y.astype(jnp.bfloat16), w1_ref[l],
                      preferred_element_type=jnp.float32) + b1_ref[l]      # (T, F)
        hid = jnp.maximum(hid, 0.0)
        ff = jnp.dot(hid.astype(jnp.bfloat16), w2_ref[l],
                     preferred_element_type=jnp.float32) + b2_ref[l]       # (T, E)
        y = layer_norm(ff + y, ln2g_ref[l], ln2b_ref[l])

    # -------- mean over batch (dim=1 of the original (S, N, E)) + fc, fused --------
    xm = y[0:S, :]
    for n in range(1, N):
        xm = xm + y[n * S:(n + 1) * S, :]
    xm = xm * (1.0 / N)                                                    # (S, E)
    out = jnp.dot(xm.astype(jnp.bfloat16), fcw_ref[...],
                  preferred_element_type=jnp.float32) + fcb_ref[...]       # (S, Cp)
    o_ref[...] = out.astype(o_ref.dtype)                                   # lane-dense store


# --------------------------------- model glue --------------------------------- #

def transformer_model_forward(x, params, num_heads, num_classes):
    """Full TransformerModel.forward. x: (S, N, E) f32 -> (S, num_classes) f32."""
    S, N, E = x.shape
    # Single one-time layout change (S,N,E) -> (N,S,E) -> (N*S, E); all later reshapes
    # inside the kernel are free (per-batch rows are contiguous).
    y = jnp.transpose(x, (1, 0, 2)).reshape(N * S, E).astype(jnp.float32)

    num_layers = params["w_qkv"].shape[0]
    Cp = params["fc_w"].shape[1]                             # lane-padded class dim (128)

    kernel = functools.partial(
        _fused_transformer_kernel,
        num_layers=num_layers, num_heads=num_heads,
        seq_len=S, batch=N, eps=1e-5)

    vmem = pl.BlockSpec(memory_space=pltpu.MemorySpace.VMEM)  # whole array, VMEM-resident
    out = pl.pallas_call(
        kernel,
        out_shape=jax.ShapeDtypeStruct((S, Cp), jnp.float32),
        in_specs=[vmem] * 15,
        out_specs=vmem,
        scratch_shapes=[pltpu.VMEM((N * S, E), jnp.float32)],  # per-layer head-merge buffer
    )(y,
      params["w_qkv"], params["b_qkv"], params["w_out"], params["b_out"],
      params["ln1_g"], params["ln1_b"],
      params["w1"], params["b1"], params["w2"], params["b2"],
      params["ln2_g"], params["ln2_b"],
      params["fc_w"], params["fc_b"])
    return out[:, :num_classes]


def init_params(key, E, num_layers, num_classes, dim_feedforward=2048):
    """Random params in kernel-ready layout.

    Matmul weights are bf16, (in, out)-oriented (x @ W); biases / LayerNorm params f32.
    Per-layer weights are stacked along a leading layer axis so the fused kernel simply
    indexes the leading dim per layer.  fc weights are pre-padded on the host to a
    lane-dense 128-wide slab (no per-call jnp.pad)."""
    L, F = num_layers, dim_feedforward
    w_qkv, w_out, w1, w2 = [], [], [], []
    for l in range(L):
        ks = jax.random.split(jax.random.fold_in(key, l), 4)
        w_qkv.append(jax.random.normal(ks[0], (E, 3 * E), jnp.float32) * 0.05)  # [q|k|v]
        w_out.append(jax.random.normal(ks[1], (E, E), jnp.float32) * 0.05)
        w1.append(jax.random.normal(ks[2], (E, F), jnp.float32) * 0.05)
        w2.append(jax.random.normal(ks[3], (F, E), jnp.float32) * 0.05)

    Cp = ((num_classes + 127) // 128) * 128
    k_fc = jax.random.fold_in(key, 1000)
    fc_w = jax.random.normal(k_fc, (E, num_classes), jnp.float32) * 0.05

    return dict(
        w_qkv=jnp.stack(w_qkv).astype(jnp.bfloat16),           # (L, E, 3E)
        b_qkv=jnp.zeros((L, 1, 3 * E), jnp.float32),
        w_out=jnp.stack(w_out).astype(jnp.bfloat16),           # (L, E, E)
        b_out=jnp.zeros((L, 1, E), jnp.float32),
        ln1_g=jnp.ones((L, 1, E), jnp.float32),
        ln1_b=jnp.zeros((L, 1, E), jnp.float32),
        w1=jnp.stack(w1).astype(jnp.bfloat16),                 # (L, E, F)
        b1=jnp.zeros((L, 1, F), jnp.float32),
        w2=jnp.stack(w2).astype(jnp.bfloat16),                 # (L, F, E)
        b2=jnp.zeros((L, 1, E), jnp.float32),
        ln2_g=jnp.ones((L, 1, E), jnp.float32),
        ln2_b=jnp.zeros((L, 1, E), jnp.float32),
        fc_w=jnp.pad(fc_w, ((0, 0), (0, Cp - num_classes))).astype(jnp.bfloat16),  # (E, 128)
        fc_b=jnp.zeros((1, Cp), jnp.float32),
    )


if __name__ == "__main__":
    # Small, forward-consistent shapes.
    input_dim = 32      # d_model (must be divisible by num_heads)
    hidden_dim = 64     # stored by the PyTorch module but unused in forward()
    num_heads = 4
    num_layers = 2
    num_classes = 5
    S, N = 8, 2         # (seq, batch) — PyTorch default (S, N, E) layout

    x = jax.random.normal(jax.random.PRNGKey(0), (S, N, input_dim), jnp.float32)
    params = init_params(jax.random.PRNGKey(1), input_dim, num_layers, num_classes)

    fwd = jax.jit(functools.partial(transformer_model_forward,
                                    num_heads=num_heads, num_classes=num_classes))
    out = fwd(x, params)
    jax.block_until_ready(out)

    assert out.shape == (S, num_classes), out.shape
    assert bool(jnp.all(jnp.isfinite(out)))
    print("KERNEL_OK")
</pallas_src>

<mosaic_0001>
module attributes {stable_mosaic.version = 11 : i64} {
  func.func @_fused_transformer_kernel(%arg0: memref<16x32xf32, #tpu.memory_space<vmem>>, %arg1: memref<2x32x96xbf16, #tpu.memory_space<vmem>>, %arg2: memref<2x1x96xf32, #tpu.memory_space<vmem>>, %arg3: memref<2x32x32xbf16, #tpu.memory_space<vmem>>, %arg4: memref<2x1x32xf32, #tpu.memory_space<vmem>>, %arg5: memref<2x1x32xf32, #tpu.memory_space<vmem>>, %arg6: memref<2x1x32xf32, #tpu.memory_space<vmem>>, %arg7: memref<2x32x2048xbf16, #tpu.memory_space<vmem>>, %arg8: memref<2x1x2048xf32, #tpu.memory_space<vmem>>, %arg9: memref<2x2048x32xbf16, #tpu.memory_space<vmem>>, %arg10: memref<2x1x32xf32, #tpu.memory_space<vmem>>, %arg11: memref<2x1x32xf32, #tpu.memory_space<vmem>>, %arg12: memref<2x1x32xf32, #tpu.memory_space<vmem>>, %arg13: memref<32x128xbf16, #tpu.memory_space<vmem>>, %arg14: memref<1x128xf32, #tpu.memory_space<vmem>>, %arg15: memref<8x128xf32, #tpu.memory_space<vmem>>, %arg16: memref<16x32xf32, #tpu.memory_space<vmem>>) attributes {dimension_semantics = [], scalar_prefetch = 0 : i64, scratch_operands = 1 : i64, tpu.core_type = #tpu.core_type<tc>} {
    %c0 = arith.constant 0 : index
    %c0_0 = arith.constant 0 : index
    %0 = vector.load %arg0[%c0, %c0_0] : memref<16x32xf32, #tpu.memory_space<vmem>>, vector<16x32xf32>
    %1 = arith.truncf %0 : vector<16x32xf32> to vector<16x32xbf16>
    %c0_1 = arith.constant 0 : index
    %c0_2 = arith.constant 0 : index
    %c0_3 = arith.constant 0 : index
    %2 = vector.load %arg1[%c0_1, %c0_2, %c0_3] : memref<2x32x96xbf16, #tpu.memory_space<vmem>>, vector<1x32x96xbf16>
    %3 = vector.shape_cast %2 : vector<1x32x96xbf16> to vector<32x96xbf16>
    %cst = arith.constant dense<0.000000e+00> : vector<16x96xf32>
    %4 = tpu.matmul %1, %3, %cst {dimension_numbers = #tpu.dot_dimension_numbers<[1], [0], [0], [1], [0, 0, 1, 1], [], []>} : vector<16x32xbf16>, vector<32x96xbf16>, vector<16x96xf32> -> vector<16x96xf32>
    %c0_4 = arith.constant 0 : index
    %c0_5 = arith.constant 0 : index
    %c0_6 = arith.constant 0 : index
    %5 = vector.load %arg2[%c0_4, %c0_5, %c0_6] : memref<2x1x96xf32, #tpu.memory_space<vmem>>, vector<1x1x96xf32>
    %6 = vector.shape_cast %5 : vector<1x1x96xf32> to vector<1x96xf32>
    %7 = vector.broadcast %6 : vector<1x96xf32> to vector<16x96xf32>
    %8 = arith.addf %4, %7 : vector<16x96xf32>
    %9 = vector.extract_strided_slice %8 {offsets = [0, 0], sizes = [8, 8], strides = [1, 1]} : vector<16x96xf32> to vector<8x8xf32>
    %cst_7 = arith.constant 0.353553385 : f32
    %10 = vector.broadcast %cst_7 : f32 to vector<8x8xf32>
    %11 = arith.mulf %9, %10 : vector<8x8xf32>
    %12 = vector.extract_strided_slice %8 {offsets = [0, 32], sizes = [8, 8], strides = [1, 1]} : vector<16x96xf32> to vector<8x8xf32>
    %13 = vector.extract_strided_slice %8 {offsets = [0, 64], sizes = [8, 8], strides = [1, 1]} : vector<16x96xf32> to vector<8x8xf32>
    %14 = arith.truncf %11 : vector<8x8xf32> to vector<8x8xbf16>
    %15 = arith.truncf %12 : vector<8x8xf32> to vector<8x8xbf16>
    %cst_8 = arith.constant dense<0.000000e+00> : vector<8x8xf32>
    %16 = tpu.matmul %14, %15, %cst_8 {dimension_numbers = #tpu.dot_dimension_numbers<[1], [1], [0], [0], [0, 0, 1, 0], [], []>} : vector<8x8xbf16>, vector<8x8xbf16>, vector<8x8xf32> -> vector<8x8xf32>
    %cst_9 = arith.constant dense<0xFF800000> : vector<8xf32>
    %17 = vector.multi_reduction <maximumf>, %16, %cst_9 [1] : vector<8x8xf32> to vector<8xf32>
    %18 = vector.shape_cast %17 : vector<8xf32> to vector<8x1xf32>
    %19 = vector.broadcast %18 : vector<8x1xf32> to vector<8x8xf32>
    %20 = arith.subf %16, %19 : vector<8x8xf32>
    %21 = math.exp %20 : vector<8x8xf32>
    %cst_10 = arith.constant dense<0.000000e+00> : vector<8xf32>
    %22 = vector.multi_reduction <add>, %21, %cst_10 [1] : vector<8x8xf32> to vector<8xf32>
    %23 = vector.shape_cast %22 : vector<8xf32> to vector<8x1xf32>
    %24 = vector.broadcast %23 : vector<8x1xf32> to vector<8x8xf32>
    %25 = arith.divf %21, %24 : vector<8x8xf32>
    %26 = arith.truncf %25 : vector<8x8xf32> to vector<8x8xbf16>
    %27 = arith.truncf %13 : vector<8x8xf32> to vector<8x8xbf16>
    %cst_11 = arith.constant dense<0.000000e+00> : vector<8x8xf32>
    %28 = tpu.matmul %26, %27, %cst_11 {dimension_numbers = #tpu.dot_dimension_numbers<[1], [0], [0], [1], [0, 0, 1, 1], [], []>} : vector<8x8xbf16>, vector<8x8xbf16>, vector<8x8xf32> -> vector<8x8xf32>
    %c0_12 = arith.constant 0 : index
    %c0_13 = arith.constant 0 : index
    %29 = vector.load %arg16[%c0_12, %c0_13] : memref<16x32xf32, #tpu.memory_space<vmem>>, vector<8x8xf32>
    tpu.vector_store %arg16[%c0_12, %c0_13], %28 {strides = array<i32>} : memref<16x32xf32, #tpu.memory_space<vmem>>, vector<8x8xf32>,
    %30 = vector.extract_strided_slice %8 {offsets = [0, 8], sizes = [8, 8], strides = [1, 1]} : vector<16x96xf32> to vector<8x8xf32>
    %cst_14 = arith.constant 0.353553385 : f32
    %31 = vector.broadcast %cst_14 : f32 to vector<8x8xf32>
    %32 = arith.mulf %30, %31 : vector<8x8xf32>
    %33 = vector.extract_strided_slice %8 {offsets = [0, 40], sizes = [8, 8], strides = [1, 1]} : vector<16x96xf32> to vector<8x8xf32>
    %34 = vector.extract_strided_slice %8 {offsets = [0, 72], sizes = [8, 8], strides = [1, 1]} : vector<16x96xf32> to vector<8x8xf32>
    %35 = arith.truncf %32 : vector<8x8xf32> to vector<8x8xbf16>
    %36 = arith.truncf %33 : vector<8x8xf32> to vector<8x8xbf16>
    %cst_15 = arith.constant dense<0.000000e+00> : vector<8x8xf32>
    %37 = tpu.matmul %35, %36, %cst_15 {dimension_numbers = #tpu.dot_dimension_numbers<[1], [1], [0], [0], [0, 0, 1, 0], [], []>} : vector<8x8xbf16>, vector<8x8xbf16>, vector<8x8xf32> -> vector<8x8xf32>
    %cst_16 = arith.constant dense<0xFF800000> : vector<8xf32>
    %38 = vector.multi_reduction <maximumf>, %37, %cst_16 [1] : vector<8x8xf32> to vector<8xf32>
    %39 = vector.shape_cast %38 : vector<8xf32> to vector<8x1xf32>
    %40 = vector.broadcast %39 : vector<8x1xf32> to vector<8x8xf32>
    %41 = arith.subf %37, %40 : vector<8x8xf32>
    %42 = math.exp %41 : vector<8x8xf32>
    %cst_17 = arith.constant dense<0.000000e+00> : vector<8xf32>
    %43 = vector.multi_reduction <add>, %42, %cst_17 [1] : vector<8x8xf32> to vector<8xf32>
    %44 = vector.shape_cast %43 : vector<8xf32> to vector<8x1xf32>
    %45 = vector.broadcast %44 : vector<8x1xf32> to vector<8x8xf32>
    %46 = arith.divf %42, %45 : vector<8x8xf32>
    %47 = arith.truncf %46 : vector<8x8xf32> to vector<8x8xbf16>
    %48 = arith.truncf %34 : vector<8x8xf32> to vector<8x8xbf16>
    %cst_18 = arith.constant dense<0.000000e+00> : vector<8x8xf32>
    %49 = tpu.matmul %47, %48, %cst_18 {dimension_numbers = #tpu.dot_dimension_numbers<[1], [0], [0], [1], [0, 0, 1, 1], [], []>} : vector<8x8xbf16>, vector<8x8xbf16>, vector<8x8xf32> -> vector<8x8xf32>
    %c0_19 = arith.constant 0 : index
    %c8 = arith.constant 8 : index
    %50 = vector.load %arg16[%c0_19, %c8] : memref<16x32xf32, #tpu.memory_space<vmem>>, vector<8x8xf32>
    tpu.vector_store %arg16[%c0_19, %c8], %49 {strides = array<i32>} : memref<16x32xf32, #tpu.memory_space<vmem>>, vector<8x8xf32>,
    %51 = vector.extract_strided_slice %8 {offsets = [0, 16], sizes = [8, 8], strides = [1, 1]} : vector<16x96xf32> to vector<8x8xf32>
    %cst_20 = arith.constant 0.353553385 : f32
    %52 = vector.broadcast %cst_20 : f32 to vector<8x8xf32>
    %53 = arith.mulf %51, %52 : vector<8x8xf32>
    %54 = vector.extract_strided_slice %8 {offsets = [0, 48], sizes = [8, 8], strides = [1, 1]} : vector<16x96xf32> to vector<8x8xf32>
    %55 = vector.extract_strided_slice %8 {offsets = [0, 80], sizes = [8, 8], strides = [1, 1]} : vector<16x96xf32> to vector<8x8xf32>
    %56 = arith.truncf %53 : vector<8x8xf32> to vector<8x8xbf16>
    %57 = arith.truncf %54 : vector<8x8xf32> to vector<8x8xbf16>
    %cst_21 = arith.constant dense<0.000000e+00> : vector<8x8xf32>
    %58 = tpu.matmul %56, %57, %cst_21 {dimension_numbers = #tpu.dot_dimension_numbers<[1], [1], [0], [0], [0, 0, 1, 0], [], []>} : vector<8x8xbf16>, vector<8x8xbf16>, vector<8x8xf32> -> vector<8x8xf32>
    %cst_22 = arith.constant dense<0xFF800000> : vector<8xf32>
    %59 = vector.multi_reduction <maximumf>, %58, %cst_22 [1] : vector<8x8xf32> to vector<8xf32>
    %60 = vector.shape_cast %59 : vector<8xf32> to vector<8x1xf32>
    %61 = vector.broadcast %60 : vector<8x1xf32> to vector<8x8xf32>
    %62 = arith.subf %58, %61 : vector<8x8xf32>
    %63 = math.exp %62 : vector<8x8xf32>
    %cst_23 = arith.constant dense<0.000000e+00> : vector<8xf32>
    %64 = vector.multi_reduction <add>, %63, %cst_23 [1] : vector<8x8xf32> to vector<8xf32>
    %65 = vector.shape_cast %64 : vector<8xf32> to vector<8x1xf32>
    %66 = vector.broadcast %65 : vector<8x1xf32> to vector<8x8xf32>
    %67 = arith.divf %63, %66 : vector<8x8xf32>
    %68 = arith.truncf %67 : vector<8x8xf32> to vector<8x8xbf16>
    %69 = arith.truncf %55 : vector<8x8xf32> to vector<8x8xbf16>
    %cst_24 = arith.constant dense<0.000000e+00> : vector<8x8xf32>
    %70 = tpu.matmul %68, %69, %cst_24 {dimension_numbers = #tpu.dot_dimension_numbers<[1], [0], [0], [1], [0, 0, 1, 1], [], []>} : vector<8x8xbf16>, vector<8x8xbf16>, vector<8x8xf32> -> vector<8x8xf32>
    %c0_25 = arith.constant 0 : index
    %c16 = arith.constant 16 : index
    %71 = vector.load %arg16[%c0_25, %c16] : memref<16x32xf32, #tpu.memory_space<vmem>>, vector<8x8xf32>
    tpu.vector_store %arg16[%c0_25, %c16], %70 {strides = array<i32>} : memref<16x32xf32, #tpu.memory_space<vmem>>, vector<8x8xf32>,
    %72 = vector.extract_strided_slice %8 {offsets = [0, 24], sizes = [8, 8], strides = [1, 1]} : vector<16x96xf32> to vector<8x8xf32>
    %cst_26 = arith.constant 0.353553385 : f32
    %73 = vector.broadcast %cst_26 : f32 to vector<8x8xf32>
    %74 = arith.mulf %72, %73 : vector<8x8xf32>
    %75 = vector.extract_strided_slice %8 {offsets = [0, 56], sizes = [8, 8], strides = [1, 1]} : vector<16x96xf32> to vector<8x8xf32>
    %76 = vector.extract_strided_slice %8 {offsets = [0, 88], sizes = [8, 8], strides = [1, 1]} : vector<16x96xf32> to vector<8x8xf32>
    %77 = arith.truncf %74 : vector<8x8xf32> to vector<8x8xbf16>
    %78 = arith.truncf %75 : vector<8x8xf32> to vector<8x8xbf16>
    %cst_27 = arith.constant dense<0.000000e+00> : vector<8x8xf32>
    %79 = tpu.matmul %77, %78, %cst_27 {dimension_numbers = #tpu.dot_dimension_numbers<[1], [1], [0], [0], [0, 0, 1, 0], [], []>} : vector<8x8xbf16>, vector<8x8xbf16>, vector<8x8xf32> -> vector<8x8xf32>
    %cst_28 = arith.constant dense<0xFF800000> : vector<8xf32>
    %80 = vector.multi_reduction <maximumf>, %79, %cst_28 [1] : vector<8x8xf32> to vector<8xf32>
    %81 = vector.shape_cast %80 : vector<8xf32> to vector<8x1xf32>
    %82 = vector.broadcast %81 : vector<8x1xf32> to vector<8x8xf32>
    %83 = arith.subf %79, %82 : vector<8x8xf32>
    %84 = math.exp %83 : vector<8x8xf32>
    %cst_29 = arith.constant dense<0.000000e+00> : vector<8xf32>
    %85 = vector.multi_reduction <add>, %84, %cst_29 [1] : vector<8x8xf32> to vector<8xf32>
    %86 = vector.shape_cast %85 : vector<8xf32> to vector<8x1xf32>
    %87 = vector.broadcast %86 : vector<8x1xf32> to vector<8x8xf32>
    %88 = arith.divf %84, %87 : vector<8x8xf32>
    %89 = arith.truncf %88 : vector<8x8xf32> to vector<8x8xbf16>
    %90 = arith.truncf %76 : vector<8x8xf32> to vector<8x8xbf16>
    %cst_30 = arith.constant dense<0.000000e+00> : vector<8x8xf32>
    %91 = tpu.matmul %89, %90, %cst_30 {dimension_numbers = #tpu.dot_dimension_numbers<[1], [0], [0], [1], [0, 0, 1, 1], [], []>} : vector<8x8xbf16>, vector<8x8xbf16>, vector<8x8xf32> -> vector<8x8xf32>
    %c0_31 = arith.constant 0 : index
    %c24 = arith.constant 24 : index
    %92 = vector.load %arg16[%c0_31, %c24] : memref<16x32xf32, #tpu.memory_space<vmem>>, vector<8x8xf32>
    tpu.vector_store %arg16[%c0_31, %c24], %91 {strides = array<i32>} : memref<16x32xf32, #tpu.memory_space<vmem>>, vector<8x8xf32>,
    %93 = vector.extract_strided_slice %8 {offsets = [8, 0], sizes = [8, 8], strides = [1, 1]} : vector<16x96xf32> to vector<8x8xf32>
    %cst_32 = arith.constant 0.353553385 : f32
    %94 = vector.broadcast %cst_32 : f32 to vector<8x8xf32>
    %95 = arith.mulf %93, %94 : vector<8x8xf32>
    %96 = vector.extract_strided_slice %8 {offsets = [8, 32], sizes = [8, 8], strides = [1, 1]} : vector<16x96xf32> to vector<8x8xf32>
    %97 = vector.extract_strided_slice %8 {offsets = [8, 64], sizes = [8, 8], strides = [1, 1]} : vector<16x96xf32> to vector<8x8xf32>
    %98 = arith.truncf %95 : vector<8x8xf32> to vector<8x8xbf16>
    %99 = arith.truncf %96 : vector<8x8xf32> to vector<8x8xbf16>
    %cst_33 = arith.constant dense<0.000000e+00> : vector<8x8xf32>
    %100 = tpu.matmul %98, %99, %cst_33 {dimension_numbers = #tpu.dot_dimension_numbers<[1], [1], [0], [0], [0, 0, 1, 0], [], []>} : vector<8x8xbf16>, vector<8x8xbf16>, vector<8x8xf32> -> vector<8x8xf32>
    %cst_34 = arith.constant dense<0xFF800000> : vector<8xf32>
    %101 = vector.multi_reduction <maximumf>, %100, %cst_34 [1] : vector<8x8xf32> to vector<8xf32>
    %102 = vector.shape_cast %101 : vector<8xf32> to vector<8x1xf32>
    %103 = vector.broadcast %102 : vector<8x1xf32> to vector<8x8xf32>
    %104 = arith.subf %100, %103 : vector<8x8xf32>
    %105 = math.exp %104 : vector<8x8xf32>
    %cst_35 = arith.constant dense<0.000000e+00> : vector<8xf32>
    %106 = vector.multi_reduction <add>, %105, %cst_35 [1] : vector<8x8xf32> to vector<8xf32>
    %107 = vector.shape_cast %106 : vector<8xf32> to vector<8x1xf32>
    %108 = vector.broadcast %107 : vector<8x1xf32> to vector<8x8xf32>
    %109 = arith.divf %105, %108 : vector<8x8xf32>
    %110 = arith.truncf %109 : vector<8x8xf32> to vector<8x8xbf16>
    %111 = arith.truncf %97 : vector<8x8xf32> to vector<8x8xbf16>
    %cst_36 = arith.constant dense<0.000000e+00> : vector<8x8xf32>
    %112 = tpu.matmul %110, %111, %cst_36 {dimension_numbers = #tpu.dot_dimension_numbers<[1], [0], [0], [1], [0, 0, 1, 1], [], []>} : vector<8x8xbf16>, vector<8x8xbf16>, vector<8x8xf32> -> vector<8x8xf32>
    %c8_37 = arith.constant 8 : index
    %c0_38 = arith.constant 0 : index
    %113 = vector.load %arg16[%c8_37, %c0_38] : memref<16x32xf32, #tpu.memory_space<vmem>>, vector<8x8xf32>
    tpu.vector_store %arg16[%c8_37, %c0_38], %112 {strides = array<i32>} : memref<16x32xf32, #tpu.memory_space<vmem>>, vector<8x8xf32>,
    %114 = vector.extract_strided_slice %8 {offsets = [8, 8], sizes = [8, 8], strides = [1, 1]} : vector<16x96xf32> to vector<8x8xf32>
    %cst_39 = arith.constant 0.353553385 : f32
    %115 = vector.broadcast %cst_39 : f32 to vector<8x8xf32>
    %116 = arith.mulf %114, %115 : vector<8x8xf32>
    %117 = vector.extract_strided_slice %8 {offsets = [8, 40], sizes = [8, 8], strides = [1, 1]} : vector<16x96xf32> to vector<8x8xf32>
    %118 = vector.extract_strided_slice %8 {offsets = [8, 72], sizes = [8, 8], strides = [1, 1]} : vector<16x96xf32> to vector<8x8xf32>
    %119 = arith.truncf %116 : vector<8x8xf32> to vector<8x8xbf16>
    %120 = arith.truncf %117 : vector<8x8xf32> to vector<8x8xbf16>
    %cst_40 = arith.constant dense<0.000000e+00> : vector<8x8xf32>
    %121 = tpu.matmul %119, %120, %cst_40 {dimension_numbers = #tpu.dot_dimension_numbers<[1], [1], [0], [0], [0, 0, 1, 0], [], []>} : vector<8x8xbf16>, vector<8x8xbf16>, vector<8x8xf32> -> vector<8x8xf32>
    %cst_41 = arith.constant dense<0xFF800000> : vector<8xf32>
    %122 = vector.multi_reduction <maximumf>, %121, %cst_41 [1] : vector<8x8xf32> to vector<8xf32>
    %123 = vector.shape_cast %122 : vector<8xf32> to vector<8x1xf32>
    %124 = vector.broadcast %123 : vector<8x1xf32> to vector<8x8xf32>
    %125 = arith.subf %121, %124 : vector<8x8xf32>
    %126 = math.exp %125 : vector<8x8xf32>
    %cst_42 = arith.constant dense<0.000000e+00> : vector<8xf32>
    %127 = vector.multi_reduction <add>, %126, %cst_42 [1] : vector<8x8xf32> to vector<8xf32>
    %128 = vector.shape_cast %127 : vector<8xf32> to vector<8x1xf32>
    %129 = vector.broadcast %128 : vector<8x1xf32> to vector<8x8xf32>
    %130 = arith.divf %126, %129 : vector<8x8xf32>
    %131 = arith.truncf %130 : vector<8x8xf32> to vector<8x8xbf16>
    %132 = arith.truncf %118 : vector<8x8xf32> to vector<8x8xbf16>
    %cst_43 = arith.constant dense<0.000000e+00> : vector<8x8xf32>
    %133 = tpu.matmul %131, %132, %cst_43 {dimension_numbers = #tpu.dot_dimension_numbers<[1], [0], [0], [1], [0, 0, 1, 1], [], []>} : vector<8x8xbf16>, vector<8x8xbf16>, vector<8x8xf32> -> vector<8x8xf32>
    %c8_44 = arith.constant 8 : index
    %c8_45 = arith.constant 8 : index
    %134 = vector.load %arg16[%c8_44, %c8_45] : memref<16x32xf32, #tpu.memory_space<vmem>>, vector<8x8xf32>
    tpu.vector_store %arg16[%c8_44, %c8_45], %133 {strides = array<i32>} : memref<16x32xf32, #tpu.memory_space<vmem>>, vector<8x8xf32>,
    %135 = vector.extract_strided_slice %8 {offsets = [8, 16], sizes = [8, 8], strides = [1, 1]} : vector<16x96xf32> to vector<8x8xf32>
    %cst_46 = arith.constant 0.353553385 : f32
    %136 = vector.broadcast %cst_46 : f32 to vector<8x8xf32>
    %137 = arith.mulf %135, %136 : vector<8x8xf32>
    %138 = vector.extract_strided_slice %8 {offsets = [8, 48], sizes = [8, 8], strides = [1, 1]} : vector<16x96xf32> to vector<8x8xf32>
    %139 = vector.extract_strided_slice %8 {offsets = [8, 80], sizes = [8, 8], strides = [1, 1]} : vector<16x96xf32> to vector<8x8xf32>
    %140 = arith.truncf %137 : vector<8x8xf32> to vector<8x8xbf16>
    %141 = arith.truncf %138 : vector<8x8xf32> to vector<8x8xbf16>
    %cst_47 = arith.constant dense<0.000000e+00> : vector<8x8xf32>
    %142 = tpu.matmul %140, %141, %cst_47 {dimension_numbers = #tpu.dot_dimension_numbers<[1], [1], [0], [0], [0, 0, 1, 0], [], []>} : vector<8x8xbf16>, vector<8x8xbf16>, vector<8x8xf32> -> vector<8x8xf32>
    %cst_48 = arith.constant dense<0xFF800000> : vector<8xf32>
    %143 = vector.multi_reduction <maximumf>, %142, %cst_48 [1] : vector<8x8xf32> to vector<8xf32>
    %144 = vector.shape_cast %143 : vector<8xf32> to vector<8x1xf32>
    %145 = vector.broadcast %144 : vector<8x1xf32> to vector<8x8xf32>
    %146 = arith.subf %142, %145 : vector<8x8xf32>
    %147 = math.exp %146 : vector<8x8xf32>
    %cst_49 = arith.constant dense<0.000000e+00> : vector<8xf32>
    %148 = vector.multi_reduction <add>, %147, %cst_49 [1] : vector<8x8xf32> to vector<8xf32>
    %149 = vector.shape_cast %148 : vector<8xf32> to vector<8x1xf32>
    %150 = vector.broadcast %149 : vector<8x1xf32> to vector<8x8xf32>
    %151 = arith.divf %147, %150 : vector<8x8xf32>
    %152 = arith.truncf %151 : vector<8x8xf32> to vector<8x8xbf16>
    %153 = arith.truncf %139 : vector<8x8xf32> to vector<8x8xbf16>
    %cst_50 = arith.constant dense<0.000000e+00> : vector<8x8xf32>
    %154 = tpu.matmul %152, %153, %cst_50 {dimension_numbers = #tpu.dot_dimension_numbers<[1], [0], [0], [1], [0, 0, 1, 1], [], []>} : vector<8x8xbf16>, vector<8x8xbf16>, vector<8x8xf32> -> vector<8x8xf32>
    %c8_51 = arith.constant 8 : index
    %c16_52 = arith.constant 16 : index
    %155 = vector.load %arg16[%c8_51, %c16_52] : memref<16x32xf32, #tpu.memory_space<vmem>>, vector<8x8xf32>
    tpu.vector_store %arg16[%c8_51, %c16_52], %154 {strides = array<i32>} : memref<16x32xf32, #tpu.memory_space<vmem>>, vector<8x8xf32>,
    %156 = vector.extract_strided_slice %8 {offsets = [8, 24], sizes = [8, 8], strides = [1, 1]} : vector<16x96xf32> to vector<8x8xf32>
    %cst_53 = arith.constant 0.353553385 : f32
    %157 = vector.broadcast %cst_53 : f32 to vector<8x8xf32>
    %158 = arith.mulf %156, %157 : vector<8x8xf32>
    %159 = vector.extract_strided_slice %8 {offsets = [8, 56], sizes = [8, 8], strides = [1, 1]} : vector<16x96xf32> to vector<8x8xf32>
    %160 = vector.extract_strided_slice %8 {offsets = [8, 88], sizes = [8, 8], strides = [1, 1]} : vector<16x96xf32> to vector<8x8xf32>
    %161 = arith.truncf %158 : vector<8x8xf32> to vector<8x8xbf16>
    %162 = arith.truncf %159 : vector<8x8xf32> to vector<8x8xbf16>
    %cst_54 = arith.constant dense<0.000000e+00> : vector<8x8xf32>
    %163 = tpu.matmul %161, %162, %cst_54 {dimension_numbers = #tpu.dot_dimension_numbers<[1], [1], [0], [0], [0, 0, 1, 0], [], []>} : vector<8x8xbf16>, vector<8x8xbf16>, vector<8x8xf32> -> vector<8x8xf32>
    %cst_55 = arith.constant dense<0xFF800000> : vector<8xf32>
    %164 = vector.multi_reduction <maximumf>, %163, %cst_55 [1] : vector<8x8xf32> to vector<8xf32>
    %165 = vector.shape_cast %164 : vector<8xf32> to vector<8x1xf32>
    %166 = vector.broadcast %165 : vector<8x1xf32> to vector<8x8xf32>
    %167 = arith.subf %163, %166 : vector<8x8xf32>
    %168 = math.exp %167 : vector<8x8xf32>
    %cst_56 = arith.constant dense<0.000000e+00> : vector<8xf32>
    %169 = vector.multi_reduction <add>, %168, %cst_56 [1] : vector<8x8xf32> to vector<8xf32>
    %170 = vector.shape_cast %169 : vector<8xf32> to vector<8x1xf32>
    %171 = vector.broadcast %170 : vector<8x1xf32> to vector<8x8xf32>
    %172 = arith.divf %168, %171 : vector<8x8xf32>
    %173 = arith.truncf %172 : vector<8x8xf32> to vector<8x8xbf16>
    %174 = arith.truncf %160 : vector<8x8xf32> to vector<8x8xbf16>
    %cst_57 = arith.constant dense<0.000000e+00> : vector<8x8xf32>
    %175 = tpu.matmul %173, %174, %cst_57 {dimension_numbers = #tpu.dot_dimension_numbers<[1], [0], [0], [1], [0, 0, 1, 1], [], []>} : vector<8x8xbf16>, vector<8x8xbf16>, vector<8x8xf32> -> vector<8x8xf32>
    %c8_58 = arith.constant 8 : index
    %c24_59 = arith.constant 24 : index
    %176 = vector.load %arg16[%c8_58, %c24_59] : memref<16x32xf32, #tpu.memory_space<vmem>>, vector<8x8xf32>
    tpu.vector_store %arg16[%c8_58, %c24_59], %175 {strides = array<i32>} : memref<16x32xf32, #tpu.memory_space<vmem>>, vector<8x8xf32>,
    %c0_60 = arith.constant 0 : index
    %c0_61 = arith.constant 0 : index
    %177 = vector.load %arg16[%c0_60, %c0_61] : memref<16x32xf32, #tpu.memory_space<vmem>>, vector<16x32xf32>
    %178 = arith.truncf %177 : vector<16x32xf32> to vector<16x32xbf16>
    %c0_62 = arith.constant 0 : index
    %c0_63 = arith.constant 0 : index
    %c0_64 = arith.constant 0 : index
    %179 = vector.load %arg3[%c0_62, %c0_63, %c0_64] : memref<2x32x32xbf16, #tpu.memory_space<vmem>>, vector<1x32x32xbf16>
    %180 = vector.shape_cast %179 : vector<1x32x32xbf16> to vector<32x32xbf16>
    %cst_65 = arith.constant dense<0.000000e+00> : vector<16x32xf32>
    %181 = tpu.matmul %178, %180, %cst_65 {dimension_numbers = #tpu.dot_dimension_numbers<[1], [0], [0], [1], [0, 0, 1, 1], [], []>} : vector<16x32xbf16>, vector<32x32xbf16>, vector<16x32xf32> -> vector<16x32xf32>
    %c0_66 = arith.constant 0 : index
    %c0_67 = arith.constant 0 : index
    %c0_68 = arith.constant 0 : index
    %182 = vector.load %arg4[%c0_66, %c0_67, %c0_68] : memref<2x1x32xf32, #tpu.memory_space<vmem>>, vector<1x1x32xf32>
    %183 = vector.shape_cast %182 : vector<1x1x32xf32> to vector<1x32xf32>
    %184 = vector.broadcast %183 : vector<1x32xf32> to vector<16x32xf32>
    %185 = arith.addf %181, %184 : vector<16x32xf32>
    %186 = arith.addf %185, %0 : vector<16x32xf32>
    %c0_69 = arith.constant 0 : index
    %c0_70 = arith.constant 0 : index
    %c0_71 = arith.constant 0 : index
    %187 = vector.load %arg5[%c0_69, %c0_70, %c0_71] : memref<2x1x32xf32, #tpu.memory_space<vmem>>, vector<1x1x32xf32>
    %188 = vector.shape_cast %187 : vector<1x1x32xf32> to vector<1x32xf32>
    %c0_72 = arith.constant 0 : index
    %c0_73 = arith.constant 0 : index
    %c0_74 = arith.constant 0 : index
    %189 = vector.load %arg6[%c0_72, %c0_73, %c0_74] : memref<2x1x32xf32, #tpu.memory_space<vmem>>, vector<1x1x32xf32>
    %190 = vector.shape_cast %189 : vector<1x1x32xf32> to vector<1x32xf32>
    %cst_75 = arith.constant dense<0.000000e+00> : vector<16xf32>
    %191 = vector.multi_reduction <add>, %186, %cst_75 [1] : vector<16x32xf32> to vector<16xf32>
    %192 = vector.shape_cast %191 : vector<16xf32> to vector<16x1xf32>
    %cst_76 = arith.constant 3.200000e+01 : f32
    %193 = vector.broadcast %cst_76 : f32 to vector<16x1xf32>
    %194 = arith.divf %192, %193 : vector<16x1xf32>
    %195 = vector.broadcast %194 : vector<16x1xf32> to vector<16x32xf32>
    %196 = arith.subf %186, %195 : vector<16x32xf32>
    %197 = vector.broadcast %194 : vector<16x1xf32> to vector<16x32xf32>
    %198 = arith.subf %186, %197 : vector<16x32xf32>
    %199 = arith.mulf %196, %198 : vector<16x32xf32>
    %cst_77 = arith.constant dense<0.000000e+00> : vector<16xf32>
    %200 = vector.multi_reduction <add>, %199, %cst_77 [1] : vector<16x32xf32> to vector<16xf32>
    %201 = vector.shape_cast %200 : vector<16xf32> to vector<16x1xf32>
    %cst_78 = arith.constant 3.200000e+01 : f32
    %202 = vector.broadcast %cst_78 : f32 to vector<16x1xf32>
    %203 = arith.divf %201, %202 : vector<16x1xf32>
    %204 = vector.broadcast %194 : vector<16x1xf32> to vector<16x32xf32>
    %205 = arith.subf %186, %204 : vector<16x32xf32>
    %cst_79 = arith.constant 9.99999974E-6 : f32
    %206 = vector.broadcast %cst_79 : f32 to vector<16x1xf32>
    %207 = arith.addf %203, %206 : vector<16x1xf32>
    %208 = math.rsqrt %207 : vector<16x1xf32>
    %209 = vector.broadcast %208 : vector<16x1xf32> to vector<16x32xf32>
    %210 = arith.mulf %205, %209 : vector<16x32xf32>
    %211 = vector.broadcast %188 : vector<1x32xf32> to vector<16x32xf32>
    %212 = arith.mulf %210, %211 : vector<16x32xf32>
    %213 = vector.broadcast %190 : vector<1x32xf32> to vector<16x32xf32>
    %214 = arith.addf %212, %213 : vector<16x32xf32>
    %215 = arith.truncf %214 : vector<16x32xf32> to vector<16x32xbf16>
    %c0_80 = arith.constant 0 : index
    %c0_81 = arith.constant 0 : index
    %c0_82 = arith.constant 0 : index
    %216 = vector.load %arg7[%c0_80, %c0_81, %c0_82] : memref<2x32x2048xbf16, #tpu.memory_space<vmem>>, vector<1x32x2048xbf16>
    %217 = vector.shape_cast %216 : vector<1x32x2048xbf16> to vector<32x2048xbf16>
    %cst_83 = arith.constant dense<0.000000e+00> : vector<16x2048xf32>
    %218 = tpu.matmul %215, %217, %cst_83 {dimension_numbers = #tpu.dot_dimension_numbers<[1], [0], [0], [1], [0, 0, 1, 1], [], []>} : vector<16x32xbf16>, vector<32x2048xbf16>, vector<16x2048xf32> -> vector<16x2048xf32>
    %c0_84 = arith.constant 0 : index
    %c0_85 = arith.constant 0 : index
    %c0_86 = arith.constant 0 : index
    %219 = vector.load %arg8[%c0_84, %c0_85, %c0_86] : memref<2x1x2048xf32, #tpu.memory_space<vmem>>, vector<1x1x2048xf32>
    %220 = vector.shape_cast %219 : vector<1x1x2048xf32> to vector<1x2048xf32>
    %221 = vector.broadcast %220 : vector<1x2048xf32> to vector<16x2048xf32>
    %222 = arith.addf %218, %221 : vector<16x2048xf32>
    %cst_87 = arith.constant 0.000000e+00 : f32
    %223 = vector.broadcast %cst_87 : f32 to vector<16x2048xf32>
    %224 = arith.maximumf %222, %223 : vector<16x2048xf32>
    %225 = arith.truncf %224 : vector<16x2048xf32> to vector<16x2048xbf16>
    %c0_88 = arith.constant 0 : index
    %c0_89 = arith.constant 0 : index
    %c0_90 = arith.constant 0 : index
    %226 = vector.load %arg9[%c0_88, %c0_89, %c0_90] : memref<2x2048x32xbf16, #tpu.memory_space<vmem>>, vector<1x2048x32xbf16>
    %227 = vector.shape_cast %226 : vector<1x2048x32xbf16> to vector<2048x32xbf16>
    %cst_91 = arith.constant dense<0.000000e+00> : vector<16x32xf32>
    %228 = tpu.matmul %225, %227, %cst_91 {dimension_numbers = #tpu.dot_dimension_numbers<[1], [0], [0], [1], [0, 0, 1, 1], [], []>} : vector<16x2048xbf16>, vector<2048x32xbf16>, vector<16x32xf32> -> vector<16x32xf32>
    %c0_92 = arith.constant 0 : index
    %c0_93 = arith.constant 0 : index
    %c0_94 = arith.constant 0 : index
    %229 = vector.load %arg10[%c0_92, %c0_93, %c0_94] : memref<2x1x32xf32, #tpu.memory_space<vmem>>, vector<1x1x32xf32>
    %230 = vector.shape_cast %229 : vector<1x1x32xf32> to vector<1x32xf32>
    %231 = vector.broadcast %230 : vector<1x32xf32> to vector<16x32xf32>
    %232 = arith.addf %228, %231 : vector<16x32xf32>
    %233 = arith.addf %232, %214 : vector<16x32xf32>
    %c0_95 = arith.constant 0 : index
    %c0_96 = arith.constant 0 : index
    %c0_97 = arith.constant 0 : index
    %234 = vector.load %arg11[%c0_95, %c0_96, %c0_97] : memref<2x1x32xf32, #tpu.memory_space<vmem>>, vector<1x1x32xf32>
    %235 = vector.shape_cast %234 : vector<1x1x32xf32> to vector<1x32xf32>
    %c0_98 = arith.constant 0 : index
    %c0_99 = arith.constant 0 : index
    %c0_100 = arith.constant 0 : index
    %236 = vector.load %arg12[%c0_98, %c0_99, %c0_100] : memref<2x1x32xf32, #tpu.memory_space<vmem>>, vector<1x1x32xf32>
    %237 = vector.shape_cast %236 : vector<1x1x32xf32> to vector<1x32xf32>
    %cst_101 = arith.constant dense<0.000000e+00> : vector<16xf32>
    %238 = vector.multi_reduction <add>, %233, %cst_101 [1] : vector<16x32xf32> to vector<16xf32>
    %239 = vector.shape_cast %238 : vector<16xf32> to vector<16x1xf32>
    %cst_102 = arith.constant 3.200000e+01 : f32
    %240 = vector.broadcast %cst_102 : f32 to vector<16x1xf32>
    %241 = arith.divf %239, %240 : vector<16x1xf32>
    %242 = vector.broadcast %241 : vector<16x1xf32> to vector<16x32xf32>
    %243 = arith.subf %233, %242 : vector<16x32xf32>
    %244 = vector.broadcast %241 : vector<16x1xf32> to vector<16x32xf32>
    %245 = arith.subf %233, %244 : vector<16x32xf32>
    %246 = arith.mulf %243, %245 : vector<16x32xf32>
    %cst_103 = arith.constant dense<0.000000e+00> : vector<16xf32>
    %247 = vector.multi_reduction <add>, %246, %cst_103 [1] : vector<16x32xf32> to vector<16xf32>
    %248 = vector.shape_cast %247 : vector<16xf32> to vector<16x1xf32>
    %cst_104 = arith.constant 3.200000e+01 : f32
    %249 = vector.broadcast %cst_104 : f32 to vector<16x1xf32>
    %250 = arith.divf %248, %249 : vector<16x1xf32>
    %251 = vector.broadcast %241 : vector<16x1xf32> to vector<16x32xf32>
    %252 = arith.subf %233, %251 : vector<16x32xf32>
    %cst_105 = arith.constant 9.99999974E-6 : f32
    %253 = vector.broadcast %cst_105 : f32 to vector<16x1xf32>
    %254 = arith.addf %250, %253 : vector<16x1xf32>
    %255 = math.rsqrt %254 : vector<16x1xf32>
    %256 = vector.broadcast %255 : vector<16x1xf32> to vector<16x32xf32>
    %257 = arith.mulf %252, %256 : vector<16x32xf32>
    %258 = vector.broadcast %235 : vector<1x32xf32> to vector<16x32xf32>
    %259 = arith.mulf %257, %258 : vector<16x32xf32>
    %260 = vector.broadcast %237 : vector<1x32xf32> to vector<16x32xf32>
    %261 = arith.addf %259, %260 : vector<16x32xf32>
    %262 = arith.truncf %261 : vector<16x32xf32> to vector<16x32xbf16>
    %c1 = arith.constant 1 : index
    %c0_106 = arith.constant 0 : index
    %c0_107 = arith.constant 0 : index
    %263 = vector.load %arg1[%c1, %c0_106, %c0_107] : memref<2x32x96xbf16, #tpu.memory_space<vmem>>, vector<1x32x96xbf16>
    %264 = vector.shape_cast %263 : vector<1x32x96xbf16> to vector<32x96xbf16>
    %cst_108 = arith.constant dense<0.000000e+00> : vector<16x96xf32>
    %265 = tpu.matmul %262, %264, %cst_108 {dimension_numbers = #tpu.dot_dimension_numbers<[1], [0], [0], [1], [0, 0, 1, 1], [], []>} : vector<16x32xbf16>, vector<32x96xbf16>, vector<16x96xf32> -> vector<16x96xf32>
    %c1_109 = arith.constant 1 : index
    %c0_110 = arith.constant 0 : index
    %c0_111 = arith.constant 0 : index
    %266 = vector.load %arg2[%c1_109, %c0_110, %c0_111] : memref<2x1x96xf32, #tpu.memory_space<vmem>>, vector<1x1x96xf32>
    %267 = vector.shape_cast %266 : vector<1x1x96xf32> to vector<1x96xf32>
    %268 = vector.broadcast %267 : vector<1x96xf32> to vector<16x96xf32>
    %269 = arith.addf %265, %268 : vector<16x96xf32>
    %270 = vector.extract_strided_slice %269 {offsets = [0, 0], sizes = [8, 8], strides = [1, 1]} : vector<16x96xf32> to vector<8x8xf32>
    %cst_112 = arith.constant 0.353553385 : f32
    %271 = vector.broadcast %cst_112 : f32 to vector<8x8xf32>
    %272 = arith.mulf %270, %271 : vector<8x8xf32>
    %273 = vector.extract_strided_slice %269 {offsets = [0, 32], sizes = [8, 8], strides = [1, 1]} : vector<16x96xf32> to vector<8x8xf32>
    %274 = vector.extract_strided_slice %269 {offsets = [0, 64], sizes = [8, 8], strides = [1, 1]} : vector<16x96xf32> to vector<8x8xf32>
    %275 = arith.truncf %272 : vector<8x8xf32> to vector<8x8xbf16>
    %276 = arith.truncf %273 : vector<8x8xf32> to vector<8x8xbf16>
    %cst_113 = arith.constant dense<0.000000e+00> : vector<8x8xf32>
    %277 = tpu.matmul %275, %276, %cst_113 {dimension_numbers = #tpu.dot_dimension_numbers<[1], [1], [0], [0], [0, 0, 1, 0], [], []>} : vector<8x8xbf16>, vector<8x8xbf16>, vector<8x8xf32> -> vector<8x8xf32>
    %cst_114 = arith.constant dense<0xFF800000> : vector<8xf32>
    %278 = vector.multi_reduction <maximumf>, %277, %cst_114 [1] : vector<8x8xf32> to vector<8xf32>
    %279 = vector.shape_cast %278 : vector<8xf32> to vector<8x1xf32>
    %280 = vector.broadcast %279 : vector<8x1xf32> to vector<8x8xf32>
    %281 = arith.subf %277, %280 : vector<8x8xf32>
    %282 = math.exp %281 : vector<8x8xf32>
    %cst_115 = arith.constant dense<0.000000e+00> : vector<8xf32>
    %283 = vector.multi_reduction <add>, %282, %cst_115 [1] : vector<8x8xf32> to vector<8xf32>
    %284 = vector.shape_cast %283 : vector<8xf32> to vector<8x1xf32>
    %285 = vector.broadcast %284 : vector<8x1xf32> to vector<8x8xf32>
    %286 = arith.divf %282, %285 : vector<8x8xf32>
    %287 = arith.truncf %286 : vector<8x8xf32> to vector<8x8xbf16>
    %288 = arith.truncf %274 : vector<8x8xf32> to vector<8x8xbf16>
    %cst_116 = arith.constant dense<0.000000e+00> : vector<8x8xf32>
    %289 = tpu.matmul %287, %288, %cst_116 {dimension_numbers = #tpu.dot_dimension_numbers<[1], [0], [0], [1], [0, 0, 1, 1], [], []>} : vector<8x8xbf16>, vector<8x8xbf16>, vector<8x8xf32> -> vector<8x8xf32>
    %c0_117 = arith.constant 0 : index
    %c0_118 = arith.constant 0 : index
    %290 = vector.load %arg16[%c0_117, %c0_118] : memref<16x32xf32, #tpu.memory_space<vmem>>, vector<8x8xf32>
    tpu.vector_store %arg16[%c0_117, %c0_118], %289 {strides = array<i32>} : memref<16x32xf32, #tpu.memory_space<vmem>>, vector<8x8xf32>,
    %291 = vector.extract_strided_slice %269 {offsets = [0, 8], sizes = [8, 8], strides = [1, 1]} : vector<16x96xf32> to vector<8x8xf32>
    %cst_119 = arith.constant 0.353553385 : f32
    %292 = vector.broadcast %cst_119 : f32 to vector<8x8xf32>
    %293 = arith.mulf %291, %292 : vector<8x8xf32>
    %294 = vector.extract_strided_slice %269 {offsets = [0, 40], sizes = [8, 8], strides = [1, 1]} : vector<16x96xf32> to vector<8x8xf32>
    %295 = vector.extract_strided_slice %269 {offsets = [0, 72], sizes = [8, 8], strides = [1, 1]} : vector<16x96xf32> to vector<8x8xf32>
    %296 = arith.truncf %293 : vector<8x8xf32> to vector<8x8xbf16>
    %297 = arith.truncf %294 : vector<8x8xf32> to vector<8x8xbf16>
    %cst_120 = arith.constant dense<0.000000e+00> : vector<8x8xf32>
    %298 = tpu.matmul %296, %297, %cst_120 {dimension_numbers = #tpu.dot_dimension_numbers<[1], [1], [0], [0], [0, 0, 1, 0], [], []>} : vector<8x8xbf16>, vector<8x8xbf16>, vector<8x8xf32> -> vector<8x8xf32>
    %cst_121 = arith.constant dense<0xFF800000> : vector<8xf32>
    %299 = vector.multi_reduction <maximumf>, %298, %cst_121 [1] : vector<8x8xf32> to vector<8xf32>
    %300 = vector.shape_cast %299 : vector<8xf32> to vector<8x1xf32>
    %301 = vector.broadcast %300 : vector<8x1xf32> to vector<8x8xf32>
    %302 = arith.subf %298, %301 : vector<8x8xf32>
    %303 = math.exp %302 : vector<8x8xf32>
    %cst_122 = arith.constant dense<0.000000e+00> : vector<8xf32>
    %304 = vector.multi_reduction <add>, %303, %cst_122 [1] : vector<8x8xf32> to vector<8xf32>
    %305 = vector.shape_cast %304 : vector<8xf32> to vector<8x1xf32>
    %306 = vector.broadcast %305 : vector<8x1xf32> to vector<8x8xf32>
    %307 = arith.divf %303, %306 : vector<8x8xf32>
    %308 = arith.truncf %307 : vector<8x8xf32> to vector<8x8xbf16>
    %309 = arith.truncf %295 : vector<8x8xf32> to vector<8x8xbf16>
    %cst_123 = arith.constant dense<0.000000e+00> : vector<8x8xf32>
    %310 = tpu.matmul %308, %309, %cst_123 {dimension_numbers = #tpu.dot_dimension_numbers<[1], [0], [0], [1], [0, 0, 1, 1], [], []>} : vector<8x8xbf16>, vector<8x8xbf16>, vector<8x8xf32> -> vector<8x8xf32>
    %c0_124 = arith.constant 0 : index
    %c8_125 = arith.constant 8 : index
    %311 = vector.load %arg16[%c0_124, %c8_125] : memref<16x32xf32, #tpu.memory_space<vmem>>, vector<8x8xf32>
    tpu.vector_store %arg16[%c0_124, %c8_125], %310 {strides = array<i32>} : memref<16x32xf32, #tpu.memory_space<vmem>>, vector<8x8xf32>,
    %312 = vector.extract_strided_slice %269 {offsets = [0, 16], sizes = [8, 8], strides = [1, 1]} : vector<16x96xf32> to vector<8x8xf32>
    %cst_126 = arith.constant 0.353553385 : f32
    %313 = vector.broadcast %cst_126 : f32 to vector<8x8xf32>
    %314 = arith.mulf %312, %313 : vector<8x8xf32>
    %315 = vector.extract_strided_slice %269 {offsets = [0, 48], sizes = [8, 8], strides = [1, 1]} : vector<16x96xf32> to vector<8x8xf32>
    %316 = vector.extract_strided_slice %269 {offsets = [0, 80], sizes = [8, 8], strides = [1, 1]} : vector<16x96xf32> to vector<8x8xf32>
    %317 = arith.truncf %314 : vector<8x8xf32> to vector<8x8xbf16>
    %318 = arith.truncf %315 : vector<8x8xf32> to vector<8x8xbf16>
    %cst_127 = arith.constant dense<0.000000e+00> : vector<8x8xf32>
    %319 = tpu.matmul %317, %318, %cst_127 {dimension_numbers = #tpu.dot_dimension_numbers<[1], [1], [0], [0], [0, 0, 1, 0], [], []>} : vector<8x8xbf16>, vector<8x8xbf16>, vector<8x8xf32> -> vector<8x8xf32>
    %cst_128 = arith.constant dense<0xFF800000> : vector<8xf32>
    %320 = vector.multi_reduction <maximumf>, %319, %cst_128 [1] : vector<8x8xf32> to vector<8xf32>
    %321 = vector.shape_cast %320 : vector<8xf32> to vector<8x1xf32>
    %322 = vector.broadcast %321 : vector<8x1xf32> to vector<8x8xf32>
    %323 = arith.subf %319, %322 : vector<8x8xf32>
    %324 = math.exp %323 : vector<8x8xf32>
    %cst_129 = arith.constant dense<0.000000e+00> : vector<8xf32>
    %325 = vector.multi_reduction <add>, %324, %cst_129 [1] : vector<8x8xf32> to vector<8xf32>
    %326 = vector.shape_cast %325 : vector<8xf32> to vector<8x1xf32>
    %327 = vector.broadcast %326 : vector<8x1xf32> to vector<8x8xf32>
    %328 = arith.divf %324, %327 : vector<8x8xf32>
    %329 = arith.truncf %328 : vector<8x8xf32> to vector<8x8xbf16>
    %330 = arith.truncf %316 : vector<8x8xf32> to vector<8x8xbf16>
    %cst_130 = arith.constant dense<0.000000e+00> : vector<8x8xf32>
    %331 = tpu.matmul %329, %330, %cst_130 {dimension_numbers = #tpu.dot_dimension_numbers<[1], [0], [0], [1], [0, 0, 1, 1], [], []>} : vector<8x8xbf16>, vector<8x8xbf16>, vector<8x8xf32> -> vector<8x8xf32>
    %c0_131 = arith.constant 0 : index
    %c16_132 = arith.constant 16 : index
    %332 = vector.load %arg16[%c0_131, %c16_132] : memref<16x32xf32, #tpu.memory_space<vmem>>, vector<8x8xf32>
    tpu.vector_store %arg16[%c0_131, %c16_132], %331 {strides = array<i32>} : memref<16x32xf32, #tpu.memory_space<vmem>>, vector<8x8xf32>,
    %333 = vector.extract_strided_slice %269 {offsets = [0, 24], sizes = [8, 8], strides = [1, 1]} : vector<16x96xf32> to vector<8x8xf32>
    %cst_133 = arith.constant 0.353553385 : f32
    %334 = vector.broadcast %cst_133 : f32 to vector<8x8xf32>
    %335 = arith.mulf %333, %334 : vector<8x8xf32>
    %336 = vector.extract_strided_slice %269 {offsets = [0, 56], sizes = [8, 8], strides = [1, 1]} : vector<16x96xf32> to vector<8x8xf32>
    %337 = vector.extract_strided_slice %269 {offsets = [0, 88], sizes = [8, 8], strides = [1, 1]} : vector<16x96xf32> to vector<8x8xf32>
    %338 = arith.truncf %335 : vector<8x8xf32> to vector<8x8xbf16>
    %339 = arith.truncf %336 : vector<8x8xf32> to vector<8x8xbf16>
    %cst_134 = arith.constant dense<0.000000e+00> : vector<8x8xf32>
    %340 = tpu.matmul %338, %339, %cst_134 {dimension_numbers = #tpu.dot_dimension_numbers<[1], [1], [0], [0], [0, 0, 1, 0], [], []>} : vector<8x8xbf16>, vector<8x8xbf16>, vector<8x8xf32> -> vector<8x8xf32>
    %cst_135 = arith.constant dense<0xFF800000> : vector<8xf32>
    %341 = vector.multi_reduction <maximumf>, %340, %cst_135 [1] : vector<8x8xf32> to vector<8xf32>
    %342 = vector.shape_cast %341 : vector<8xf32> to vector<8x1xf32>
    %343 = vector.broadcast %342 : vector<8x1xf32> to vector<8x8xf32>
    %344 = arith.subf %340, %343 : vector<8x8xf32>
    %345 = math.exp %344 : vector<8x8xf32>
    %cst_136 = arith.constant dense<0.000000e+00> : vector<8xf32>
    %346 = vector.multi_reduction <add>, %345, %cst_136 [1] : vector<8x8xf32> to vector<8xf32>
    %347 = vector.shape_cast %346 : vector<8xf32> to vector<8x1xf32>
    %348 = vector.broadcast %347 : vector<8x1xf32> to vector<8x8xf32>
    %349 = arith.divf %345, %348 : vector<8x8xf32>
    %350 = arith.truncf %349 : vector<8x8xf32> to vector<8x8xbf16>
    %351 = arith.truncf %337 : vector<8x8xf32> to vector<8x8xbf16>
    %cst_137 = arith.constant dense<0.000000e+00> : vector<8x8xf32>
    %352 = tpu.matmul %350, %351, %cst_137 {dimension_numbers = #tpu.dot_dimension_numbers<[1], [0], [0], [1], [0, 0, 1, 1], [], []>} : vector<8x8xbf16>, vector<8x8xbf16>, vector<8x8xf32> -> vector<8x8xf32>
    %c0_138 = arith.constant 0 : index
    %c24_139 = arith.constant 24 : index
    %353 = vector.load %arg16[%c0_138, %c24_139] : memref<16x32xf32, #tpu.memory_space<vmem>>, vector<8x8xf32>
    tpu.vector_store %arg16[%c0_138, %c24_139], %352 {strides = array<i32>} : memref<16x32xf32, #tpu.memory_space<vmem>>, vector<8x8xf32>,
    %354 = vector.extract_strided_slice %269 {offsets = [8, 0], sizes = [8, 8], strides = [1, 1]} : vector<16x96xf32> to vector<8x8xf32>
    %cst_140 = arith.constant 0.353553385 : f32
    %355 = vector.broadcast %cst_140 : f32 to vector<8x8xf32>
    %356 = arith.mulf %354, %355 : vector<8x8xf32>
    %357 = vector.extract_strided_slice %269 {offsets = [8, 32], sizes = [8, 8], strides = [1, 1]} : vector<16x96xf32> to vector<8x8xf32>
    %358 = vector.extract_strided_slice %269 {offsets = [8, 64], sizes = [8, 8], strides = [1, 1]} : vector<16x96xf32> to vector<8x8xf32>
    %359 = arith.truncf %356 : vector<8x8xf32> to vector<8x8xbf16>
    %360 = arith.truncf %357 : vector<8x8xf32> to vector<8x8xbf16>
    %cst_141 = arith.constant dense<0.000000e+00> : vector<8x8xf32>
    %361 = tpu.matmul %359, %360, %cst_141 {dimension_numbers = #tpu.dot_dimension_numbers<[1], [1], [0], [0], [0, 0, 1, 0], [], []>} : vector<8x8xbf16>, vector<8x8xbf16>, vector<8x8xf32> -> vector<8x8xf32>
    %cst_142 = arith.constant dense<0xFF800000> : vector<8xf32>
    %362 = vector.multi_reduction <maximumf>, %361, %cst_142 [1] : vector<8x8xf32> to vector<8xf32>
    %363 = vector.shape_cast %362 : vector<8xf32> to vector<8x1xf32>
    %364 = vector.broadcast %363 : vector<8x1xf32> to vector<8x8xf32>
    %365 = arith.subf %361, %364 : vector<8x8xf32>
    %366 = math.exp %365 : vector<8x8xf32>
    %cst_143 = arith.constant dense<0.000000e+00> : vector<8xf32>
    %367 = vector.multi_reduction <add>, %366, %cst_143 [1] : vector<8x8xf32> to vector<8xf32>
    %368 = vector.shape_cast %367 : vector<8xf32> to vector<8x1xf32>
    %369 = vector.broadcast %368 : vector<8x1xf32> to vector<8x8xf32>
    %370 = arith.divf %366, %369 : vector<8x8xf32>
    %371 = arith.truncf %370 : vector<8x8xf32> to vector<8x8xbf16>
    %372 = arith.truncf %358 : vector<8x8xf32> to vector<8x8xbf16>
    %cst_144 = arith.constant dense<0.000000e+00> : vector<8x8xf32>
    %373 = tpu.matmul %371, %372, %cst_144 {dimension_numbers = #tpu.dot_dimension_numbers<[1], [0], [0], [1], [0, 0, 1, 1], [], []>} : vector<8x8xbf16>, vector<8x8xbf16>, vector<8x8xf32> -> vector<8x8xf32>
    %c8_145 = arith.constant 8 : index
    %c0_146 = arith.constant 0 : index
    %374 = vector.load %arg16[%c8_145, %c0_146] : memref<16x32xf32, #tpu.memory_space<vmem>>, vector<8x8xf32>
    tpu.vector_store %arg16[%c8_145, %c0_146], %373 {strides = array<i32>} : memref<16x32xf32, #tpu.memory_space<vmem>>, vector<8x8xf32>,
    %375 = vector.extract_strided_slice %269 {offsets = [8, 8], sizes = [8, 8], strides = [1, 1]} : vector<16x96xf32> to vector<8x8xf32>
    %cst_147 = arith.constant 0.353553385 : f32
    %376 = vector.broadcast %cst_147 : f32 to vector<8x8xf32>
    %377 = arith.mulf %375, %376 : vector<8x8xf32>
    %378 = vector.extract_strided_slice %269 {offsets = [8, 40], sizes = [8, 8], strides = [1, 1]} : vector<16x96xf32> to vector<8x8xf32>
    %379 = vector.extract_strided_slice %269 {offsets = [8, 72], sizes = [8, 8], strides = [1, 1]} : vector<16x96xf32> to vector<8x8xf32>
    %380 = arith.truncf %377 : vector<8x8xf32> to vector<8x8xbf16>
    %381 = arith.truncf %378 : vector<8x8xf32> to vector<8x8xbf16>
    %cst_148 = arith.constant dense<0.000000e+00> : vector<8x8xf32>
    %382 = tpu.matmul %380, %381, %cst_148 {dimension_numbers = #tpu.dot_dimension_numbers<[1], [1], [0], [0], [0, 0, 1, 0], [], []>} : vector<8x8xbf16>, vector<8x8xbf16>, vector<8x8xf32> -> vector<8x8xf32>
    %cst_149 = arith.constant dense<0xFF800000> : vector<8xf32>
    %383 = vector.multi_reduction <maximumf>, %382, %cst_149 [1] : vector<8x8xf32> to vector<8xf32>
    %384 = vector.shape_cast %383 : vector<8xf32> to vector<8x1xf32>
    %385 = vector.broadcast %384 : vector<8x1xf32> to vector<8x8xf32>
    %386 = arith.subf %382, %385 : vector<8x8xf32>
    %387 = math.exp %386 : vector<8x8xf32>
    %cst_150 = arith.constant dense<0.000000e+00> : vector<8xf32>
    %388 = vector.multi_reduction <add>, %387, %cst_150 [1] : vector<8x8xf32> to vector<8xf32>
    %389 = vector.shape_cast %388 : vector<8xf32> to vector<8x1xf32>
    %390 = vector.broadcast %389 : vector<8x1xf32> to vector<8x8xf32>
    %391 = arith.divf %387, %390 : vector<8x8xf32>
    %392 = arith.truncf %391 : vector<8x8xf32> to vector<8x8xbf16>
    %393 = arith.truncf %379 : vector<8x8xf32> to vector<8x8xbf16>
    %cst_151 = arith.constant dense<0.000000e+00> : vector<8x8xf32>
    %394 = tpu.matmul %392, %393, %cst_151 {dimension_numbers = #tpu.dot_dimension_numbers<[1], [0], [0], [1], [0, 0, 1, 1], [], []>} : vector<8x8xbf16>, vector<8x8xbf16>, vector<8x8xf32> -> vector<8x8xf32>
    %c8_152 = arith.constant 8 : index
    %c8_153 = arith.constant 8 : index
    %395 = vector.load %arg16[%c8_152, %c8_153] : memref<16x32xf32, #tpu.memory_space<vmem>>, vector<8x8xf32>
    tpu.vector_store %arg16[%c8_152, %c8_153], %394 {strides = array<i32>} : memref<16x32xf32, #tpu.memory_space<vmem>>, vector<8x8xf32>,
    %396 = vector.extract_strided_slice %269 {offsets = [8, 16], sizes = [8, 8], strides = [1, 1]} : vector<16x96xf32> to vector<8x8xf32>
    %cst_154 = arith.constant 0.353553385 : f32
    %397 = vector.broadcast %cst_154 : f32 to vector<8x8xf32>
    %398 = arith.mulf %396, %397 : vector<8x8xf32>
    %399 = vector.extract_strided_slice %269 {offsets = [8, 48], sizes = [8, 8], strides = [1, 1]} : vector<16x96xf32> to vector<8x8xf32>
    %400 = vector.extract_strided_slice %269 {offsets = [8, 80], sizes = [8, 8], strides = [1, 1]} : vector<16x96xf32> to vector<8x8xf32>
    %401 = arith.truncf %398 : vector<8x8xf32> to vector<8x8xbf16>
    %402 = arith.truncf %399 : vector<8x8xf32> to vector<8x8xbf16>
    %cst_155 = arith.constant dense<0.000000e+00> : vector<8x8xf32>
    %403 = tpu.matmul %401, %402, %cst_155 {dimension_numbers = #tpu.dot_dimension_numbers<[1], [1], [0], [0], [0, 0, 1, 0], [], []>} : vector<8x8xbf16>, vector<8x8xbf16>, vector<8x8xf32> -> vector<8x8xf32>
    %cst_156 = arith.constant dense<0xFF800000> : vector<8xf32>
    %404 = vector.multi_reduction <maximumf>, %403, %cst_156 [1] : vector<8x8xf32> to vector<8xf32>
    %405 = vector.shape_cast %404 : vector<8xf32> to vector<8x1xf32>
    %406 = vector.broadcast %405 : vector<8x1xf32> to vector<8x8xf32>
    %407 = arith.subf %403, %406 : vector<8x8xf32>
    %408 = math.exp %407 : vector<8x8xf32>
    %cst_157 = arith.constant dense<0.000000e+00> : vector<8xf32>
    %409 = vector.multi_reduction <add>, %408, %cst_157 [1] : vector<8x8xf32> to vector<8xf32>
    %410 = vector.shape_cast %409 : vector<8xf32> to vector<8x1xf32>
    %411 = vector.broadcast %410 : vector<8x1xf32> to vector<8x8xf32>
    %412 = arith.divf %408, %411 : vector<8x8xf32>
    %413 = arith.truncf %412 : vector<8x8xf32> to vector<8x8xbf16>
    %414 = arith.truncf %400 : vector<8x8xf32> to vector<8x8xbf16>
    %cst_158 = arith.constant dense<0.000000e+00> : vector<8x8xf32>
    %415 = tpu.matmul %413, %414, %cst_158 {dimension_numbers = #tpu.dot_dimension_numbers<[1], [0], [0], [1], [0, 0, 1, 1], [], []>} : vector<8x8xbf16>, vector<8x8xbf16>, vector<8x8xf32> -> vector<8x8xf32>
    %c8_159 = arith.constant 8 : index
    %c16_160 = arith.constant 16 : index
    %416 = vector.load %arg16[%c8_159, %c16_160] : memref<16x32xf32, #tpu.memory_space<vmem>>, vector<8x8xf32>
    tpu.vector_store %arg16[%c8_159, %c16_160], %415 {strides = array<i32>} : memref<16x32xf32, #tpu.memory_space<vmem>>, vector<8x8xf32>,
    %417 = vector.extract_strided_slice %269 {offsets = [8, 24], sizes = [8, 8], strides = [1, 1]} : vector<16x96xf32> to vector<8x8xf32>
    %cst_161 = arith.constant 0.353553385 : f32
    %418 = vector.broadcast %cst_161 : f32 to vector<8x8xf32>
    %419 = arith.mulf %417, %418 : vector<8x8xf32>
    %420 = vector.extract_strided_slice %269 {offsets = [8, 56], sizes = [8, 8], strides = [1, 1]} : vector<16x96xf32> to vector<8x8xf32>
    %421 = vector.extract_strided_slice %269 {offsets = [8, 88], sizes = [8, 8], strides = [1, 1]} : vector<16x96xf32> to vector<8x8xf32>
    %422 = arith.truncf %419 : vector<8x8xf32> to vector<8x8xbf16>
    %423 = arith.truncf %420 : vector<8x8xf32> to vector<8x8xbf16>
    %cst_162 = arith.constant dense<0.000000e+00> : vector<8x8xf32>
    %424 = tpu.matmul %422, %423, %cst_162 {dimension_numbers = #tpu.dot_dimension_numbers<[1], [1], [0], [0], [0, 0, 1, 0], [], []>} : vector<8x8xbf16>, vector<8x8xbf16>, vector<8x8xf32> -> vector<8x8xf32>
    %cst_163 = arith.constant dense<0xFF800000> : vector<8xf32>
    %425 = vector.multi_reduction <maximumf>, %424, %cst_163 [1] : vector<8x8xf32> to vector<8xf32>
    %426 = vector.shape_cast %425 : vector<8xf32> to vector<8x1xf32>
    %427 = vector.broadcast %426 : vector<8x1xf32> to vector<8x8xf32>
    %428 = arith.subf %424, %427 : vector<8x8xf32>
    %429 = math.exp %428 : vector<8x8xf32>
    %cst_164 = arith.constant dense<0.000000e+00> : vector<8xf32>
    %430 = vector.multi_reduction <add>, %429, %cst_164 [1] : vector<8x8xf32> to vector<8xf32>
    %431 = vector.shape_cast %430 : vector<8xf32> to vector<8x1xf32>
    %432 = vector.broadcast %431 : vector<8x1xf32> to vector<8x8xf32>
    %433 = arith.divf %429, %432 : vector<8x8xf32>
    %434 = arith.truncf %433 : vector<8x8xf32> to vector<8x8xbf16>
    %435 = arith.truncf %421 : vector<8x8xf32> to vector<8x8xbf16>
    %cst_165 = arith.constant dense<0.000000e+00> : vector<8x8xf32>
    %436 = tpu.matmul %434, %435, %cst_165 {dimension_numbers = #tpu.dot_dimension_numbers<[1], [0], [0], [1], [0, 0, 1, 1], [], []>} : vector<8x8xbf16>, vector<8x8xbf16>, vector<8x8xf32> -> vector<8x8xf32>
    %c8_166 = arith.constant 8 : index
    %c24_167 = arith.constant 24 : index
    %437 = vector.load %arg16[%c8_166, %c24_167] : memref<16x32xf32, #tpu.memory_space<vmem>>, vector<8x8xf32>
    tpu.vector_store %arg16[%c8_166, %c24_167], %436 {strides = array<i32>} : memref<16x32xf32, #tpu.memory_space<vmem>>, vector<8x8xf32>,
    %c0_168 = arith.constant 0 : index
    %c0_169 = arith.constant 0 : index
    %438 = vector.load %arg16[%c0_168, %c0_169] : memref<16x32xf32, #tpu.memory_space<vmem>>, vector<16x32xf32>
    %439 = arith.truncf %438 : vector<16x32xf32> to vector<16x32xbf16>
    %c1_170 = arith.constant 1 : index
    %c0_171 = arith.constant 0 : index
    %c0_172 = arith.constant 0 : index
    %440 = vector.load %arg3[%c1_170, %c0_171, %c0_172] : memref<2x32x32xbf16, #tpu.memory_space<vmem>>, vector<1x32x32xbf16>
    %441 = vector.shape_cast %440 : vector<1x32x32xbf16> to vector<32x32xbf16>
    %cst_173 = arith.constant dense<0.000000e+00> : vector<16x32xf32>
    %442 = tpu.matmul %439, %441, %cst_173 {dimension_numbers = #tpu.dot_dimension_numbers<[1], [0], [0], [1], [0, 0, 1, 1], [], []>} : vector<16x32xbf16>, vector<32x32xbf16>, vector<16x32xf32> -> vector<16x32xf32>
    %c1_174 = arith.constant 1 : index
    %c0_175 = arith.constant 0 : index
    %c0_176 = arith.constant 0 : index
    %443 = vector.load %arg4[%c1_174, %c0_175, %c0_176] : memref<2x1x32xf32, #tpu.memory_space<vmem>>, vector<1x1x32xf32>
    %444 = vector.shape_cast %443 : vector<1x1x32xf32> to vector<1x32xf32>
    %445 = vector.broadcast %444 : vector<1x32xf32> to vector<16x32xf32>
    %446 = arith.addf %442, %445 : vector<16x32xf32>
    %447 = arith.addf %446, %261 : vector<16x32xf32>
    %c1_177 = arith.constant 1 : index
    %c0_178 = arith.constant 0 : index
    %c0_179 = arith.constant 0 : index
    %448 = vector.load %arg5[%c1_177, %c0_178, %c0_179] : memref<2x1x32xf32, #tpu.memory_space<vmem>>, vector<1x1x32xf32>
    %449 = vector.shape_cast %448 : vector<1x1x32xf32> to vector<1x32xf32>
    %c1_180 = arith.constant 1 : index
    %c0_181 = arith.constant 0 : index
    %c0_182 = arith.constant 0 : index
    %450 = vector.load %arg6[%c1_180, %c0_181, %c0_182] : memref<2x1x32xf32, #tpu.memory_space<vmem>>, vector<1x1x32xf32>
    %451 = vector.shape_cast %450 : vector<1x1x32xf32> to vector<1x32xf32>
    %cst_183 = arith.constant dense<0.000000e+00> : vector<16xf32>
    %452 = vector.multi_reduction <add>, %447, %cst_183 [1] : vector<16x32xf32> to vector<16xf32>
    %453 = vector.shape_cast %452 : vector<16xf32> to vector<16x1xf32>
    %cst_184 = arith.constant 3.200000e+01 : f32
    %454 = vector.broadcast %cst_184 : f32 to vector<16x1xf32>
    %455 = arith.divf %453, %454 : vector<16x1xf32>
    %456 = vector.broadcast %455 : vector<16x1xf32> to vector<16x32xf32>
    %457 = arith.subf %447, %456 : vector<16x32xf32>
    %458 = vector.broadcast %455 : vector<16x1xf32> to vector<16x32xf32>
    %459 = arith.subf %447, %458 : vector<16x32xf32>
    %460 = arith.mulf %457, %459 : vector<16x32xf32>
    %cst_185 = arith.constant dense<0.000000e+00> : vector<16xf32>
    %461 = vector.multi_reduction <add>, %460, %cst_185 [1] : vector<16x32xf32> to vector<16xf32>
    %462 = vector.shape_cast %461 : vector<16xf32> to vector<16x1xf32>
    %cst_186 = arith.constant 3.200000e+01 : f32
    %463 = vector.broadcast %cst_186 : f32 to vector<16x1xf32>
    %464 = arith.divf %462, %463 : vector<16x1xf32>
    %465 = vector.broadcast %455 : vector<16x1xf32> to vector<16x32xf32>
    %466 = arith.subf %447, %465 : vector<16x32xf32>
    %cst_187 = arith.constant 9.99999974E-6 : f32
    %467 = vector.broadcast %cst_187 : f32 to vector<16x1xf32>
    %468 = arith.addf %464, %467 : vector<16x1xf32>
    %469 = math.rsqrt %468 : vector<16x1xf32>
    %470 = vector.broadcast %469 : vector<16x1xf32> to vector<16x32xf32>
    %471 = arith.mulf %466, %470 : vector<16x32xf32>
    %472 = vector.broadcast %449 : vector<1x32xf32> to vector<16x32xf32>
    %473 = arith.mulf %471, %472 : vector<16x32xf32>
    %474 = vector.broadcast %451 : vector<1x32xf32> to vector<16x32xf32>
    %475 = arith.addf %473, %474 : vector<16x32xf32>
    %476 = arith.truncf %475 : vector<16x32xf32> to vector<16x32xbf16>
    %c1_188 = arith.constant 1 : index
    %c0_189 = arith.constant 0 : index
    %c0_190 = arith.constant 0 : index
    %477 = vector.load %arg7[%c1_188, %c0_189, %c0_190] : memref<2x32x2048xbf16, #tpu.memory_space<vmem>>, vector<1x32x2048xbf16>
    %478 = vector.shape_cast %477 : vector<1x32x2048xbf16> to vector<32x2048xbf16>
    %cst_191 = arith.constant dense<0.000000e+00> : vector<16x2048xf32>
    %479 = tpu.matmul %476, %478, %cst_191 {dimension_numbers = #tpu.dot_dimension_numbers<[1], [0], [0], [1], [0, 0, 1, 1], [], []>} : vector<16x32xbf16>, vector<32x2048xbf16>, vector<16x2048xf32> -> vector<16x2048xf32>
    %c1_192 = arith.constant 1 : index
    %c0_193 = arith.constant 0 : index
    %c0_194 = arith.constant 0 : index
    %480 = vector.load %arg8[%c1_192, %c0_193, %c0_194] : memref<2x1x2048xf32, #tpu.memory_space<vmem>>, vector<1x1x2048xf32>
    %481 = vector.shape_cast %480 : vector<1x1x2048xf32> to vector<1x2048xf32>
    %482 = vector.broadcast %481 : vector<1x2048xf32> to vector<16x2048xf32>
    %483 = arith.addf %479, %482 : vector<16x2048xf32>
    %cst_195 = arith.constant 0.000000e+00 : f32
    %484 = vector.broadcast %cst_195 : f32 to vector<16x2048xf32>
    %485 = arith.maximumf %483, %484 : vector<16x2048xf32>
    %486 = arith.truncf %485 : vector<16x2048xf32> to vector<16x2048xbf16>
    %c1_196 = arith.constant 1 : index
    %c0_197 = arith.constant 0 : index
    %c0_198 = arith.constant 0 : index
    %487 = vector.load %arg9[%c1_196, %c0_197, %c0_198] : memref<2x2048x32xbf16, #tpu.memory_space<vmem>>, vector<1x2048x32xbf16>
    %488 = vector.shape_cast %487 : vector<1x2048x32xbf16> to vector<2048x32xbf16>
    %cst_199 = arith.constant dense<0.000000e+00> : vector<16x32xf32>
    %489 = tpu.matmul %486, %488, %cst_199 {dimension_numbers = #tpu.dot_dimension_numbers<[1], [0], [0], [1], [0, 0, 1, 1], [], []>} : vector<16x2048xbf16>, vector<2048x32xbf16>, vector<16x32xf32> -> vector<16x32xf32>
    %c1_200 = arith.constant 1 : index
    %c0_201 = arith.constant 0 : index
    %c0_202 = arith.constant 0 : index
    %490 = vector.load %arg10[%c1_200, %c0_201, %c0_202] : memref<2x1x32xf32, #tpu.memory_space<vmem>>, vector<1x1x32xf32>
    %491 = vector.shape_cast %490 : vector<1x1x32xf32> to vector<1x32xf32>
    %492 = vector.broadcast %491 : vector<1x32xf32> to vector<16x32xf32>
    %493 = arith.addf %489, %492 : vector<16x32xf32>
    %494 = arith.addf %493, %475 : vector<16x32xf32>
    %c1_203 = arith.constant 1 : index
    %c0_204 = arith.constant 0 : index
    %c0_205 = arith.constant 0 : index
    %495 = vector.load %arg11[%c1_203, %c0_204, %c0_205] : memref<2x1x32xf32, #tpu.memory_space<vmem>>, vector<1x1x32xf32>
    %496 = vector.shape_cast %495 : vector<1x1x32xf32> to vector<1x32xf32>
    %c1_206 = arith.constant 1 : index
    %c0_207 = arith.constant 0 : index
    %c0_208 = arith.constant 0 : index
    %497 = vector.load %arg12[%c1_206, %c0_207, %c0_208] : memref<2x1x32xf32, #tpu.memory_space<vmem>>, vector<1x1x32xf32>
    %498 = vector.shape_cast %497 : vector<1x1x32xf32> to vector<1x32xf32>
    %cst_209 = arith.constant dense<0.000000e+00> : vector<16xf32>
    %499 = vector.multi_reduction <add>, %494, %cst_209 [1] : vector<16x32xf32> to vector<16xf32>
    %500 = vector.shape_cast %499 : vector<16xf32> to vector<16x1xf32>
    %cst_210 = arith.constant 3.200000e+01 : f32
    %501 = vector.broadcast %cst_210 : f32 to vector<16x1xf32>
    %502 = arith.divf %500, %501 : vector<16x1xf32>
    %503 = vector.broadcast %502 : vector<16x1xf32> to vector<16x32xf32>
    %504 = arith.subf %494, %503 : vector<16x32xf32>
    %505 = vector.broadcast %502 : vector<16x1xf32> to vector<16x32xf32>
    %506 = arith.subf %494, %505 : vector<16x32xf32>
    %507 = arith.mulf %504, %506 : vector<16x32xf32>
    %cst_211 = arith.constant dense<0.000000e+00> : vector<16xf32>
    %508 = vector.multi_reduction <add>, %507, %cst_211 [1] : vector<16x32xf32> to vector<16xf32>
    %509 = vector.shape_cast %508 : vector<16xf32> to vector<16x1xf32>
    %cst_212 = arith.constant 3.200000e+01 : f32
    %510 = vector.broadcast %cst_212 : f32 to vector<16x1xf32>
    %511 = arith.divf %509, %510 : vector<16x1xf32>
    %512 = vector.broadcast %502 : vector<16x1xf32> to vector<16x32xf32>
    %513 = arith.subf %494, %512 : vector<16x32xf32>
    %cst_213 = arith.constant 9.99999974E-6 : f32
    %514 = vector.broadcast %cst_213 : f32 to vector<16x1xf32>
    %515 = arith.addf %511, %514 : vector<16x1xf32>
    %516 = math.rsqrt %515 : vector<16x1xf32>
    %517 = vector.broadcast %516 : vector<16x1xf32> to vector<16x32xf32>
    %518 = arith.mulf %513, %517 : vector<16x32xf32>
    %519 = vector.broadcast %496 : vector<1x32xf32> to vector<16x32xf32>
    %520 = arith.mulf %518, %519 : vector<16x32xf32>
    %521 = vector.broadcast %498 : vector<1x32xf32> to vector<16x32xf32>
    %522 = arith.addf %520, %521 : vector<16x32xf32>
    %523 = vector.extract_strided_slice %522 {offsets = [0, 0], sizes = [8, 32], strides = [1, 1]} : vector<16x32xf32> to vector<8x32xf32>
    %524 = vector.extract_strided_slice %522 {offsets = [8, 0], sizes = [8, 32], strides = [1, 1]} : vector<16x32xf32> to vector<8x32xf32>
    %525 = arith.addf %523, %524 : vector<8x32xf32>
    %cst_214 = arith.constant 5.000000e-01 : f32
    %526 = vector.broadcast %cst_214 : f32 to vector<8x32xf32>
    %527 = arith.mulf %525, %526 : vector<8x32xf32>
    %528 = arith.truncf %527 : vector<8x32xf32> to vector<8x32xbf16>
    %c0_215 = arith.constant 0 : index
    %c0_216 = arith.constant 0 : index
    %529 = vector.load %arg13[%c0_215, %c0_216] : memref<32x128xbf16, #tpu.memory_space<vmem>>, vector<32x128xbf16>
    %cst_217 = arith.constant dense<0.000000e+00> : vector<8x128xf32>
    %530 = tpu.matmul %528, %529, %cst_217 {dimension_numbers = #tpu.dot_dimension_numbers<[1], [0], [0], [1], [0, 0, 1, 1], [], []>} : vector<8x32xbf16>, vector<32x128xbf16>, vector<8x128xf32> -> vector<8x128xf32>
    %c0_218 = arith.constant 0 : index
    %c0_219 = arith.constant 0 : index
    %531 = vector.load %arg14[%c0_218, %c0_219] : memref<1x128xf32, #tpu.memory_space<vmem>>, vector<1x128xf32>
    %532 = vector.broadcast %531 : vector<1x128xf32> to vector<8x128xf32>
    %533 = arith.addf %530, %532 : vector<8x128xf32>
    %c0_220 = arith.constant 0 : index
    %c0_221 = arith.constant 0 : index
    %534 = vector.load %arg15[%c0_220, %c0_221] : memref<8x128xf32, #tpu.memory_space<vmem>>, vector<8x128xf32>
    tpu.vector_store %arg15[%c0_220, %c0_221], %533 {strides = array<i32>} : memref<8x128xf32, #tpu.memory_space<vmem>>, vector<8x128xf32>,
    return
  }
}

</mosaic_0001>

<llo_original>
// kernel: transformer_model_forward.1
$region0: #{transformer_model_forward.1}
  #allocation0 [shape = 'u32[]', space=smem, size = 0x4, offset = 0x4, fixed_abs, tag = 'smem constant byte address 0x4 - core index']
  #allocation1 [shape = 'u32[144,128]{1,0:T(1,128)}', space=vmem, size = 0x12000, scoped, tag = 'internal scratch']
  #allocation2 [shape = 'f32[16,32]{1,0:T(8,128)}', space=vmem, size = 0x2000, scoped, tag = 'scratch operand']
  %s0 = inlined_call_operand.vmem [shape: f32[16,32], index: 0, kind: input, shape index: {}]
  %s1 = inlined_call_operand.vmem [shape: bf16[2,32,96], index: 1, kind: input, shape index: {}]
  %s2 = inlined_call_operand.vmem [shape: f32[2,1,96], index: 2, kind: input, shape index: {}]
  %s3 = inlined_call_operand.vmem [shape: bf16[2,32,32], index: 3, kind: input, shape index: {}]
  %s4 = inlined_call_operand.vmem [shape: f32[2,1,32], index: 4, kind: input, shape index: {}]
  %s5 = inlined_call_operand.vmem [shape: f32[2,1,32], index: 5, kind: input, shape index: {}]
  %s6 = inlined_call_operand.vmem [shape: f32[2,1,32], index: 6, kind: input, shape index: {}]
  %s7 = inlined_call_operand.vmem [shape: bf16[2,32,2048], index: 7, kind: input, shape index: {}]
  %s8 = inlined_call_operand.vmem [shape: f32[2,1,2048], index: 8, kind: input, shape index: {}]
  %s9 = inlined_call_operand.vmem [shape: bf16[2,2048,32], index: 9, kind: input, shape index: {}]
  %s10 = inlined_call_operand.vmem [shape: f32[2,1,32], index: 10, kind: input, shape index: {}]
  %s11 = inlined_call_operand.vmem [shape: f32[2,1,32], index: 11, kind: input, shape index: {}]
  %s12 = inlined_call_operand.vmem [shape: f32[2,1,32], index: 12, kind: input, shape index: {}]
  %s13 = inlined_call_operand.vmem [shape: bf16[32,128], index: 13, kind: input, shape index: {}]
  %s14 = inlined_call_operand.vmem [shape: f32[1,128], index: 14, kind: input, shape index: {}]
  %s15 = inlined_call_operand.hbm [shape: f32[8,128], index: 15, kind: output, shape index: {}]
  %s16 = sld [smem:[#allocation0]]
  $region70: #{transformer_model_forward.1} parent=0
    _
  %s18 = ssub.s32 1, %s16
  %s19 = scalar_select 0, %s18, %s16
  $region1: #{transformer_model_forward.1} parent=0
    #allocation3 [shape = 'u8[4096]{0}', space=vmem, size = 0x1000, scoped, tag = 'output window, operand 0, single buffered']
    #allocation4 [shape = 's32[1]{0}', space=sflag, size = 0x4, scoped, tag = 'scoped memory for transformer_model_forward.1']
    %20 = vsyncpa [#allocation4], 0
    // Predicated region
    $region2: #{transformer_model_forward.1} parent=1 // pred_check
      _
    $region3: #{transformer_model_forward.1} parent=1 // pred_check_branch
      %22 = sbr.rel (0) target = $region5
    $region4: #{transformer_model_forward.1} parent=1 // pred_region
      _
    $region5: #{transformer_model_forward.1} parent=1 // pred_fallthru
      _
    // Predicated region
    $region6: #{transformer_model_forward.1} parent=1 // pred_check
      _
    $region7: #{transformer_model_forward.1} parent=1 // pred_check_branch
      %24 = sbr.rel (0) target = $region9
    $region8: #{transformer_model_forward.1} parent=1 // pred_region
      _
    $region9: #{transformer_model_forward.1} parent=1 // pred_fallthru
      _
    // Predicated region
    $region10: #{transformer_model_forward.1} parent=1 // pred_check
      _
    $region11: #{transformer_model_forward.1} parent=1 // pred_check_branch
      %26 = sbr.rel (0) target = $region13
    $region12: #{transformer_model_forward.1} parent=1 // pred_region
      _
    $region13: #{transformer_model_forward.1} parent=1 // pred_fallthru
      _
    // Predicated region
    $region14: #{transformer_model_forward.1} parent=1 // pred_check
      _
    $region15: #{transformer_model_forward.1} parent=1 // pred_check_branch
      %28 = sbr.rel (0) target = $region17
    $region16: #{transformer_model_forward.1} parent=1 // pred_region
      _
    $region17: #{transformer_model_forward.1} parent=1 // pred_fallthru
      _
    // Predicated region
    $region18: #{transformer_model_forward.1} parent=1 // pred_check
      _
    $region19: #{transformer_model_forward.1} parent=1 // pred_check_branch
      %30 = sbr.rel (0) target = $region21
    $region20: #{transformer_model_forward.1} parent=1 // pred_region
      _
    $region21: #{transformer_model_forward.1} parent=1 // pred_fallthru
      _
    // Predicated region
    $region22: #{transformer_model_forward.1} parent=1 // pred_check
      _
    $region23: #{transformer_model_forward.1} parent=1 // pred_check_branch
      %32 = sbr.rel (0) target = $region25
    $region24: #{transformer_model_forward.1} parent=1 // pred_region
      _
    $region25: #{transformer_model_forward.1} parent=1 // pred_fallthru
      _
    // Predicated region
    $region26: #{transformer_model_forward.1} parent=1 // pred_check
      _
    $region27: #{transformer_model_forward.1} parent=1 // pred_check_branch
      %34 = sbr.rel (0) target = $region29
    $region28: #{transformer_model_forward.1} parent=1 // pred_region
      _
    $region29: #{transformer_model_forward.1} parent=1 // pred_fallthru
      _
    // Predicated region
    $region30: #{transformer_model_forward.1} parent=1 // pred_check
      _
    $region31: #{transformer_model_forward.1} parent=1 // pred_check_branch
      %36 = sbr.rel (0) target = $region33
    $region32: #{transformer_model_forward.1} parent=1 // pred_region
      _
    $region33: #{transformer_model_forward.1} parent=1 // pred_fallthru
      _
    // Predicated region
    $region34: #{transformer_model_forward.1} parent=1 // pred_check
      _
    $region35: #{transformer_model_forward.1} parent=1 // pred_check_branch
      %38 = sbr.rel (0) target = $region37
    $region36: #{transformer_model_forward.1} parent=1 // pred_region
      _
    $region37: #{transformer_model_forward.1} parent=1 // pred_fallthru
      _
    // Predicated region
    $region38: #{transformer_model_forward.1} parent=1 // pred_check
      _
    $region39: #{transformer_model_forward.1} parent=1 // pred_check_branch
      %40 = sbr.rel (0) target = $region41
    $region40: #{transformer_model_forward.1} parent=1 // pred_region
      _
    $region41: #{transformer_model_forward.1} parent=1 // pred_fallthru
      _
    // Predicated region
    $region42: #{transformer_model_forward.1} parent=1 // pred_check
      _
    $region43: #{transformer_model_forward.1} parent=1 // pred_check_branch
      %42 = sbr.rel (0) target = $region45
    $region44: #{transformer_model_forward.1} parent=1 // pred_region
      _
    $region45: #{transformer_model_forward.1} parent=1 // pred_fallthru
      _
    // Predicated region
    $region46: #{transformer_model_forward.1} parent=1 // pred_check
      _
    $region47: #{transformer_model_forward.1} parent=1 // pred_check_branch
      %44 = sbr.rel (0) target = $region49
    $region48: #{transformer_model_forward.1} parent=1 // pred_region
      _
    $region49: #{transformer_model_forward.1} parent=1 // pred_fallthru
      _
    // Predicated region
    $region50: #{transformer_model_forward.1} parent=1 // pred_check
      _
    $region51: #{transformer_model_forward.1} parent=1 // pred_check_branch
      %46 = sbr.rel (0) target = $region53
    $region52: #{transformer_model_forward.1} parent=1 // pred_region
      _
    $region53: #{transformer_model_forward.1} parent=1 // pred_fallthru
      _
    // Predicated region
    $region54: #{transformer_model_forward.1} parent=1 // pred_check
      _
    $region55: #{transformer_model_forward.1} parent=1 // pred_check_branch
      %48 = sbr.rel (0) target = $region57
    $region56: #{transformer_model_forward.1} parent=1 // pred_region
      _
    $region57: #{transformer_model_forward.1} parent=1 // pred_fallthru
      _
    // Predicated region
    $region58: #{transformer_model_forward.1} parent=1 // pred_check
      _
    $region59: #{transformer_model_forward.1} parent=1 // pred_check_branch
      %50 = sbr.rel (0) target = $region61
    $region60: #{transformer_model_forward.1} parent=1 // pred_region
      _
    $region61: #{transformer_model_forward.1} parent=1 // pred_fallthru
      _
    %v52 = vld [vmem:[%s0] sm:$0xff]
    %v53 = vld [vmem:[%s0 + $0x8] sm:$0xff]
    %v54 = vpack.c.bf16 %v53, %v52
    %v55 = vld [vmem:[%s1] sm:$0xf]
    %v56 = vld [vmem:[%s1 + $0x4] sm:$0xf]
    %v57 = vld [vmem:[%s1 + $0x8] sm:$0xf]
    %v58 = vld [vmem:[%s1 + $0xc] sm:$0xf]
    %v59 = vld [vmem:[%s2] sm:$0x1]
    %v61 = vlaneseq
    %v62 = vshrl.u32 %v61, 7
    %v63 = vsub.s32 0, %v62
    %v64 = vrot.slane %v59, %v63
    %v70 = vunpack.c.l.b16 %v55
    %v71 = vunpack.c.l.b16 %v56
    %v72 = vunpack.c.l.b16 %v57
    %v73 = vunpack.c.l.b16 %v58
    %v74 = vpack.c.b16 %v71, %v70
    %v75 = vpack.c.b16 %v73, %v72
    %vm78 = vcmask 261120
    %v80 = vsel %vm78, %v54, 0
    %82 = vmatprep.subr.bf16.mxu0 0
    %83 = vmatpush1.bf16.msra.mxu0 %v74
    %84 = vmatprep.subr.bf16.mxu0 0
    %85 = vmatpush1.bf16.msra.mxu0 %v75
    %86 = vmatprep.subr.bf16.mxu0 0
    %87 = vmatpush1.bf16.msra.mxu0 0
    %88 = vmatprep.subr.bf16.mxu0 0
    %89 = vmatpush1.bf16.msra.mxu0 0
    %90 = vmatprep.subr.bf16.mxu0 0
    %91 = vmatpush1.bf16.msra.mxu0 0
    %92 = vmatprep.subr.bf16.mxu0 0
    %93 = vmatpush1.bf16.msra.mxu0 0
    %94 = vmatprep.subr.bf16.mxu0 0
    %95 = vmatpush1.bf16.msra.mxu0 0
    %96 = vmatprep.subr.bf16.mxu0 0
    %97 = vmatpush1.bf16.msra.mxu0 0
    %98 = vmatprep.subr.bf16.mxu0 0
    %99 = vmatpush1.bf16.msra.mxu0 0
    %100 = vmatprep.subr.bf16.mxu0 0
    %101 = vmatpush1.bf16.msra.mxu0 0
    %102 = vmatprep.subr.bf16.mxu0 0
    %103 = vmatpush1.bf16.msra.mxu0 0
    %104 = vmatprep.subr.bf16.mxu0 0
    %105 = vmatpush1.bf16.msra.mxu0 0
    %106 = vmatprep.subr.bf16.mxu0 0
    %107 = vmatpush1.bf16.msra.mxu0 0
    %108 = vmatprep.subr.bf16.mxu0 0
    %109 = vmatpush1.bf16.msra.mxu0 0
    %110 = vmatprep.subr.bf16.mxu0 0
    %111 = vmatpush1.bf16.msra.mxu0 0
    %112 = vmatprep.subr.bf16.mxu0 0
    %113 = vmatpush1.bf16.msra.mxu0 0
    %114 = vmatprep.mubr.bf16.mxu0 0
    %115 = vmatmul.mubr.bf16.gmra.mrb[0].mxu0 %v80
    %v116 = vpop.f32.mrb[0].mxu0
    %v117 = vadd.f32 %v64, %v116
    %v118 = vpop.f32.mrb[0].mxu0
    %v119 = vpop.f32.mrb[0].mxu0
    %v120 = vadd.f32 %v64, %v119
    %v121 = vpop.f32.mrb[0].mxu0
    %122 = vdwg.mxu0
    %v123 = vmul.f32 %v117, 0.35355338
    %v124 = vpack.c.bf16 %v123, %v123
    %v125 = vpack.c.bf16 %v117, %v117
    %127 = vrot.lane.b32.xlu0 %v125, 96
    %v128 = vpop.permute.xlu0 %127
    %vm129 = vcmask 64512
    %v131 = vsel %vm129, %v124, 0
    %v134 = vsel %vm129, %v128, 0
    %136 = vmatprep.subr.bf16.mxu0 0
    %137 = vmatpush1.bf16.xpose.msra.mxu0 %v134
    %138 = vmatprep.subr.bf16.mxu0 0
    %139 = vmatpush1.bf16.xpose.msra.mxu0 0
    %140 = vmatprep.subr.bf16.mxu0 0
    %141 = vmatpush1.bf16.xpose.msra.mxu0 0
    %142 = vmatprep.subr.bf16.mxu0 0
    %143 = vmatpush1.bf16.xpose.msra.mxu0 0
    %144 = vmatprep.subr.bf16.mxu0 0
    %145 = vmatpush1.bf16.xpose.msra.mxu0 0
    %146 = vmatprep.subr.bf16.mxu0 0
    %147 = vmatpush1.bf16.xpose.msra.mxu0 0
    %148 = vmatprep.subr.bf16.mxu0 0
    %149 = vmatpush1.bf16.xpose.msra.mxu0 0
    %150 = vmatprep.subr.bf16.mxu0 0
    %151 = vmatpush1.bf16.xpose.msra.mxu0 0
    %152 = vmatprep.subr.bf16.mxu0 0
    %153 = vmatpush1.bf16.xpose.msra.mxu0 0
    %154 = vmatprep.subr.bf16.mxu0 0
    %155 = vmatpush1.bf16.xpose.msra.mxu0 0
    %156 = vmatprep.subr.bf16.mxu0 0
    %157 = vmatpush1.bf16.xpose.msra.mxu0 0
    %158 = vmatprep.subr.bf16.mxu0 0
    %159 = vmatpush1.bf16.xpose.msra.mxu0 0
    %160 = vmatprep.subr.bf16.mxu0 0
    %161 = vmatpush1.bf16.xpose.msra.mxu0 0
    %162 = vmatprep.subr.bf16.mxu0 0
    %163 = vmatpush1.bf16.xpose.msra.mxu0 0
    %164 = vmatprep.subr.bf16.mxu0 0
    %165 = vmatpush1.bf16.xpose.msra.mxu0 0
    %166 = vmatprep.subr.bf16.mxu0 0
    %167 = vmatpush1.bf16.xpose.msra.mxu0 0
    %168 = vmatprep.mubr.bf16.mxu0 0
    %169 = vmatmul.mubr.bf16.gmra.mrb[0].mxu0 %v131
    %v170 = vpop.f32.mrb[0].mxu0
    %v171 = vadd.f32 0.0, %v170
    %v172 = vpop.f32.mrb[0].mxu0
    %v173 = vpop.f32.mrb[0].mxu0
    %v174 = vpop.f32.mrb[0].mxu0
    %175 = vdwg.mxu0
    %v176 = vsel %vm129, %v171, -inf
    %177 = vmax.xlane.f32.xlu0 %v176
    %v178 = vpop.xlane.xlu0 %177
    %v179 = vsub.f32 %v171, %v178
    %v180 = vmul.f32 %v179, 1.442695
    %v181 = vpow.pop %v180
    %v182 = vsel %vm129, %v181, 0.0
    %183 = vadd.xlane.f32.xlu0 %v182
    %v184 = vpop.xlane.xlu0 %183
    %v185 = vrcp.pop %v184
    %v186 = vmul.f32 %v181, %v185
    %v187 = vpack.c.bf16 %v186, %v186
    %188 = vrot.lane.b32.xlu0 %v125, 64
    %v189 = vpop.permute.xlu0 %188
    %v191 = vsel %vm129, %v187, 0
    %vm193 = vcmask 1043456
    %v195 = vsel %vm193, %v189, 0
    %197 = vmatprep.subr.bf16.mxu0 0
    %198 = vmatpush1.bf16.msra.mxu0 %v195
    %199 = vmatprep.subr.bf16.mxu0 0
    %200 = vmatpush1.bf16.msra.mxu0 0
    %201 = vmatprep.subr.bf16.mxu0 0
    %202 = vmatpush1.bf16.msra.mxu0 0
    %203 = vmatprep.subr.bf16.mxu0 0
    %204 = vmatpush1.bf16.msra.mxu0 0
    %205 = vmatprep.subr.bf16.mxu0 0
    %206 = vmatpush1.bf16.msra.mxu0 0
    %207 = vmatprep.subr.bf16.mxu0 0
    %208 = vmatpush1.bf16.msra.mxu0 0
    %209 = vmatprep.subr.bf16.mxu0 0
    %210 = vmatpush1.bf16.msra.mxu0 0
    %211 = vmatprep.subr.bf16.mxu0 0
    %212 = vmatpush1.bf16.msra.mxu0 0
    %213 = vmatprep.subr.bf16.mxu0 0
    %214 = vmatpush1.bf16.msra.mxu0 0
    %215 = vmatprep.subr.bf16.mxu0 0
    %216 = vmatpush1.bf16.msra.mxu0 0
    %217 = vmatprep.subr.bf16.mxu0 0
    %218 = vmatpush1.bf16.msra.mxu0 0
    %219 = vmatprep.subr.bf16.mxu0 0
    %220 = vmatpush1.bf16.msra.mxu0 0
    %221 = vmatprep.subr.bf16.mxu0 0
    %222 = vmatpush1.bf16.msra.mxu0 0
    %223 = vmatprep.subr.bf16.mxu0 0
    %224 = vmatpush1.bf16.msra.mxu0 0
    %225 = vmatprep.subr.bf16.mxu0 0
    %226 = vmatpush1.bf16.msra.mxu0 0
    %227 = vmatprep.subr.bf16.mxu0 0
    %228 = vmatpush1.bf16.msra.mxu0 0
    %229 = vmatprep.mubr.bf16.mxu0 0
    %230 = vmatmul.mubr.bf16.gmra.mrb[0].mxu0 %v191
    %v231 = vpop.f32.mrb[0].mxu0
    %v232 = vadd.f32 0.0, %v231
    %v233 = vpop.f32.mrb[0].mxu0
    %v234 = vpop.f32.mrb[0].mxu0
    %v235 = vpop.f32.mrb[0].mxu0
    %236 = vdwg.mxu0
    %237 = vst.msk [vmem:[#allocation2] sm:$0xff] %vm129, %v232
    %239 = vrot.lane.b32.xlu0 %v124, 120
    %v240 = vpop.permute.xlu0 %239
    %241 = vrot.lane.b32.xlu0 %v125, 88
    %v242 = vpop.permute.xlu0 %241
    %v244 = vsel %vm129, %v240, 0
    %v247 = vsel %vm129, %v242, 0
    %249 = vmatprep.subr.bf16.mxu0 0
    %250 = vmatpush1.bf16.xpose.msra.mxu0 %v247
    %251 = vmatprep.subr.bf16.mxu0 0
    %252 = vmatpush1.bf16.xpose.msra.mxu0 0
    %253 = vmatprep.subr.bf16.mxu0 0
    %254 = vmatpush1.bf16.xpose.msra.mxu0 0
    %255 = vmatprep.subr.bf16.mxu0 0
    %256 = vmatpush1.bf16.xpose.msra.mxu0 0
    %257 = vmatprep.subr.bf16.mxu0 0
    %258 = vmatpush1.bf16.xpose.msra.mxu0 0
    %259 = vmatprep.subr.bf16.mxu0 0
    %260 = vmatpush1.bf16.xpose.msra.mxu0 0
    %261 = vmatprep.subr.bf16.mxu0 0
    %262 = vmatpush1.bf16.xpose.msra.mxu0 0
    %263 = vmatprep.subr.bf16.mxu0 0
    %264 = vmatpush1.bf16.xpose.msra.mxu0 0
    %265 = vmatprep.subr.bf16.mxu0 0
    %266 = vmatpush1.bf16.xpose.msra.mxu0 0
    %267 = vmatprep.subr.bf16.mxu0 0
    %268 = vmatpush1.bf16.xpose.msra.mxu0 0
    %269 = vmatprep.subr.bf16.mxu0 0
    %270 = vmatpush1.bf16.xpose.msra.mxu0 0
    %271 = vmatprep.subr.bf16.mxu0 0
    %272 = vmatpush1.bf16.xpose.msra.mxu0 0
    %273 = vmatprep.subr.bf16.mxu0 0
    %274 = vmatpush1.bf16.xpose.msra.mxu0 0
    %275 = vmatprep.subr.bf16.mxu0 0
    %276 = vmatpush1.bf16.xpose.msra.mxu0 0
    %277 = vmatprep.subr.bf16.mxu0 0
    %278 = vmatpush1.bf16.xpose.msra.mxu0 0
    %279 = vmatprep.subr.bf16.mxu0 0
    %280 = vmatpush1.bf16.xpose.msra.mxu0 0
    %281 = vmatprep.mubr.bf16.mxu0 0
    %282 = vmatmul.mubr.bf16.gmra.mrb[0].mxu0 %v244
    %v283 = vpop.f32.mrb[0].mxu0
    %v284 = vadd.f32 0.0, %v283
    %v285 = vpop.f32.mrb[0].mxu0
    %v286 = vpop.f32.mrb[0].mxu0
    %v287 = vpop.f32.mrb[0].mxu0
    %288 = vdwg.mxu0
    %v289 = vsel %vm129, %v284, -inf
    %290 = vmax.xlane.f32.xlu0 %v289
    %v291 = vpop.xlane.xlu0 %290
    %v292 = vsub.f32 %v284, %v291
    %v293 = vmul.f32 %v292, 1.442695
    %v294 = vpow.pop %v293
    %v295 = vsel %vm129, %v294, 0.0
    %296 = vadd.xlane.f32.xlu0 %v295
    %v297 = vpop.xlane.xlu0 %296
    %v298 = vrcp.pop %v297
    %v299 = vmul.f32 %v294, %v298
    %v300 = vpack.c.bf16 %v299, %v299
    %301 = vrot.lane.b32.xlu0 %v125, 56
    %v302 = vpop.permute.xlu0 %301
    %v304 = vsel %vm129, %v300, 0
    %v307 = vsel %vm193, %v302, 0
    %309 = vmatprep.subr.bf16.mxu0 0
    %310 = vmatpush1.bf16.msra.mxu0 %v307
    %311 = vmatprep.subr.bf16.mxu0 0
    %312 = vmatpush1.bf16.msra.mxu0 0
    %313 = vmatprep.subr.bf16.mxu0 0
    %314 = vmatpush1.bf16.msra.mxu0 0
    %315 = vmatprep.subr.bf16.mxu0 0
    %316 = vmatpush1.bf16.msra.mxu0 0
    %317 = vmatprep.subr.bf16.mxu0 0
    %318 = vmatpush1.bf16.msra.mxu0 0
    %319 = vmatprep.subr.bf16.mxu0 0
    %320 = vmatpush1.bf16.msra.mxu0 0
    %321 = vmatprep.subr.bf16.mxu0 0
    %322 = vmatpush1.bf16.msra.mxu0 0
    %323 = vmatprep.subr.bf16.mxu0 0
    %324 = vmatpush1.bf16.msra.mxu0 0
    %325 = vmatprep.subr.bf16.mxu0 0
    %326 = vmatpush1.bf16.msra.mxu0 0
    %327 = vmatprep.subr.bf16.mxu0 0
    %328 = vmatpush1.bf16.msra.mxu0 0
    %329 = vmatprep.subr.bf16.mxu0 0
    %330 = vmatpush1.bf16.msra.mxu0 0
    %331 = vmatprep.subr.bf16.mxu0 0
    %332 = vmatpush1.bf16.msra.mxu0 0
    %333 = vmatprep.subr.bf16.mxu0 0
    %334 = vmatpush1.bf16.msra.mxu0 0
    %335 = vmatprep.subr.bf16.mxu0 0
    %336 = vmatpush1.bf16.msra.mxu0 0
    %337 = vmatprep.subr.bf16.mxu0 0
    %338 = vmatpush1.bf16.msra.mxu0 0
    %339 = vmatprep.subr.bf16.mxu0 0
    %340 = vmatpush1.bf16.msra.mxu0 0
    %341 = vmatprep.mubr.bf16.mxu0 0
    %342 = vmatmul.mubr.bf16.gmra.mrb[0].mxu0 %v304
    %v343 = vpop.f32.mrb[0].mxu0
    %v344 = vadd.f32 0.0, %v343
    %v345 = vpop.f32.mrb[0].mxu0
    %v346 = vpop.f32.mrb[0].mxu0
    %v347 = vpop.f32.mrb[0].mxu0
    %348 = vdwg.mxu0
    %350 = vrot.lane.b32.xlu0 %v344, 8
    %v351 = vpop.permute.xlu0 %350
    %vm353 = vcmask 130112
    %354 = vst.msk [vmem:[#allocation2] sm:$0xff] %vm353, %v351
    %355 = vrot.lane.b32.xlu0 %v124, 112
    %v356 = vpop.permute.xlu0 %355
    %357 = vrot.lane.b32.xlu0 %v125, 80
    %v358 = vpop.permute.xlu0 %357
    %v360 = vsel %vm129, %v356, 0
    %v363 = vsel %vm129, %v358, 0
    %365 = vmatprep.subr.bf16.mxu0 0
    %366 = vmatpush1.bf16.xpose.msra.mxu0 %v363
    %367 = vmatprep.subr.bf16.mxu0 0
    %368 = vmatpush1.bf16.xpose.msra.mxu0 0
    %369 = vmatprep.subr.bf16.mxu0 0
    %370 = vmatpush1.bf16.xpose.msra.mxu0 0
    %371 = vmatprep.subr.bf16.mxu0 0
    %372 = vmatpush1.bf16.xpose.msra.mxu0 0
    %373 = vmatprep.subr.bf16.mxu0 0
    %374 = vmatpush1.bf16.xpose.msra.mxu0 0
    %375 = vmatprep.subr.bf16.mxu0 0
    %376 = vmatpush1.bf16.xpose.msra.mxu0 0
    %377 = vmatprep.subr.bf16.mxu0 0
    %378 = vmatpush1.bf16.xpose.msra.mxu0 0
    %379 = vmatprep.subr.bf16.mxu0 0
    %380 = vmatpush1.bf16.xpose.msra.mxu0 0
    %381 = vmatprep.subr.bf16.mxu0 0
    %382 = vmatpush1.bf16.xpose.msra.mxu0 0
    %383 = vmatprep.subr.bf16.mxu0 0
    %384 = vmatpush1.bf16.xpose.msra.mxu0 0
    %385 = vmatprep.subr.bf16.mxu0 0
    %386 = vmatpush1.bf16.xpose.msra.mxu0 0
    %387 = vmatprep.subr.bf16.mxu0 0
    %388 = vmatpush1.bf16.xpose.msra.mxu0 0
    %389 = vmatprep.subr.bf16.mxu0 0
    %390 = vmatpush1.bf16.xpose.msra.mxu0 0
    %391 = vmatprep.subr.bf16.mxu0 0
    %392 = vmatpush1.bf16.xpose.msra.mxu0 0
    %393 = vmatprep.subr.bf16.mxu0 0
    %394 = vmatpush1.bf16.xpose.msra.mxu0 0
    %395 = vmatprep.subr.bf16.mxu0 0
    %396 = vmatpush1.bf16.xpose.msra.mxu0 0
    %397 = vmatprep.mubr.bf16.mxu0 0
    %398 = vmatmul.mubr.bf16.gmra.mrb[0].mxu0 %v360
    %v399 = vpop.f32.mrb[0].mxu0
    %v400 = vadd.f32 0.0, %v399
    %v401 = vpop.f32.mrb[0].mxu0
    %v402 = vpop.f32.mrb[0].mxu0
    %v403 = vpop.f32.mrb[0].mxu0
    %404 = vdwg.mxu0
    %v405 = vsel %vm129, %v400, -inf
    %406 = vmax.xlane.f32.xlu0 %v405
    %v407 = vpop.xlane.xlu0 %406
    %v408 = vsub.f32 %v400, %v407
    %v409 = vmul.f32 %v408, 1.442695
    %v410 = vpow.pop %v409
    %v411 = vsel %vm129, %v410, 0.0
    %412 = vadd.xlane.f32.xlu0 %v411
    %v413 = vpop.xlane.xlu0 %412
    %v414 = vrcp.pop %v413
    %v415 = vmul.f32 %v410, %v414
    %v416 = vpack.c.bf16 %v415, %v415
    %417 = vrot.lane.b32.xlu0 %v125, 48
    %v418 = vpop.permute.xlu0 %417
    %v420 = vsel %vm129, %v416, 0
    %v423 = vsel %vm193, %v418, 0
    %425 = vmatprep.subr.bf16.mxu0 0
    %426 = vmatpush1.bf16.msra.mxu0 %v423
    %427 = vmatprep.subr.bf16.mxu0 0
    %428 = vmatpush1.bf16.msra.mxu0 0
    %429 = vmatprep.subr.bf16.mxu0 0
    %430 = vmatpush1.bf16.msra.mxu0 0
    %431 = vmatprep.subr.bf16.mxu0 0
    %432 = vmatpush1.bf16.msra.mxu0 0
    %433 = vmatprep.subr.bf16.mxu0 0
    %434 = vmatpush1.bf16.msra.mxu0 0
    %435 = vmatprep.subr.bf16.mxu0 0
    %436 = vmatpush1.bf16.msra.mxu0 0
    %437 = vmatprep.subr.bf16.mxu0 0
    %438 = vmatpush1.bf16.msra.mxu0 0
    %439 = vmatprep.subr.bf16.mxu0 0
    %440 = vmatpush1.bf16.msra.mxu0 0
    %441 = vmatprep.subr.bf16.mxu0 0
    %442 = vmatpush1.bf16.msra.mxu0 0
    %443 = vmatprep.subr.bf16.mxu0 0
    %444 = vmatpush1.bf16.msra.mxu0 0
    %445 = vmatprep.subr.bf16.mxu0 0
    %446 = vmatpush1.bf16.msra.mxu0 0
    %447 = vmatprep.subr.bf16.mxu0 0
    %448 = vmatpush1.bf16.msra.mxu0 0
    %449 = vmatprep.subr.bf16.mxu0 0
    %450 = vmatpush1.bf16.msra.mxu0 0
    %451 = vmatprep.subr.bf16.mxu0 0
    %452 = vmatpush1.bf16.msra.mxu0 0
    %453 = vmatprep.subr.bf16.mxu0 0
    %454 = vmatpush1.bf16.msra.mxu0 0
    %455 = vmatprep.subr.bf16.mxu0 0
    %456 = vmatpush1.bf16.msra.mxu0 0
    %457 = vmatprep.mubr.bf16.mxu0 0
    %458 = vmatmul.mubr.bf16.gmra.mrb[0].mxu0 %v420
    %v459 = vpop.f32.mrb[0].mxu0
    %v460 = vadd.f32 0.0, %v459
    %v461 = vpop.f32.mrb[0].mxu0
    %v462 = vpop.f32.mrb[0].mxu0
    %v463 = vpop.f32.mrb[0].mxu0
    %464 = vdwg.mxu0
    %466 = vrot.lane.b32.xlu0 %v460, 16
    %v467 = vpop.permute.xlu0 %466
    %vm469 = vcmask 195712
    %470 = vst.msk [vmem:[#allocation2] sm:$0xff] %vm469, %v467
    %471 = vrot.lane.b32.xlu0 %v124, 104
    %v472 = vpop.permute.xlu0 %471
    %473 = vrot.lane.b32.xlu0 %v125, 72
    %v474 = vpop.permute.xlu0 %473
    %v476 = vsel %vm129, %v472, 0
    %v479 = vsel %vm129, %v474, 0
    %481 = vmatprep.subr.bf16.mxu0 0
    %482 = vmatpush1.bf16.xpose.msra.mxu0 %v479
    %483 = vmatprep.subr.bf16.mxu0 0
    %484 = vmatpush1.bf16.xpose.msra.mxu0 0
    %485 = vmatprep.subr.bf16.mxu0 0
    %486 = vmatpush1.bf16.xpose.msra.mxu0 0
    %487 = vmatprep.subr.bf16.mxu0 0
    %488 = vmatpush1.bf16.xpose.msra.mxu0 0
    %489 = vmatprep.subr.bf16.mxu0 0
    %490 = vmatpush1.bf16.xpose.msra.mxu0 0
    %491 = vmatprep.subr.bf16.mxu0 0
    %492 = vmatpush1.bf16.xpose.msra.mxu0 0
    %493 = vmatprep.subr.bf16.mxu0 0
    %494 = vmatpush1.bf16.xpose.msra.mxu0 0
    %495 = vmatprep.subr.bf16.mxu0 0
    %496 = vmatpush1.bf16.xpose.msra.mxu0 0
    %497 = vmatprep.subr.bf16.mxu0 0
    %498 = vmatpush1.bf16.xpose.msra.mxu0 0
    %499 = vmatprep.subr.bf16.mxu0 0
    %500 = vmatpush1.bf16.xpose.msra.mxu0 0
    %501 = vmatprep.subr.bf16.mxu0 0
    %502 = vmatpush1.bf16.xpose.msra.mxu0 0
    %503 = vmatprep.subr.bf16.mxu0 0
    %504 = vmatpush1.bf16.xpose.msra.mxu0 0
    %505 = vmatprep.subr.bf16.mxu0 0
    %506 = vmatpush1.bf16.xpose.msra.mxu0 0
    %507 = vmatprep.subr.bf16.mxu0 0
    %508 = vmatpush1.bf16.xpose.msra.mxu0 0
    %509 = vmatprep.subr.bf16.mxu0 0
    %510 = vmatpush1.bf16.xpose.msra.mxu0 0
    %511 = vmatprep.subr.bf16.mxu0 0
    %512 = vmatpush1.bf16.xpose.msra.mxu0 0
    %513 = vmatprep.mubr.bf16.mxu0 0
    %514 = vmatmul.mubr.bf16.gmra.mrb[0].mxu0 %v476
    %v515 = vpop.f32.mrb[0].mxu0
    %v516 = vadd.f32 0.0, %v515
    %v517 = vpop.f32.mrb[0].mxu0
    %v518 = vpop.f32.mrb[0].mxu0
    %v519 = vpop.f32.mrb[0].mxu0
    %520 = vdwg.mxu0
    %v521 = vsel %vm129, %v516, -inf
    %522 = vmax.xlane.f32.xlu0 %v521
    %v523 = vpop.xlane.xlu0 %522
    %v524 = vsub.f32 %v516, %v523
    %v525 = vmul.f32 %v524, 1.442695
    %v526 = vpow.pop %v525
    %v527 = vsel %vm129, %v526, 0.0
    %528 = vadd.xlane.f32.xlu0 %v527
    %v529 = vpop.xlane.xlu0 %528
    %v530 = vrcp.pop %v529
    %v531 = vmul.f32 %v526, %v530
    %v532 = vpack.c.bf16 %v531, %v531
    %533 = vrot.lane.b32.xlu0 %v125, 40
    %v534 = vpop.permute.xlu0 %533
    %v536 = vsel %vm129, %v532, 0
    %v539 = vsel %vm193, %v534, 0
    %541 = vmatprep.subr.bf16.mxu0 0
    %542 = vmatpush1.bf16.msra.mxu0 %v539
    %543 = vmatprep.subr.bf16.mxu0 0
    %544 = vmatpush1.bf16.msra.mxu0 0
    %545 = vmatprep.subr.bf16.mxu0 0
    %546 = vmatpush1.bf16.msra.mxu0 0
    %547 = vmatprep.subr.bf16.mxu0 0
    %548 = vmatpush1.bf16.msra.mxu0 0
    %549 = vmatprep.subr.bf16.mxu0 0
    %550 = vmatpush1.bf16.msra.mxu0 0
    %551 = vmatprep.subr.bf16.mxu0 0
    %552 = vmatpush1.bf16.msra.mxu0 0
    %553 = vmatprep.subr.bf16.mxu0 0
    %554 = vmatpush1.bf16.msra.mxu0 0
    %555 = vmatprep.subr.bf16.mxu0 0
    %556 = vmatpush1.bf16.msra.mxu0 0
    %557 = vmatprep.subr.bf16.mxu0 0
    %558 = vmatpush1.bf16.msra.mxu0 0
    %559 = vmatprep.subr.bf16.mxu0 0
    %560 = vmatpush1.bf16.msra.mxu0 0
    %561 = vmatprep.subr.bf16.mxu0 0
    %562 = vmatpush1.bf16.msra.mxu0 0
    %563 = vmatprep.subr.bf16.mxu0 0
    %564 = vmatpush1.bf16.msra.mxu0 0
    %565 = vmatprep.subr.bf16.mxu0 0
    %566 = vmatpush1.bf16.msra.mxu0 0
    %567 = vmatprep.subr.bf16.mxu0 0
    %568 = vmatpush1.bf16.msra.mxu0 0
    %569 = vmatprep.subr.bf16.mxu0 0
    %570 = vmatpush1.bf16.msra.mxu0 0
    %571 = vmatprep.subr.bf16.mxu0 0
    %572 = vmatpush1.bf16.msra.mxu0 0
    %573 = vmatprep.mubr.bf16.mxu0 0
    %574 = vmatmul.mubr.bf16.gmra.mrb[0].mxu0 %v536
    %v575 = vpop.f32.mrb[0].mxu0
    %v576 = vadd.f32 0.0, %v575
    %v577 = vpop.f32.mrb[0].mxu0
    %v578 = vpop.f32.mrb[0].mxu0
    %v579 = vpop.f32.mrb[0].mxu0
    %580 = vdwg.mxu0
    %582 = vrot.lane.b32.xlu0 %v576, 24
    %v583 = vpop.permute.xlu0 %582
    %vm585 = vcmask 261312
    %586 = vst.msk [vmem:[#allocation2] sm:$0xff] %vm585, %v583
    %v587 = vmul.f32 %v120, 0.35355338
    %v588 = vpack.c.bf16 %v587, %v587
    %v589 = vpack.c.bf16 %v120, %v120
    %591 = vrot.lane.b32.xlu0 %v589, 96
    %v592 = vpop.permute.xlu0 %591
    %v594 = vsel %vm129, %v588, 0
    %v597 = vsel %vm129, %v592, 0
    %599 = vmatprep.subr.bf16.mxu0 0
    %600 = vmatpush1.bf16.xpose.msra.mxu0 %v597
    %601 = vmatprep.subr.bf16.mxu0 0
    %602 = vmatpush1.bf16.xpose.msra.mxu0 0
    %603 = vmatprep.subr.bf16.mxu0 0
    %604 = vmatpush1.bf16.xpose.msra.mxu0 0
    %605 = vmatprep.subr.bf16.mxu0 0
    %606 = vmatpush1.bf16.xpose.msra.mxu0 0
    %607 = vmatprep.subr.bf16.mxu0 0
    %608 = vmatpush1.bf16.xpose.msra.mxu0 0
    %609 = vmatprep.subr.bf16.mxu0 0
    %610 = vmatpush1.bf16.xpose.msra.mxu0 0
    %611 = vmatprep.subr.bf16.mxu0 0
    %612 = vmatpush1.bf16.xpose.msra.mxu0 0
    %613 = vmatprep.subr.bf16.mxu0 0
    %614 = vmatpush1.bf16.xpose.msra.mxu0 0
    %615 = vmatprep.subr.bf16.mxu0 0
    %616 = vmatpush1.bf16.xpose.msra.mxu0 0
    %617 = vmatprep.subr.bf16.mxu0 0
    %618 = vmatpush1.bf16.xpose.msra.mxu0 0
    %619 = vmatprep.subr.bf16.mxu0 0
    %620 = vmatpush1.bf16.xpose.msra.mxu0 0
    %621 = vmatprep.subr.bf16.mxu0 0
    %622 = vmatpush1.bf16.xpose.msra.mxu0 0
    %623 = vmatprep.subr.bf16.mxu0 0
    %624 = vmatpush1.bf16.xpose.msra.mxu0 0
    %625 = vmatprep.subr.bf16.mxu0 0
    %626 = vmatpush1.bf16.xpose.msra.mxu0 0
    %627 = vmatprep.subr.bf16.mxu0 0
    %628 = vmatpush1.bf16.xpose.msra.mxu0 0
    %629 = vmatprep.subr.bf16.mxu0 0
    %630 = vmatpush1.bf16.xpose.msra.mxu0 0
    %631 = vmatprep.mubr.bf16.mxu0 0
    %632 = vmatmul.mubr.bf16.gmra.mrb[0].mxu0 %v594
    %v633 = vpop.f32.mrb[0].mxu0
    %v634 = vadd.f32 0.0, %v633
    %v635 = vpop.f32.mrb[0].mxu0
    %v636 = vpop.f32.mrb[0].mxu0
    %v637 = vpop.f32.mrb[0].mxu0
    %638 = vdwg.mxu0
    %v639 = vsel %vm129, %v634, -inf
    %640 = vmax.xlane.f32.xlu0 %v639
    %v641 = vpop.xlane.xlu0 %640
    %v642 = vsub.f32 %v634, %v641
    %v643 = vmul.f32 %v642, 1.442695
    %v644 = vpow.pop %v643
    %v645 = vsel %vm129, %v644, 0.0
    %646 = vadd.xlane.f32.xlu0 %v645
    %v647 = vpop.xlane.xlu0 %646
    %v648 = vrcp.pop %v647
    %v649 = vmul.f32 %v644, %v648
    %v650 = vpack.c.bf16 %v649, %v649
    %651 = vrot.lane.b32.xlu0 %v589, 64
    %v652 = vpop.permute.xlu0 %651
    %v654 = vsel %vm129, %v650, 0
    %v657 = vsel %vm193, %v652, 0
    %659 = vmatprep.subr.bf16.mxu0 0
    %660 = vmatpush1.bf16.msra.mxu0 %v657
    %661 = vmatprep.subr.bf16.mxu0 0
    %662 = vmatpush1.bf16.msra.mxu0 0
    %663 = vmatprep.subr.bf16.mxu0 0
    %664 = vmatpush1.bf16.msra.mxu0 0
    %665 = vmatprep.subr.bf16.mxu0 0
    %666 = vmatpush1.bf16.msra.mxu0 0
    %667 = vmatprep.subr.bf16.mxu0 0
    %668 = vmatpush1.bf16.msra.mxu0 0
    %669 = vmatprep.subr.bf16.mxu0 0
    %670 = vmatpush1.bf16.msra.mxu0 0
    %671 = vmatprep.subr.bf16.mxu0 0
    %672 = vmatpush1.bf16.msra.mxu0 0
    %673 = vmatprep.subr.bf16.mxu0 0
    %674 = vmatpush1.bf16.msra.mxu0 0
    %675 = vmatprep.subr.bf16.mxu0 0
    %676 = vmatpush1.bf16.msra.mxu0 0
    %677 = vmatprep.subr.bf16.mxu0 0
    %678 = vmatpush1.bf16.msra.mxu0 0
    %679 = vmatprep.subr.bf16.mxu0 0
    %680 = vmatpush1.bf16.msra.mxu0 0
    %681 = vmatprep.subr.bf16.mxu0 0
    %682 = vmatpush1.bf16.msra.mxu0 0
    %683 = vmatprep.subr.bf16.mxu0 0
    %684 = vmatpush1.bf16.msra.mxu0 0
    %685 = vmatprep.subr.bf16.mxu0 0
    %686 = vmatpush1.bf16.msra.mxu0 0
    %687 = vmatprep.subr.bf16.mxu0 0
    %688 = vmatpush1.bf16.msra.mxu0 0
    %689 = vmatprep.subr.bf16.mxu0 0
    %690 = vmatpush1.bf16.msra.mxu0 0
    %691 = vmatprep.mubr.bf16.mxu0 0
    %692 = vmatmul.mubr.bf16.gmra.mrb[0].mxu0 %v654
    %v693 = vpop.f32.mrb[0].mxu0
    %v694 = vadd.f32 0.0, %v693
    %v695 = vpop.f32.mrb[0].mxu0
    %v696 = vpop.f32.mrb[0].mxu0
    %v697 = vpop.f32.mrb[0].mxu0
    %698 = vdwg.mxu0
    %699 = vst.msk [vmem:[#allocation2 + $0x8] sm:$0xff] %vm129, %v694
    %701 = vrot.lane.b32.xlu0 %v588, 120
    %v702 = vpop.permute.xlu0 %701
    %703 = vrot.lane.b32.xlu0 %v589, 88
    %v704 = vpop.permute.xlu0 %703
    %v706 = vsel %vm129, %v702, 0
    %v709 = vsel %vm129, %v704, 0
    %711 = vmatprep.subr.bf16.mxu0 0
    %712 = vmatpush1.bf16.xpose.msra.mxu0 %v709
    %713 = vmatprep.subr.bf16.mxu0 0
    %714 = vmatpush1.bf16.xpose.msra.mxu0 0
    %715 = vmatprep.subr.bf16.mxu0 0
    %716 = vmatpush1.bf16.xpose.msra.mxu0 0
    %717 = vmatprep.subr.bf16.mxu0 0
    %718 = vmatpush1.bf16.xpose.msra.mxu0 0
    %719 = vmatprep.subr.bf16.mxu0 0
    %720 = vmatpush1.bf16.xpose.msra.mxu0 0
    %721 = vmatprep.subr.bf16.mxu0 0
    %722 = vmatpush1.bf16.xpose.msra.mxu0 0
    %723 = vmatprep.subr.bf16.mxu0 0
    %724 = vmatpush1.bf16.xpose.msra.mxu0 0
    %725 = vmatprep.subr.bf16.mxu0 0
    %726 = vmatpush1.bf16.xpose.msra.mxu0 0
    %727 = vmatprep.subr.bf16.mxu0 0
    %728 = vmatpush1.bf16.xpose.msra.mxu0 0
    %729 = vmatprep.subr.bf16.mxu0 0
    %730 = vmatpush1.bf16.xpose.msra.mxu0 0
    %731 = vmatprep.subr.bf16.mxu0 0
    %732 = vmatpush1.bf16.xpose.msra.mxu0 0
    %733 = vmatprep.subr.bf16.mxu0 0
    %734 = vmatpush1.bf16.xpose.msra.mxu0 0
    %735 = vmatprep.subr.bf16.mxu0 0
    %736 = vmatpush1.bf16.xpose.msra.mxu0 0
    %737 = vmatprep.subr.bf16.mxu0 0
    %738 = vmatpush1.bf16.xpose.msra.mxu0 0
    %739 = vmatprep.subr.bf16.mxu0 0
    %740 = vmatpush1.bf16.xpose.msra.mxu0 0
    %741 = vmatprep.subr.bf16.mxu0 0
    %742 = vmatpush1.bf16.xpose.msra.mxu0 0
    %743 = vmatprep.mubr.bf16.mxu0 0
    %744 = vmatmul.mubr.bf16.gmra.mrb[0].mxu0 %v706
    %v745 = vpop.f32.mrb[0].mxu0
    %v746 = vadd.f32 0.0, %v745
    %v747 = vpop.f32.mrb[0].mxu0
    %v748 = vpop.f32.mrb[0].mxu0
    %v749 = vpop.f32.mrb[0].mxu0
    %750 = vdwg.mxu0
    %v751 = vsel %vm129, %v746, -inf
    %752 = vmax.xlane.f32.xlu0 %v751
    %v753 = vpop.xlane.xlu0 %752
    %v754 = vsub.f32 %v746, %v753
    %v755 = vmul.f32 %v754, 1.442695
    %v756 = vpow.pop %v755
    %v757 = vsel %vm129, %v756, 0.0
    %758 = vadd.xlane.f32.xlu0 %v757
    %v759 = vpop.xlane.xlu0 %758
    %v760 = vrcp.pop %v759
    %v761 = vmul.f32 %v756, %v760
    %v762 = vpack.c.bf16 %v761, %v761
    %763 = vrot.lane.b32.xlu0 %v589, 56
    %v764 = vpop.permute.xlu0 %763
    %v766 = vsel %vm129, %v762, 0
    %v769 = vsel %vm193, %v764, 0
    %771 = vmatprep.subr.bf16.mxu0 0
    %772 = vmatpush1.bf16.msra.mxu0 %v769
    %773 = vmatprep.subr.bf16.mxu0 0
    %774 = vmatpush1.bf16.msra.mxu0 0
    %775 = vmatprep.subr.bf16.mxu0 0
    %776 = vmatpush1.bf16.msra.mxu0 0
    %777 = vmatprep.subr.bf16.mxu0 0
    %778 = vmatpush1.bf16.msra.mxu0 0
    %779 = vmatprep.subr.bf16.mxu0 0
    %780 = vmatpush1.bf16.msra.mxu0 0
    %781 = vmatprep.subr.bf16.mxu0 0
    %782 = vmatpush1.bf16.msra.mxu0 0
    %783 = vmatprep.subr.bf16.mxu0 0
    %784 = vmatpush1.bf16.msra.mxu0 0
    %785 = vmatprep.subr.bf16.mxu0 0
    %786 = vmatpush1.bf16.msra.mxu0 0
    %787 = vmatprep.subr.bf16.mxu0 0
    %788 = vmatpush1.bf16.msra.mxu0 0
    %789 = vmatprep.subr.bf16.mxu0 0
    %790 = vmatpush1.bf16.msra.mxu0 0
    %791 = vmatprep.subr.bf16.mxu0 0
    %792 = vmatpush1.bf16.msra.mxu0 0
    %793 = vmatprep.subr.bf16.mxu0 0
    %794 = vmatpush1.bf16.msra.mxu0 0
    %795 = vmatprep.subr.bf16.mxu0 0
    %796 = vmatpush1.bf16.msra.mxu0 0
    %797 = vmatprep.subr.bf16.mxu0 0
    %798 = vmatpush1.bf16.msra.mxu0 0
    %799 = vmatprep.subr.bf16.mxu0 0
    %800 = vmatpush1.bf16.msra.mxu0 0
    %801 = vmatprep.subr.bf16.mxu0 0
    %802 = vmatpush1.bf16.msra.mxu0 0
    %803 = vmatprep.mubr.bf16.mxu0 0
    %804 = vmatmul.mubr.bf16.gmra.mrb[0].mxu0 %v766
    %v805 = vpop.f32.mrb[0].mxu0
    %v806 = vadd.f32 0.0, %v805
    %v807 = vpop.f32.mrb[0].mxu0
    %v808 = vpop.f32.mrb[0].mxu0
    %v809 = vpop.f32.mrb[0].mxu0
    %810 = vdwg.mxu0
    %812 = vrot.lane.b32.xlu0 %v806, 8
    %v813 = vpop.permute.xlu0 %812
    %815 = vst.msk [vmem:[#allocation2 + $0x8] sm:$0xff] %vm353, %v813
    %816 = vrot.lane.b32.xlu0 %v588, 112
    %v817 = vpop.permute.xlu0 %816
    %818 = vrot.lane.b32.xlu0 %v589, 80
    %v819 = vpop.permute.xlu0 %818
    %v821 = vsel %vm129, %v817, 0
    %v824 = vsel %vm129, %v819, 0
    %826 = vmatprep.subr.bf16.mxu0 0
    %827 = vmatpush1.bf16.xpose.msra.mxu0 %v824
    %828 = vmatprep.subr.bf16.mxu0 0
    %829 = vmatpush1.bf16.xpose.msra.mxu0 0
    %830 = vmatprep.subr.bf16.mxu0 0
    %831 = vmatpush1.bf16.xpose.msra.mxu0 0
    %832 = vmatprep.subr.bf16.mxu0 0
    %833 = vmatpush1.bf16.xpose.msra.mxu0 0
    %834 = vmatprep.subr.bf16.mxu0 0
    %835 = vmatpush1.bf16.xpose.msra.mxu0 0
    %836 = vmatprep.subr.bf16.mxu0 0
    %837 = vmatpush1.bf16.xpose.msra.mxu0 0
    %838 = vmatprep.subr.bf16.mxu0 0
    %839 = vmatpush1.bf16.xpose.msra.mxu0 0
    %840 = vmatprep.subr.bf16.mxu0 0
    %841 = vmatpush1.bf16.xpose.msra.mxu0 0
    %842 = vmatprep.subr.bf16.mxu0 0
    %843 = vmatpush1.bf16.xpose.msra.mxu0 0
    %844 = vmatprep.subr.bf16.mxu0 0
    %845 = vmatpush1.bf16.xpose.msra.mxu0 0
    %846 = vmatprep.subr.bf16.mxu0 0
    %847 = vmatpush1.bf16.xpose.msra.mxu0 0
    %848 = vmatprep.subr.bf16.mxu0 0
    %849 = vmatpush1.bf16.xpose.msra.mxu0 0
    %850 = vmatprep.subr.bf16.mxu0 0
    %851 = vmatpush1.bf16.xpose.msra.mxu0 0
    %852 = vmatprep.subr.bf16.mxu0 0
    %853 = vmatpush1.bf16.xpose.msra.mxu0 0
    %854 = vmatprep.subr.bf16.mxu0 0
    %855 = vmatpush1.bf16.xpose.msra.mxu0 0
    %856 = vmatprep.subr.bf16.mxu0 0
    %857 = vmatpush1.bf16.xpose.msra.mxu0 0
    %858 = vmatprep.mubr.bf16.mxu0 0
    %859 = vmatmul.mubr.bf16.gmra.mrb[0].mxu0 %v821
    %v860 = vpop.f32.mrb[0].mxu0
    %v861 = vadd.f32 0.0, %v860
    %v862 = vpop.f32.mrb[0].mxu0
    %v863 = vpop.f32.mrb[0].mxu0
    %v864 = vpop.f32.mrb[0].mxu0
    %865 = vdwg.mxu0
    %v866 = vsel %vm129, %v861, -inf
    %867 = vmax.xlane.f32.xlu0 %v866
    %v868 = vpop.xlane.xlu0 %867
    %v869 = vsub.f32 %v861, %v868
    %v870 = vmul.f32 %v869, 1.442695
    %v871 = vpow.pop %v870
    %v872 = vsel %vm129, %v871, 0.0
    %873 = vadd.xlane.f32.xlu0 %v872
    %v874 = vpop.xlane.xlu0 %873
    %v875 = vrcp.pop %v874
    %v876 = vmul.f32 %v871, %v875
    %v877 = vpack.c.bf16 %v876, %v876
    %878 = vrot.lane.b32.xlu0 %v589, 48
    %v879 = vpop.permute.xlu0 %878
    %v881 = vsel %vm129, %v877, 0
    %v884 = vsel %vm193, %v879, 0
    %886 = vmatprep.subr.bf16.mxu0 0
    %887 = vmatpush1.bf16.msra.mxu0 %v884
    %888 = vmatprep.subr.bf16.mxu0 0
    %889 = vmatpush1.bf16.msra.mxu0 0
    %890 = vmatprep.subr.bf16.mxu0 0
    %891 = vmatpush1.bf16.msra.mxu0 0
    %892 = vmatprep.subr.bf16.mxu0 0
    %893 = vmatpush1.bf16.msra.mxu0 0
    %894 = vmatprep.subr.bf16.mxu0 0
    %895 = vmatpush1.bf16.msra.mxu0 0
    %896 = vmatprep.subr.bf16.mxu0 0
    %897 = vmatpush1.bf16.msra.mxu0 0
    %898 = vmatprep.subr.bf16.mxu0 0
    %899 = vmatpush1.bf16.msra.mxu0 0
    %900 = vmatprep.subr.bf16.mxu0 0
    %901 = vmatpush1.bf16.msra.mxu0 0
    %902 = vmatprep.subr.bf16.mxu0 0
    %903 = vmatpush1.bf16.msra.mxu0 0
    %904 = vmatprep.subr.bf16.mxu0 0
    %905 = vmatpush1.bf16.msra.mxu0 0
    %906 = vmatprep.subr.bf16.mxu0 0
    %907 = vmatpush1.bf16.msra.mxu0 0
    %908 = vmatprep.subr.bf16.mxu0 0
    %909 = vmatpush1.bf16.msra.mxu0 0
    %910 = vmatprep.subr.bf16.mxu0 0
    %911 = vmatpush1.bf16.msra.mxu0 0
    %912 = vmatprep.subr.bf16.mxu0 0
    %913 = vmatpush1.bf16.msra.mxu0 0
    %914 = vmatprep.subr.bf16.mxu0 0
    %915 = vmatpush1.bf16.msra.mxu0 0
    %916 = vmatprep.subr.bf16.mxu0 0
    %917 = vmatpush1.bf16.msra.mxu0 0
    %918 = vmatprep.mubr.bf16.mxu0 0
    %919 = vmatmul.mubr.bf16.gmra.mrb[0].mxu0 %v881
    %v920 = vpop.f32.mrb[0].mxu0
    %v921 = vadd.f32 0.0, %v920
    %v922 = vpop.f32.mrb[0].mxu0
    %v923 = vpop.f32.mrb[0].mxu0
    %v924 = vpop.f32.mrb[0].mxu0
    %925 = vdwg.mxu0
    %927 = vrot.lane.b32.xlu0 %v921, 16
    %v928 = vpop.permute.xlu0 %927
    %930 = vst.msk [vmem:[#allocation2 + $0x8] sm:$0xff] %vm469, %v928
    %931 = vrot.lane.b32.xlu0 %v588, 104
    %v932 = vpop.permute.xlu0 %931
    %933 = vrot.lane.b32.xlu0 %v589, 72
    %v934 = vpop.permute.xlu0 %933
    %v936 = vsel %vm129, %v932, 0
    %v939 = vsel %vm129, %v934, 0
    %941 = vmatprep.subr.bf16.mxu0 0
    %942 = vmatpush1.bf16.xpose.msra.mxu0 %v939
    %943 = vmatprep.subr.bf16.mxu0 0
    %944 = vmatpush1.bf16.xpose.msra.mxu0 0
    %945 = vmatprep.subr.bf16.mxu0 0
    %946 = vmatpush1.bf16.xpose.msra.mxu0 0
    %947 = vmatprep.subr.bf16.mxu0 0
    %948 = vmatpush1.bf16.xpose.msra.mxu0 0
    %949 = vmatprep.subr.bf16.mxu0 0
    %950 = vmatpush1.bf16.xpose.msra.mxu0 0
    %951 = vmatprep.subr.bf16.mxu0 0
    %952 = vmatpush1.bf16.xpose.msra.mxu0 0
    %953 = vmatprep.subr.bf16.mxu0 0
    %954 = vmatpush1.bf16.xpose.msra.mxu0 0
    %955 = vmatprep.subr.bf16.mxu0 0
    %956 = vmatpush1.bf16.xpose.msra.mxu0 0
    %957 = vmatprep.subr.bf16.mxu0 0
    %958 = vmatpush1.bf16.xpose.msra.mxu0 0
    %959 = vmatprep.subr.bf16.mxu0 0
    %960 = vmatpush1.bf16.xpose.msra.mxu0 0
    %961 = vmatprep.subr.bf16.mxu0 0
    %962 = vmatpush1.bf16.xpose.msra.mxu0 0
    %963 = vmatprep.subr.bf16.mxu0 0
    %964 = vmatpush1.bf16.xpose.msra.mxu0 0
    %965 = vmatprep.subr.bf16.mxu0 0
    %966 = vmatpush1.bf16.xpose.msra.mxu0 0
    %967 = vmatprep.subr.bf16.mxu0 0
    %968 = vmatpush1.bf16.xpose.msra.mxu0 0
    %969 = vmatprep.subr.bf16.mxu0 0
    %970 = vmatpush1.bf16.xpose.msra.mxu0 0
    %971 = vmatprep.subr.bf16.mxu0 0
    %972 = vmatpush1.bf16.xpose.msra.mxu0 0
    %973 = vmatprep.mubr.bf16.mxu0 0
    %974 = vmatmul.mubr.bf16.gmra.mrb[0].mxu0 %v936
    %v975 = vpop.f32.mrb[0].mxu0
    %v976 = vadd.f32 0.0, %v975
    %v977 = vpop.f32.mrb[0].mxu0
    %v978 = vpop.f32.mrb[0].mxu0
    %v979 = vpop.f32.mrb[0].mxu0
    %980 = vdwg.mxu0
    %v981 = vsel %vm129, %v976, -inf
    %982 = vmax.xlane.f32.xlu0 %v981
    %v983 = vpop.xlane.xlu0 %982
    %v984 = vsub.f32 %v976, %v983
    %v985 = vmul.f32 %v984, 1.442695
    %v986 = vpow.pop %v985
    %v987 = vsel %vm129, %v986, 0.0
    %988 = vadd.xlane.f32.xlu0 %v987
    %v989 = vpop.xlane.xlu0 %988
    %v990 = vrcp.pop %v989
    %v991 = vmul.f32 %v986, %v990
    %v992 = vpack.c.bf16 %v991, %v991
    %993 = vrot.lane.b32.xlu0 %v589, 40
    %v994 = vpop.permute.xlu0 %993
    %v996 = vsel %vm129, %v992, 0
    %v999 = vsel %vm193, %v994, 0
    %1001 = vmatprep.subr.bf16.mxu0 0
    %1002 = vmatpush1.bf16.msra.mxu0 %v999
    %1003 = vmatprep.subr.bf16.mxu0 0
    %1004 = vmatpush1.bf16.msra.mxu0 0
    %1005 = vmatprep.subr.bf16.mxu0 0
    %1006 = vmatpush1.bf16.msra.mxu0 0
    %1007 = vmatprep.subr.bf16.mxu0 0
    %1008 = vmatpush1.bf16.msra.mxu0 0
    %1009 = vmatprep.subr.bf16.mxu0 0
    %1010 = vmatpush1.bf16.msra.mxu0 0
    %1011 = vmatprep.subr.bf16.mxu0 0
    %1012 = vmatpush1.bf16.msra.mxu0 0
    %1013 = vmatprep.subr.bf16.mxu0 0
    %1014 = vmatpush1.bf16.msra.mxu0 0
    %1015 = vmatprep.subr.bf16.mxu0 0
    %1016 = vmatpush1.bf16.msra.mxu0 0
    %1017 = vmatprep.subr.bf16.mxu0 0
    %1018 = vmatpush1.bf16.msra.mxu0 0
    %1019 = vmatprep.subr.bf16.mxu0 0
    %1020 = vmatpush1.bf16.msra.mxu0 0
    %1021 = vmatprep.subr.bf16.mxu0 0
    %1022 = vmatpush1.bf16.msra.mxu0 0
    %1023 = vmatprep.subr.bf16.mxu0 0
    %1024 = vmatpush1.bf16.msra.mxu0 0
    %1025 = vmatprep.subr.bf16.mxu0 0
    %1026 = vmatpush1.bf16.msra.mxu0 0
    %1027 = vmatprep.subr.bf16.mxu0 0
    %1028 = vmatpush1.bf16.msra.mxu0 0
    %1029 = vmatprep.subr.bf16.mxu0 0
    %1030 = vmatpush1.bf16.msra.mxu0 0
    %1031 = vmatprep.subr.bf16.mxu0 0
    %1032 = vmatpush1.bf16.msra.mxu0 0
    %1033 = vmatprep.mubr.bf16.mxu0 0
    %1034 = vmatmul.mubr.bf16.gmra.mrb[0].mxu0 %v996
    %v1035 = vpop.f32.mrb[0].mxu0
    %v1036 = vadd.f32 0.0, %v1035
    %v1037 = vpop.f32.mrb[0].mxu0
    %v1038 = vpop.f32.mrb[0].mxu0
    %v1039 = vpop.f32.mrb[0].mxu0
    %1040 = vdwg.mxu0
    %1042 = vrot.lane.b32.xlu0 %v1036, 24
    %v1043 = vpop.permute.xlu0 %1042
    %1045 = vst.msk [vmem:[#allocation2 + $0x8] sm:$0xff] %vm585, %v1043
    %v1046 = vld [vmem:[#allocation2] sm:$0xff]
    %v1047 = vld [vmem:[#allocation2 + $0x8] sm:$0xff]
    %v1048 = vpack.c.bf16 %v1047, %v1046
    %v1049 = vld [vmem:[%s3] sm:$0xf]
    %v1050 = vld [vmem:[%s3 + $0x4] sm:$0xf]
    %v1051 = vld [vmem:[%s3 + $0x8] sm:$0xf]
    %v1052 = vld [vmem:[%s3 + $0xc] sm:$0xf]
    %v1053 = vld [vmem:[%s4] sm:$0x1]
    %v1055 = vlaneseq
    %v1056 = vshrl.u32 %v1055, 7
    %v1057 = vsub.s32 0, %v1056
    %v1058 = vrot.slane %v1053, %v1057
    %v1064 = vunpack.c.l.b16 %v1049
    %v1065 = vunpack.c.l.b16 %v1050
    %v1066 = vunpack.c.l.b16 %v1051
    %v1067 = vunpack.c.l.b16 %v1052
    %v1068 = vpack.c.b16 %v1065, %v1064
    %v1069 = vpack.c.b16 %v1067, %v1066
    %v1073 = vsel %vm78, %v1048, 0
    %1075 = vmatprep.subr.bf16.mxu0 0
    %1076 = vmatpush1.bf16.msra.mxu0 %v1068
    %1077 = vmatprep.subr.bf16.mxu0 0
    %1078 = vmatpush1.bf16.msra.mxu0 %v1069
    %1079 = vmatprep.subr.bf16.mxu0 0
    %1080 = vmatpush1.bf16.msra.mxu0 0
    %1081 = vmatprep.subr.bf16.mxu0 0
    %1082 = vmatpush1.bf16.msra.mxu0 0
    %1083 = vmatprep.subr.bf16.mxu0 0
    %1084 = vmatpush1.bf16.msra.mxu0 0
    %1085 = vmatprep.subr.bf16.mxu0 0
    %1086 = vmatpush1.bf16.msra.mxu0 0
    %1087 = vmatprep.subr.bf16.mxu0 0
    %1088 = vmatpush1.bf16.msra.mxu0 0
    %1089 = vmatprep.subr.bf16.mxu0 0
    %1090 = vmatpush1.bf16.msra.mxu0 0
    %1091 = vmatprep.subr.bf16.mxu0 0
    %1092 = vmatpush1.bf16.msra.mxu0 0
    %1093 = vmatprep.subr.bf16.mxu0 0
    %1094 = vmatpush1.bf16.msra.mxu0 0
    %1095 = vmatprep.subr.bf16.mxu0 0
    %1096 = vmatpush1.bf16.msra.mxu0 0
    %1097 = vmatprep.subr.bf16.mxu0 0
    %1098 = vmatpush1.bf16.msra.mxu0 0
    %1099 = vmatprep.subr.bf16.mxu0 0
    %1100 = vmatpush1.bf16.msra.mxu0 0
    %1101 = vmatprep.subr.bf16.mxu0 0
    %1102 = vmatpush1.bf16.msra.mxu0 0
    %1103 = vmatprep.subr.bf16.mxu0 0
    %1104 = vmatpush1.bf16.msra.mxu0 0
    %1105 = vmatprep.subr.bf16.mxu0 0
    %1106 = vmatpush1.bf16.msra.mxu0 0
    %1107 = vmatprep.mubr.bf16.mxu0 0
    %1108 = vmatmul.mubr.bf16.gmra.mrb[0].mxu0 %v1073
    %v1109 = vpop.f32.mrb[0].mxu0
    %v1110 = vadd.f32 %v1058, %v1109
    %v1111 = vpop.f32.mrb[0].mxu0
    %v1112 = vpop.f32.mrb[0].mxu0
    %v1113 = vadd.f32 %v1058, %v1112
    %v1114 = vpop.f32.mrb[0].mxu0
    %1115 = vdwg.mxu0
    %v1116 = vadd.f32 %v1110, %v52
    %v1117 = vadd.f32 %v1113, %v53
    %v1118 = vld [vmem:[%s5] sm:$0x1]
    %v1119 = vld [vmem:[%s6] sm:$0x1]
    %v1120 = vsel %vm78, %v1116, 0.0
    %1121 = vadd.xlane.f32.xlu0 %v1120
    %v1122 = vpop.xlane.xlu0 %1121
    %v1123 = vsel %vm78, %v1117, 0.0
    %1124 = vadd.xlane.f32.xlu0 %v1123
    %v1125 = vpop.xlane.xlu0 %1124
    %v1126 = vrcp.pop 32.0
    %v1127 = vmul.f32 %v1122, %v1126
    %v1128 = vmul.f32 %v1125, %v1126
    %v1129 = vsub.f32 %v1116, %v1127
    %v1130 = vsub.f32 %v1117, %v1128
    %v1131 = vmul.f32 %v1129, %v1129
    %v1132 = vmul.f32 %v1130, %v1130
    %v1133 = vsel %vm78, %v1131, 0.0
    %1134 = vadd.xlane.f32.xlu0 %v1133
    %v1135 = vpop.xlane.xlu0 %1134
    %v1136 = vsel %vm78, %v1132, 0.0
    %1137 = vadd.xlane.f32.xlu0 %v1136
    %v1138 = vpop.xlane.xlu0 %1137
    %v1139 = vmul.f32 %v1135, %v1126
    %v1140 = vmul.f32 %v1138, %v1126
    %v1141 = vadd.f32 %v1139, 1e-05
    %v1142 = vadd.f32 %v1140, 1e-05
    %v1143 = vrsqrt.pop %v1141
    %v1144 = vrsqrt.pop %v1142
    %v1145 = vmul.f32 %v1129, %v1143
    %v1146 = vmul.f32 %v1130, %v1144
    %v1148 = vlaneseq
    %v1149 = vshrl.u32 %v1148, 7
    %v1150 = vsub.s32 0, %v1149
    %v1151 = vrot.slane %v1118, %v1150
    %v1153 = vmul.f32 %v1145, %v1151
    %v1154 = vmul.f32 %v1146, %v1151
    %v1156 = vlaneseq
    %v1157 = vshrl.u32 %v1156, 7
    %v1158 = vsub.s32 0, %v1157
    %v1159 = vrot.slane %v1119, %v1158
    %v1161 = vadd.f32 %v1153, %v1159
    %v1162 = vadd.f32 %v1154, %v1159
    %v1163 = vpack.c.bf16 %v1162, %v1161
    %v1164 = vld [vmem:[%s7] sm:$0xff]
    %v1165 = vld [vmem:[%s7 + $0x8] sm:$0xff]
    %v1166 = vld [vmem:[%s7 + $0x10] sm:$0xff]
    %v1167 = vld [vmem:[%s7 + $0x18] sm:$0xff]
    %v1168 = vld [vmem:[%s7 + $0x20] sm:$0xff]
    %v1169 = vld [vmem:[%s7 + $0x28] sm:$0xff]
    %v1170 = vld [vmem:[%s7 + $0x30] sm:$0xff]
    %v1171 = vld [vmem:[%s7 + $0x38] sm:$0xff]
    %v1172 = vld [vmem:[%s7 + $0x40] sm:$0xff]
    %v1173 = vld [vmem:[%s7 + $0x48] sm:$0xff]
    %v1174 = vld [vmem:[%s7 + $0x50] sm:$0xff]
    %v1175 = vld [vmem:[%s7 + $0x58] sm:$0xff]
    %v1176 = vld [vmem:[%s7 + $0x60] sm:$0xff]
    %v1177 = vld [vmem:[%s7 + $0x68] sm:$0xff]
    %v1178 = vld [vmem:[%s7 + $0x70] sm:$0xff]
    %v1179 = vld [vmem:[%s7 + $0x78] sm:$0xff]
    %v1180 = vld [vmem:[%s7 + $0x80] sm:$0xff]
    %v1181 = vld [vmem:[%s7 + $0x88] sm:$0xff]
    %v1182 = vld [vmem:[%s7 + $0x90] sm:$0xff]
    %v1183 = vld [vmem:[%s7 + $0x98] sm:$0xff]
    %v1184 = vld [vmem:[%s7 + $0xa0] sm:$0xff]
    %v1185 = vld [vmem:[%s7 + $0xa8] sm:$0xff]
    %v1186 = vld [vmem:[%s7 + $0xb0] sm:$0xff]
    %v1187 = vld [vmem:[%s7 + $0xb8] sm:$0xff]
    %v1188 = vld [vmem:[%s7 + $0xc0] sm:$0xff]
    %v1189 = vld [vmem:[%s7 + $0xc8] sm:$0xff]
    %v1190 = vld [vmem:[%s7 + $0xd0] sm:$0xff]
    %v1191 = vld [vmem:[%s7 + $0xd8] sm:$0xff]
    %v1192 = vld [vmem:[%s7 + $0xe0] sm:$0xff]
    %v1193 = vld [vmem:[%s7 + $0xe8] sm:$0xff]
    %v1194 = vld [vmem:[%s7 + $0xf0] sm:$0xff]
    %v1195 = vld [vmem:[%s7 + $0xf8] sm:$0xff]
    %v1196 = vld [vmem:[%s8] sm:$0xff]
    %v1197 = vld [vmem:[%s8 + $0x8] sm:$0xff]
    %v1200 = vlaneseq
    %v1201 = vshrl.u32 %v1200, 7
    %v1202 = vsub.s32 0, %v1201
    %v1203 = vrot.slane %v1196, %v1202
    %v1204 = vlaneseq
    %v1205 = vshrl.u32 %v1204, 7
    %v1206 = vsub.s32 1, %v1205
    %v1207 = vrot.slane %v1196, %v1206
    %v1208 = vlaneseq
    %v1209 = vshrl.u32 %v1208, 7
    %v1210 = vsub.s32 2, %v1209
    %v1211 = vrot.slane %v1196, %v1210
    %v1212 = vlaneseq
    %v1213 = vshrl.u32 %v1212, 7
    %v1214 = vsub.s32 3, %v1213
    %v1215 = vrot.slane %v1196, %v1214
    %v1216 = vlaneseq
    %v1217 = vshrl.u32 %v1216, 7
    %v1218 = vsub.s32 4, %v1217
    %v1219 = vrot.slane %v1196, %v1218
    %v1220 = vlaneseq
    %v1221 = vshrl.u32 %v1220, 7
    %v1222 = vsub.s32 5, %v1221
    %v1223 = vrot.slane %v1196, %v1222
    %v1224 = vlaneseq
    %v1225 = vshrl.u32 %v1224, 7
    %v1226 = vsub.s32 6, %v1225
    %v1227 = vrot.slane %v1196, %v1226
    %v1228 = vlaneseq
    %v1229 = vshrl.u32 %v1228, 7
    %v1230 = vsub.s32 7, %v1229
    %v1231 = vrot.slane %v1196, %v1230
    %v1232 = vlaneseq
    %v1233 = vshrl.u32 %v1232, 7
    %v1234 = vsub.s32 0, %v1233
    %v1235 = vrot.slane %v1197, %v1234
    %v1236 = vlaneseq
    %v1237 = vshrl.u32 %v1236, 7
    %v1238 = vsub.s32 1, %v1237
    %v1239 = vrot.slane %v1197, %v1238
    %v1240 = vlaneseq
    %v1241 = vshrl.u32 %v1240, 7
    %v1242 = vsub.s32 2, %v1241
    %v1243 = vrot.slane %v1197, %v1242
    %v1244 = vlaneseq
    %v1245 = vshrl.u32 %v1244, 7
    %v1246 = vsub.s32 3, %v1245
    %v1247 = vrot.slane %v1197, %v1246
    %v1248 = vlaneseq
    %v1249 = vshrl.u32 %v1248, 7
    %v1250 = vsub.s32 4, %v1249
    %v1251 = vrot.slane %v1197, %v1250
    %v1252 = vlaneseq
    %v1253 = vshrl.u32 %v1252, 7
    %v1254 = vsub.s32 5, %v1253
    %v1255 = vrot.slane %v1197, %v1254
    %v1256 = vlaneseq
    %v1257 = vshrl.u32 %v1256, 7
    %v1258 = vsub.s32 6, %v1257
    %v1259 = vrot.slane %v1197, %v1258
    %v1260 = vlaneseq
    %v1261 = vshrl.u32 %v1260, 7
    %v1262 = vsub.s32 7, %v1261
    %v1263 = vrot.slane %v1197, %v1262
    %v1312 = vunpack.c.l.b16 %v1164
    %v1313 = vunpack.c.h.b16 %v1164
    %v1314 = vunpack.c.l.b16 %v1165
    %v1315 = vunpack.c.h.b16 %v1165
    %v1316 = vunpack.c.l.b16 %v1166
    %v1317 = vunpack.c.h.b16 %v1166
    %v1318 = vunpack.c.l.b16 %v1167
    %v1319 = vunpack.c.h.b16 %v1167
    %v1320 = vunpack.c.l.b16 %v1168
    %v1321 = vunpack.c.h.b16 %v1168
    %v1322 = vunpack.c.l.b16 %v1169
    %v1323 = vunpack.c.h.b16 %v1169
    %v1324 = vunpack.c.l.b16 %v1170
    %v1325 = vunpack.c.h.b16 %v1170
    %v1326 = vunpack.c.l.b16 %v1171
    %v1327 = vunpack.c.h.b16 %v1171
    %v1328 = vunpack.c.l.b16 %v1172
    %v1329 = vunpack.c.h.b16 %v1172
    %v1330 = vunpack.c.l.b16 %v1173
    %v1331 = vunpack.c.h.b16 %v1173
    %v1332 = vunpack.c.l.b16 %v1174
    %v1333 = vunpack.c.h.b16 %v1174
    %v1334 = vunpack.c.l.b16 %v1175
    %v1335 = vunpack.c.h.b16 %v1175
    %v1336 = vunpack.c.l.b16 %v1176
    %v1337 = vunpack.c.h.b16 %v1176
    %v1338 = vunpack.c.l.b16 %v1177
    %v1339 = vunpack.c.h.b16 %v1177
    %v1340 = vunpack.c.l.b16 %v1178
    %v1341 = vunpack.c.h.b16 %v1178
    %v1342 = vunpack.c.l.b16 %v1179
    %v1343 = vunpack.c.h.b16 %v1179
    %v1344 = vunpack.c.l.b16 %v1180
    %v1345 = vunpack.c.h.b16 %v1180
    %v1346 = vunpack.c.l.b16 %v1181
    %v1347 = vunpack.c.h.b16 %v1181
    %v1348 = vunpack.c.l.b16 %v1182
    %v1349 = vunpack.c.h.b16 %v1182
    %v1350 = vunpack.c.l.b16 %v1183
    %v1351 = vunpack.c.h.b16 %v1183
    %v1352 = vunpack.c.l.b16 %v1184
    %v1353 = vunpack.c.h.b16 %v1184
    %v1354 = vunpack.c.l.b16 %v1185
    %v1355 = vunpack.c.h.b16 %v1185
    %v1356 = vunpack.c.l.b16 %v1186
    %v1357 = vunpack.c.h.b16 %v1186
    %v1358 = vunpack.c.l.b16 %v1187
    %v1359 = vunpack.c.h.b16 %v1187
    %v1360 = vunpack.c.l.b16 %v1188
    %v1361 = vunpack.c.h.b16 %v1188
    %v1362 = vunpack.c.l.b16 %v1189
    %v1363 = vunpack.c.h.b16 %v1189
    %v1364 = vunpack.c.l.b16 %v1190
    %v1365 = vunpack.c.h.b16 %v1190
    %v1366 = vunpack.c.l.b16 %v1191
    %v1367 = vunpack.c.h.b16 %v1191
    %v1368 = vunpack.c.l.b16 %v1192
    %v1369 = vunpack.c.h.b16 %v1192
    %v1370 = vunpack.c.l.b16 %v1193
    %v1371 = vunpack.c.h.b16 %v1193
    %v1372 = vunpack.c.l.b16 %v1194
    %v1373 = vunpack.c.h.b16 %v1194
    %v1374 = vunpack.c.l.b16 %v1195
    %v1375 = vunpack.c.h.b16 %v1195
    %v1376 = vpack.c.b16 %v1328, %v1312
    %v1377 = vpack.c.b16 %v1329, %v1313
    %v1378 = vpack.c.b16 %v1330, %v1314
    %v1379 = vpack.c.b16 %v1331, %v1315
    %v1380 = vpack.c.b16 %v1332, %v1316
    %v1381 = vpack.c.b16 %v1333, %v1317
    %v1382 = vpack.c.b16 %v1334, %v1318
    %v1383 = vpack.c.b16 %v1335, %v1319
    %v1384 = vpack.c.b16 %v1336, %v1320
    %v1385 = vpack.c.b16 %v1337, %v1321
    %v1386 = vpack.c.b16 %v1338, %v1322
    %v1387 = vpack.c.b16 %v1339, %v1323
    %v1388 = vpack.c.b16 %v1340, %v1324
    %v1389 = vpack.c.b16 %v1341, %v1325
    %v1390 = vpack.c.b16 %v1342, %v1326
    %v1391 = vpack.c.b16 %v1343, %v1327
    %v1392 = vpack.c.b16 %v1360, %v1344
    %v1393 = vpack.c.b16 %v1361, %v1345
    %v1394 = vpack.c.b16 %v1362, %v1346
    %v1395 = vpack.c.b16 %v1363, %v1347
    %v1396 = vpack.c.b16 %v1364, %v1348
    %v1397 = vpack.c.b16 %v1365, %v1349
    %v1398 = vpack.c.b16 %v1366, %v1350
    %v1399 = vpack.c.b16 %v1367, %v1351
    %v1400 = vpack.c.b16 %v1368, %v1352
    %v1401 = vpack.c.b16 %v1369, %v1353
    %v1402 = vpack.c.b16 %v1370, %v1354
    %v1403 = vpack.c.b16 %v1371, %v1355
    %v1404 = vpack.c.b16 %v1372, %v1356
    %v1405 = vpack.c.b16 %v1373, %v1357
    %v1406 = vpack.c.b16 %v1374, %v1358
    %v1407 = vpack.c.b16 %v1375, %v1359
    %v1441 = vsel %vm78, %v1163, 0
    %1443 = vmatprep.subr.bf16.mxu0 %v1377
    %1444 = vmatpush1.bf16.msra.mxu0 %v1376
    %1445 = vmatprep.subr.bf16.mxu0 %v1393
    %1446 = vmatpush1.bf16.msra.mxu0 %v1392
    %1447 = vmatprep.subr.bf16.mxu0 0
    %1448 = vmatpush1.bf16.msra.mxu0 0
    %1449 = vmatprep.subr.bf16.mxu0 0
    %1450 = vmatpush1.bf16.msra.mxu0 0
    %1451 = vmatprep.subr.bf16.mxu0 0
    %1452 = vmatpush1.bf16.msra.mxu0 0
    %1453 = vmatprep.subr.bf16.mxu0 0
    %1454 = vmatpush1.bf16.msra.mxu0 0
    %1455 = vmatprep.subr.bf16.mxu0 0
    %1456 = vmatpush1.bf16.msra.mxu0 0
    %1457 = vmatprep.subr.bf16.mxu0 0
    %1458 = vmatpush1.bf16.msra.mxu0 0
    %1459 = vmatprep.subr.bf16.mxu0 0
    %1460 = vmatpush1.bf16.msra.mxu0 0
    %1461 = vmatprep.subr.bf16.mxu0 0
    %1462 = vmatpush1.bf16.msra.mxu0 0
    %1463 = vmatprep.subr.bf16.mxu0 0
    %1464 = vmatpush1.bf16.msra.mxu0 0
    %1465 = vmatprep.subr.bf16.mxu0 0
    %1466 = vmatpush1.bf16.msra.mxu0 0
    %1467 = vmatprep.subr.bf16.mxu0 0
    %1468 = vmatpush1.bf16.msra.mxu0 0
    %1469 = vmatprep.subr.bf16.mxu0 0
    %1470 = vmatpush1.bf16.msra.mxu0 0
    %1471 = vmatprep.subr.bf16.mxu0 0
    %1472 = vmatpush1.bf16.msra.mxu0 0
    %1473 = vmatprep.subr.bf16.mxu0 0
    %1474 = vmatpush1.bf16.msra.mxu0 0
    %1475 = vmatprep.mubr.bf16.mxu0 0
    %1476 = vmatmul.mubr.bf16.gmra.mrb[0].mxu0 %v1441
    %v1477 = vpop.f32.mrb[0].mxu0
    %v1478 = vadd.f32 %v1203, %v1477
    %v1479 = vpop.f32.mrb[0].mxu0
    %v1480 = vadd.f32 %v1207, %v1479
    %v1481 = vpop.f32.mrb[0].mxu0
    %v1482 = vadd.f32 %v1203, %v1481
    %v1483 = vpop.f32.mrb[0].mxu0
    %v1484 = vadd.f32 %v1207, %v1483
    %1485 = vdwg.mxu0
    %1486 = vmatprep.subr.bf16.mxu0 %v1379
    %1487 = vmatpush1.bf16.msra.mxu0 %v1378
    %1488 = vmatprep.subr.bf16.mxu0 %v1395
    %1489 = vmatpush1.bf16.msra.mxu0 %v1394
    %1490 = vmatprep.subr.bf16.mxu0 0
    %1491 = vmatpush1.bf16.msra.mxu0 0
    %1492 = vmatprep.subr.bf16.mxu0 0
    %1493 = vmatpush1.bf16.msra.mxu0 0
    %1494 = vmatprep.subr.bf16.mxu0 0
    %1495 = vmatpush1.bf16.msra.mxu0 0
    %1496 = vmatprep.subr.bf16.mxu0 0
    %1497 = vmatpush1.bf16.msra.mxu0 0
    %1498 = vmatprep.subr.bf16.mxu0 0
    %1499 = vmatpush1.bf16.msra.mxu0 0
    %1500 = vmatprep.subr.bf16.mxu0 0
    %1501 = vmatpush1.bf16.msra.mxu0 0
    %1502 = vmatprep.subr.bf16.mxu0 0
    %1503 = vmatpush1.bf16.msra.mxu0 0
    %1504 = vmatprep.subr.bf16.mxu0 0
    %1505 = vmatpush1.bf16.msra.mxu0 0
    %1506 = vmatprep.subr.bf16.mxu0 0
    %1507 = vmatpush1.bf16.msra.mxu0 0
    %1508 = vmatprep.subr.bf16.mxu0 0
    %1509 = vmatpush1.bf16.msra.mxu0 0
    %1510 = vmatprep.subr.bf16.mxu0 0
    %1511 = vmatpush1.bf16.msra.mxu0 0
    %1512 = vmatprep.subr.bf16.mxu0 0
    %1513 = vmatpush1.bf16.msra.mxu0 0
    %1514 = vmatprep.subr.bf16.mxu0 0
    %1515 = vmatpush1.bf16.msra.mxu0 0
    %1516 = vmatprep.subr.bf16.mxu0 0
    %1517 = vmatpush1.bf16.msra.mxu0 0
    %1518 = vmatprep.mubr.bf16.mxu0 0
    %1519 = vmatmul.mubr.bf16.gmra.mrb[0].mxu0 %v1441
    %v1520 = vpop.f32.mrb[0].mxu0
    %v1521 = vadd.f32 %v1211, %v1520
    %v1522 = vpop.f32.mrb[0].mxu0
    %v1523 = vadd.f32 %v1215, %v1522
    %v1524 = vpop.f32.mrb[0].mxu0
    %v1525 = vadd.f32 %v1211, %v1524
    %v1526 = vpop.f32.mrb[0].mxu0
    %v1527 = vadd.f32 %v1215, %v1526
    %1528 = vdwg.mxu0
    %1529 = vmatprep.subr.bf16.mxu0 %v1381
    %1530 = vmatpush1.bf16.msra.mxu0 %v1380
    %1531 = vmatprep.subr.bf16.mxu0 %v1397
    %1532 = vmatpush1.bf16.msra.mxu0 %v1396
    %1533 = vmatprep.subr.bf16.mxu0 0
    %1534 = vmatpush1.bf16.msra.mxu0 0
    %1535 = vmatprep.subr.bf16.mxu0 0
    %1536 = vmatpush1.bf16.msra.mxu0 0
    %1537 = vmatprep.subr.bf16.mxu0 0
    %1538 = vmatpush1.bf16.msra.mxu0 0
    %1539 = vmatprep.subr.bf16.mxu0 0
    %1540 = vmatpush1.bf16.msra.mxu0 0
    %1541 = vmatprep.subr.bf16.mxu0 0
    %1542 = vmatpush1.bf16.msra.mxu0 0
    %1543 = vmatprep.subr.bf16.mxu0 0
    %1544 = vmatpush1.bf16.msra.mxu0 0
    %1545 = vmatprep.subr.bf16.mxu0 0
    %1546 = vmatpush1.bf16.msra.mxu0 0
    %1547 = vmatprep.subr.bf16.mxu0 0
    %1548 = vmatpush1.bf16.msra.mxu0 0
    %1549 = vmatprep.subr.bf16.mxu0 0
    %1550 = vmatpush1.bf16.msra.mxu0 0
    %1551 = vmatprep.subr.bf16.mxu0 0
    %1552 = vmatpush1.bf16.msra.mxu0 0
    %1553 = vmatprep.subr.bf16.mxu0 0
    %1554 = vmatpush1.bf16.msra.mxu0 0
    %1555 = vmatprep.subr.bf16.mxu0 0
    %1556 = vmatpush1.bf16.msra.mxu0 0
    %1557 = vmatprep.subr.bf16.mxu0 0
    %1558 = vmatpush1.bf16.msra.mxu0 0
    %1559 = vmatprep.subr.bf16.mxu0 0
    %1560 = vmatpush1.bf16.msra.mxu0 0
    %1561 = vmatprep.mubr.bf16.mxu0 0
    %1562 = vmatmul.mubr.bf16.gmra.mrb[0].mxu0 %v1441
    %v1563 = vpop.f32.mrb[0].mxu0
    %v1564 = vadd.f32 %v1219, %v1563
    %v1565 = vpop.f32.mrb[0].mxu0
    %v1566 = vadd.f32 %v1223, %v1565
    %v1567 = vpop.f32.mrb[0].mxu0
    %v1568 = vadd.f32 %v1219, %v1567
    %v1569 = vpop.f32.mrb[0].mxu0
    %v1570 = vadd.f32 %v1223, %v1569
    %1571 = vdwg.mxu0
    %1572 = vmatprep.subr.bf16.mxu0 %v1383
    %1573 = vmatpush1.bf16.msra.mxu0 %v1382
    %1574 = vmatprep.subr.bf16.mxu0 %v1399
    %1575 = vmatpush1.bf16.msra.mxu0 %v1398
    %1576 = vmatprep.subr.bf16.mxu0 0
    %1577 = vmatpush1.bf16.msra.mxu0 0
    %1578 = vmatprep.subr.bf16.mxu0 0
    %1579 = vmatpush1.bf16.msra.mxu0 0
    %1580 = vmatprep.subr.bf16.mxu0 0
    %1581 = vmatpush1.bf16.msra.mxu0 0
    %1582 = vmatprep.subr.bf16.mxu0 0
    %1583 = vmatpush1.bf16.msra.mxu0 0
    %1584 = vmatprep.subr.bf16.mxu0 0
    %1585 = vmatpush1.bf16.msra.mxu0 0
    %1586 = vmatprep.subr.bf16.mxu0 0
    %1587 = vmatpush1.bf16.msra.mxu0 0
    %1588 = vmatprep.subr.bf16.mxu0 0
    %1589 = vmatpush1.bf16.msra.mxu0 0
    %1590 = vmatprep.subr.bf16.mxu0 0
    %1591 = vmatpush1.bf16.msra.mxu0 0
    %1592 = vmatprep.subr.bf16.mxu0 0
    %1593 = vmatpush1.bf16.msra.mxu0 0
    %1594 = vmatprep.subr.bf16.mxu0 0
    %1595 = vmatpush1.bf16.msra.mxu0 0
    %1596 = vmatprep.subr.bf16.mxu0 0
    %1597 = vmatpush1.bf16.msra.mxu0 0
    %1598 = vmatprep.subr.bf16.mxu0 0
    %1599 = vmatpush1.bf16.msra.mxu0 0
    %1600 = vmatprep.subr.bf16.mxu0 0
    %1601 = vmatpush1.bf16.msra.mxu0 0
    %1602 = vmatprep.subr.bf16.mxu0 0
    %1603 = vmatpush1.bf16.msra.mxu0 0
    %1604 = vmatprep.mubr.bf16.mxu0 0
    %1605 = vmatmul.mubr.bf16.gmra.mrb[0].mxu0 %v1441
    %v1606 = vpop.f32.mrb[0].mxu0
    %v1607 = vadd.f32 %v1227, %v1606
    %v1608 = vpop.f32.mrb[0].mxu0
    %v1609 = vadd.f32 %v1231, %v1608
    %v1610 = vpop.f32.mrb[0].mxu0
    %v1611 = vadd.f32 %v1227, %v1610
    %v1612 = vpop.f32.mrb[0].mxu0
    %v1613 = vadd.f32 %v1231, %v1612
    %1614 = vdwg.mxu0
    %1615 = vmatprep.subr.bf16.mxu0 %v1385
    %1616 = vmatpush1.bf16.msra.mxu0 %v1384
    %1617 = vmatprep.subr.bf16.mxu0 %v1401
    %1618 = vmatpush1.bf16.msra.mxu0 %v1400
    %1619 = vmatprep.subr.bf16.mxu0 0
    %1620 = vmatpush1.bf16.msra.mxu0 0
    %1621 = vmatprep.subr.bf16.mxu0 0
    %1622 = vmatpush1.bf16.msra.mxu0 0
    %1623 = vmatprep.subr.bf16.mxu0 0
    %1624 = vmatpush1.bf16.msra.mxu0 0
    %1625 = vmatprep.subr.bf16.mxu0 0
    %1626 = vmatpush1.bf16.msra.mxu0 0
    %1627 = vmatprep.subr.bf16.mxu0 0
    %1628 = vmatpush1.bf16.msra.mxu0 0
    %1629 = vmatprep.subr.bf16.mxu0 0
    %1630 = vmatpush1.bf16.msra.mxu0 0
    %1631 = vmatprep.subr.bf16.mxu0 0
    %1632 = vmatpush1.bf16.msra.mxu0 0
    %1633 = vmatprep.subr.bf16.mxu0 0
    %1634 = vmatpush1.bf16.msra.mxu0 0
    %1635 = vmatprep.subr.bf16.mxu0 0
    %1636 = vmatpush1.bf16.msra.mxu0 0
    %1637 = vmatprep.subr.bf16.mxu0 0
    %1638 = vmatpush1.bf16.msra.mxu0 0
    %1639 = vmatprep.subr.bf16.mxu0 0
    %1640 = vmatpush1.bf16.msra.mxu0 0
    %1641 = vmatprep.subr.bf16.mxu0 0
    %1642 = vmatpush1.bf16.msra.mxu0 0
    %1643 = vmatprep.subr.bf16.mxu0 0
    %1644 = vmatpush1.bf16.msra.mxu0 0
    %1645 = vmatprep.subr.bf16.mxu0 0
    %1646 = vmatpush1.bf16.msra.mxu0 0
    %1647 = vmatprep.mubr.bf16.mxu0 0
    %1648 = vmatmul.mubr.bf16.gmra.mrb[0].mxu0 %v1441
    %v1649 = vpop.f32.mrb[0].mxu0
    %v1650 = vadd.f32 %v1235, %v1649
    %v1651 = vpop.f32.mrb[0].mxu0
    %v1652 = vadd.f32 %v1239, %v1651
    %v1653 = vpop.f32.mrb[0].mxu0
    %v1654 = vadd.f32 %v1235, %v1653
    %v1655 = vpop.f32.mrb[0].mxu0
    %v1656 = vadd.f32 %v1239, %v1655
    %1657 = vdwg.mxu0
    %1658 = vmatprep.subr.bf16.mxu0 %v1387
    %1659 = vmatpush1.bf16.msra.mxu0 %v1386
    %1660 = vmatprep.subr.bf16.mxu0 %v1403
    %1661 = vmatpush1.bf16.msra.mxu0 %v1402
    %1662 = vmatprep.subr.bf16.mxu0 0
    %1663 = vmatpush1.bf16.msra.mxu0 0
    %1664 = vmatprep.subr.bf16.mxu0 0
    %1665 = vmatpush1.bf16.msra.mxu0 0
    %1666 = vmatprep.subr.bf16.mxu0 0
    %1667 = vmatpush1.bf16.msra.mxu0 0
    %1668 = vmatprep.subr.bf16.mxu0 0
    %1669 = vmatpush1.bf16.msra.mxu0 0
    %1670 = vmatprep.subr.bf16.mxu0 0
    %1671 = vmatpush1.bf16.msra.mxu0 0
    %1672 = vmatprep.subr.bf16.mxu0 0
    %1673 = vmatpush1.bf16.msra.mxu0 0
    %1674 = vmatprep.subr.bf16.mxu0 0
    %1675 = vmatpush1.bf16.msra.mxu0 0
    %1676 = vmatprep.subr.bf16.mxu0 0
    %1677 = vmatpush1.bf16.msra.mxu0 0
    %1678 = vmatprep.subr.bf16.mxu0 0
    %1679 = vmatpush1.bf16.msra.mxu0 0
    %1680 = vmatprep.subr.bf16.mxu0 0
    %1681 = vmatpush1.bf16.msra.mxu0 0
    %1682 = vmatprep.subr.bf16.mxu0 0
    %1683 = vmatpush1.bf16.msra.mxu0 0
    %1684 = vmatprep.subr.bf16.mxu0 0
    %1685 = vmatpush1.bf16.msra.mxu0 0
    %1686 = vmatprep.subr.bf16.mxu0 0
    %1687 = vmatpush1.bf16.msra.mxu0 0
    %1688 = vmatprep.subr.bf16.mxu0 0
    %1689 = vmatpush1.bf16.msra.mxu0 0
    %1690 = vmatprep.mubr.bf16.mxu0 0
    %1691 = vmatmul.mubr.bf16.gmra.mrb[0].mxu0 %v1441
    %v1692 = vpop.f32.mrb[0].mxu0
    %v1693 = vadd.f32 %v1243, %v1692
    %v1694 = vpop.f32.mrb[0].mxu0
    %v1695 = vadd.f32 %v1247, %v1694
    %v1696 = vpop.f32.mrb[0].mxu0
    %v1697 = vadd.f32 %v1243, %v1696
    %v1698 = vpop.f32.mrb[0].mxu0
    %v1699 = vadd.f32 %v1247, %v1698
    %1700 = vdwg.mxu0
    %1701 = vmatprep.subr.bf16.mxu0 %v1389
    %1702 = vmatpush1.bf16.msra.mxu0 %v1388
    %1703 = vmatprep.subr.bf16.mxu0 %v1405
    %1704 = vmatpush1.bf16.msra.mxu0 %v1404
    %1705 = vmatprep.subr.bf16.mxu0 0
    %1706 = vmatpush1.bf16.msra.mxu0 0
    %1707 = vmatprep.subr.bf16.mxu0 0
    %1708 = vmatpush1.bf16.msra.mxu0 0
    %1709 = vmatprep.subr.bf16.mxu0 0
    %1710 = vmatpush1.bf16.msra.mxu0 0
    %1711 = vmatprep.subr.bf16.mxu0 0
    %1712 = vmatpush1.bf16.msra.mxu0 0
    %1713 = vmatprep.subr.bf16.mxu0 0
    %1714 = vmatpush1.bf16.msra.mxu0 0
    %1715 = vmatprep.subr.bf16.mxu0 0
    %1716 = vmatpush1.bf16.msra.mxu0 0
    %1717 = vmatprep.subr.bf16.mxu0 0
    %1718 = vmatpush1.bf16.msra.mxu0 0
    %1719 = vmatprep.subr.bf16.mxu0 0
    %1720 = vmatpush1.bf16.msra.mxu0 0
    %1721 = vmatprep.subr.bf16.mxu0 0
    %1722 = vmatpush1.bf16.msra.mxu0 0
    %1723 = vmatprep.subr.bf16.mxu0 0
    %1724 = vmatpush1.bf16.msra.mxu0 0
    %1725 = vmatprep.subr.bf16.mxu0 0
    %1726 = vmatpush1.bf16.msra.mxu0 0
    %1727 = vmatprep.subr.bf16.mxu0 0
    %1728 = vmatpush1.bf16.msra.mxu0 0
    %1729 = vmatprep.subr.bf16.mxu0 0
    %1730 = vmatpush1.bf16.msra.mxu0 0
    %1731 = vmatprep.subr.bf16.mxu0 0
    %1732 = vmatpush1.bf16.msra.mxu0 0
    %1733 = vmatprep.mubr.bf16.mxu0 0
    %1734 = vmatmul.mubr.bf16.gmra.mrb[0].mxu0 %v1441
    %v1735 = vpop.f32.mrb[0].mxu0
    %v1736 = vadd.f32 %v1251, %v1735
    %v1737 = vpop.f32.mrb[0].mxu0
    %v1738 = vadd.f32 %v1255, %v1737
    %v1739 = vpop.f32.mrb[0].mxu0
    %v1740 = vadd.f32 %v1251, %v1739
    %v1741 = vpop.f32.mrb[0].mxu0
    %v1742 = vadd.f32 %v1255, %v1741
    %1743 = vdwg.mxu0
    %1744 = vmatprep.subr.bf16.mxu0 %v1391
    %1745 = vmatpush1.bf16.msra.mxu0 %v1390
    %1746 = vmatprep.subr.bf16.mxu0 %v1407
    %1747 = vmatpush1.bf16.msra.mxu0 %v1406
    %1748 = vmatprep.subr.bf16.mxu0 0
    %1749 = vmatpush1.bf16.msra.mxu0 0
    %1750 = vmatprep.subr.bf16.mxu0 0
    %1751 = vmatpush1.bf16.msra.mxu0 0
    %1752 = vmatprep.subr.bf16.mxu0 0
    %1753 = vmatpush1.bf16.msra.mxu0 0
    %1754 = vmatprep.subr.bf16.mxu0 0
    %1755 = vmatpush1.bf16.msra.mxu0 0
    %1756 = vmatprep.subr.bf16.mxu0 0
    %1757 = vmatpush1.bf16.msra.mxu0 0
    %1758 = vmatprep.subr.bf16.mxu0 0
    %1759 = vmatpush1.bf16.msra.mxu0 0
    %1760 = vmatprep.subr.bf16.mxu0 0
    %1761 = vmatpush1.bf16.msra.mxu0 0
    %1762 = vmatprep.subr.bf16.mxu0 0
    %1763 = vmatpush1.bf16.msra.mxu0 0
    %1764 = vmatprep.subr.bf16.mxu0 0
    %1765 = vmatpush1.bf16.msra.mxu0 0
    %1766 = vmatprep.subr.bf16.mxu0 0
    %1767 = vmatpush1.bf16.msra.mxu0 0
    %1768 = vmatprep.subr.bf16.mxu0 0
    %1769 = vmatpush1.bf16.msra.mxu0 0
    %1770 = vmatprep.subr.bf16.mxu0 0
    %1771 = vmatpush1.bf16.msra.mxu0 0
    %1772 = vmatprep.subr.bf16.mxu0 0
    %1773 = vmatpush1.bf16.msra.mxu0 0
    %1774 = vmatprep.subr.bf16.mxu0 0
    %1775 = vmatpush1.bf16.msra.mxu0 0
    %1776 = vmatprep.mubr.bf16.mxu0 0
    %1777 = vmatmul.mubr.bf16.gmra.mrb[0].mxu0 %v1441
    %v1778 = vpop.f32.mrb[0].mxu0
    %v1779 = vadd.f32 %v1259, %v1778
    %v1780 = vpop.f32.mrb[0].mxu0
    %v1781 = vadd.f32 %v1263, %v1780
    %v1782 = vpop.f32.mrb[0].mxu0
    %v1783 = vadd.f32 %v1259, %v1782
    %v1784 = vpop.f32.mrb[0].mxu0
    %v1785 = vadd.f32 %v1263, %v1784
    %1786 = vdwg.mxu0
    %v1787 = vmax.f32 %v1478, 0.0
    %v1788 = vmax.f32 %v1480, 0.0
    %v1789 = vmax.f32 %v1521, 0.0
    %v1790 = vmax.f32 %v1523, 0.0
    %v1791 = vmax.f32 %v1564, 0.0
    %v1792 = vmax.f32 %v1566, 0.0
    %v1793 = vmax.f32 %v1607, 0.0
    %v1794 = vmax.f32 %v1609, 0.0
    %v1795 = vmax.f32 %v1650, 0.0
    %v1796 = vmax.f32 %v1652, 0.0
    %v1797 = vmax.f32 %v1693, 0.0
    %v1798 = vmax.f32 %v1695, 0.0
    %v1799 = vmax.f32 %v1736, 0.0
    %v1800 = vmax.f32 %v1738, 0.0
    %v1801 = vmax.f32 %v1779, 0.0
    %v1802 = vmax.f32 %v1781, 0.0
    %v1803 = vmax.f32 %v1482, 0.0
    %v1804 = vmax.f32 %v1484, 0.0
    %v1805 = vmax.f32 %v1525, 0.0
    %v1806 = vmax.f32 %v1527, 0.0
    %v1807 = vmax.f32 %v1568, 0.0
    %v1808 = vmax.f32 %v1570, 0.0
    %v1809 = vmax.f32 %v1611, 0.0
    %v1810 = vmax.f32 %v1613, 0.0
    %v1811 = vmax.f32 %v1654, 0.0
    %v1812 = vmax.f32 %v1656, 0.0
    %v1813 = vmax.f32 %v1697, 0.0
    %v1814 = vmax.f32 %v1699, 0.0
    %v1815 = vmax.f32 %v1740, 0.0
    %v1816 = vmax.f32 %v1742, 0.0
    %v1817 = vmax.f32 %v1783, 0.0
    %v1818 = vmax.f32 %v1785, 0.0
    %v1819 = vpack.c.bf16 %v1803, %v1787
    %v1820 = vpack.c.bf16 %v1804, %v1788
    %v1821 = vpack.c.bf16 %v1805, %v1789
    %v1822 = vpack.c.bf16 %v1806, %v1790
    %v1823 = vpack.c.bf16 %v1807, %v1791
    %v1824 = vpack.c.bf16 %v1808, %v1792
    %v1825 = vpack.c.bf16 %v1809, %v1793
    %v1826 = vpack.c.bf16 %v1810, %v1794
    %v1827 = vpack.c.bf16 %v1811, %v1795
    %v1828 = vpack.c.bf16 %v1812, %v1796
    %v1829 = vpack.c.bf16 %v1813, %v1797
    %v1830 = vpack.c.bf16 %v1814, %v1798
    %v1831 = vpack.c.bf16 %v1815, %v1799
    %v1832 = vpack.c.bf16 %v1816, %v1800
    %v1833 = vpack.c.bf16 %v1817, %v1801
    %v1834 = vpack.c.bf16 %v1818, %v1802
    %v1835 = vld [vmem:[%s9] sm:$0xf]
    %v1836 = vld [vmem:[%s9 + $0x4] sm:$0xf]
    %v1837 = vld [vmem:[%s9 + $0x8] sm:$0xf]
    %v1838 = vld [vmem:[%s9 + $0xc] sm:$0xf]
    %v1839 = vld [vmem:[%s9 + $0x10] sm:$0xf]
    %v1840 = vld [vmem:[%s9 + $0x14] sm:$0xf]
    %v1841 = vld [vmem:[%s9 + $0x18] sm:$0xf]
    %v1842 = vld [vmem:[%s9 + $0x1c] sm:$0xf]
    %v1843 = vld [vmem:[%s9 + $0x20] sm:$0xf]
    %v1844 = vld [vmem:[%s9 + $0x24] sm:$0xf]
    %v1845 = vld [vmem:[%s9 + $0x28] sm:$0xf]
    %v1846 = vld [vmem:[%s9 + $0x2c] sm:$0xf]
    %v1847 = vld [vmem:[%s9 + $0x30] sm:$0xf]
    %v1848 = vld [vmem:[%s9 + $0x34] sm:$0xf]
    %v1849 = vld [vmem:[%s9 + $0x38] sm:$0xf]
    %v1850 = vld [vmem:[%s9 + $0x3c] sm:$0xf]
    %v1851 = vld [vmem:[%s9 + $0x40] sm:$0xf]
    %v1852 = vld [vmem:[%s9 + $0x44] sm:$0xf]
    %v1853 = vld [vmem:[%s9 + $0x48] sm:$0xf]
    %v1854 = vld [vmem:[%s9 + $0x4c] sm:$0xf]
    %v1855 = vld [vmem:[%s9 + $0x50] sm:$0xf]
    %v1856 = vld [vmem:[%s9 + $0x54] sm:$0xf]
    %v1857 = vld [vmem:[%s9 + $0x58] sm:$0xf]
    %v1858 = vld [vmem:[%s9 + $0x5c] sm:$0xf]
    %v1859 = vld [vmem:[%s9 + $0x60] sm:$0xf]
    %v1860 = vld [vmem:[%s9 + $0x64] sm:$0xf]
    %v1861 = vld [vmem:[%s9 + $0x68] sm:$0xf]
    %v1862 = vld [vmem:[%s9 + $0x6c] sm:$0xf]
    %v1863 = vld [vmem:[%s9 + $0x70] sm:$0xf]
    %v1864 = vld [vmem:[%s9 + $0x74] sm:$0xf]
    %v1865 = vld [vmem:[%s9 + $0x78] sm:$0xf]
    %v1866 = vld [vmem:[%s9 + $0x7c] sm:$0xf]
    %v1867 = vld [vmem:[%s9 + $0x80] sm:$0xf]
    %v1868 = vld [vmem:[%s9 + $0x84] sm:$0xf]
    %v1869 = vld [vmem:[%s9 + $0x88] sm:$0xf]
    %v1870 = vld [vmem:[%s9 + $0x8c] sm:$0xf]
    %v1871 = vld [vmem:[%s9 + $0x90] sm:$0xf]
    %v1872 = vld [vmem:[%s9 + $0x94] sm:$0xf]
    %v1873 = vld [vmem:[%s9 + $0x98] sm:$0xf]
    %v1874 = vld [vmem:[%s9 + $0x9c] sm:$0xf]
    %v1875 = vld [vmem:[%s9 + $0xa0] sm:$0xf]
    %v1876 = vld [vmem:[%s9 + $0xa4] sm:$0xf]
    %v1877 = vld [vmem:[%s9 + $0xa8] sm:$0xf]
    %v1878 = vld [vmem:[%s9 + $0xac] sm:$0xf]
    %v1879 = vld [vmem:[%s9 + $0xb0] sm:$0xf]
    %v1880 = vld [vmem:[%s9 + $0xb4] sm:$0xf]
    %v1881 = vld [vmem:[%s9 + $0xb8] sm:$0xf]
    %v1882 = vld [vmem:[%s9 + $0xbc] sm:$0xf]
    %v1883 = vld [vmem:[%s9 + $0xc0] sm:$0xf]
    %v1884 = vld [vmem:[%s9 + $0xc4] sm:$0xf]
    %v1885 = vld [vmem:[%s9 + $0xc8] sm:$0xf]
    %v1886 = vld [vmem:[%s9 + $0xcc] sm:$0xf]
    %v1887 = vld [vmem:[%s9 + $0xd0] sm:$0xf]
    %v1888 = vld [vmem:[%s9 + $0xd4] sm:$0xf]
    %v1889 = vld [vmem:[%s9 + $0xd8] sm:$0xf]
    %v1890 = vld [vmem:[%s9 + $0xdc] sm:$0xf]
    %v1891 = vld [vmem:[%s9 + $0xe0] sm:$0xf]
    %v1892 = vld [vmem:[%s9 + $0xe4] sm:$0xf]
    %v1893 = vld [vmem:[%s9 + $0xe8] sm:$0xf]
    %v1894 = vld [vmem:[%s9 + $0xec] sm:$0xf]
    %v1895 = vld [vmem:[%s9 + $0xf0] sm:$0xf]
    %v1896 = vld [vmem:[%s9 + $0xf4] sm:$0xf]
    %v1897 = vld [vmem:[%s9 + $0xf8] sm:$0xf]
    %v1898 = vld [vmem:[%s9 + $0xfc] sm:$0xf]
    %v1899 = vld [vmem:[%s9 + $0x100] sm:$0xf]
    %v1900 = vld [vmem:[%s9 + $0x104] sm:$0xf]
    %v1901 = vld [vmem:[%s9 + $0x108] sm:$0xf]
    %v1902 = vld [vmem:[%s9 + $0x10c] sm:$0xf]
    %v1903 = vld [vmem:[%s9 + $0x110] sm:$0xf]
    %v1904 = vld [vmem:[%s9 + $0x114] sm:$0xf]
    %v1905 = vld [vmem:[%s9 + $0x118] sm:$0xf]
    %v1906 = vld [vmem:[%s9 + $0x11c] sm:$0xf]
    %v1907 = vld [vmem:[%s9 + $0x120] sm:$0xf]
    %v1908 = vld [vmem:[%s9 + $0x124] sm:$0xf]
    %v1909 = vld [vmem:[%s9 + $0x128] sm:$0xf]
    %v1910 = vld [vmem:[%s9 + $0x12c] sm:$0xf]
    %v1911 = vld [vmem:[%s9 + $0x130] sm:$0xf]
    %v1912 = vld [vmem:[%s9 + $0x134] sm:$0xf]
    %v1913 = vld [vmem:[%s9 + $0x138] sm:$0xf]
    %v1914 = vld [vmem:[%s9 + $0x13c] sm:$0xf]
    %v1915 = vld [vmem:[%s9 + $0x140] sm:$0xf]
    %v1916 = vld [vmem:[%s9 + $0x144] sm:$0xf]
    %v1917 = vld [vmem:[%s9 + $0x148] sm:$0xf]
    %v1918 = vld [vmem:[%s9 + $0x14c] sm:$0xf]
    %v1919 = vld [vmem:[%s9 + $0x150] sm:$0xf]
    %v1920 = vld [vmem:[%s9 + $0x154] sm:$0xf]
    %v1921 = vld [vmem:[%s9 + $0x158] sm:$0xf]
    %v1922 = vld [vmem:[%s9 + $0x15c] sm:$0xf]
    %v1923 = vld [vmem:[%s9 + $0x160] sm:$0xf]
    %v1924 = vld [vmem:[%s9 + $0x164] sm:$0xf]
    %v1925 = vld [vmem:[%s9 + $0x168] sm:$0xf]
    %v1926 = vld [vmem:[%s9 + $0x16c] sm:$0xf]
    %v1927 = vld [vmem:[%s9 + $0x170] sm:$0xf]
    %v1928 = vld [vmem:[%s9 + $0x174] sm:$0xf]
    %v1929 = vld [vmem:[%s9 + $0x178] sm:$0xf]
    %v1930 = vld [vmem:[%s9 + $0x17c] sm:$0xf]
    %v1931 = vld [vmem:[%s9 + $0x180] sm:$0xf]
    %v1932 = vld [vmem:[%s9 + $0x184] sm:$0xf]
    %v1933 = vld [vmem:[%s9 + $0x188] sm:$0xf]
    %v1934 = vld [vmem:[%s9 + $0x18c] sm:$0xf]
    %v1935 = vld [vmem:[%s9 + $0x190] sm:$0xf]
    %v1936 = vld [vmem:[%s9 + $0x194] sm:$0xf]
    %v1937 = vld [vmem:[%s9 + $0x198] sm:$0xf]
    %v1938 = vld [vmem:[%s9 + $0x19c] sm:$0xf]
    %v1939 = vld [vmem:[%s9 + $0x1a0] sm:$0xf]
    %v1940 = vld [vmem:[%s9 + $0x1a4] sm:$0xf]
    %v1941 = vld [vmem:[%s9 + $0x1a8] sm:$0xf]
    %v1942 = vld [vmem:[%s9 + $0x1ac] sm:$0xf]
    %v1943 = vld [vmem:[%s9 + $0x1b0] sm:$0xf]
    %v1944 = vld [vmem:[%s9 + $0x1b4] sm:$0xf]
    %v1945 = vld [vmem:[%s9 + $0x1b8] sm:$0xf]
    %v1946 = vld [vmem:[%s9 + $0x1bc] sm:$0xf]
    %v1947 = vld [vmem:[%s9 + $0x1c0] sm:$0xf]
    %v1948 = vld [vmem:[%s9 + $0x1c4] sm:$0xf]
    %v1949 = vld [vmem:[%s9 + $0x1c8] sm:$0xf]
    %v1950 = vld [vmem:[%s9 + $0x1cc] sm:$0xf]
    %v1951 = vld [vmem:[%s9 + $0x1d0] sm:$0xf]
    %v1952 = vld [vmem:[%s9 + $0x1d4] sm:$0xf]
    %v1953 = vld [vmem:[%s9 + $0x1d8] sm:$0xf]
    %v1954 = vld [vmem:[%s9 + $0x1dc] sm:$0xf]
    %v1955 = vld [vmem:[%s9 + $0x1e0] sm:$0xf]
    %v1956 = vld [vmem:[%s9 + $0x1e4] sm:$0xf]
    %v1957 = vld [vmem:[%s9 + $0x1e8] sm:$0xf]
    %v1958 = vld [vmem:[%s9 + $0x1ec] sm:$0xf]
    %v1959 = vld [vmem:[%s9 + $0x1f0] sm:$0xf]
    %v1960 = vld [vmem:[%s9 + $0x1f4] sm:$0xf]
    %v1961 = vld [vmem:[%s9 + $0x1f8] sm:$0xf]
    %v1962 = vld [vmem:[%s9 + $0x1fc] sm:$0xf]
    %v1963 = vld [vmem:[%s9 + $0x200] sm:$0xf]
    %v1964 = vld [vmem:[%s9 + $0x204] sm:$0xf]
    %v1965 = vld [vmem:[%s9 + $0x208] sm:$0xf]
    %v1966 = vld [vmem:[%s9 + $0x20c] sm:$0xf]
    %v1967 = vld [vmem:[%s9 + $0x210] sm:$0xf]
    %v1968 = vld [vmem:[%s9 + $0x214] sm:$0xf]
    %v1969 = vld [vmem:[%s9 + $0x218] sm:$0xf]
    %v1970 = vld [vmem:[%s9 + $0x21c] sm:$0xf]
    %v1971 = vld [vmem:[%s9 + $0x220] sm:$0xf]
    %v1972 = vld [vmem:[%s9 + $0x224] sm:$0xf]
    %v1973 = vld [vmem:[%s9 + $0x228] sm:$0xf]
    %v1974 = vld [vmem:[%s9 + $0x22c] sm:$0xf]
    %v1975 = vld [vmem:[%s9 + $0x230] sm:$0xf]
    %v1976 = vld [vmem:[%s9 + $0x234] sm:$0xf]
    %v1977 = vld [vmem:[%s9 + $0x238] sm:$0xf]
    %v1978 = vld [vmem:[%s9 + $0x23c] sm:$0xf]
    %v1979 = vld [vmem:[%s9 + $0x240] sm:$0xf]
    %v1980 = vld [vmem:[%s9 + $0x244] sm:$0xf]
    %v1981 = vld [vmem:[%s9 + $0x248] sm:$0xf]
    %v1982 = vld [vmem:[%s9 + $0x24c] sm:$0xf]
    %v1983 = vld [vmem:[%s9 + $0x250] sm:$0xf]
    %v1984 = vld [vmem:[%s9 + $0x254] sm:$0xf]
    %v1985 = vld [vmem:[%s9 + $0x258] sm:$0xf]
    %v1986 = vld [vmem:[%s9 + $0x25c] sm:$0xf]
    %v1987 = vld [vmem:[%s9 + $0x260] sm:$0xf]
    %v1988 = vld [vmem:[%s9 + $0x264] sm:$0xf]
    %v1989 = vld [vmem:[%s9 + $0x268] sm:$0xf]
    %v1990 = vld [vmem:[%s9 + $0x26c] sm:$0xf]
    %v1991 = vld [vmem:[%s9 + $0x270] sm:$0xf]
    %v1992 = vld [vmem:[%s9 + $0x274] sm:$0xf]
    %v1993 = vld [vmem:[%s9 + $0x278] sm:$0xf]
    %v1994 = vld [vmem:[%s9 + $0x27c] sm:$0xf]
    %v1995 = vld [vmem:[%s9 + $0x280] sm:$0xf]
    %v1996 = vld [vmem:[%s9 + $0x284] sm:$0xf]
    %v1997 = vld [vmem:[%s9 + $0x288] sm:$0xf]
    %v1998 = vld [vmem:[%s9 + $0x28c] sm:$0xf]
    %v1999 = vld [vmem:[%s9 + $0x290] sm:$0xf]
    %v2000 = vld [vmem:[%s9 + $0x294] sm:$0xf]
    %v2001 = vld [vmem:[%s9 + $0x298] sm:$0xf]
    %v2002 = vld [vmem:[%s9 + $0x29c] sm:$0xf]
    %v2003 = vld [vmem:[%s9 + $0x2a0] sm:$0xf]
    %v2004 = vld [vmem:[%s9 + $0x2a4] sm:$0xf]
    %v2005 = vld [vmem:[%s9 + $0x2a8] sm:$0xf]
    %v2006 = vld [vmem:[%s9 + $0x2ac] sm:$0xf]
    %v2007 = vld [vmem:[%s9 + $0x2b0] sm:$0xf]
    %v2008 = vld [vmem:[%s9 + $0x2b4] sm:$0xf]
    %v2009 = vld [vmem:[%s9 + $0x2b8] sm:$0xf]
    %v2010 = vld [vmem:[%s9 + $0x2bc] sm:$0xf]
    %v2011 = vld [vmem:[%s9 + $0x2c0] sm:$0xf]
    %v2012 = vld [vmem:[%s9 + $0x2c4] sm:$0xf]
    %v2013 = vld [vmem:[%s9 + $0x2c8] sm:$0xf]
    %v2014 = vld [vmem:[%s9 + $0x2cc] sm:$0xf]
    %v2015 = vld [vmem:[%s9 + $0x2d0] sm:$0xf]
    %v2016 = vld [vmem:[%s9 + $0x2d4] sm:$0xf]
    %v2017 = vld [vmem:[%s9 + $0x2d8] sm:$0xf]
    %v2018 = vld [vmem:[%s9 + $0x2dc] sm:$0xf]
    %v2019 = vld [vmem:[%s9 + $0x2e0] sm:$0xf]
    %v2020 = vld [vmem:[%s9 + $0x2e4] sm:$0xf]
    %v2021 = vld [vmem:[%s9 + $0x2e8] sm:$0xf]
    %v2022 = vld [vmem:[%s9 + $0x2ec] sm:$0xf]
    %v2023 = vld [vmem:[%s9 + $0x2f0] sm:$0xf]
    %v2024 = vld [vmem:[%s9 + $0x2f4] sm:$0xf]
    %v2025 = vld [vmem:[%s9 + $0x2f8] sm:$0xf]
    %v2026 = vld [vmem:[%s9 + $0x2fc] sm:$0xf]
    %v2027 = vld [vmem:[%s9 + $0x300] sm:$0xf]
    %v2028 = vld [vmem:[%s9 + $0x304] sm:$0xf]
    %v2029 = vld [vmem:[%s9 + $0x308] sm:$0xf]
    %v2030 = vld [vmem:[%s9 + $0x30c] sm:$0xf]
    %v2031 = vld [vmem:[%s9 + $0x310] sm:$0xf]
    %v2032 = vld [vmem:[%s9 + $0x314] sm:$0xf]
    %v2033 = vld [vmem:[%s9 + $0x318] sm:$0xf]
    %v2034 = vld [vmem:[%s9 + $0x31c] sm:$0xf]
    %v2035 = vld [vmem:[%s9 + $0x320] sm:$0xf]
    %v2036 = vld [vmem:[%s9 + $0x324] sm:$0xf]
    %v2037 = vld [vmem:[%s9 + $0x328] sm:$0xf]
    %v2038 = vld [vmem:[%s9 + $0x32c] sm:$0xf]
    %v2039 = vld [vmem:[%s9 + $0x330] sm:$0xf]
    %v2040 = vld [vmem:[%s9 + $0x334] sm:$0xf]
    %v2041 = vld [vmem:[%s9 + $0x338] sm:$0xf]
    %v2042 = vld [vmem:[%s9 + $0x33c] sm:$0xf]
    %v2043 = vld [vmem:[%s9 + $0x340] sm:$0xf]
    %v2044 = vld [vmem:[%s9 + $0x344] sm:$0xf]
    %v2045 = vld [vmem:[%s9 + $0x348] sm:$0xf]
    %v2046 = vld [vmem:[%s9 + $0x34c] sm:$0xf]
    %v2047 = vld [vmem:[%s9 + $0x350] sm:$0xf]
    %v2048 = vld [vmem:[%s9 + $0x354] sm:$0xf]
    %v2049 = vld [vmem:[%s9 + $0x358] sm:$0xf]
    %v2050 = vld [vmem:[%s9 + $0x35c] sm:$0xf]
    %v2051 = vld [vmem:[%s9 + $0x360] sm:$0xf]
    %v2052 = vld [vmem:[%s9 + $0x364] sm:$0xf]
    %v2053 = vld [vmem:[%s9 + $0x368] sm:$0xf]
    %v2054 = vld [vmem:[%s9 + $0x36c] sm:$0xf]
    %v2055 = vld [vmem:[%s9 + $0x370] sm:$0xf]
    %v2056 = vld [vmem:[%s9 + $0x374] sm:$0xf]
    %v2057 = vld [vmem:[%s9 + $0x378] sm:$0xf]
    %v2058 = vld [vmem:[%s9 + $0x37c] sm:$0xf]
    %v2059 = vld [vmem:[%s9 + $0x380] sm:$0xf]
    %v2060 = vld [vmem:[%s9 + $0x384] sm:$0xf]
    %v2061 = vld [vmem:[%s9 + $0x388] sm:$0xf]
    %v2062 = vld [vmem:[%s9 + $0x38c] sm:$0xf]
    %v2063 = vld [vmem:[%s9 + $0x390] sm:$0xf]
    %v2064 = vld [vmem:[%s9 + $0x394] sm:$0xf]
    %v2065 = vld [vmem:[%s9 + $0x398] sm:$0xf]
    %v2066 = vld [vmem:[%s9 + $0x39c] sm:$0xf]
    %v2067 = vld [vmem:[%s9 + $0x3a0] sm:$0xf]
    %v2068 = vld [vmem:[%s9 + $0x3a4] sm:$0xf]
    %v2069 = vld [vmem:[%s9 + $0x3a8] sm:$0xf]
    %v2070 = vld [vmem:[%s9 + $0x3ac] sm:$0xf]
    %v2071 = vld [vmem:[%s9 + $0x3b0] sm:$0xf]
    %v2072 = vld [vmem:[%s9 + $0x3b4] sm:$0xf]
    %v2073 = vld [vmem:[%s9 + $0x3b8] sm:$0xf]
    %v2074 = vld [vmem:[%s9 + $0x3bc] sm:$0xf]
    %v2075 = vld [vmem:[%s9 + $0x3c0] sm:$0xf]
    %v2076 = vld [vmem:[%s9 + $0x3c4] sm:$0xf]
    %v2077 = vld [vmem:[%s9 + $0x3c8] sm:$0xf]
    %v2078 = vld [vmem:[%s9 + $0x3cc] sm:$0xf]
    %v2079 = vld [vmem:[%s9 + $0x3d0] sm:$0xf]
    %v2080 = vld [vmem:[%s9 + $0x3d4] sm:$0xf]
    %v2081 = vld [vmem:[%s9 + $0x3d8] sm:$0xf]
    %v2082 = vld [vmem:[%s9 + $0x3dc] sm:$0xf]
    %v2083 = vld [vmem:[%s9 + $0x3e0] sm:$0xf]
    %v2084 = vld [vmem:[%s9 + $0x3e4] sm:$0xf]
    %v2085 = vld [vmem:[%s9 + $0x3e8] sm:$0xf]
    %v2086 = vld [vmem:[%s9 + $0x3ec] sm:$0xf]
    %v2087 = vld [vmem:[%s9 + $0x3f0] sm:$0xf]
    %v2088 = vld [vmem:[%s9 + $0x3f4] sm:$0xf]
    %v2089 = vld [vmem:[%s9 + $0x3f8] sm:$0xf]
    %v2090 = vld [vmem:[%s9 + $0x3fc] sm:$0xf]
    %v2091 = vld [vmem:[%s10] sm:$0x1]
    %v2093 = vlaneseq
    %v2094 = vshrl.u32 %v2093, 7
    %v2095 = vsub.s32 0, %v2094
    %v2096 = vrot.slane %v2091, %v2095
    %v2354 = vunpack.c.l.b16 %v1835
    %v2355 = vunpack.c.l.b16 %v1836
    %v2356 = vunpack.c.l.b16 %v1837
    %v2357 = vunpack.c.l.b16 %v1838
    %v2358 = vunpack.c.l.b16 %v1839
    %v2359 = vunpack.c.l.b16 %v1840
    %v2360 = vunpack.c.l.b16 %v1841
    %v2361 = vunpack.c.l.b16 %v1842
    %v2362 = vunpack.c.l.b16 %v1843
    %v2363 = vunpack.c.l.b16 %v1844
    %v2364 = vunpack.c.l.b16 %v1845
    %v2365 = vunpack.c.l.b16 %v1846
    %v2366 = vunpack.c.l.b16 %v1847
    %v2367 = vunpack.c.l.b16 %v1848
    %v2368 = vunpack.c.l.b16 %v1849
    %v2369 = vunpack.c.l.b16 %v1850
    %v2370 = vunpack.c.l.b16 %v1851
    %v2371 = vunpack.c.l.b16 %v1852
    %v2372 = vunpack.c.l.b16 %v1853
    %v2373 = vunpack.c.l.b16 %v1854
    %v2374 = vunpack.c.l.b16 %v1855
    %v2375 = vunpack.c.l.b16 %v1856
    %v2376 = vunpack.c.l.b16 %v1857
    %v2377 = vunpack.c.l.b16 %v1858
    %v2378 = vunpack.c.l.b16 %v1859
    %v2379 = vunpack.c.l.b16 %v1860
    %v2380 = vunpack.c.l.b16 %v1861
    %v2381 = vunpack.c.l.b16 %v1862
    %v2382 = vunpack.c.l.b16 %v1863
    %v2383 = vunpack.c.l.b16 %v1864
    %v2384 = vunpack.c.l.b16 %v1865
    %v2385 = vunpack.c.l.b16 %v1866
    %v2386 = vunpack.c.l.b16 %v1867
    %v2387 = vunpack.c.l.b16 %v1868
    %v2388 = vunpack.c.l.b16 %v1869
    %v2389 = vunpack.c.l.b16 %v1870
    %v2390 = vunpack.c.l.b16 %v1871
    %v2391 = vunpack.c.l.b16 %v1872
    %v2392 = vunpack.c.l.b16 %v1873
    %v2393 = vunpack.c.l.b16 %v1874
    %v2394 = vunpack.c.l.b16 %v1875
    %v2395 = vunpack.c.l.b16 %v1876
    %v2396 = vunpack.c.l.b16 %v1877
    %v2397 = vunpack.c.l.b16 %v1878
    %v2398 = vunpack.c.l.b16 %v1879
    %v2399 = vunpack.c.l.b16 %v1880
    %v2400 = vunpack.c.l.b16 %v1881
    %v2401 = vunpack.c.l.b16 %v1882
    %v2402 = vunpack.c.l.b16 %v1883
    %v2403 = vunpack.c.l.b16 %v1884
    %v2404 = vunpack.c.l.b16 %v1885
    %v2405 = vunpack.c.l.b16 %v1886
    %v2406 = vunpack.c.l.b16 %v1887
    %v2407 = vunpack.c.l.b16 %v1888
    %v2408 = vunpack.c.l.b16 %v1889
    %v2409 = vunpack.c.l.b16 %v1890
    %v2410 = vunpack.c.l.b16 %v1891
    %v2411 = vunpack.c.l.b16 %v1892
    %v2412 = vunpack.c.l.b16 %v1893
    %v2413 = vunpack.c.l.b16 %v1894
    %v2414 = vunpack.c.l.b16 %v1895
    %v2415 = vunpack.c.l.b16 %v1896
    %v2416 = vunpack.c.l.b16 %v1897
    %v2417 = vunpack.c.l.b16 %v1898
    %v2418 = vunpack.c.l.b16 %v1899
    %v2419 = vunpack.c.l.b16 %v1900
    %v2420 = vunpack.c.l.b16 %v1901
    %v2421 = vunpack.c.l.b16 %v1902
    %v2422 = vunpack.c.l.b16 %v1903
    %v2423 = vunpack.c.l.b16 %v1904
    %v2424 = vunpack.c.l.b16 %v1905
    %v2425 = vunpack.c.l.b16 %v1906
    %v2426 = vunpack.c.l.b16 %v1907
    %v2427 = vunpack.c.l.b16 %v1908
    %v2428 = vunpack.c.l.b16 %v1909
    %v2429 = vunpack.c.l.b16 %v1910
    %v2430 = vunpack.c.l.b16 %v1911
    %v2431 = vunpack.c.l.b16 %v1912
    %v2432 = vunpack.c.l.b16 %v1913
    %v2433 = vunpack.c.l.b16 %v1914
    %v2434 = vunpack.c.l.b16 %v1915
    %v2435 = vunpack.c.l.b16 %v1916
    %v2436 = vunpack.c.l.b16 %v1917
    %v2437 = vunpack.c.l.b16 %v1918
    %v2438 = vunpack.c.l.b16 %v1919
    %v2439 = vunpack.c.l.b16 %v1920
    %v2440 = vunpack.c.l.b16 %v1921
    %v2441 = vunpack.c.l.b16 %v1922
    %v2442 = vunpack.c.l.b16 %v1923
    %v2443 = vunpack.c.l.b16 %v1924
    %v2444 = vunpack.c.l.b16 %v1925
    %v2445 = vunpack.c.l.b16 %v1926
    %v2446 = vunpack.c.l.b16 %v1927
    %v2447 = vunpack.c.l.b16 %v1928
    %v2448 = vunpack.c.l.b16 %v1929
    %v2449 = vunpack.c.l.b16 %v1930
    %v2450 = vunpack.c.l.b16 %v1931
    %v2451 = vunpack.c.l.b16 %v1932
    %v2452 = vunpack.c.l.b16 %v1933
    %v2453 = vunpack.c.l.b16 %v1934
    %v2454 = vunpack.c.l.b16 %v1935
    %v2455 = vunpack.c.l.b16 %v1936
    %v2456 = vunpack.c.l.b16 %v1937
    %v2457 = vunpack.c.l.b16 %v1938
    %v2458 = vunpack.c.l.b16 %v1939
    %v2459 = vunpack.c.l.b16 %v1940
    %v2460 = vunpack.c.l.b16 %v1941
    %v2461 = vunpack.c.l.b16 %v1942
    %v2462 = vunpack.c.l.b16 %v1943
    %v2463 = vunpack.c.l.b16 %v1944
    %v2464 = vunpack.c.l.b16 %v1945
    %v2465 = vunpack.c.l.b16 %v1946
    %v2466 = vunpack.c.l.b16 %v1947
    %v2467 = vunpack.c.l.b16 %v1948
    %v2468 = vunpack.c.l.b16 %v1949
    %v2469 = vunpack.c.l.b16 %v1950
    %v2470 = vunpack.c.l.b16 %v1951
    %v2471 = vunpack.c.l.b16 %v1952
    %v2472 = vunpack.c.l.b16 %v1953
    %v2473 = vunpack.c.l.b16 %v1954
    %v2474 = vunpack.c.l.b16 %v1955
    %v2475 = vunpack.c.l.b16 %v1956
    %v2476 = vunpack.c.l.b16 %v1957
    %v2477 = vunpack.c.l.b16 %v1958
    %v2478 = vunpack.c.l.b16 %v1959
    %v2479 = vunpack.c.l.b16 %v1960
    %v2480 = vunpack.c.l.b16 %v1961
    %v2481 = vunpack.c.l.b16 %v1962
    %v2482 = vunpack.c.l.b16 %v1963
    %v2483 = vunpack.c.l.b16 %v1964
    %v2484 = vunpack.c.l.b16 %v1965
    %v2485 = vunpack.c.l.b16 %v1966
    %v2486 = vunpack.c.l.b16 %v1967
    %v2487 = vunpack.c.l.b16 %v1968
    %v2488 = vunpack.c.l.b16 %v1969
    %v2489 = vunpack.c.l.b16 %v1970
    %v2490 = vunpack.c.l.b16 %v1971
    %v2491 = vunpack.c.l.b16 %v1972
    %v2492 = vunpack.c.l.b16 %v1973
    %v2493 = vunpack.c.l.b16 %v1974
    %v2494 = vunpack.c.l.b16 %v1975
    %v2495 = vunpack.c.l.b16 %v1976
    %v2496 = vunpack.c.l.b16 %v1977
    %v2497 = vunpack.c.l.b16 %v1978
    %v2498 = vunpack.c.l.b16 %v1979
    %v2499 = vunpack.c.l.b16 %v1980
    %v2500 = vunpack.c.l.b16 %v1981
    %v2501 = vunpack.c.l.b16 %v1982
    %v2502 = vunpack.c.l.b16 %v1983
    %v2503 = vunpack.c.l.b16 %v1984
    %v2504 = vunpack.c.l.b16 %v1985
    %v2505 = vunpack.c.l.b16 %v1986
    %v2506 = vunpack.c.l.b16 %v1987
    %v2507 = vunpack.c.l.b16 %v1988
    %v2508 = vunpack.c.l.b16 %v1989
    %v2509 = vunpack.c.l.b16 %v1990
    %v2510 = vunpack.c.l.b16 %v1991
    %v2511 = vunpack.c.l.b16 %v1992
    %v2512 = vunpack.c.l.b16 %v1993
    %v2513 = vunpack.c.l.b16 %v1994
    %v2514 = vunpack.c.l.b16 %v1995
    %v2515 = vunpack.c.l.b16 %v1996
    %v2516 = vunpack.c.l.b16 %v1997
    %v2517 = vunpack.c.l.b16 %v1998
    %v2518 = vunpack.c.l.b16 %v1999
    %v2519 = vunpack.c.l.b16 %v2000
    %v2520 = vunpack.c.l.b16 %v2001
    %v2521 = vunpack.c.l.b16 %v2002
    %v2522 = vunpack.c.l.b16 %v2003
    %v2523 = vunpack.c.l.b16 %v2004
    %v2524 = vunpack.c.l.b16 %v2005
    %v2525 = vunpack.c.l.b16 %v2006
    %v2526 = vunpack.c.l.b16 %v2007
    %v2527 = vunpack.c.l.b16 %v2008
    %v2528 = vunpack.c.l.b16 %v2009
    %v2529 = vunpack.c.l.b16 %v2010
    %v2530 = vunpack.c.l.b16 %v2011
    %v2531 = vunpack.c.l.b16 %v2012
    %v2532 = vunpack.c.l.b16 %v2013
    %v2533 = vunpack.c.l.b16 %v2014
    %v2534 = vunpack.c.l.b16 %v2015
    %v2535 = vunpack.c.l.b16 %v2016
    %v2536 = vunpack.c.l.b16 %v2017
    %v2537 = vunpack.c.l.b16 %v2018
    %v2538 = vunpack.c.l.b16 %v2019
    %v2539 = vunpack.c.l.b16 %v2020
    %v2540 = vunpack.c.l.b16 %v2021
    %v2541 = vunpack.c.l.b16 %v2022
    %v2542 = vunpack.c.l.b16 %v2023
    %v2543 = vunpack.c.l.b16 %v2024
    %v2544 = vunpack.c.l.b16 %v2025
    %v2545 = vunpack.c.l.b16 %v2026
    %v2546 = vunpack.c.l.b16 %v2027
    %v2547 = vunpack.c.l.b16 %v2028
    %v2548 = vunpack.c.l.b16 %v2029
    %v2549 = vunpack.c.l.b16 %v2030
    %v2550 = vunpack.c.l.b16 %v2031
    %v2551 = vunpack.c.l.b16 %v2032
    %v2552 = vunpack.c.l.b16 %v2033
    %v2553 = vunpack.c.l.b16 %v2034
    %v2554 = vunpack.c.l.b16 %v2035
    %v2555 = vunpack.c.l.b16 %v2036
    %v2556 = vunpack.c.l.b16 %v2037
    %v2557 = vunpack.c.l.b16 %v2038
    %v2558 = vunpack.c.l.b16 %v2039
    %v2559 = vunpack.c.l.b16 %v2040
    %v2560 = vunpack.c.l.b16 %v2041
    %v2561 = vunpack.c.l.b16 %v2042
    %v2562 = vunpack.c.l.b16 %v2043
    %v2563 = vunpack.c.l.b16 %v2044
    %v2564 = vunpack.c.l.b16 %v2045
    %v2565 = vunpack.c.l.b16 %v2046
    %v2566 = vunpack.c.l.b16 %v2047
    %v2567 = vunpack.c.l.b16 %v2048
    %v2568 = vunpack.c.l.b16 %v2049
    %v2569 = vunpack.c.l.b16 %v2050
    %v2570 = vunpack.c.l.b16 %v2051
    %v2571 = vunpack.c.l.b16 %v2052
    %v2572 = vunpack.c.l.b16 %v2053
    %v2573 = vunpack.c.l.b16 %v2054
    %v2574 = vunpack.c.l.b16 %v2055
    %v2575 = vunpack.c.l.b16 %v2056
    %v2576 = vunpack.c.l.b16 %v2057
    %v2577 = vunpack.c.l.b16 %v2058
    %v2578 = vunpack.c.l.b16 %v2059
    %v2579 = vunpack.c.l.b16 %v2060
    %v2580 = vunpack.c.l.b16 %v2061
    %v2581 = vunpack.c.l.b16 %v2062
    %v2582 = vunpack.c.l.b16 %v2063
    %v2583 = vunpack.c.l.b16 %v2064
    %v2584 = vunpack.c.l.b16 %v2065
    %v2585 = vunpack.c.l.b16 %v2066
    %v2586 = vunpack.c.l.b16 %v2067
    %v2587 = vunpack.c.l.b16 %v2068
    %v2588 = vunpack.c.l.b16 %v2069
    %v2589 = vunpack.c.l.b16 %v2070
    %v2590 = vunpack.c.l.b16 %v2071
    %v2591 = vunpack.c.l.b16 %v2072
    %v2592 = vunpack.c.l.b16 %v2073
    %v2593 = vunpack.c.l.b16 %v2074
    %v2594 = vunpack.c.l.b16 %v2075
    %v2595 = vunpack.c.l.b16 %v2076
    %v2596 = vunpack.c.l.b16 %v2077
    %v2597 = vunpack.c.l.b16 %v2078
    %v2598 = vunpack.c.l.b16 %v2079
    %v2599 = vunpack.c.l.b16 %v2080
    %v2600 = vunpack.c.l.b16 %v2081
    %v2601 = vunpack.c.l.b16 %v2082
    %v2602 = vunpack.c.l.b16 %v2083
    %v2603 = vunpack.c.l.b16 %v2084
    %v2604 = vunpack.c.l.b16 %v2085
    %v2605 = vunpack.c.l.b16 %v2086
    %v2606 = vunpack.c.l.b16 %v2087
    %v2607 = vunpack.c.l.b16 %v2088
    %v2608 = vunpack.c.l.b16 %v2089
    %v2609 = vunpack.c.l.b16 %v2090
    %v2610 = vpack.c.b16 %v2355, %v2354
    %v2611 = vpack.c.b16 %v2357, %v2356
    %v2612 = vpack.c.b16 %v2359, %v2358
    %v2613 = vpack.c.b16 %v2361, %v2360
    %v2614 = vpack.c.b16 %v2363, %v2362
    %v2615 = vpack.c.b16 %v2365, %v2364
    %v2616 = vpack.c.b16 %v2367, %v2366
    %v2617 = vpack.c.b16 %v2369, %v2368
    %v2618 = vpack.c.b16 %v2371, %v2370
    %v2619 = vpack.c.b16 %v2373, %v2372
    %v2620 = vpack.c.b16 %v2375, %v2374
    %v2621 = vpack.c.b16 %v2377, %v2376
    %v2622 = vpack.c.b16 %v2379, %v2378
    %v2623 = vpack.c.b16 %v2381, %v2380
    %v2624 = vpack.c.b16 %v2383, %v2382
    %v2625 = vpack.c.b16 %v2385, %v2384
    %v2626 = vpack.c.b16 %v2387, %v2386
    %v2627 = vpack.c.b16 %v2389, %v2388
    %v2628 = vpack.c.b16 %v2391, %v2390
    %v2629 = vpack.c.b16 %v2393, %v2392
    %v2630 = vpack.c.b16 %v2395, %v2394
    %v2631 = vpack.c.b16 %v2397, %v2396
    %v2632 = vpack.c.b16 %v2399, %v2398
    %v2633 = vpack.c.b16 %v2401, %v2400
    %v2634 = vpack.c.b16 %v2403, %v2402
    %v2635 = vpack.c.b16 %v2405, %v2404
    %v2636 = vpack.c.b16 %v2407, %v2406
    %v2637 = vpack.c.b16 %v2409, %v2408
    %v2638 = vpack.c.b16 %v2411, %v2410
    %v2639 = vpack.c.b16 %v2413, %v2412
    %v2640 = vpack.c.b16 %v2415, %v2414
    %v2641 = vpack.c.b16 %v2417, %v2416
    %v2642 = vpack.c.b16 %v2419, %v2418
    %v2643 = vpack.c.b16 %v2421, %v2420
    %v2644 = vpack.c.b16 %v2423, %v2422
    %v2645 = vpack.c.b16 %v2425, %v2424
    %v2646 = vpack.c.b16 %v2427, %v2426
    %v2647 = vpack.c.b16 %v2429, %v2428
    %v2648 = vpack.c.b16 %v2431, %v2430
    %v2649 = vpack.c.b16 %v2433, %v2432
    %v2650 = vpack.c.b16 %v2435, %v2434
    %v2651 = vpack.c.b16 %v2437, %v2436
    %v2652 = vpack.c.b16 %v2439, %v2438
    %v2653 = vpack.c.b16 %v2441, %v2440
    %v2654 = vpack.c.b16 %v2443, %v2442
    %v2655 = vpack.c.b16 %v2445, %v2444
    %v2656 = vpack.c.b16 %v2447, %v2446
    %v2657 = vpack.c.b16 %v2449, %v2448
    %v2658 = vpack.c.b16 %v2451, %v2450
    %v2659 = vpack.c.b16 %v2453, %v2452
    %v2660 = vpack.c.b16 %v2455, %v2454
    %v2661 = vpack.c.b16 %v2457, %v2456
    %v2662 = vpack.c.b16 %v2459, %v2458
    %v2663 = vpack.c.b16 %v2461, %v2460
    %v2664 = vpack.c.b16 %v2463, %v2462
    %v2665 = vpack.c.b16 %v2465, %v2464
    %v2666 = vpack.c.b16 %v2467, %v2466
    %v2667 = vpack.c.b16 %v2469, %v2468
    %v2668 = vpack.c.b16 %v2471, %v2470
    %v2669 = vpack.c.b16 %v2473, %v2472
    %v2670 = vpack.c.b16 %v2475, %v2474
    %v2671 = vpack.c.b16 %v2477, %v2476
    %v2672 = vpack.c.b16 %v2479, %v2478
    %v2673 = vpack.c.b16 %v2481, %v2480
    %v2674 = vpack.c.b16 %v2483, %v2482
    %v2675 = vpack.c.b16 %v2485, %v2484
    %v2676 = vpack.c.b16 %v2487, %v2486
    %v2677 = vpack.c.b16 %v2489, %v2488
    %v2678 = vpack.c.b16 %v2491, %v2490
    %v2679 = vpack.c.b16 %v2493, %v2492
    %v2680 = vpack.c.b16 %v2495, %v2494
    %v2681 = vpack.c.b16 %v2497, %v2496
    %v2682 = vpack.c.b16 %v2499, %v2498
    %v2683 = vpack.c.b16 %v2501, %v2500
    %v2684 = vpack.c.b16 %v2503, %v2502
    %v2685 = vpack.c.b16 %v2505, %v2504
    %v2686 = vpack.c.b16 %v2507, %v2506
    %v2687 = vpack.c.b16 %v2509, %v2508
    %v2688 = vpack.c.b16 %v2511, %v2510
    %v2689 = vpack.c.b16 %v2513, %v2512
    %v2690 = vpack.c.b16 %v2515, %v2514
    %v2691 = vpack.c.b16 %v2517, %v2516
    %v2692 = vpack.c.b16 %v2519, %v2518
    %v2693 = vpack.c.b16 %v2521, %v2520
    %v2694 = vpack.c.b16 %v2523, %v2522
    %v2695 = vpack.c.b16 %v2525, %v2524
    %v2696 = vpack.c.b16 %v2527, %v2526
    %v2697 = vpack.c.b16 %v2529, %v2528
    %v2698 = vpack.c.b16 %v2531, %v2530
    %v2699 = vpack.c.b16 %v2533, %v2532
    %v2700 = vpack.c.b16 %v2535, %v2534
    %v2701 = vpack.c.b16 %v2537, %v2536
    %v2702 = vpack.c.b16 %v2539, %v2538
    %v2703 = vpack.c.b16 %v2541, %v2540
    %v2704 = vpack.c.b16 %v2543, %v2542
    %v2705 = vpack.c.b16 %v2545, %v2544
    %v2706 = vpack.c.b16 %v2547, %v2546
    %v2707 = vpack.c.b16 %v2549, %v2548
    %v2708 = vpack.c.b16 %v2551, %v2550
    %v2709 = vpack.c.b16 %v2553, %v2552
    %v2710 = vpack.c.b16 %v2555, %v2554
    %v2711 = vpack.c.b16 %v2557, %v2556
    %v2712 = vpack.c.b16 %v2559, %v2558
    %v2713 = vpack.c.b16 %v2561, %v2560
    %v2714 = vpack.c.b16 %v2563, %v2562
    %v2715 = vpack.c.b16 %v2565, %v2564
    %v2716 = vpack.c.b16 %v2567, %v2566
    %v2717 = vpack.c.b16 %v2569, %v2568
    %v2718 = vpack.c.b16 %v2571, %v2570
    %v2719 = vpack.c.b16 %v2573, %v2572
    %v2720 = vpack.c.b16 %v2575, %v2574
    %v2721 = vpack.c.b16 %v2577, %v2576
    %v2722 = vpack.c.b16 %v2579, %v2578
    %v2723 = vpack.c.b16 %v2581, %v2580
    %v2724 = vpack.c.b16 %v2583, %v2582
    %v2725 = vpack.c.b16 %v2585, %v2584
    %v2726 = vpack.c.b16 %v2587, %v2586
    %v2727 = vpack.c.b16 %v2589, %v2588
    %v2728 = vpack.c.b16 %v2591, %v2590
    %v2729 = vpack.c.b16 %v2593, %v2592
    %v2730 = vpack.c.b16 %v2595, %v2594
    %v2731 = vpack.c.b16 %v2597, %v2596
    %v2732 = vpack.c.b16 %v2599, %v2598
    %v2733 = vpack.c.b16 %v2601, %v2600
    %v2734 = vpack.c.b16 %v2603, %v2602
    %v2735 = vpack.c.b16 %v2605, %v2604
    %v2736 = vpack.c.b16 %v2607, %v2606
    %v2737 = vpack.c.b16 %v2609, %v2608
    %2866 = vmatprep.subr.bf16.mxu0 0
    %2867 = vmatpush1.bf16.msra.mxu0 %v2610
    %2868 = vmatprep.subr.bf16.mxu0 0
    %2869 = vmatpush1.bf16.msra.mxu0 %v2611
    %2870 = vmatprep.subr.bf16.mxu0 0
    %2871 = vmatpush1.bf16.msra.mxu0 %v2612
    %2872 = vmatprep.subr.bf16.mxu0 0
    %2873 = vmatpush1.bf16.msra.mxu0 %v2613
    %2874 = vmatprep.subr.bf16.mxu0 0
    %2875 = vmatpush1.bf16.msra.mxu0 %v2614
    %2876 = vmatprep.subr.bf16.mxu0 0
    %2877 = vmatpush1.bf16.msra.mxu0 %v2615
    %2878 = vmatprep.subr.bf16.mxu0 0
    %2879 = vmatpush1.bf16.msra.mxu0 %v2616
    %2880 = vmatprep.subr.bf16.mxu0 0
    %2881 = vmatpush1.bf16.msra.mxu0 %v2617
    %2882 = vmatprep.subr.bf16.mxu0 0
    %2883 = vmatpush1.bf16.msra.mxu0 %v2618
    %2884 = vmatprep.subr.bf16.mxu0 0
    %2885 = vmatpush1.bf16.msra.mxu0 %v2619
    %2886 = vmatprep.subr.bf16.mxu0 0
    %2887 = vmatpush1.bf16.msra.mxu0 %v2620
    %2888 = vmatprep.subr.bf16.mxu0 0
    %2889 = vmatpush1.bf16.msra.mxu0 %v2621
    %2890 = vmatprep.subr.bf16.mxu0 0
    %2891 = vmatpush1.bf16.msra.mxu0 %v2622
    %2892 = vmatprep.subr.bf16.mxu0 0
    %2893 = vmatpush1.bf16.msra.mxu0 %v2623
    %2894 = vmatprep.subr.bf16.mxu0 0
    %2895 = vmatpush1.bf16.msra.mxu0 %v2624
    %2896 = vmatprep.subr.bf16.mxu0 0
    %2897 = vmatpush1.bf16.msra.mxu0 %v2625
    %2898 = vmatprep.mubr.bf16.mxu0 %v1820
    %2899 = vmatmul.mubr.bf16.gmra.mrb[0].mxu0 %v1819
    %v2900 = vpop.f32.mrb[0].mxu0
    %v2901 = vadd.f32 %v2096, %v2900
    %v2902 = vpop.f32.mrb[0].mxu0
    %v2903 = vpop.f32.mrb[0].mxu0
    %v2904 = vadd.f32 %v2096, %v2903
    %v2905 = vpop.f32.mrb[0].mxu0
    %2906 = vdwg.mxu0
    %2907 = vmatprep.subr.bf16.mxu0 0
    %2908 = vmatpush1.bf16.msra.mxu0 %v2626
    %2909 = vmatprep.subr.bf16.mxu0 0
    %2910 = vmatpush1.bf16.msra.mxu0 %v2627
    %2911 = vmatprep.subr.bf16.mxu0 0
    %2912 = vmatpush1.bf16.msra.mxu0 %v2628
    %2913 = vmatprep.subr.bf16.mxu0 0
    %2914 = vmatpush1.bf16.msra.mxu0 %v2629
    %2915 = vmatprep.subr.bf16.mxu0 0
    %2916 = vmatpush1.bf16.msra.mxu0 %v2630
    %2917 = vmatprep.subr.bf16.mxu0 0
    %2918 = vmatpush1.bf16.msra.mxu0 %v2631
    %2919 = vmatprep.subr.bf16.mxu0 0
    %2920 = vmatpush1.bf16.msra.mxu0 %v2632
    %2921 = vmatprep.subr.bf16.mxu0 0
    %2922 = vmatpush1.bf16.msra.mxu0 %v2633
    %2923 = vmatprep.subr.bf16.mxu0 0
    %2924 = vmatpush1.bf16.msra.mxu0 %v2634
    %2925 = vmatprep.subr.bf16.mxu0 0
    %2926 = vmatpush1.bf16.msra.mxu0 %v2635
    %2927 = vmatprep.subr.bf16.mxu0 0
    %2928 = vmatpush1.bf16.msra.mxu0 %v2636
    %2929 = vmatprep.subr.bf16.mxu0 0
    %2930 = vmatpush1.bf16.msra.mxu0 %v2637
    %2931 = vmatprep.subr.bf16.mxu0 0
    %2932 = vmatpush1.bf16.msra.mxu0 %v2638
    %2933 = vmatprep.subr.bf16.mxu0 0
    %2934 = vmatpush1.bf16.msra.mxu0 %v2639
    %2935 = vmatprep.subr.bf16.mxu0 0
    %2936 = vmatpush1.bf16.msra.mxu0 %v2640
    %2937 = vmatprep.subr.bf16.mxu0 0
    %2938 = vmatpush1.bf16.msra.mxu0 %v2641
    %2939 = vmatprep.mubr.bf16.mxu0 %v1822
    %2940 = vmatmul.mubr.bf16.gmra.mrb[0].mxu0 %v1821
    %v2941 = vpop.f32.mrb[0].mxu0
    %v2942 = vadd.f32 %v2901, %v2941
    %v2943 = vpop.f32.mrb[0].mxu0
    %v2944 = vpop.f32.mrb[0].mxu0
    %v2945 = vadd.f32 %v2904, %v2944
    %v2946 = vpop.f32.mrb[0].mxu0
    %2947 = vdwg.mxu0
    %2948 = vmatprep.subr.bf16.mxu0 0
    %2949 = vmatpush1.bf16.msra.mxu0 %v2642
    %2950 = vmatprep.subr.bf16.mxu0 0
    %2951 = vmatpush1.bf16.msra.mxu0 %v2643
    %2952 = vmatprep.subr.bf16.mxu0 0
    %2953 = vmatpush1.bf16.msra.mxu0 %v2644
    %2954 = vmatprep.subr.bf16.mxu0 0
    %2955 = vmatpush1.bf16.msra.mxu0 %v2645
    %2956 = vmatprep.subr.bf16.mxu0 0
    %2957 = vmatpush1.bf16.msra.mxu0 %v2646
    %2958 = vmatprep.subr.bf16.mxu0 0
    %2959 = vmatpush1.bf16.msra.mxu0 %v2647
    %2960 = vmatprep.subr.bf16.mxu0 0
    %2961 = vmatpush1.bf16.msra.mxu0 %v2648
    %2962 = vmatprep.subr.bf16.mxu0 0
    %2963 = vmatpush1.bf16.msra.mxu0 %v2649
    %2964 = vmatprep.subr.bf16.mxu0 0
    %2965 = vmatpush1.bf16.msra.mxu0 %v2650
    %2966 = vmatprep.subr.bf16.mxu0 0
    %2967 = vmatpush1.bf16.msra.mxu0 %v2651
    %2968 = vmatprep.subr.bf16.mxu0 0
    %2969 = vmatpush1.bf16.msra.mxu0 %v2652
    %2970 = vmatprep.subr.bf16.mxu0 0
    %2971 = vmatpush1.bf16.msra.mxu0 %v2653
    %2972 = vmatprep.subr.bf16.mxu0 0
    %2973 = vmatpush1.bf16.msra.mxu0 %v2654
    %2974 = vmatprep.subr.bf16.mxu0 0
    %2975 = vmatpush1.bf16.msra.mxu0 %v2655
    %2976 = vmatprep.subr.bf16.mxu0 0
    %2977 = vmatpush1.bf16.msra.mxu0 %v2656
    %2978 = vmatprep.subr.bf16.mxu0 0
    %2979 = vmatpush1.bf16.msra.mxu0 %v2657
    %2980 = vmatprep.mubr.bf16.mxu0 %v1824
    %2981 = vmatmul.mubr.bf16.gmra.mrb[0].mxu0 %v1823
    %v2982 = vpop.f32.mrb[0].mxu0
    %v2983 = vadd.f32 %v2942, %v2982
    %v2984 = vpop.f32.mrb[0].mxu0
    %v2985 = vpop.f32.mrb[0].mxu0
    %v2986 = vadd.f32 %v2945, %v2985
    %v2987 = vpop.f32.mrb[0].mxu0
    %2988 = vdwg.mxu0
    %2989 = vmatprep.subr.bf16.mxu0 0
    %2990 = vmatpush1.bf16.msra.mxu0 %v2658
    %2991 = vmatprep.subr.bf16.mxu0 0
    %2992 = vmatpush1.bf16.msra.mxu0 %v2659
    %2993 = vmatprep.subr.bf16.mxu0 0
    %2994 = vmatpush1.bf16.msra.mxu0 %v2660
    %2995 = vmatprep.subr.bf16.mxu0 0
    %2996 = vmatpush1.bf16.msra.mxu0 %v2661
    %2997 = vmatprep.subr.bf16.mxu0 0
    %2998 = vmatpush1.bf16.msra.mxu0 %v2662
    %2999 = vmatprep.subr.bf16.mxu0 0
    %3000 = vmatpush1.bf16.msra.mxu0 %v2663
    %3001 = vmatprep.subr.bf16.mxu0 0
    %3002 = vmatpush1.bf16.msra.mxu0 %v2664
    %3003 = vmatprep.subr.bf16.mxu0 0
    %3004 = vmatpush1.bf16.msra.mxu0 %v2665
    %3005 = vmatprep.subr.bf16.mxu0 0
    %3006 = vmatpush1.bf16.msra.mxu0 %v2666
    %3007 = vmatprep.subr.bf16.mxu0 0
    %3008 = vmatpush1.bf16.msra.mxu0 %v2667
    %3009 = vmatprep.subr.bf16.mxu0 0
    %3010 = vmatpush1.bf16.msra.mxu0 %v2668
    %3011 = vmatprep.subr.bf16.mxu0 0
    %3012 = vmatpush1.bf16.msra.mxu0 %v2669
    %3013 = vmatprep.subr.bf16.mxu0 0
    %3014 = vmatpush1.bf16.msra.mxu0 %v2670
    %3015 = vmatprep.subr.bf16.mxu0 0
    %3016 = vmatpush1.bf16.msra.mxu0 %v2671
    %3017 = vmatprep.subr.bf16.mxu0 0
    %3018 = vmatpush1.bf16.msra.mxu0 %v2672
    %3019 = vmatprep.subr.bf16.mxu0 0
    %3020 = vmatpush1.bf16.msra.mxu0 %v2673
    %3021 = vmatprep.mubr.bf16.mxu0 %v1826
    %3022 = vmatmul.mubr.bf16.gmra.mrb[0].mxu0 %v1825
    %v3023 = vpop.f32.mrb[0].mxu0
    %v3024 = vadd.f32 %v2983, %v3023
    %v3025 = vpop.f32.mrb[0].mxu0
    %v3026 = vpop.f32.mrb[0].mxu0
    %v3027 = vadd.f32 %v2986, %v3026
    %v3028 = vpop.f32.mrb[0].mxu0
    %3029 = vdwg.mxu0
    %3030 = vmatprep.subr.bf16.mxu0 0
    %3031 = vmatpush1.bf16.msra.mxu0 %v2674
    %3032 = vmatprep.subr.bf16.mxu0 0
    %3033 = vmatpush1.bf16.msra.mxu0 %v2675
    %3034 = vmatprep.subr.bf16.mxu0 0
    %3035 = vmatpush1.bf16.msra.mxu0 %v2676
    %3036 = vmatprep.subr.bf16.mxu0 0
    %3037 = vmatpush1.bf16.msra.mxu0 %v2677
    %3038 = vmatprep.subr.bf16.mxu0 0
    %3039 = vmatpush1.bf16.msra.mxu0 %v2678
    %3040 = vmatprep.subr.bf16.mxu0 0
    %3041 = vmatpush1.bf16.msra.mxu0 %v2679
    %3042 = vmatprep.subr.bf16.mxu0 0
    %3043 = vmatpush1.bf16.msra.mxu0 %v2680
    %3044 = vmatprep.subr.bf16.mxu0 0
    %3045 = vmatpush1.bf16.msra.mxu0 %v2681
    %3046 = vmatprep.subr.bf16.mxu0 0
    %3047 = vmatpush1.bf16.msra.mxu0 %v2682
    %3048 = vmatprep.subr.bf16.mxu0 0
    %3049 = vmatpush1.bf16.msra.mxu0 %v2683
    %3050 = vmatprep.subr.bf16.mxu0 0
    %3051 = vmatpush1.bf16.msra.mxu0 %v2684
    %3052 = vmatprep.subr.bf16.mxu0 0
    %3053 = vmatpush1.bf16.msra.mxu0 %v2685
    %3054 = vmatprep.subr.bf16.mxu0 0
    %3055 = vmatpush1.bf16.msra.mxu0 %v2686
    %3056 = vmatprep.subr.bf16.mxu0 0
    %3057 = vmatpush1.bf16.msra.mxu0 %v2687
    %3058 = vmatprep.subr.bf16.mxu0 0
    %3059 = vmatpush1.bf16.msra.mxu0 %v2688
    %3060 = vmatprep.subr.bf16.mxu0 0
    %3061 = vmatpush1.bf16.msra.mxu0 %v2689
    %3062 = vmatprep.mubr.bf16.mxu0 %v1828
    %3063 = vmatmul.mubr.bf16.gmra.mrb[0].mxu0 %v1827
    %v3064 = vpop.f32.mrb[0].mxu0
    %v3065 = vadd.f32 %v3024, %v3064
    %v3066 = vpop.f32.mrb[0].mxu0
    %v3067 = vpop.f32.mrb[0].mxu0
    %v3068 = vadd.f32 %v3027, %v3067
    %v3069 = vpop.f32.mrb[0].mxu0
    %3070 = vdwg.mxu0
    %3071 = vmatprep.subr.bf16.mxu0 0
    %3072 = vmatpush1.bf16.msra.mxu0 %v2690
    %3073 = vmatprep.subr.bf16.mxu0 0
    %3074 = vmatpush1.bf16.msra.mxu0 %v2691
    %3075 = vmatprep.subr.bf16.mxu0 0
    %3076 = vmatpush1.bf16.msra.mxu0 %v2692
    %3077 = vmatprep.subr.bf16.mxu0 0
    %3078 = vmatpush1.bf16.msra.mxu0 %v2693
    %3079 = vmatprep.subr.bf16.mxu0 0
    %3080 = vmatpush1.bf16.msra.mxu0 %v2694
    %3081 = vmatprep.subr.bf16.mxu0 0
    %3082 = vmatpush1.bf16.msra.mxu0 %v2695
    %3083 = vmatprep.subr.bf16.mxu0 0
    %3084 = vmatpush1.bf16.msra.mxu0 %v2696
    %3085 = vmatprep.subr.bf16.mxu0 0
    %3086 = vmatpush1.bf16.msra.mxu0 %v2697
    %3087 = vmatprep.subr.bf16.mxu0 0
    %3088 = vmatpush1.bf16.msra.mxu0 %v2698
    %3089 = vmatprep.subr.bf16.mxu0 0
    %3090 = vmatpush1.bf16.msra.mxu0 %v2699
    %3091 = vmatprep.subr.bf16.mxu0 0
    %3092 = vmatpush1.bf16.msra.mxu0 %v2700
    %3093 = vmatprep.subr.bf16.mxu0 0
    %3094 = vmatpush1.bf16.msra.mxu0 %v2701
    %3095 = vmatprep.subr.bf16.mxu0 0
    %3096 = vmatpush1.bf16.msra.mxu0 %v2702
    %3097 = vmatprep.subr.bf16.mxu0 0
    %3098 = vmatpush1.bf16.msra.mxu0 %v2703
    %3099 = vmatprep.subr.bf16.mxu0 0
    %3100 = vmatpush1.bf16.msra.mxu0 %v2704
    %3101 = vmatprep.subr.bf16.mxu0 0
    %3102 = vmatpush1.bf16.msra.mxu0 %v2705
    %3103 = vmatprep.mubr.bf16.mxu0 %v1830
    %3104 = vmatmul.mubr.bf16.gmra.mrb[0].mxu0 %v1829
    %v3105 = vpop.f32.mrb[0].mxu0
    %v3106 = vadd.f32 %v3065, %v3105
    %v3107 = vpop.f32.mrb[0].mxu0
    %v3108 = vpop.f32.mrb[0].mxu0
    %v3109 = vadd.f32 %v3068, %v3108
    %v3110 = vpop.f32.mrb[0].mxu0
    %3111 = vdwg.mxu0
    %3112 = vmatprep.subr.bf16.mxu0 0
    %3113 = vmatpush1.bf16.msra.mxu0 %v2706
    %3114 = vmatprep.subr.bf16.mxu0 0
    %3115 = vmatpush1.bf16.msra.mxu0 %v2707
    %3116 = vmatprep.subr.bf16.mxu0 0
    %3117 = vmatpush1.bf16.msra.mxu0 %v2708
    %3118 = vmatprep.subr.bf16.mxu0 0
    %3119 = vmatpush1.bf16.msra.mxu0 %v2709
    %3120 = vmatprep.subr.bf16.mxu0 0
    %3121 = vmatpush1.bf16.msra.mxu0 %v2710
    %3122 = vmatprep.subr.bf16.mxu0 0
    %3123 = vmatpush1.bf16.msra.mxu0 %v2711
    %3124 = vmatprep.subr.bf16.mxu0 0
    %3125 = vmatpush1.bf16.msra.mxu0 %v2712
    %3126 = vmatprep.subr.bf16.mxu0 0
    %3127 = vmatpush1.bf16.msra.mxu0 %v2713
    %3128 = vmatprep.subr.bf16.mxu0 0
    %3129 = vmatpush1.bf16.msra.mxu0 %v2714
    %3130 = vmatprep.subr.bf16.mxu0 0
    %3131 = vmatpush1.bf16.msra.mxu0 %v2715
    %3132 = vmatprep.subr.bf16.mxu0 0
    %3133 = vmatpush1.bf16.msra.mxu0 %v2716
    %3134 = vmatprep.subr.bf16.mxu0 0
    %3135 = vmatpush1.bf16.msra.mxu0 %v2717
    %3136 = vmatprep.subr.bf16.mxu0 0
    %3137 = vmatpush1.bf16.msra.mxu0 %v2718
    %3138 = vmatprep.subr.bf16.mxu0 0
    %3139 = vmatpush1.bf16.msra.mxu0 %v2719
    %3140 = vmatprep.subr.bf16.mxu0 0
    %3141 = vmatpush1.bf16.msra.mxu0 %v2720
    %3142 = vmatprep.subr.bf16.mxu0 0
    %3143 = vmatpush1.bf16.msra.mxu0 %v2721
    %3144 = vmatprep.mubr.bf16.mxu0 %v1832
    %3145 = vmatmul.mubr.bf16.gmra.mrb[0].mxu0 %v1831
    %v3146 = vpop.f32.mrb[0].mxu0
    %v3147 = vadd.f32 %v3106, %v3146
    %v3148 = vpop.f32.mrb[0].mxu0
    %v3149 = vpop.f32.mrb[0].mxu0
    %v3150 = vadd.f32 %v3109, %v3149
    %v3151 = vpop.f32.mrb[0].mxu0
    %3152 = vdwg.mxu0
    %3153 = vmatprep.subr.bf16.mxu0 0
    %3154 = vmatpush1.bf16.msra.mxu0 %v2722
    %3155 = vmatprep.subr.bf16.mxu0 0
    %3156 = vmatpush1.bf16.msra.mxu0 %v2723
    %3157 = vmatprep.subr.bf16.mxu0 0
    %3158 = vmatpush1.bf16.msra.mxu0 %v2724
    %3159 = vmatprep.subr.bf16.mxu0 0
    %3160 = vmatpush1.bf16.msra.mxu0 %v2725
    %3161 = vmatprep.subr.bf16.mxu0 0
    %3162 = vmatpush1.bf16.msra.mxu0 %v2726
    %3163 = vmatprep.subr.bf16.mxu0 0
    %3164 = vmatpush1.bf16.msra.mxu0 %v2727
    %3165 = vmatprep.subr.bf16.mxu0 0
    %3166 = vmatpush1.bf16.msra.mxu0 %v2728
    %3167 = vmatprep.subr.bf16.mxu0 0
    %3168 = vmatpush1.bf16.msra.mxu0 %v2729
    %3169 = vmatprep.subr.bf16.mxu0 0
    %3170 = vmatpush1.bf16.msra.mxu0 %v2730
    %3171 = vmatprep.subr.bf16.mxu0 0
    %3172 = vmatpush1.bf16.msra.mxu0 %v2731
    %3173 = vmatprep.subr.bf16.mxu0 0
    %3174 = vmatpush1.bf16.msra.mxu0 %v2732
    %3175 = vmatprep.subr.bf16.mxu0 0
    %3176 = vmatpush1.bf16.msra.mxu0 %v2733
    %3177 = vmatprep.subr.bf16.mxu0 0
    %3178 = vmatpush1.bf16.msra.mxu0 %v2734
    %3179 = vmatprep.subr.bf16.mxu0 0
    %3180 = vmatpush1.bf16.msra.mxu0 %v2735
    %3181 = vmatprep.subr.bf16.mxu0 0
    %3182 = vmatpush1.bf16.msra.mxu0 %v2736
    %3183 = vmatprep.subr.bf16.mxu0 0
    %3184 = vmatpush1.bf16.msra.mxu0 %v2737
    %3185 = vmatprep.mubr.bf16.mxu0 %v1834
    %3186 = vmatmul.mubr.bf16.gmra.mrb[0].mxu0 %v1833
    %v3187 = vpop.f32.mrb[0].mxu0
    %v3188 = vadd.f32 %v3147, %v3187
    %v3189 = vpop.f32.mrb[0].mxu0
    %v3190 = vpop.f32.mrb[0].mxu0
    %v3191 = vadd.f32 %v3150, %v3190
    %v3192 = vpop.f32.mrb[0].mxu0
    %3193 = vdwg.mxu0
    %v3194 = vadd.f32 %v3188, %v1161
    %v3195 = vadd.f32 %v3191, %v1162
    %v3196 = vld [vmem:[%s11] sm:$0x1]
    %v3197 = vld [vmem:[%s12] sm:$0x1]
    %v3198 = vsel %vm78, %v3194, 0.0
    %3199 = vadd.xlane.f32.xlu0 %v3198
    %v3200 = vpop.xlane.xlu0 %3199
    %v3201 = vsel %vm78, %v3195, 0.0
    %3202 = vadd.xlane.f32.xlu0 %v3201
    %v3203 = vpop.xlane.xlu0 %3202
    %v3204 = vmul.f32 %v3200, %v1126
    %v3205 = vmul.f32 %v3203, %v1126
    %v3206 = vsub.f32 %v3194, %v3204
    %v3207 = vsub.f32 %v3195, %v3205
    %v3208 = vmul.f32 %v3206, %v3206
    %v3209 = vmul.f32 %v3207, %v3207
    %v3210 = vsel %vm78, %v3208, 0.0
    %3211 = vadd.xlane.f32.xlu0 %v3210
    %v3212 = vpop.xlane.xlu0 %3211
    %v3213 = vsel %vm78, %v3209, 0.0
    %3214 = vadd.xlane.f32.xlu0 %v3213
    %v3215 = vpop.xlane.xlu0 %3214
    %v3216 = vmul.f32 %v3212, %v1126
    %v3217 = vmul.f32 %v3215, %v1126
    %v3218 = vadd.f32 %v3216, 1e-05
    %v3219 = vadd.f32 %v3217, 1e-05
    %v3220 = vrsqrt.pop %v3218
    %v3221 = vrsqrt.pop %v3219
    %v3222 = vmul.f32 %v3206, %v3220
    %v3223 = vmul.f32 %v3207, %v3221
    %v3225 = vlaneseq
    %v3226 = vshrl.u32 %v3225, 7
    %v3227 = vsub.s32 0, %v3226
    %v3228 = vrot.slane %v3196, %v3227
    %v3230 = vmul.f32 %v3222, %v3228
    %v3231 = vmul.f32 %v3223, %v3228
    %v3233 = vlaneseq
    %v3234 = vshrl.u32 %v3233, 7
    %v3235 = vsub.s32 0, %v3234
    %v3236 = vrot.slane %v3197, %v3235
    %v3238 = vadd.f32 %v3230, %v3236
    %v3239 = vadd.f32 %v3231, %v3236
    %v3240 = vpack.c.bf16 %v3239, %v3238
    %s3241 = scalar_lea.vmem %s1, 16
    %v3242 = vld [vmem:[%s3241] sm:$0xf]
    %v3243 = vld [vmem:[%s3241 + $0x4] sm:$0xf]
    %v3244 = vld [vmem:[%s3241 + $0x8] sm:$0xf]
    %v3245 = vld [vmem:[%s3241 + $0xc] sm:$0xf]
    %s3246 = scalar_lea.vmem %s2, 1
    %v3247 = vld [vmem:[%s3246] sm:$0x1]
    %v3249 = vlaneseq
    %v3250 = vshrl.u32 %v3249, 7
    %v3251 = vsub.s32 0, %v3250
    %v3252 = vrot.slane %v3247, %v3251
    %v3258 = vunpack.c.l.b16 %v3242
    %v3259 = vunpack.c.l.b16 %v3243
    %v3260 = vunpack.c.l.b16 %v3244
    %v3261 = vunpack.c.l.b16 %v3245
    %v3262 = vpack.c.b16 %v3259, %v3258
    %v3263 = vpack.c.b16 %v3261, %v3260
    %v3267 = vsel %vm78, %v3240, 0
    %3269 = vmatprep.subr.bf16.mxu0 0
    %3270 = vmatpush1.bf16.msra.mxu0 %v3262
    %3271 = vmatprep.subr.bf16.mxu0 0
    %3272 = vmatpush1.bf16.msra.mxu0 %v3263
    %3273 = vmatprep.subr.bf16.mxu0 0
    %3274 = vmatpush1.bf16.msra.mxu0 0
    %3275 = vmatprep.subr.bf16.mxu0 0
    %3276 = vmatpush1.bf16.msra.mxu0 0
    %3277 = vmatprep.subr.bf16.mxu0 0
    %3278 = vmatpush1.bf16.msra.mxu0 0
    %3279 = vmatprep.subr.bf16.mxu0 0
    %3280 = vmatpush1.bf16.msra.mxu0 0
    %3281 = vmatprep.subr.bf16.mxu0 0
    %3282 = vmatpush1.bf16.msra.mxu0 0
    %3283 = vmatprep.subr.bf16.mxu0 0
    %3284 = vmatpush1.bf16.msra.mxu0 0
    %3285 = vmatprep.subr.bf16.mxu0 0
    %3286 = vmatpush1.bf16.msra.mxu0 0
    %3287 = vmatprep.subr.bf16.mxu0 0
    %3288 = vmatpush1.bf16.msra.mxu0 0
    %3289 = vmatprep.subr.bf16.mxu0 0
    %3290 = vmatpush1.bf16.msra.mxu0 0
    %3291 = vmatprep.subr.bf16.mxu0 0
    %3292 = vmatpush1.bf16.msra.mxu0 0
    %3293 = vmatprep.subr.bf16.mxu0 0
    %3294 = vmatpush1.bf16.msra.mxu0 0
    %3295 = vmatprep.subr.bf16.mxu0 0
    %3296 = vmatpush1.bf16.msra.mxu0 0
    %3297 = vmatprep.subr.bf16.mxu0 0
    %3298 = vmatpush1.bf16.msra.mxu0 0
    %3299 = vmatprep.subr.bf16.mxu0 0
    %3300 = vmatpush1.bf16.msra.mxu0 0
    %3301 = vmatprep.mubr.bf16.mxu0 0
    %3302 = vmatmul.mubr.bf16.gmra.mrb[0].mxu0 %v3267
    %v3303 = vpop.f32.mrb[0].mxu0
    %v3304 = vadd.f32 %v3252, %v3303
    %v3305 = vpop.f32.mrb[0].mxu0
    %v3306 = vpop.f32.mrb[0].mxu0
    %v3307 = vadd.f32 %v3252, %v3306
    %v3308 = vpop.f32.mrb[0].mxu0
    %3309 = vdwg.mxu0
    %v3310 = vmul.f32 %v3304, 0.35355338
    %v3311 = vpack.c.bf16 %v3310, %v3310
    %v3312 = vpack.c.bf16 %v3304, %v3304
    %3314 = vrot.lane.b32.xlu0 %v3312, 96
    %v3315 = vpop.permute.xlu0 %3314
    %v3317 = vsel %vm129, %v3311, 0
    %v3320 = vsel %vm129, %v3315, 0
    %3322 = vmatprep.subr.bf16.mxu0 0
    %3323 = vmatpush1.bf16.xpose.msra.mxu0 %v3320
    %3324 = vmatprep.subr.bf16.mxu0 0
    %3325 = vmatpush1.bf16.xpose.msra.mxu0 0
    %3326 = vmatprep.subr.bf16.mxu0 0
    %3327 = vmatpush1.bf16.xpose.msra.mxu0 0
    %3328 = vmatprep.subr.bf16.mxu0 0
    %3329 = vmatpush1.bf16.xpose.msra.mxu0 0
    %3330 = vmatprep.subr.bf16.mxu0 0
    %3331 = vmatpush1.bf16.xpose.msra.mxu0 0
    %3332 = vmatprep.subr.bf16.mxu0 0
    %3333 = vmatpush1.bf16.xpose.msra.mxu0 0
    %3334 = vmatprep.subr.bf16.mxu0 0
    %3335 = vmatpush1.bf16.xpose.msra.mxu0 0
    %3336 = vmatprep.subr.bf16.mxu0 0
    %3337 = vmatpush1.bf16.xpose.msra.mxu0 0
    %3338 = vmatprep.subr.bf16.mxu0 0
    %3339 = vmatpush1.bf16.xpose.msra.mxu0 0
    %3340 = vmatprep.subr.bf16.mxu0 0
    %3341 = vmatpush1.bf16.xpose.msra.mxu0 0
    %3342 = vmatprep.subr.bf16.mxu0 0
    %3343 = vmatpush1.bf16.xpose.msra.mxu0 0
    %3344 = vmatprep.subr.bf16.mxu0 0
    %3345 = vmatpush1.bf16.xpose.msra.mxu0 0
    %3346 = vmatprep.subr.bf16.mxu0 0
    %3347 = vmatpush1.bf16.xpose.msra.mxu0 0
    %3348 = vmatprep.subr.bf16.mxu0 0
    %3349 = vmatpush1.bf16.xpose.msra.mxu0 0
    %3350 = vmatprep.subr.bf16.mxu0 0
    %3351 = vmatpush1.bf16.xpose.msra.mxu0 0
    %3352 = vmatprep.subr.bf16.mxu0 0
    %3353 = vmatpush1.bf16.xpose.msra.mxu0 0
    %3354 = vmatprep.mubr.bf16.mxu0 0
    %3355 = vmatmul.mubr.bf16.gmra.mrb[0].mxu0 %v3317
    %v3356 = vpop.f32.mrb[0].mxu0
    %v3357 = vadd.f32 0.0, %v3356
    %v3358 = vpop.f32.mrb[0].mxu0
    %v3359 = vpop.f32.mrb[0].mxu0
    %v3360 = vpop.f32.mrb[0].mxu0
    %3361 = vdwg.mxu0
    %v3362 = vsel %vm129, %v3357, -inf
    %3363 = vmax.xlane.f32.xlu0 %v3362
    %v3364 = vpop.xlane.xlu0 %3363
    %v3365 = vsub.f32 %v3357, %v3364
    %v3366 = vmul.f32 %v3365, 1.442695
    %v3367 = vpow.pop %v3366
    %v3368 = vsel %vm129, %v3367, 0.0
    %3369 = vadd.xlane.f32.xlu0 %v3368
    %v3370 = vpop.xlane.xlu0 %3369
    %v3371 = vrcp.pop %v3370
    %v3372 = vmul.f32 %v3367, %v3371
    %v3373 = vpack.c.bf16 %v3372, %v3372
    %3374 = vrot.lane.b32.xlu0 %v3312, 64
    %v3375 = vpop.permute.xlu0 %3374
    %v3377 = vsel %vm129, %v3373, 0
    %v3380 = vsel %vm193, %v3375, 0
    %3382 = vmatprep.subr.bf16.mxu0 0
    %3383 = vmatpush1.bf16.msra.mxu0 %v3380
    %3384 = vmatprep.subr.bf16.mxu0 0
    %3385 = vmatpush1.bf16.msra.mxu0 0
    %3386 = vmatprep.subr.bf16.mxu0 0
    %3387 = vmatpush1.bf16.msra.mxu0 0
    %3388 = vmatprep.subr.bf16.mxu0 0
    %3389 = vmatpush1.bf16.msra.mxu0 0
    %3390 = vmatprep.subr.bf16.mxu0 0
    %3391 = vmatpush1.bf16.msra.mxu0 0
    %3392 = vmatprep.subr.bf16.mxu0 0
    %3393 = vmatpush1.bf16.msra.mxu0 0
    %3394 = vmatprep.subr.bf16.mxu0 0
    %3395 = vmatpush1.bf16.msra.mxu0 0
    %3396 = vmatprep.subr.bf16.mxu0 0
    %3397 = vmatpush1.bf16.msra.mxu0 0
    %3398 = vmatprep.subr.bf16.mxu0 0
    %3399 = vmatpush1.bf16.msra.mxu0 0
    %3400 = vmatprep.subr.bf16.mxu0 0
    %3401 = vmatpush1.bf16.msra.mxu0 0
    %3402 = vmatprep.subr.bf16.mxu0 0
    %3403 = vmatpush1.bf16.msra.mxu0 0
    %3404 = vmatprep.subr.bf16.mxu0 0
    %3405 = vmatpush1.bf16.msra.mxu0 0
    %3406 = vmatprep.subr.bf16.mxu0 0
    %3407 = vmatpush1.bf16.msra.mxu0 0
    %3408 = vmatprep.subr.bf16.mxu0 0
    %3409 = vmatpush1.bf16.msra.mxu0 0
    %3410 = vmatprep.subr.bf16.mxu0 0
    %3411 = vmatpush1.bf16.msra.mxu0 0
    %3412 = vmatprep.subr.bf16.mxu0 0
    %3413 = vmatpush1.bf16.msra.mxu0 0
    %3414 = vmatprep.mubr.bf16.mxu0 0
    %3415 = vmatmul.mubr.bf16.gmra.mrb[0].mxu0 %v3377
    %v3416 = vpop.f32.mrb[0].mxu0
    %v3417 = vadd.f32 0.0, %v3416
    %v3418 = vpop.f32.mrb[0].mxu0
    %v3419 = vpop.f32.mrb[0].mxu0
    %v3420 = vpop.f32.mrb[0].mxu0
    %3421 = vdwg.mxu0
    %3422 = vst.msk [vmem:[#allocation2] sm:$0xff] %vm129, %v3417
    %3424 = vrot.lane.b32.xlu0 %v3311, 120
    %v3425 = vpop.permute.xlu0 %3424
    %3426 = vrot.lane.b32.xlu0 %v3312, 88
    %v3427 = vpop.permute.xlu0 %3426
    %v3429 = vsel %vm129, %v3425, 0
    %v3432 = vsel %vm129, %v3427, 0
    %3434 = vmatprep.subr.bf16.mxu0 0
    %3435 = vmatpush1.bf16.xpose.msra.mxu0 %v3432
    %3436 = vmatprep.subr.bf16.mxu0 0
    %3437 = vmatpush1.bf16.xpose.msra.mxu0 0
    %3438 = vmatprep.subr.bf16.mxu0 0
    %3439 = vmatpush1.bf16.xpose.msra.mxu0 0
    %3440 = vmatprep.subr.bf16.mxu0 0
    %3441 = vmatpush1.bf16.xpose.msra.mxu0 0
    %3442 = vmatprep.subr.bf16.mxu0 0
    %3443 = vmatpush1.bf16.xpose.msra.mxu0 0
    %3444 = vmatprep.subr.bf16.mxu0 0
    %3445 = vmatpush1.bf16.xpose.msra.mxu0 0
    %3446 = vmatprep.subr.bf16.mxu0 0
    %3447 = vmatpush1.bf16.xpose.msra.mxu0 0
    %3448 = vmatprep.subr.bf16.mxu0 0
    %3449 = vmatpush1.bf16.xpose.msra.mxu0 0
    %3450 = vmatprep.subr.bf16.mxu0 0
    %3451 = vmatpush1.bf16.xpose.msra.mxu0 0
    %3452 = vmatprep.subr.bf16.mxu0 0
    %3453 = vmatpush1.bf16.xpose.msra.mxu0 0
    %3454 = vmatprep.subr.bf16.mxu0 0
    %3455 = vmatpush1.bf16.xpose.msra.mxu0 0
    %3456 = vmatprep.subr.bf16.mxu0 0
    %3457 = vmatpush1.bf16.xpose.msra.mxu0 0
    %3458 = vmatprep.subr.bf16.mxu0 0
    %3459 = vmatpush1.bf16.xpose.msra.mxu0 0
    %3460 = vmatprep.subr.bf16.mxu0 0
    %3461 = vmatpush1.bf16.xpose.msra.mxu0 0
    %3462 = vmatprep.subr.bf16.mxu0 0
    %3463 = vmatpush1.bf16.xpose.msra.mxu0 0
    %3464 = vmatprep.subr.bf16.mxu0 0
    %3465 = vmatpush1.bf16.xpose.msra.mxu0 0
    %3466 = vmatprep.mubr.bf16.mxu0 0
    %3467 = vmatmul.mubr.bf16.gmra.mrb[0].mxu0 %v3429
    %v3468 = vpop.f32.mrb[0].mxu0
    %v3469 = vadd.f32 0.0, %v3468
    %v3470 = vpop.f32.mrb[0].mxu0
    %v3471 = vpop.f32.mrb[0].mxu0
    %v3472 = vpop.f32.mrb[0].mxu0
    %3473 = vdwg.mxu0
    %v3474 = vsel %vm129, %v3469, -inf
    %3475 = vmax.xlane.f32.xlu0 %v3474
    %v3476 = vpop.xlane.xlu0 %3475
    %v3477 = vsub.f32 %v3469, %v3476
    %v3478 = vmul.f32 %v3477, 1.442695
    %v3479 = vpow.pop %v3478
    %v3480 = vsel %vm129, %v3479, 0.0
    %3481 = vadd.xlane.f32.xlu0 %v3480
    %v3482 = vpop.xlane.xlu0 %3481
    %v3483 = vrcp.pop %v3482
    %v3484 = vmul.f32 %v3479, %v3483
    %v3485 = vpack.c.bf16 %v3484, %v3484
    %3486 = vrot.lane.b32.xlu0 %v3312, 56
    %v3487 = vpop.permute.xlu0 %3486
    %v3489 = vsel %vm129, %v3485, 0
    %v3492 = vsel %vm193, %v3487, 0
    %3494 = vmatprep.subr.bf16.mxu0 0
    %3495 = vmatpush1.bf16.msra.mxu0 %v3492
    %3496 = vmatprep.subr.bf16.mxu0 0
    %3497 = vmatpush1.bf16.msra.mxu0 0
    %3498 = vmatprep.subr.bf16.mxu0 0
    %3499 = vmatpush1.bf16.msra.mxu0 0
    %3500 = vmatprep.subr.bf16.mxu0 0
    %3501 = vmatpush1.bf16.msra.mxu0 0
    %3502 = vmatprep.subr.bf16.mxu0 0
    %3503 = vmatpush1.bf16.msra.mxu0 0
    %3504 = vmatprep.subr.bf16.mxu0 0
    %3505 = vmatpush1.bf16.msra.mxu0 0
    %3506 = vmatprep.subr.bf16.mxu0 0
    %3507 = vmatpush1.bf16.msra.mxu0 0
    %3508 = vmatprep.subr.bf16.mxu0 0
    %3509 = vmatpush1.bf16.msra.mxu0 0
    %3510 = vmatprep.subr.bf16.mxu0 0
    %3511 = vmatpush1.bf16.msra.mxu0 0
    %3512 = vmatprep.subr.bf16.mxu0 0
    %3513 = vmatpush1.bf16.msra.mxu0 0
    %3514 = vmatprep.subr.bf16.mxu0 0
    %3515 = vmatpush1.bf16.msra.mxu0 0
    %3516 = vmatprep.subr.bf16.mxu0 0
    %3517 = vmatpush1.bf16.msra.mxu0 0
    %3518 = vmatprep.subr.bf16.mxu0 0
    %3519 = vmatpush1.bf16.msra.mxu0 0
    %3520 = vmatprep.subr.bf16.mxu0 0
    %3521 = vmatpush1.bf16.msra.mxu0 0
    %3522 = vmatprep.subr.bf16.mxu0 0
    %3523 = vmatpush1.bf16.msra.mxu0 0
    %3524 = vmatprep.subr.bf16.mxu0 0
    %3525 = vmatpush1.bf16.msra.mxu0 0
    %3526 = vmatprep.mubr.bf16.mxu0 0
    %3527 = vmatmul.mubr.bf16.gmra.mrb[0].mxu0 %v3489
    %v3528 = vpop.f32.mrb[0].mxu0
    %v3529 = vadd.f32 0.0, %v3528
    %v3530 = vpop.f32.mrb[0].mxu0
    %v3531 = vpop.f32.mrb[0].mxu0
    %v3532 = vpop.f32.mrb[0].mxu0
    %3533 = vdwg.mxu0
    %3535 = vrot.lane.b32.xlu0 %v3529, 8
    %v3536 = vpop.permute.xlu0 %3535
    %3538 = vst.msk [vmem:[#allocation2] sm:$0xff] %vm353, %v3536
    %3539 = vrot.lane.b32.xlu0 %v3311, 112
    %v3540 = vpop.permute.xlu0 %3539
    %3541 = vrot.lane.b32.xlu0 %v3312, 80
    %v3542 = vpop.permute.xlu0 %3541
    %v3544 = vsel %vm129, %v3540, 0
    %v3547 = vsel %vm129, %v3542, 0
    %3549 = vmatprep.subr.bf16.mxu0 0
    %3550 = vmatpush1.bf16.xpose.msra.mxu0 %v3547
    %3551 = vmatprep.subr.bf16.mxu0 0
    %3552 = vmatpush1.bf16.xpose.msra.mxu0 0
    %3553 = vmatprep.subr.bf16.mxu0 0
    %3554 = vmatpush1.bf16.xpose.msra.mxu0 0
    %3555 = vmatprep.subr.bf16.mxu0 0
    %3556 = vmatpush1.bf16.xpose.msra.mxu0 0
    %3557 = vmatprep.subr.bf16.mxu0 0
    %3558 = vmatpush1.bf16.xpose.msra.mxu0 0
    %3559 = vmatprep.subr.bf16.mxu0 0
    %3560 = vmatpush1.bf16.xpose.msra.mxu0 0
    %3561 = vmatprep.subr.bf16.mxu0 0
    %3562 = vmatpush1.bf16.xpose.msra.mxu0 0
    %3563 = vmatprep.subr.bf16.mxu0 0
    %3564 = vmatpush1.bf16.xpose.msra.mxu0 0
    %3565 = vmatprep.subr.bf16.mxu0 0
    %3566 = vmatpush1.bf16.xpose.msra.mxu0 0
    %3567 = vmatprep.subr.bf16.mxu0 0
    %3568 = vmatpush1.bf16.xpose.msra.mxu0 0
    %3569 = vmatprep.subr.bf16.mxu0 0
    %3570 = vmatpush1.bf16.xpose.msra.mxu0 0
    %3571 = vmatprep.subr.bf16.mxu0 0
    %3572 = vmatpush1.bf16.xpose.msra.mxu0 0
    %3573 = vmatprep.subr.bf16.mxu0 0
    %3574 = vmatpush1.bf16.xpose.msra.mxu0 0
    %3575 = vmatprep.subr.bf16.mxu0 0
    %3576 = vmatpush1.bf16.xpose.msra.mxu0 0
    %3577 = vmatprep.subr.bf16.mxu0 0
    %3578 = vmatpush1.bf16.xpose.msra.mxu0 0
    %3579 = vmatprep.subr.bf16.mxu0 0
    %3580 = vmatpush1.bf16.xpose.msra.mxu0 0
    %3581 = vmatprep.mubr.bf16.mxu0 0
    %3582 = vmatmul.mubr.bf16.gmra.mrb[0].mxu0 %v3544
    %v3583 = vpop.f32.mrb[0].mxu0
    %v3584 = vadd.f32 0.0, %v3583
    %v3585 = vpop.f32.mrb[0].mxu0
    %v3586 = vpop.f32.mrb[0].mxu0
    %v3587 = vpop.f32.mrb[0].mxu0
    %3588 = vdwg.mxu0
    %v3589 = vsel %vm129, %v3584, -inf
    %3590 = vmax.xlane.f32.xlu0 %v3589
    %v3591 = vpop.xlane.xlu0 %3590
    %v3592 = vsub.f32 %v3584, %v3591
    %v3593 = vmul.f32 %v3592, 1.442695
    %v3594 = vpow.pop %v3593
    %v3595 = vsel %vm129, %v3594, 0.0
    %3596 = vadd.xlane.f32.xlu0 %v3595
    %v3597 = vpop.xlane.xlu0 %3596
    %v3598 = vrcp.pop %v3597
    %v3599 = vmul.f32 %v3594, %v3598
    %v3600 = vpack.c.bf16 %v3599, %v3599
    %3601 = vrot.lane.b32.xlu0 %v3312, 48
    %v3602 = vpop.permute.xlu0 %3601
    %v3604 = vsel %vm129, %v3600, 0
    %v3607 = vsel %vm193, %v3602, 0
    %3609 = vmatprep.subr.bf16.mxu0 0
    %3610 = vmatpush1.bf16.msra.mxu0 %v3607
    %3611 = vmatprep.subr.bf16.mxu0 0
    %3612 = vmatpush1.bf16.msra.mxu0 0
    %3613 = vmatprep.subr.bf16.mxu0 0
    %3614 = vmatpush1.bf16.msra.mxu0 0
    %3615 = vmatprep.subr.bf16.mxu0 0
    %3616 = vmatpush1.bf16.msra.mxu0 0
    %3617 = vmatprep.subr.bf16.mxu0 0
    %3618 = vmatpush1.bf16.msra.mxu0 0
    %3619 = vmatprep.subr.bf16.mxu0 0
    %3620 = vmatpush1.bf16.msra.mxu0 0
    %3621 = vmatprep.subr.bf16.mxu0 0
    %3622 = vmatpush1.bf16.msra.mxu0 0
    %3623 = vmatprep.subr.bf16.mxu0 0
    %3624 = vmatpush1.bf16.msra.mxu0 0
    %3625 = vmatprep.subr.bf16.mxu0 0
    %3626 = vmatpush1.bf16.msra.mxu0 0
    %3627 = vmatprep.subr.bf16.mxu0 0
    %3628 = vmatpush1.bf16.msra.mxu0 0
    %3629 = vmatprep.subr.bf16.mxu0 0
    %3630 = vmatpush1.bf16.msra.mxu0 0
    %3631 = vmatprep.subr.bf16.mxu0 0
    %3632 = vmatpush1.bf16.msra.mxu0 0
    %3633 = vmatprep.subr.bf16.mxu0 0
    %3634 = vmatpush1.bf16.msra.mxu0 0
    %3635 = vmatprep.subr.bf16.mxu0 0
    %3636 = vmatpush1.bf16.msra.mxu0 0
    %3637 = vmatprep.subr.bf16.mxu0 0
    %3638 = vmatpush1.bf16.msra.mxu0 0
    %3639 = vmatprep.subr.bf16.mxu0 0
    %3640 = vmatpush1.bf16.msra.mxu0 0
    %3641 = vmatprep.mubr.bf16.mxu0 0
    %3642 = vmatmul.mubr.bf16.gmra.mrb[0].mxu0 %v3604
    %v3643 = vpop.f32.mrb[0].mxu0
    %v3644 = vadd.f32 0.0, %v3643
    %v3645 = vpop.f32.mrb[0].mxu0
    %v3646 = vpop.f32.mrb[0].mxu0
    %v3647 = vpop.f32.mrb[0].mxu0
    %3648 = vdwg.mxu0
    %3650 = vrot.lane.b32.xlu0 %v3644, 16
    %v3651 = vpop.permute.xlu0 %3650
    %3653 = vst.msk [vmem:[#allocation2] sm:$0xff] %vm469, %v3651
    %3654 = vrot.lane.b32.xlu0 %v3311, 104
    %v3655 = vpop.permute.xlu0 %3654
    %3656 = vrot.lane.b32.xlu0 %v3312, 72
    %v3657 = vpop.permute.xlu0 %3656
    %v3659 = vsel %vm129, %v3655, 0
    %v3662 = vsel %vm129, %v3657, 0
    %3664 = vmatprep.subr.bf16.mxu0 0
    %3665 = vmatpush1.bf16.xpose.msra.mxu0 %v3662
    %3666 = vmatprep.subr.bf16.mxu0 0
    %3667 = vmatpush1.bf16.xpose.msra.mxu0 0
    %3668 = vmatprep.subr.bf16.mxu0 0
    %3669 = vmatpush1.bf16.xpose.msra.mxu0 0
    %3670 = vmatprep.subr.bf16.mxu0 0
    %3671 = vmatpush1.bf16.xpose.msra.mxu0 0
    %3672 = vmatprep.subr.bf16.mxu0 0
    %3673 = vmatpush1.bf16.xpose.msra.mxu0 0
    %3674 = vmatprep.subr.bf16.mxu0 0
    %3675 = vmatpush1.bf16.xpose.msra.mxu0 0
    %3676 = vmatprep.subr.bf16.mxu0 0
    %3677 = vmatpush1.bf16.xpose.msra.mxu0 0
    %3678 = vmatprep.subr.bf16.mxu0 0
    %3679 = vmatpush1.bf16.xpose.msra.mxu0 0
    %3680 = vmatprep.subr.bf16.mxu0 0
    %3681 = vmatpush1.bf16.xpose.msra.mxu0 0
    %3682 = vmatprep.subr.bf16.mxu0 0
    %3683 = vmatpush1.bf16.xpose.msra.mxu0 0
    %3684 = vmatprep.subr.bf16.mxu0 0
    %3685 = vmatpush1.bf16.xpose.msra.mxu0 0
    %3686 = vmatprep.subr.bf16.mxu0 0
    %3687 = vmatpush1.bf16.xpose.msra.mxu0 0
    %3688 = vmatprep.subr.bf16.mxu0 0
    %3689 = vmatpush1.bf16.xpose.msra.mxu0 0
    %3690 = vmatprep.subr.bf16.mxu0 0
    %3691 = vmatpush1.bf16.xpose.msra.mxu0 0
    %3692 = vmatprep.subr.bf16.mxu0 0
    %3693 = vmatpush1.bf16.xpose.msra.mxu0 0
    %3694 = vmatprep.subr.bf16.mxu0 0
    %3695 = vmatpush1.bf16.xpose.msra.mxu0 0
    %3696 = vmatprep.mubr.bf16.mxu0 0
    %3697 = vmatmul.mubr.bf16.gmra.mrb[0].mxu0 %v3659
    %v3698 = vpop.f32.mrb[0].mxu0
    %v3699 = vadd.f32 0.0, %v3698
    %v3700 = vpop.f32.mrb[0].mxu0
    %v3701 = vpop.f32.mrb[0].mxu0
    %v3702 = vpop.f32.mrb[0].mxu0
    %3703 = vdwg.mxu0
    %v3704 = vsel %vm129, %v3699, -inf
    %3705 = vmax.xlane.f32.xlu0 %v3704
    %v3706 = vpop.xlane.xlu0 %3705
    %v3707 = vsub.f32 %v3699, %v3706
    %v3708 = vmul.f32 %v3707, 1.442695
    %v3709 = vpow.pop %v3708
    %v3710 = vsel %vm129, %v3709, 0.0
    %3711 = vadd.xlane.f32.xlu0 %v3710
    %v3712 = vpop.xlane.xlu0 %3711
    %v3713 = vrcp.pop %v3712
    %v3714 = vmul.f32 %v3709, %v3713
    %v3715 = vpack.c.bf16 %v3714, %v3714
    %3716 = vrot.lane.b32.xlu0 %v3312, 40
    %v3717 = vpop.permute.xlu0 %3716
    %v3719 = vsel %vm129, %v3715, 0
    %v3722 = vsel %vm193, %v3717, 0
    %3724 = vmatprep.subr.bf16.mxu0 0
    %3725 = vmatpush1.bf16.msra.mxu0 %v3722
    %3726 = vmatprep.subr.bf16.mxu0 0
    %3727 = vmatpush1.bf16.msra.mxu0 0
    %3728 = vmatprep.subr.bf16.mxu0 0
    %3729 = vmatpush1.bf16.msra.mxu0 0
    %3730 = vmatprep.subr.bf16.mxu0 0
    %3731 = vmatpush1.bf16.msra.mxu0 0
    %3732 = vmatprep.subr.bf16.mxu0 0
    %3733 = vmatpush1.bf16.msra.mxu0 0
    %3734 = vmatprep.subr.bf16.mxu0 0
    %3735 = vmatpush1.bf16.msra.mxu0 0
    %3736 = vmatprep.subr.bf16.mxu0 0
    %3737 = vmatpush1.bf16.msra.mxu0 0
    %3738 = vmatprep.subr.bf16.mxu0 0
    %3739 = vmatpush1.bf16.msra.mxu0 0
    %3740 = vmatprep.subr.bf16.mxu0 0
    %3741 = vmatpush1.bf16.msra.mxu0 0
    %3742 = vmatprep.subr.bf16.mxu0 0
    %3743 = vmatpush1.bf16.msra.mxu0 0
    %3744 = vmatprep.subr.bf16.mxu0 0
    %3745 = vmatpush1.bf16.msra.mxu0 0
    %3746 = vmatprep.subr.bf16.mxu0 0
    %3747 = vmatpush1.bf16.msra.mxu0 0
    %3748 = vmatprep.subr.bf16.mxu0 0
    %3749 = vmatpush1.bf16.msra.mxu0 0
    %3750 = vmatprep.subr.bf16.mxu0 0
    %3751 = vmatpush1.bf16.msra.mxu0 0
    %3752 = vmatprep.subr.bf16.mxu0 0
    %3753 = vmatpush1.bf16.msra.mxu0 0
    %3754 = vmatprep.subr.bf16.mxu0 0
    %3755 = vmatpush1.bf16.msra.mxu0 0
    %3756 = vmatprep.mubr.bf16.mxu0 0
    %3757 = vmatmul.mubr.bf16.gmra.mrb[0].mxu0 %v3719
    %v3758 = vpop.f32.mrb[0].mxu0
    %v3759 = vadd.f32 0.0, %v3758
    %v3760 = vpop.f32.mrb[0].mxu0
    %v3761 = vpop.f32.mrb[0].mxu0
    %v3762 = vpop.f32.mrb[0].mxu0
    %3763 = vdwg.mxu0
    %3765 = vrot.lane.b32.xlu0 %v3759, 24
    %v3766 = vpop.permute.xlu0 %3765
    %3768 = vst.msk [vmem:[#allocation2] sm:$0xff] %vm585, %v3766
    %v3769 = vmul.f32 %v3307, 0.35355338
    %v3770 = vpack.c.bf16 %v3769, %v3769
    %v3771 = vpack.c.bf16 %v3307, %v3307
    %3773 = vrot.lane.b32.xlu0 %v3771, 96
    %v3774 = vpop.permute.xlu0 %3773
    %v3776 = vsel %vm129, %v3770, 0
    %v3779 = vsel %vm129, %v3774, 0
    %3781 = vmatprep.subr.bf16.mxu0 0
    %3782 = vmatpush1.bf16.xpose.msra.mxu0 %v3779
    %3783 = vmatprep.subr.bf16.mxu0 0
    %3784 = vmatpush1.bf16.xpose.msra.mxu0 0
    %3785 = vmatprep.subr.bf16.mxu0 0
    %3786 = vmatpush1.bf16.xpose.msra.mxu0 0
    %3787 = vmatprep.subr.bf16.mxu0 0
    %3788 = vmatpush1.bf16.xpose.msra.mxu0 0
    %3789 = vmatprep.subr.bf16.mxu0 0
    %3790 = vmatpush1.bf16.xpose.msra.mxu0 0
    %3791 = vmatprep.subr.bf16.mxu0 0
    %3792 = vmatpush1.bf16.xpose.msra.mxu0 0
    %3793 = vmatprep.subr.bf16.mxu0 0
    %3794 = vmatpush1.bf16.xpose.msra.mxu0 0
    %3795 = vmatprep.subr.bf16.mxu0 0
    %3796 = vmatpush1.bf16.xpose.msra.mxu0 0
    %3797 = vmatprep.subr.bf16.mxu0 0
    %3798 = vmatpush1.bf16.xpose.msra.mxu0 0
    %3799 = vmatprep.subr.bf16.mxu0 0
    %3800 = vmatpush1.bf16.xpose.msra.mxu0 0
    %3801 = vmatprep.subr.bf16.mxu0 0
    %3802 = vmatpush1.bf16.xpose.msra.mxu0 0
    %3803 = vmatprep.subr.bf16.mxu0 0
    %3804 = vmatpush1.bf16.xpose.msra.mxu0 0
    %3805 = vmatprep.subr.bf16.mxu0 0
    %3806 = vmatpush1.bf16.xpose.msra.mxu0 0
    %3807 = vmatprep.subr.bf16.mxu0 0
    %3808 = vmatpush1.bf16.xpose.msra.mxu0 0
    %3809 = vmatprep.subr.bf16.mxu0 0
    %3810 = vmatpush1.bf16.xpose.msra.mxu0 0
    %3811 = vmatprep.subr.bf16.mxu0 0
    %3812 = vmatpush1.bf16.xpose.msra.mxu0 0
    %3813 = vmatprep.mubr.bf16.mxu0 0
    %3814 = vmatmul.mubr.bf16.gmra.mrb[0].mxu0 %v3776
    %v3815 = vpop.f32.mrb[0].mxu0
    %v3816 = vadd.f32 0.0, %v3815
    %v3817 = vpop.f32.mrb[0].mxu0
    %v3818 = vpop.f32.mrb[0].mxu0
    %v3819 = vpop.f32.mrb[0].mxu0
    %3820 = vdwg.mxu0
    %v3821 = vsel %vm129, %v3816, -inf
    %3822 = vmax.xlane.f32.xlu0 %v3821
    %v3823 = vpop.xlane.xlu0 %3822
    %v3824 = vsub.f32 %v3816, %v3823
    %v3825 = vmul.f32 %v3824, 1.442695
    %v3826 = vpow.pop %v3825
    %v3827 = vsel %vm129, %v3826, 0.0
    %3828 = vadd.xlane.f32.xlu0 %v3827
    %v3829 = vpop.xlane.xlu0 %3828
    %v3830 = vrcp.pop %v3829
    %v3831 = vmul.f32 %v3826, %v3830
    %v3832 = vpack.c.bf16 %v3831, %v3831
    %3833 = vrot.lane.b32.xlu0 %v3771, 64
    %v3834 = vpop.permute.xlu0 %3833
    %v3836 = vsel %vm129, %v3832, 0
    %v3839 = vsel %vm193, %v3834, 0
    %3841 = vmatprep.subr.bf16.mxu0 0
    %3842 = vmatpush1.bf16.msra.mxu0 %v3839
    %3843 = vmatprep.subr.bf16.mxu0 0
    %3844 = vmatpush1.bf16.msra.mxu0 0
    %3845 = vmatprep.subr.bf16.mxu0 0
    %3846 = vmatpush1.bf16.msra.mxu0 0
    %3847 = vmatprep.subr.bf16.mxu0 0
    %3848 = vmatpush1.bf16.msra.mxu0 0
    %3849 = vmatprep.subr.bf16.mxu0 0
    %3850 = vmatpush1.bf16.msra.mxu0 0
    %3851 = vmatprep.subr.bf16.mxu0 0
    %3852 = vmatpush1.bf16.msra.mxu0 0
    %3853 = vmatprep.subr.bf16.mxu0 0
    %3854 = vmatpush1.bf16.msra.mxu0 0
    %3855 = vmatprep.subr.bf16.mxu0 0
    %3856 = vmatpush1.bf16.msra.mxu0 0
    %3857 = vmatprep.subr.bf16.mxu0 0
    %3858 = vmatpush1.bf16.msra.mxu0 0
    %3859 = vmatprep.subr.bf16.mxu0 0
    %3860 = vmatpush1.bf16.msra.mxu0 0
    %3861 = vmatprep.subr.bf16.mxu0 0
    %3862 = vmatpush1.bf16.msra.mxu0 0
    %3863 = vmatprep.subr.bf16.mxu0 0
    %3864 = vmatpush1.bf16.msra.mxu0 0
    %3865 = vmatprep.subr.bf16.mxu0 0
    %3866 = vmatpush1.bf16.msra.mxu0 0
    %3867 = vmatprep.subr.bf16.mxu0 0
    %3868 = vmatpush1.bf16.msra.mxu0 0
    %3869 = vmatprep.subr.bf16.mxu0 0
    %3870 = vmatpush1.bf16.msra.mxu0 0
    %3871 = vmatprep.subr.bf16.mxu0 0
    %3872 = vmatpush1.bf16.msra.mxu0 0
    %3873 = vmatprep.mubr.bf16.mxu0 0
    %3874 = vmatmul.mubr.bf16.gmra.mrb[0].mxu0 %v3836
    %v3875 = vpop.f32.mrb[0].mxu0
    %v3876 = vadd.f32 0.0, %v3875
    %v3877 = vpop.f32.mrb[0].mxu0
    %v3878 = vpop.f32.mrb[0].mxu0
    %v3879 = vpop.f32.mrb[0].mxu0
    %3880 = vdwg.mxu0
    %3881 = vst.msk [vmem:[#allocation2 + $0x8] sm:$0xff] %vm129, %v3876
    %3883 = vrot.lane.b32.xlu0 %v3770, 120
    %v3884 = vpop.permute.xlu0 %3883
    %3885 = vrot.lane.b32.xlu0 %v3771, 88
    %v3886 = vpop.permute.xlu0 %3885
    %v3888 = vsel %vm129, %v3884, 0
    %v3891 = vsel %vm129, %v3886, 0
    %3893 = vmatprep.subr.bf16.mxu0 0
    %3894 = vmatpush1.bf16.xpose.msra.mxu0 %v3891
    %3895 = vmatprep.subr.bf16.mxu0 0
    %3896 = vmatpush1.bf16.xpose.msra.mxu0 0
    %3897 = vmatprep.subr.bf16.mxu0 0
    %3898 = vmatpush1.bf16.xpose.msra.mxu0 0
    %3899 = vmatprep.subr.bf16.mxu0 0
    %3900 = vmatpush1.bf16.xpose.msra.mxu0 0
    %3901 = vmatprep.subr.bf16.mxu0 0
    %3902 = vmatpush1.bf16.xpose.msra.mxu0 0
    %3903 = vmatprep.subr.bf16.mxu0 0
    %3904 = vmatpush1.bf16.xpose.msra.mxu0 0
    %3905 = vmatprep.subr.bf16.mxu0 0
    %3906 = vmatpush1.bf16.xpose.msra.mxu0 0
    %3907 = vmatprep.subr.bf16.mxu0 0
    %3908 = vmatpush1.bf16.xpose.msra.mxu0 0
    %3909 = vmatprep.subr.bf16.mxu0 0
    %3910 = vmatpush1.bf16.xpose.msra.mxu0 0
    %3911 = vmatprep.subr.bf16.mxu0 0
    %3912 = vmatpush1.bf16.xpose.msra.mxu0 0
    %3913 = vmatprep.subr.bf16.mxu0 0
    %3914 = vmatpush1.bf16.xpose.msra.mxu0 0
    %3915 = vmatprep.subr.bf16.mxu0 0
    %3916 = vmatpush1.bf16.xpose.msra.mxu0 0
    %3917 = vmatprep.subr.bf16.mxu0 0
    %3918 = vmatpush1.bf16.xpose.msra.mxu0 0
    %3919 = vmatprep.subr.bf16.mxu0 0
    %3920 = vmatpush1.bf16.xpose.msra.mxu0 0
    %3921 = vmatprep.subr.bf16.mxu0 0
    %3922 = vmatpush1.bf16.xpose.msra.mxu0 0
    %3923 = vmatprep.subr.bf16.mxu0 0
    %3924 = vmatpush1.bf16.xpose.msra.mxu0 0
    %3925 = vmatprep.mubr.bf16.mxu0 0
    %3926 = vmatmul.mubr.bf16.gmra.mrb[0].mxu0 %v3888
    %v3927 = vpop.f32.mrb[0].mxu0
    %v3928 = vadd.f32 0.0, %v3927
    %v3929 = vpop.f32.mrb[0].mxu0
    %v3930 = vpop.f32.mrb[0].mxu0
    %v3931 = vpop.f32.mrb[0].mxu0
    %3932 = vdwg.mxu0
    %v3933 = vsel %vm129, %v3928, -inf
    %3934 = vmax.xlane.f32.xlu0 %v3933
    %v3935 = vpop.xlane.xlu0 %3934
    %v3936 = vsub.f32 %v3928, %v3935
    %v3937 = vmul.f32 %v3936, 1.442695
    %v3938 = vpow.pop %v3937
    %v3939 = vsel %vm129, %v3938, 0.0
    %3940 = vadd.xlane.f32.xlu0 %v3939
    %v3941 = vpop.xlane.xlu0 %3940
    %v3942 = vrcp.pop %v3941
    %v3943 = vmul.f32 %v3938, %v3942
    %v3944 = vpack.c.bf16 %v3943, %v3943
    %3945 = vrot.lane.b32.xlu0 %v3771, 56
    %v3946 = vpop.permute.xlu0 %3945
    %v3948 = vsel %vm129, %v3944, 0
    %v3951 = vsel %vm193, %v3946, 0
    %3953 = vmatprep.subr.bf16.mxu0 0
    %3954 = vmatpush1.bf16.msra.mxu0 %v3951
    %3955 = vmatprep.subr.bf16.mxu0 0
    %3956 = vmatpush1.bf16.msra.mxu0 0
    %3957 = vmatprep.subr.bf16.mxu0 0
    %3958 = vmatpush1.bf16.msra.mxu0 0
    %3959 = vmatprep.subr.bf16.mxu0 0
    %3960 = vmatpush1.bf16.msra.mxu0 0
    %3961 = vmatprep.subr.bf16.mxu0 0
    %3962 = vmatpush1.bf16.msra.mxu0 0
    %3963 = vmatprep.subr.bf16.mxu0 0
    %3964 = vmatpush1.bf16.msra.mxu0 0
    %3965 = vmatprep.subr.bf16.mxu0 0
    %3966 = vmatpush1.bf16.msra.mxu0 0
    %3967 = vmatprep.subr.bf16.mxu0 0
    %3968 = vmatpush1.bf16.msra.mxu0 0
    %3969 = vmatprep.subr.bf16.mxu0 0
    %3970 = vmatpush1.bf16.msra.mxu0 0
    %3971 = vmatprep.subr.bf16.mxu0 0
    %3972 = vmatpush1.bf16.msra.mxu0 0
    %3973 = vmatprep.subr.bf16.mxu0 0
    %3974 = vmatpush1.bf16.msra.mxu0 0
    %3975 = vmatprep.subr.bf16.mxu0 0
    %3976 = vmatpush1.bf16.msra.mxu0 0
    %3977 = vmatprep.subr.bf16.mxu0 0
    %3978 = vmatpush1.bf16.msra.mxu0 0
    %3979 = vmatprep.subr.bf16.mxu0 0
    %3980 = vmatpush1.bf16.msra.mxu0 0
    %3981 = vmatprep.subr.bf16.mxu0 0
    %3982 = vmatpush1.bf16.msra.mxu0 0
    %3983 = vmatprep.subr.bf16.mxu0 0
    %3984 = vmatpush1.bf16.msra.mxu0 0
    %3985 = vmatprep.mubr.bf16.mxu0 0
    %3986 = vmatmul.mubr.bf16.gmra.mrb[0].mxu0 %v3948
    %v3987 = vpop.f32.mrb[0].mxu0
    %v3988 = vadd.f32 0.0, %v3987
    %v3989 = vpop.f32.mrb[0].mxu0
    %v3990 = vpop.f32.mrb[0].mxu0
    %v3991 = vpop.f32.mrb[0].mxu0
    %3992 = vdwg.mxu0
    %3994 = vrot.lane.b32.xlu0 %v3988, 8
    %v3995 = vpop.permute.xlu0 %3994
    %3997 = vst.msk [vmem:[#allocation2 + $0x8] sm:$0xff] %vm353, %v3995
    %3998 = vrot.lane.b32.xlu0 %v3770, 112
    %v3999 = vpop.permute.xlu0 %3998
    %4000 = vrot.lane.b32.xlu0 %v3771, 80
    %v4001 = vpop.permute.xlu0 %4000
    %v4003 = vsel %vm129, %v3999, 0
    %v4006 = vsel %vm129, %v4001, 0
    %4008 = vmatprep.subr.bf16.mxu0 0
    %4009 = vmatpush1.bf16.xpose.msra.mxu0 %v4006
    %4010 = vmatprep.subr.bf16.mxu0 0
    %4011 = vmatpush1.bf16.xpose.msra.mxu0 0
    %4012 = vmatprep.subr.bf16.mxu0 0
    %4013 = vmatpush1.bf16.xpose.msra.mxu0 0
    %4014 = vmatprep.subr.bf16.mxu0 0
    %4015 = vmatpush1.bf16.xpose.msra.mxu0 0
    %4016 = vmatprep.subr.bf16.mxu0 0
    %4017 = vmatpush1.bf16.xpose.msra.mxu0 0
    %4018 = vmatprep.subr.bf16.mxu0 0
    %4019 = vmatpush1.bf16.xpose.msra.mxu0 0
    %4020 = vmatprep.subr.bf16.mxu0 0
    %4021 = vmatpush1.bf16.xpose.msra.mxu0 0
    %4022 = vmatprep.subr.bf16.mxu0 0
    %4023 = vmatpush1.bf16.xpose.msra.mxu0 0
    %4024 = vmatprep.subr.bf16.mxu0 0
    %4025 = vmatpush1.bf16.xpose.msra.mxu0 0
    %4026 = vmatprep.subr.bf16.mxu0 0
    %4027 = vmatpush1.bf16.xpose.msra.mxu0 0
    %4028 = vmatprep.subr.bf16.mxu0 0
    %4029 = vmatpush1.bf16.xpose.msra.mxu0 0
    %4030 = vmatprep.subr.bf16.mxu0 0
    %4031 = vmatpush1.bf16.xpose.msra.mxu0 0
    %4032 = vmatprep.subr.bf16.mxu0 0
    %4033 = vmatpush1.bf16.xpose.msra.mxu0 0
    %4034 = vmatprep.subr.bf16.mxu0 0
    %4035 = vmatpush1.bf16.xpose.msra.mxu0 0
    %4036 = vmatprep.subr.bf16.mxu0 0
    %4037 = vmatpush1.bf16.xpose.msra.mxu0 0
    %4038 = vmatprep.subr.bf16.mxu0 0
    %4039 = vmatpush1.bf16.xpose.msra.mxu0 0
    %4040 = vmatprep.mubr.bf16.mxu0 0
    %4041 = vmatmul.mubr.bf16.gmra.mrb[0].mxu0 %v4003
    %v4042 = vpop.f32.mrb[0].mxu0
    %v4043 = vadd.f32 0.0, %v4042
    %v4044 = vpop.f32.mrb[0].mxu0
    %v4045 = vpop.f32.mrb[0].mxu0
    %v4046 = vpop.f32.mrb[0].mxu0
    %4047 = vdwg.mxu0
    %v4048 = vsel %vm129, %v4043, -inf
    %4049 = vmax.xlane.f32.xlu0 %v4048
    %v4050 = vpop.xlane.xlu0 %4049
    %v4051 = vsub.f32 %v4043, %v4050
    %v4052 = vmul.f32 %v4051, 1.442695
    %v4053 = vpow.pop %v4052
    %v4054 = vsel %vm129, %v4053, 0.0
    %4055 = vadd.xlane.f32.xlu0 %v4054
    %v4056 = vpop.xlane.xlu0 %4055
    %v4057 = vrcp.pop %v4056
    %v4058 = vmul.f32 %v4053, %v4057
    %v4059 = vpack.c.bf16 %v4058, %v4058
    %4060 = vrot.lane.b32.xlu0 %v3771, 48
    %v4061 = vpop.permute.xlu0 %4060
    %v4063 = vsel %vm129, %v4059, 0
    %v4066 = vsel %vm193, %v4061, 0
    %4068 = vmatprep.subr.bf16.mxu0 0
    %4069 = vmatpush1.bf16.msra.mxu0 %v4066
    %4070 = vmatprep.subr.bf16.mxu0 0
    %4071 = vmatpush1.bf16.msra.mxu0 0
    %4072 = vmatprep.subr.bf16.mxu0 0
    %4073 = vmatpush1.bf16.msra.mxu0 0
    %4074 = vmatprep.subr.bf16.mxu0 0
    %4075 = vmatpush1.bf16.msra.mxu0 0
    %4076 = vmatprep.subr.bf16.mxu0 0
    %4077 = vmatpush1.bf16.msra.mxu0 0
    %4078 = vmatprep.subr.bf16.mxu0 0
    %4079 = vmatpush1.bf16.msra.mxu0 0
    %4080 = vmatprep.subr.bf16.mxu0 0
    %4081 = vmatpush1.bf16.msra.mxu0 0
    %4082 = vmatprep.subr.bf16.mxu0 0
    %4083 = vmatpush1.bf16.msra.mxu0 0
    %4084 = vmatprep.subr.bf16.mxu0 0
    %4085 = vmatpush1.bf16.msra.mxu0 0
    %4086 = vmatprep.subr.bf16.mxu0 0
    %4087 = vmatpush1.bf16.msra.mxu0 0
    %4088 = vmatprep.subr.bf16.mxu0 0
    %4089 = vmatpush1.bf16.msra.mxu0 0
    %4090 = vmatprep.subr.bf16.mxu0 0
    %4091 = vmatpush1.bf16.msra.mxu0 0
    %4092 = vmatprep.subr.bf16.mxu0 0
    %4093 = vmatpush1.bf16.msra.mxu0 0
    %4094 = vmatprep.subr.bf16.mxu0 0
    %4095 = vmatpush1.bf16.msra.mxu0 0
    %4096 = vmatprep.subr.bf16.mxu0 0
    %4097 = vmatpush1.bf16.msra.mxu0 0
    %4098 = vmatprep.subr.bf16.mxu0 0
    %4099 = vmatpush1.bf16.msra.mxu0 0
    %4100 = vmatprep.mubr.bf16.mxu0 0
    %4101 = vmatmul.mubr.bf16.gmra.mrb[0].mxu0 %v4063
    %v4102 = vpop.f32.mrb[0].mxu0
    %v4103 = vadd.f32 0.0, %v4102
    %v4104 = vpop.f32.mrb[0].mxu0
    %v4105 = vpop.f32.mrb[0].mxu0
    %v4106 = vpop.f32.mrb[0].mxu0
    %4107 = vdwg.mxu0
    %4109 = vrot.lane.b32.xlu0 %v4103, 16
    %v4110 = vpop.permute.xlu0 %4109
    %4112 = vst.msk [vmem:[#allocation2 + $0x8] sm:$0xff] %vm469, %v4110
    %4113 = vrot.lane.b32.xlu0 %v3770, 104
    %v4114 = vpop.permute.xlu0 %4113
    %4115 = vrot.lane.b32.xlu0 %v3771, 72
    %v4116 = vpop.permute.xlu0 %4115
    %v4118 = vsel %vm129, %v4114, 0
    %v4121 = vsel %vm129, %v4116, 0
    %4123 = vmatprep.subr.bf16.mxu0 0
    %4124 = vmatpush1.bf16.xpose.msra.mxu0 %v4121
    %4125 = vmatprep.subr.bf16.mxu0 0
    %4126 = vmatpush1.bf16.xpose.msra.mxu0 0
    %4127 = vmatprep.subr.bf16.mxu0 0
    %4128 = vmatpush1.bf16.xpose.msra.mxu0 0
    %4129 = vmatprep.subr.bf16.mxu0 0
    %4130 = vmatpush1.bf16.xpose.msra.mxu0 0
    %4131 = vmatprep.subr.bf16.mxu0 0
    %4132 = vmatpush1.bf16.xpose.msra.mxu0 0
    %4133 = vmatprep.subr.bf16.mxu0 0
    %4134 = vmatpush1.bf16.xpose.msra.mxu0 0
    %4135 = vmatprep.subr.bf16.mxu0 0
    %4136 = vmatpush1.bf16.xpose.msra.mxu0 0
    %4137 = vmatprep.subr.bf16.mxu0 0
    %4138 = vmatpush1.bf16.xpose.msra.mxu0 0
    %4139 = vmatprep.subr.bf16.mxu0 0
    %4140 = vmatpush1.bf16.xpose.msra.mxu0 0
    %4141 = vmatprep.subr.bf16.mxu0 0
    %4142 = vmatpush1.bf16.xpose.msra.mxu0 0
    %4143 = vmatprep.subr.bf16.mxu0 0
    %4144 = vmatpush1.bf16.xpose.msra.mxu0 0
    %4145 = vmatprep.subr.bf16.mxu0 0
    %4146 = vmatpush1.bf16.xpose.msra.mxu0 0
    %4147 = vmatprep.subr.bf16.mxu0 0
    %4148 = vmatpush1.bf16.xpose.msra.mxu0 0
    %4149 = vmatprep.subr.bf16.mxu0 0
    %4150 = vmatpush1.bf16.xpose.msra.mxu0 0
    %4151 = vmatprep.subr.bf16.mxu0 0
    %4152 = vmatpush1.bf16.xpose.msra.mxu0 0
    %4153 = vmatprep.subr.bf16.mxu0 0
    %4154 = vmatpush1.bf16.xpose.msra.mxu0 0
    %4155 = vmatprep.mubr.bf16.mxu0 0
    %4156 = vmatmul.mubr.bf16.gmra.mrb[0].mxu0 %v4118
    %v4157 = vpop.f32.mrb[0].mxu0
    %v4158 = vadd.f32 0.0, %v4157
    %v4159 = vpop.f32.mrb[0].mxu0
    %v4160 = vpop.f32.mrb[0].mxu0
    %v4161 = vpop.f32.mrb[0].mxu0
    %4162 = vdwg.mxu0
    %v4163 = vsel %vm129, %v4158, -inf
    %4164 = vmax.xlane.f32.xlu0 %v4163
    %v4165 = vpop.xlane.xlu0 %4164
    %v4166 = vsub.f32 %v4158, %v4165
    %v4167 = vmul.f32 %v4166, 1.442695
    %v4168 = vpow.pop %v4167
    %v4169 = vsel %vm129, %v4168, 0.0
    %4170 = vadd.xlane.f32.xlu0 %v4169
    %v4171 = vpop.xlane.xlu0 %4170
    %v4172 = vrcp.pop %v4171
    %v4173 = vmul.f32 %v4168, %v4172
    %v4174 = vpack.c.bf16 %v4173, %v4173
    %4175 = vrot.lane.b32.xlu0 %v3771, 40
    %v4176 = vpop.permute.xlu0 %4175
    %v4178 = vsel %vm129, %v4174, 0
    %v4181 = vsel %vm193, %v4176, 0
    %4183 = vmatprep.subr.bf16.mxu0 0
    %4184 = vmatpush1.bf16.msra.mxu0 %v4181
    %4185 = vmatprep.subr.bf16.mxu0 0
    %4186 = vmatpush1.bf16.msra.mxu0 0
    %4187 = vmatprep.subr.bf16.mxu0 0
    %4188 = vmatpush1.bf16.msra.mxu0 0
    %4189 = vmatprep.subr.bf16.mxu0 0
    %4190 = vmatpush1.bf16.msra.mxu0 0
    %4191 = vmatprep.subr.bf16.mxu0 0
    %4192 = vmatpush1.bf16.msra.mxu0 0
    %4193 = vmatprep.subr.bf16.mxu0 0
    %4194 = vmatpush1.bf16.msra.mxu0 0
    %4195 = vmatprep.subr.bf16.mxu0 0
    %4196 = vmatpush1.bf16.msra.mxu0 0
    %4197 = vmatprep.subr.bf16.mxu0 0
    %4198 = vmatpush1.bf16.msra.mxu0 0
    %4199 = vmatprep.subr.bf16.mxu0 0
    %4200 = vmatpush1.bf16.msra.mxu0 0
    %4201 = vmatprep.subr.bf16.mxu0 0
    %4202 = vmatpush1.bf16.msra.mxu0 0
    %4203 = vmatprep.subr.bf16.mxu0 0
    %4204 = vmatpush1.bf16.msra.mxu0 0
    %4205 = vmatprep.subr.bf16.mxu0 0
    %4206 = vmatpush1.bf16.msra.mxu0 0
    %4207 = vmatprep.subr.bf16.mxu0 0
    %4208 = vmatpush1.bf16.msra.mxu0 0
    %4209 = vmatprep.subr.bf16.mxu0 0
    %4210 = vmatpush1.bf16.msra.mxu0 0
    %4211 = vmatprep.subr.bf16.mxu0 0
    %4212 = vmatpush1.bf16.msra.mxu0 0
    %4213 = vmatprep.subr.bf16.mxu0 0
    %4214 = vmatpush1.bf16.msra.mxu0 0
    %4215 = vmatprep.mubr.bf16.mxu0 0
    %4216 = vmatmul.mubr.bf16.gmra.mrb[0].mxu0 %v4178
    %v4217 = vpop.f32.mrb[0].mxu0
    %v4218 = vadd.f32 0.0, %v4217
    %v4219 = vpop.f32.mrb[0].mxu0
    %v4220 = vpop.f32.mrb[0].mxu0
    %v4221 = vpop.f32.mrb[0].mxu0
    %4222 = vdwg.mxu0
    %4224 = vrot.lane.b32.xlu0 %v4218, 24
    %v4225 = vpop.permute.xlu0 %4224
    %4227 = vst.msk [vmem:[#allocation2 + $0x8] sm:$0xff] %vm585, %v4225
    %v4228 = vld [vmem:[#allocation2] sm:$0xff]
    %v4229 = vld [vmem:[#allocation2 + $0x8] sm:$0xff]
    %v4230 = vpack.c.bf16 %v4229, %v4228
    %s4231 = scalar_lea.vmem %s3, 16
    %v4232 = vld [vmem:[%s4231] sm:$0xf]
    %v4233 = vld [vmem:[%s4231 + $0x4] sm:$0xf]
    %v4234 = vld [vmem:[%s4231 + $0x8] sm:$0xf]
    %v4235 = vld [vmem:[%s4231 + $0xc] sm:$0xf]
    %s4236 = scalar_lea.vmem %s4, 1
    %v4237 = vld [vmem:[%s4236] sm:$0x1]
    %v4239 = vlaneseq
    %v4240 = vshrl.u32 %v4239, 7
    %v4241 = vsub.s32 0, %v4240
    %v4242 = vrot.slane %v4237, %v4241
    %v4248 = vunpack.c.l.b16 %v4232
    %v4249 = vunpack.c.l.b16 %v4233
    %v4250 = vunpack.c.l.b16 %v4234
    %v4251 = vunpack.c.l.b16 %v4235
    %v4252 = vpack.c.b16 %v4249, %v4248
    %v4253 = vpack.c.b16 %v4251, %v4250
    %v4257 = vsel %vm78, %v4230, 0
    %4259 = vmatprep.subr.bf16.mxu0 0
    %4260 = vmatpush1.bf16.msra.mxu0 %v4252
    %4261 = vmatprep.subr.bf16.mxu0 0
    %4262 = vmatpush1.bf16.msra.mxu0 %v4253
    %4263 = vmatprep.subr.bf16.mxu0 0
    %4264 = vmatpush1.bf16.msra.mxu0 0
    %4265 = vmatprep.subr.bf16.mxu0 0
    %4266 = vmatpush1.bf16.msra.mxu0 0
    %4267 = vmatprep.subr.bf16.mxu0 0
    %4268 = vmatpush1.bf16.msra.mxu0 0
    %4269 = vmatprep.subr.bf16.mxu0 0
    %4270 = vmatpush1.bf16.msra.mxu0 0
    %4271 = vmatprep.subr.bf16.mxu0 0
    %4272 = vmatpush1.bf16.msra.mxu0 0
    %4273 = vmatprep.subr.bf16.mxu0 0
    %4274 = vmatpush1.bf16.msra.mxu0 0
    %4275 = vmatprep.subr.bf16.mxu0 0
    %4276 = vmatpush1.bf16.msra.mxu0 0
    %4277 = vmatprep.subr.bf16.mxu0 0
    %4278 = vmatpush1.bf16.msra.mxu0 0
    %4279 = vmatprep.subr.bf16.mxu0 0
    %4280 = vmatpush1.bf16.msra.mxu0 0
    %4281 = vmatprep.subr.bf16.mxu0 0
    %4282 = vmatpush1.bf16.msra.mxu0 0
    %4283 = vmatprep.subr.bf16.mxu0 0
    %4284 = vmatpush1.bf16.msra.mxu0 0
    %4285 = vmatprep.subr.bf16.mxu0 0
    %4286 = vmatpush1.bf16.msra.mxu0 0
    %4287 = vmatprep.subr.bf16.mxu0 0
    %4288 = vmatpush1.bf16.msra.mxu0 0
    %4289 = vmatprep.subr.bf16.mxu0 0
    %4290 = vmatpush1.bf16.msra.mxu0 0
    %4291 = vmatprep.mubr.bf16.mxu0 0
    %4292 = vmatmul.mubr.bf16.gmra.mrb[0].mxu0 %v4257
    %v4293 = vpop.f32.mrb[0].mxu0
    %v4294 = vadd.f32 %v4242, %v4293
    %v4295 = vpop.f32.mrb[0].mxu0
    %v4296 = vpop.f32.mrb[0].mxu0
    %v4297 = vadd.f32 %v4242, %v4296
    %v4298 = vpop.f32.mrb[0].mxu0
    %4299 = vdwg.mxu0
    %v4300 = vadd.f32 %v4294, %v3238
    %v4301 = vadd.f32 %v4297, %v3239
    %s4302 = scalar_lea.vmem %s5, 1
    %v4303 = vld [vmem:[%s4302] sm:$0x1]
    %s4304 = scalar_lea.vmem %s6, 1
    %v4305 = vld [vmem:[%s4304] sm:$0x1]
    %v4306 = vsel %vm78, %v4300, 0.0
    %4307 = vadd.xlane.f32.xlu0 %v4306
    %v4308 = vpop.xlane.xlu0 %4307
    %v4309 = vsel %vm78, %v4301, 0.0
    %4310 = vadd.xlane.f32.xlu0 %v4309
    %v4311 = vpop.xlane.xlu0 %4310
    %v4312 = vmul.f32 %v4308, %v1126
    %v4313 = vmul.f32 %v4311, %v1126
    %v4314 = vsub.f32 %v4300, %v4312
    %v4315 = vsub.f32 %v4301, %v4313
    %v4316 = vmul.f32 %v4314, %v4314
    %v4317 = vmul.f32 %v4315, %v4315
    %v4318 = vsel %vm78, %v4316, 0.0
    %4319 = vadd.xlane.f32.xlu0 %v4318
    %v4320 = vpop.xlane.xlu0 %4319
    %v4321 = vsel %vm78, %v4317, 0.0
    %4322 = vadd.xlane.f32.xlu0 %v4321
    %v4323 = vpop.xlane.xlu0 %4322
    %v4324 = vmul.f32 %v4320, %v1126
    %v4325 = vmul.f32 %v4323, %v1126
    %v4326 = vadd.f32 %v4324, 1e-05
    %v4327 = vadd.f32 %v4325, 1e-05
    %v4328 = vrsqrt.pop %v4326
    %v4329 = vrsqrt.pop %v4327
    %v4330 = vmul.f32 %v4314, %v4328
    %v4331 = vmul.f32 %v4315, %v4329
    %v4333 = vlaneseq
    %v4334 = vshrl.u32 %v4333, 7
    %v4335 = vsub.s32 0, %v4334
    %v4336 = vrot.slane %v4303, %v4335
    %v4338 = vmul.f32 %v4330, %v4336
    %v4339 = vmul.f32 %v4331, %v4336
    %v4341 = vlaneseq
    %v4342 = vshrl.u32 %v4341, 7
    %v4343 = vsub.s32 0, %v4342
    %v4344 = vrot.slane %v4305, %v4343
    %v4346 = vadd.f32 %v4338, %v4344
    %v4347 = vadd.f32 %v4339, %v4344
    %v4348 = vpack.c.bf16 %v4347, %v4346
    %s4349 = scalar_lea.vmem %s7, 256
    %v4350 = vld [vmem:[%s4349] sm:$0xff]
    %v4351 = vld [vmem:[%s4349 + $0x8] sm:$0xff]
    %v4352 = vld [vmem:[%s4349 + $0x10] sm:$0xff]
    %v4353 = vld [vmem:[%s4349 + $0x18] sm:$0xff]
    %v4354 = vld [vmem:[%s4349 + $0x20] sm:$0xff]
    %v4355 = vld [vmem:[%s4349 + $0x28] sm:$0xff]
    %v4356 = vld [vmem:[%s4349 + $0x30] sm:$0xff]
    %v4357 = vld [vmem:[%s4349 + $0x38] sm:$0xff]
    %v4358 = vld [vmem:[%s4349 + $0x40] sm:$0xff]
    %v4359 = vld [vmem:[%s4349 + $0x48] sm:$0xff]
    %v4360 = vld [vmem:[%s4349 + $0x50] sm:$0xff]
    %v4361 = vld [vmem:[%s4349 + $0x58] sm:$0xff]
    %v4362 = vld [vmem:[%s4349 + $0x60] sm:$0xff]
    %v4363 = vld [vmem:[%s4349 + $0x68] sm:$0xff]
    %v4364 = vld [vmem:[%s4349 + $0x70] sm:$0xff]
    %v4365 = vld [vmem:[%s4349 + $0x78] sm:$0xff]
    %v4366 = vld [vmem:[%s4349 + $0x80] sm:$0xff]
    %v4367 = vld [vmem:[%s4349 + $0x88] sm:$0xff]
    %v4368 = vld [vmem:[%s4349 + $0x90] sm:$0xff]
    %v4369 = vld [vmem:[%s4349 + $0x98] sm:$0xff]
    %v4370 = vld [vmem:[%s4349 + $0xa0] sm:$0xff]
    %v4371 = vld [vmem:[%s4349 + $0xa8] sm:$0xff]
    %v4372 = vld [vmem:[%s4349 + $0xb0] sm:$0xff]
    %v4373 = vld [vmem:[%s4349 + $0xb8] sm:$0xff]
    %v4374 = vld [vmem:[%s4349 + $0xc0] sm:$0xff]
    %v4375 = vld [vmem:[%s4349 + $0xc8] sm:$0xff]
    %v4376 = vld [vmem:[%s4349 + $0xd0] sm:$0xff]
    %v4377 = vld [vmem:[%s4349 + $0xd8] sm:$0xff]
    %v4378 = vld [vmem:[%s4349 + $0xe0] sm:$0xff]
    %v4379 = vld [vmem:[%s4349 + $0xe8] sm:$0xff]
    %v4380 = vld [vmem:[%s4349 + $0xf0] sm:$0xff]
    %v4381 = vld [vmem:[%s4349 + $0xf8] sm:$0xff]
    %s4382 = scalar_lea.vmem %s8, 16
    %v4383 = vld [vmem:[%s4382] sm:$0xff]
    %v4384 = vld [vmem:[%s4382 + $0x8] sm:$0xff]
    %v4387 = vlaneseq
    %v4388 = vshrl.u32 %v4387, 7
    %v4389 = vsub.s32 0, %v4388
    %v4390 = vrot.slane %v4383, %v4389
    %v4391 = vlaneseq
    %v4392 = vshrl.u32 %v4391, 7
    %v4393 = vsub.s32 1, %v4392
    %v4394 = vrot.slane %v4383, %v4393
    %v4395 = vlaneseq
    %v4396 = vshrl.u32 %v4395, 7
    %v4397 = vsub.s32 2, %v4396
    %v4398 = vrot.slane %v4383, %v4397
    %v4399 = vlaneseq
    %v4400 = vshrl.u32 %v4399, 7
    %v4401 = vsub.s32 3, %v4400
    %v4402 = vrot.slane %v4383, %v4401
    %v4403 = vlaneseq
    %v4404 = vshrl.u32 %v4403, 7
    %v4405 = vsub.s32 4, %v4404
    %v4406 = vrot.slane %v4383, %v4405
    %v4407 = vlaneseq
    %v4408 = vshrl.u32 %v4407, 7
    %v4409 = vsub.s32 5, %v4408
    %v4410 = vrot.slane %v4383, %v4409
    %v4411 = vlaneseq
    %v4412 = vshrl.u32 %v4411, 7
    %v4413 = vsub.s32 6, %v4412
    %v4414 = vrot.slane %v4383, %v4413
    %v4415 = vlaneseq
    %v4416 = vshrl.u32 %v4415, 7
    %v4417 = vsub.s32 7, %v4416
    %v4418 = vrot.slane %v4383, %v4417
    %v4419 = vlaneseq
    %v4420 = vshrl.u32 %v4419, 7
    %v4421 = vsub.s32 0, %v4420
    %v4422 = vrot.slane %v4384, %v4421
    %v4423 = vlaneseq
    %v4424 = vshrl.u32 %v4423, 7
    %v4425 = vsub.s32 1, %v4424
    %v4426 = vrot.slane %v4384, %v4425
    %v4427 = vlaneseq
    %v4428 = vshrl.u32 %v4427, 7
    %v4429 = vsub.s32 2, %v4428
    %v4430 = vrot.slane %v4384, %v4429
    %v4431 = vlaneseq
    %v4432 = vshrl.u32 %v4431, 7
    %v4433 = vsub.s32 3, %v4432
    %v4434 = vrot.slane %v4384, %v4433
    %v4435 = vlaneseq
    %v4436 = vshrl.u32 %v4435, 7
    %v4437 = vsub.s32 4, %v4436
    %v4438 = vrot.slane %v4384, %v4437
    %v4439 = vlaneseq
    %v4440 = vshrl.u32 %v4439, 7
    %v4441 = vsub.s32 5, %v4440
    %v4442 = vrot.slane %v4384, %v4441
    %v4443 = vlaneseq
    %v4444 = vshrl.u32 %v4443, 7
    %v4445 = vsub.s32 6, %v4444
    %v4446 = vrot.slane %v4384, %v4445
    %v4447 = vlaneseq
    %v4448 = vshrl.u32 %v4447, 7
    %v4449 = vsub.s32 7, %v4448
    %v4450 = vrot.slane %v4384, %v4449
    %v4499 = vunpack.c.l.b16 %v4350
    %v4500 = vunpack.c.h.b16 %v4350
    %v4501 = vunpack.c.l.b16 %v4351
    %v4502 = vunpack.c.h.b16 %v4351
    %v4503 = vunpack.c.l.b16 %v4352
    %v4504 = vunpack.c.h.b16 %v4352
    %v4505 = vunpack.c.l.b16 %v4353
    %v4506 = vunpack.c.h.b16 %v4353
    %v4507 = vunpack.c.l.b16 %v4354
    %v4508 = vunpack.c.h.b16 %v4354
    %v4509 = vunpack.c.l.b16 %v4355
    %v4510 = vunpack.c.h.b16 %v4355
    %v4511 = vunpack.c.l.b16 %v4356
    %v4512 = vunpack.c.h.b16 %v4356
    %v4513 = vunpack.c.l.b16 %v4357
    %v4514 = vunpack.c.h.b16 %v4357
    %v4515 = vunpack.c.l.b16 %v4358
    %v4516 = vunpack.c.h.b16 %v4358
    %v4517 = vunpack.c.l.b16 %v4359
    %v4518 = vunpack.c.h.b16 %v4359
    %v4519 = vunpack.c.l.b16 %v4360
    %v4520 = vunpack.c.h.b16 %v4360
    %v4521 = vunpack.c.l.b16 %v4361
    %v4522 = vunpack.c.h.b16 %v4361
    %v4523 = vunpack.c.l.b16 %v4362
    %v4524 = vunpack.c.h.b16 %v4362
    %v4525 = vunpack.c.l.b16 %v4363
    %v4526 = vunpack.c.h.b16 %v4363
    %v4527 = vunpack.c.l.b16 %v4364
    %v4528 = vunpack.c.h.b16 %v4364
    %v4529 = vunpack.c.l.b16 %v4365
    %v4530 = vunpack.c.h.b16 %v4365
    %v4531 = vunpack.c.l.b16 %v4366
    %v4532 = vunpack.c.h.b16 %v4366
    %v4533 = vunpack.c.l.b16 %v4367
    %v4534 = vunpack.c.h.b16 %v4367
    %v4535 = vunpack.c.l.b16 %v4368
    %v4536 = vunpack.c.h.b16 %v4368
    %v4537 = vunpack.c.l.b16 %v4369
    %v4538 = vunpack.c.h.b16 %v4369
    %v4539 = vunpack.c.l.b16 %v4370
    %v4540 = vunpack.c.h.b16 %v4370
    %v4541 = vunpack.c.l.b16 %v4371
    %v4542 = vunpack.c.h.b16 %v4371
    %v4543 = vunpack.c.l.b16 %v4372
    %v4544 = vunpack.c.h.b16 %v4372
    %v4545 = vunpack.c.l.b16 %v4373
    %v4546 = vunpack.c.h.b16 %v4373
    %v4547 = vunpack.c.l.b16 %v4374
    %v4548 = vunpack.c.h.b16 %v4374
    %v4549 = vunpack.c.l.b16 %v4375
    %v4550 = vunpack.c.h.b16 %v4375
    %v4551 = vunpack.c.l.b16 %v4376
    %v4552 = vunpack.c.h.b16 %v4376
    %v4553 = vunpack.c.l.b16 %v4377
    %v4554 = vunpack.c.h.b16 %v4377
    %v4555 = vunpack.c.l.b16 %v4378
    %v4556 = vunpack.c.h.b16 %v4378
    %v4557 = vunpack.c.l.b16 %v4379
    %v4558 = vunpack.c.h.b16 %v4379
    %v4559 = vunpack.c.l.b16 %v4380
    %v4560 = vunpack.c.h.b16 %v4380
    %v4561 = vunpack.c.l.b16 %v4381
    %v4562 = vunpack.c.h.b16 %v4381
    %v4563 = vpack.c.b16 %v4515, %v4499
    %v4564 = vpack.c.b16 %v4516, %v4500
    %v4565 = vpack.c.b16 %v4517, %v4501
    %v4566 = vpack.c.b16 %v4518, %v4502
    %v4567 = vpack.c.b16 %v4519, %v4503
    %v4568 = vpack.c.b16 %v4520, %v4504
    %v4569 = vpack.c.b16 %v4521, %v4505
    %v4570 = vpack.c.b16 %v4522, %v4506
    %v4571 = vpack.c.b16 %v4523, %v4507
    %v4572 = vpack.c.b16 %v4524, %v4508
    %v4573 = vpack.c.b16 %v4525, %v4509
    %v4574 = vpack.c.b16 %v4526, %v4510
    %v4575 = vpack.c.b16 %v4527, %v4511
    %v4576 = vpack.c.b16 %v4528, %v4512
    %v4577 = vpack.c.b16 %v4529, %v4513
    %v4578 = vpack.c.b16 %v4530, %v4514
    %v4579 = vpack.c.b16 %v4547, %v4531
    %v4580 = vpack.c.b16 %v4548, %v4532
    %v4581 = vpack.c.b16 %v4549, %v4533
    %v4582 = vpack.c.b16 %v4550, %v4534
    %v4583 = vpack.c.b16 %v4551, %v4535
    %v4584 = vpack.c.b16 %v4552, %v4536
    %v4585 = vpack.c.b16 %v4553, %v4537
    %v4586 = vpack.c.b16 %v4554, %v4538
    %v4587 = vpack.c.b16 %v4555, %v4539
    %v4588 = vpack.c.b16 %v4556, %v4540
    %v4589 = vpack.c.b16 %v4557, %v4541
    %v4590 = vpack.c.b16 %v4558, %v4542
    %v4591 = vpack.c.b16 %v4559, %v4543
    %v4592 = vpack.c.b16 %v4560, %v4544
    %v4593 = vpack.c.b16 %v4561, %v4545
    %v4594 = vpack.c.b16 %v4562, %v4546
    %v4628 = vsel %vm78, %v4348, 0
    %4630 = vmatprep.subr.bf16.mxu0 %v4564
    %4631 = vmatpush1.bf16.msra.mxu0 %v4563
    %4632 = vmatprep.subr.bf16.mxu0 %v4580
    %4633 = vmatpush1.bf16.msra.mxu0 %v4579
    %4634 = vmatprep.subr.bf16.mxu0 0
    %4635 = vmatpush1.bf16.msra.mxu0 0
    %4636 = vmatprep.subr.bf16.mxu0 0
    %4637 = vmatpush1.bf16.msra.mxu0 0
    %4638 = vmatprep.subr.bf16.mxu0 0
    %4639 = vmatpush1.bf16.msra.mxu0 0
    %4640 = vmatprep.subr.bf16.mxu0 0
    %4641 = vmatpush1.bf16.msra.mxu0 0
    %4642 = vmatprep.subr.bf16.mxu0 0
    %4643 = vmatpush1.bf16.msra.mxu0 0
    %4644 = vmatprep.subr.bf16.mxu0 0
    %4645 = vmatpush1.bf16.msra.mxu0 0
    %4646 = vmatprep.subr.bf16.mxu0 0
    %4647 = vmatpush1.bf16.msra.mxu0 0
    %4648 = vmatprep.subr.bf16.mxu0 0
    %4649 = vmatpush1.bf16.msra.mxu0 0
    %4650 = vmatprep.subr.bf16.mxu0 0
    %4651 = vmatpush1.bf16.msra.mxu0 0
    %4652 = vmatprep.subr.bf16.mxu0 0
    %4653 = vmatpush1.bf16.msra.mxu0 0
    %4654 = vmatprep.subr.bf16.mxu0 0
    %4655 = vmatpush1.bf16.msra.mxu0 0
    %4656 = vmatprep.subr.bf16.mxu0 0
    %4657 = vmatpush1.bf16.msra.mxu0 0
    %4658 = vmatprep.subr.bf16.mxu0 0
    %4659 = vmatpush1.bf16.msra.mxu0 0
    %4660 = vmatprep.subr.bf16.mxu0 0
    %4661 = vmatpush1.bf16.msra.mxu0 0
    %4662 = vmatprep.mubr.bf16.mxu0 0
    %4663 = vmatmul.mubr.bf16.gmra.mrb[0].mxu0 %v4628
    %v4664 = vpop.f32.mrb[0].mxu0
    %v4665 = vadd.f32 %v4390, %v4664
    %v4666 = vpop.f32.mrb[0].mxu0
    %v4667 = vadd.f32 %v4394, %v4666
    %v4668 = vpop.f32.mrb[0].mxu0
    %v4669 = vadd.f32 %v4390, %v4668
    %v4670 = vpop.f32.mrb[0].mxu0
    %v4671 = vadd.f32 %v4394, %v4670
    %4672 = vdwg.mxu0
    %4673 = vmatprep.subr.bf16.mxu0 %v4566
    %4674 = vmatpush1.bf16.msra.mxu0 %v4565
    %4675 = vmatprep.subr.bf16.mxu0 %v4582
    %4676 = vmatpush1.bf16.msra.mxu0 %v4581
    %4677 = vmatprep.subr.bf16.mxu0 0
    %4678 = vmatpush1.bf16.msra.mxu0 0
    %4679 = vmatprep.subr.bf16.mxu0 0
    %4680 = vmatpush1.bf16.msra.mxu0 0
    %4681 = vmatprep.subr.bf16.mxu0 0
    %4682 = vmatpush1.bf16.msra.mxu0 0
    %4683 = vmatprep.subr.bf16.mxu0 0
    %4684 = vmatpush1.bf16.msra.mxu0 0
    %4685 = vmatprep.subr.bf16.mxu0 0
    %4686 = vmatpush1.bf16.msra.mxu0 0
    %4687 = vmatprep.subr.bf16.mxu0 0
    %4688 = vmatpush1.bf16.msra.mxu0 0
    %4689 = vmatprep.subr.bf16.mxu0 0
    %4690 = vmatpush1.bf16.msra.mxu0 0
    %4691 = vmatprep.subr.bf16.mxu0 0
    %4692 = vmatpush1.bf16.msra.mxu0 0
    %4693 = vmatprep.subr.bf16.mxu0 0
    %4694 = vmatpush1.bf16.msra.mxu0 0
    %4695 = vmatprep.subr.bf16.mxu0 0
    %4696 = vmatpush1.bf16.msra.mxu0 0
    %4697 = vmatprep.subr.bf16.mxu0 0
    %4698 = vmatpush1.bf16.msra.mxu0 0
    %4699 = vmatprep.subr.bf16.mxu0 0
    %4700 = vmatpush1.bf16.msra.mxu0 0
    %4701 = vmatprep.subr.bf16.mxu0 0
    %4702 = vmatpush1.bf16.msra.mxu0 0
    %4703 = vmatprep.subr.bf16.mxu0 0
    %4704 = vmatpush1.bf16.msra.mxu0 0
    %4705 = vmatprep.mubr.bf16.mxu0 0
    %4706 = vmatmul.mubr.bf16.gmra.mrb[0].mxu0 %v4628
    %v4707 = vpop.f32.mrb[0].mxu0
    %v4708 = vadd.f32 %v4398, %v4707
    %v4709 = vpop.f32.mrb[0].mxu0
    %v4710 = vadd.f32 %v4402, %v4709
    %v4711 = vpop.f32.mrb[0].mxu0
    %v4712 = vadd.f32 %v4398, %v4711
    %v4713 = vpop.f32.mrb[0].mxu0
    %v4714 = vadd.f32 %v4402, %v4713
    %4715 = vdwg.mxu0
    %4716 = vmatprep.subr.bf16.mxu0 %v4568
    %4717 = vmatpush1.bf16.msra.mxu0 %v4567
    %4718 = vmatprep.subr.bf16.mxu0 %v4584
    %4719 = vmatpush1.bf16.msra.mxu0 %v4583
    %4720 = vmatprep.subr.bf16.mxu0 0
    %4721 = vmatpush1.bf16.msra.mxu0 0
    %4722 = vmatprep.subr.bf16.mxu0 0
    %4723 = vmatpush1.bf16.msra.mxu0 0
    %4724 = vmatprep.subr.bf16.mxu0 0
    %4725 = vmatpush1.bf16.msra.mxu0 0
    %4726 = vmatprep.subr.bf16.mxu0 0
    %4727 = vmatpush1.bf16.msra.mxu0 0
    %4728 = vmatprep.subr.bf16.mxu0 0
    %4729 = vmatpush1.bf16.msra.mxu0 0
    %4730 = vmatprep.subr.bf16.mxu0 0
    %4731 = vmatpush1.bf16.msra.mxu0 0
    %4732 = vmatprep.subr.bf16.mxu0 0
    %4733 = vmatpush1.bf16.msra.mxu0 0
    %4734 = vmatprep.subr.bf16.mxu0 0
    %4735 = vmatpush1.bf16.msra.mxu0 0
    %4736 = vmatprep.subr.bf16.mxu0 0
    %4737 = vmatpush1.bf16.msra.mxu0 0
    %4738 = vmatprep.subr.bf16.mxu0 0
    %4739 = vmatpush1.bf16.msra.mxu0 0
    %4740 = vmatprep.subr.bf16.mxu0 0
    %4741 = vmatpush1.bf16.msra.mxu0 0
    %4742 = vmatprep.subr.bf16.mxu0 0
    %4743 = vmatpush1.bf16.msra.mxu0 0
    %4744 = vmatprep.subr.bf16.mxu0 0
    %4745 = vmatpush1.bf16.msra.mxu0 0
    %4746 = vmatprep.subr.bf16.mxu0 0
    %4747 = vmatpush1.bf16.msra.mxu0 0
    %4748 = vmatprep.mubr.bf16.mxu0 0
    %4749 = vmatmul.mubr.bf16.gmra.mrb[0].mxu0 %v4628
    %v4750 = vpop.f32.mrb[0].mxu0
    %v4751 = vadd.f32 %v4406, %v4750
    %v4752 = vpop.f32.mrb[0].mxu0
    %v4753 = vadd.f32 %v4410, %v4752
    %v4754 = vpop.f32.mrb[0].mxu0
    %v4755 = vadd.f32 %v4406, %v4754
    %v4756 = vpop.f32.mrb[0].mxu0
    %v4757 = vadd.f32 %v4410, %v4756
    %4758 = vdwg.mxu0
    %4759 = vmatprep.subr.bf16.mxu0 %v4570
    %4760 = vmatpush1.bf16.msra.mxu0 %v4569
    %4761 = vmatprep.subr.bf16.mxu0 %v4586
    %4762 = vmatpush1.bf16.msra.mxu0 %v4585
    %4763 = vmatprep.subr.bf16.mxu0 0
    %4764 = vmatpush1.bf16.msra.mxu0 0
    %4765 = vmatprep.subr.bf16.mxu0 0
    %4766 = vmatpush1.bf16.msra.mxu0 0
    %4767 = vmatprep.subr.bf16.mxu0 0
    %4768 = vmatpush1.bf16.msra.mxu0 0
    %4769 = vmatprep.subr.bf16.mxu0 0
    %4770 = vmatpush1.bf16.msra.mxu0 0
    %4771 = vmatprep.subr.bf16.mxu0 0
    %4772 = vmatpush1.bf16.msra.mxu0 0
    %4773 = vmatprep.subr.bf16.mxu0 0
    %4774 = vmatpush1.bf16.msra.mxu0 0
    %4775 = vmatprep.subr.bf16.mxu0 0
    %4776 = vmatpush1.bf16.msra.mxu0 0
    %4777 = vmatprep.subr.bf16.mxu0 0
    %4778 = vmatpush1.bf16.msra.mxu0 0
    %4779 = vmatprep.subr.bf16.mxu0 0
    %4780 = vmatpush1.bf16.msra.mxu0 0
    %4781 = vmatprep.subr.bf16.mxu0 0
    %4782 = vmatpush1.bf16.msra.mxu0 0
    %4783 = vmatprep.subr.bf16.mxu0 0
    %4784 = vmatpush1.bf16.msra.mxu0 0
    %4785 = vmatprep.subr.bf16.mxu0 0
    %4786 = vmatpush1.bf16.msra.mxu0 0
    %4787 = vmatprep.subr.bf16.mxu0 0
    %4788 = vmatpush1.bf16.msra.mxu0 0
    %4789 = vmatprep.subr.bf16.mxu0 0
    %4790 = vmatpush1.bf16.msra.mxu0 0
    %4791 = vmatprep.mubr.bf16.mxu0 0
    %4792 = vmatmul.mubr.bf16.gmra.mrb[0].mxu0 %v4628
    %v4793 = vpop.f32.mrb[0].mxu0
    %v4794 = vadd.f32 %v4414, %v4793
    %v4795 = vpop.f32.mrb[0].mxu0
    %v4796 = vadd.f32 %v4418, %v4795
    %v4797 = vpop.f32.mrb[0].mxu0
    %v4798 = vadd.f32 %v4414, %v4797
    %v4799 = vpop.f32.mrb[0].mxu0
    %v4800 = vadd.f32 %v4418, %v4799
    %4801 = vdwg.mxu0
    %4802 = vmatprep.subr.bf16.mxu0 %v4572
    %4803 = vmatpush1.bf16.msra.mxu0 %v4571
    %4804 = vmatprep.subr.bf16.mxu0 %v4588
    %4805 = vmatpush1.bf16.msra.mxu0 %v4587
    %4806 = vmatprep.subr.bf16.mxu0 0
    %4807 = vmatpush1.bf16.msra.mxu0 0
    %4808 = vmatprep.subr.bf16.mxu0 0
    %4809 = vmatpush1.bf16.msra.mxu0 0
    %4810 = vmatprep.subr.bf16.mxu0 0
    %4811 = vmatpush1.bf16.msra.mxu0 0
    %4812 = vmatprep.subr.bf16.mxu0 0
    %4813 = vmatpush1.bf16.msra.mxu0 0
    %4814 = vmatprep.subr.bf16.mxu0 0
    %4815 = vmatpush1.bf16.msra.mxu0 0
    %4816 = vmatprep.subr.bf16.mxu0 0
    %4817 = vmatpush1.bf16.msra.mxu0 0
    %4818 = vmatprep.subr.bf16.mxu0 0
    %4819 = vmatpush1.bf16.msra.mxu0 0
    %4820 = vmatprep.subr.bf16.mxu0 0
    %4821 = vmatpush1.bf16.msra.mxu0 0
    %4822 = vmatprep.subr.bf16.mxu0 0
    %4823 = vmatpush1.bf16.msra.mxu0 0
    %4824 = vmatprep.subr.bf16.mxu0 0
    %4825 = vmatpush1.bf16.msra.mxu0 0
    %4826 = vmatprep.subr.bf16.mxu0 0
    %4827 = vmatpush1.bf16.msra.mxu0 0
    %4828 = vmatprep.subr.bf16.mxu0 0
    %4829 = vmatpush1.bf16.msra.mxu0 0
    %4830 = vmatprep.subr.bf16.mxu0 0
    %4831 = vmatpush1.bf16.msra.mxu0 0
    %4832 = vmatprep.subr.bf16.mxu0 0
    %4833 = vmatpush1.bf16.msra.mxu0 0
    %4834 = vmatprep.mubr.bf16.mxu0 0
    %4835 = vmatmul.mubr.bf16.gmra.mrb[0].mxu0 %v4628
    %v4836 = vpop.f32.mrb[0].mxu0
    %v4837 = vadd.f32 %v4422, %v4836
    %v4838 = vpop.f32.mrb[0].mxu0
    %v4839 = vadd.f32 %v4426, %v4838
    %v4840 = vpop.f32.mrb[0].mxu0
    %v4841 = vadd.f32 %v4422, %v4840
    %v4842 = vpop.f32.mrb[0].mxu0
    %v4843 = vadd.f32 %v4426, %v4842
    %4844 = vdwg.mxu0
    %4845 = vmatprep.subr.bf16.mxu0 %v4574
    %4846 = vmatpush1.bf16.msra.mxu0 %v4573
    %4847 = vmatprep.subr.bf16.mxu0 %v4590
    %4848 = vmatpush1.bf16.msra.mxu0 %v4589
    %4849 = vmatprep.subr.bf16.mxu0 0
    %4850 = vmatpush1.bf16.msra.mxu0 0
    %4851 = vmatprep.subr.bf16.mxu0 0
    %4852 = vmatpush1.bf16.msra.mxu0 0
    %4853 = vmatprep.subr.bf16.mxu0 0
    %4854 = vmatpush1.bf16.msra.mxu0 0
    %4855 = vmatprep.subr.bf16.mxu0 0
    %4856 = vmatpush1.bf16.msra.mxu0 0
    %4857 = vmatprep.subr.bf16.mxu0 0
    %4858 = vmatpush1.bf16.msra.mxu0 0
    %4859 = vmatprep.subr.bf16.mxu0 0
    %4860 = vmatpush1.bf16.msra.mxu0 0
    %4861 = vmatprep.subr.bf16.mxu0 0
    %4862 = vmatpush1.bf16.msra.mxu0 0
    %4863 = vmatprep.subr.bf16.mxu0 0
    %4864 = vmatpush1.bf16.msra.mxu0 0
    %4865 = vmatprep.subr.bf16.mxu0 0
    %4866 = vmatpush1.bf16.msra.mxu0 0
    %4867 = vmatprep.subr.bf16.mxu0 0
    %4868 = vmatpush1.bf16.msra.mxu0 0
    %4869 = vmatprep.subr.bf16.mxu0 0
    %4870 = vmatpush1.bf16.msra.mxu0 0
    %4871 = vmatprep.subr.bf16.mxu0 0
    %4872 = vmatpush1.bf16.msra.mxu0 0
    %4873 = vmatprep.subr.bf16.mxu0 0
    %4874 = vmatpush1.bf16.msra.mxu0 0
    %4875 = vmatprep.subr.bf16.mxu0 0
    %4876 = vmatpush1.bf16.msra.mxu0 0
    %4877 = vmatprep.mubr.bf16.mxu0 0
    %4878 = vmatmul.mubr.bf16.gmra.mrb[0].mxu0 %v4628
    %v4879 = vpop.f32.mrb[0].mxu0
    %v4880 = vadd.f32 %v4430, %v4879
    %v4881 = vpop.f32.mrb[0].mxu0
    %v4882 = vadd.f32 %v4434, %v4881
    %v4883 = vpop.f32.mrb[0].mxu0
    %v4884 = vadd.f32 %v4430, %v4883
    %v4885 = vpop.f32.mrb[0].mxu0
    %v4886 = vadd.f32 %v4434, %v4885
    %4887 = vdwg.mxu0
    %4888 = vmatprep.subr.bf16.mxu0 %v4576
    %4889 = vmatpush1.bf16.msra.mxu0 %v4575
    %4890 = vmatprep.subr.bf16.mxu0 %v4592
    %4891 = vmatpush1.bf16.msra.mxu0 %v4591
    %4892 = vmatprep.subr.bf16.mxu0 0
    %4893 = vmatpush1.bf16.msra.mxu0 0
    %4894 = vmatprep.subr.bf16.mxu0 0
    %4895 = vmatpush1.bf16.msra.mxu0 0
    %4896 = vmatprep.subr.bf16.mxu0 0
    %4897 = vmatpush1.bf16.msra.mxu0 0
    %4898 = vmatprep.subr.bf16.mxu0 0
    %4899 = vmatpush1.bf16.msra.mxu0 0
    %4900 = vmatprep.subr.bf16.mxu0 0
    %4901 = vmatpush1.bf16.msra.mxu0 0
    %4902 = vmatprep.subr.bf16.mxu0 0
    %4903 = vmatpush1.bf16.msra.mxu0 0
    %4904 = vmatprep.subr.bf16.mxu0 0
    %4905 = vmatpush1.bf16.msra.mxu0 0
    %4906 = vmatprep.subr.bf16.mxu0 0
    %4907 = vmatpush1.bf16.msra.mxu0 0
    %4908 = vmatprep.subr.bf16.mxu0 0
    %4909 = vmatpush1.bf16.msra.mxu0 0
    %4910 = vmatprep.subr.bf16.mxu0 0
    %4911 = vmatpush1.bf16.msra.mxu0 0
    %4912 = vmatprep.subr.bf16.mxu0 0
    %4913 = vmatpush1.bf16.msra.mxu0 0
    %4914 = vmatprep.subr.bf16.mxu0 0
    %4915 = vmatpush1.bf16.msra.mxu0 0
    %4916 = vmatprep.subr.bf16.mxu0 0
    %4917 = vmatpush1.bf16.msra.mxu0 0
    %4918 = vmatprep.subr.bf16.mxu0 0
    %4919 = vmatpush1.bf16.msra.mxu0 0
    %4920 = vmatprep.mubr.bf16.mxu0 0
    %4921 = vmatmul.mubr.bf16.gmra.mrb[0].mxu0 %v4628
    %v4922 = vpop.f32.mrb[0].mxu0
    %v4923 = vadd.f32 %v4438, %v4922
    %v4924 = vpop.f32.mrb[0].mxu0
    %v4925 = vadd.f32 %v4442, %v4924
    %v4926 = vpop.f32.mrb[0].mxu0
    %v4927 = vadd.f32 %v4438, %v4926
    %v4928 = vpop.f32.mrb[0].mxu0
    %v4929 = vadd.f32 %v4442, %v4928
    %4930 = vdwg.mxu0
    %4931 = vmatprep.subr.bf16.mxu0 %v4578
    %4932 = vmatpush1.bf16.msra.mxu0 %v4577
    %4933 = vmatprep.subr.bf16.mxu0 %v4594
    %4934 = vmatpush1.bf16.msra.mxu0 %v4593
    %4935 = vmatprep.subr.bf16.mxu0 0
    %4936 = vmatpush1.bf16.msra.mxu0 0
    %4937 = vmatprep.subr.bf16.mxu0 0
    %4938 = vmatpush1.bf16.msra.mxu0 0
    %4939 = vmatprep.subr.bf16.mxu0 0
    %4940 = vmatpush1.bf16.msra.mxu0 0
    %4941 = vmatprep.subr.bf16.mxu0 0
    %4942 = vmatpush1.bf16.msra.mxu0 0
    %4943 = vmatprep.subr.bf16.mxu0 0
    %4944 = vmatpush1.bf16.msra.mxu0 0
    %4945 = vmatprep.subr.bf16.mxu0 0
    %4946 = vmatpush1.bf16.msra.mxu0 0
    %4947 = vmatprep.subr.bf16.mxu0 0
    %4948 = vmatpush1.bf16.msra.mxu0 0
    %4949 = vmatprep.subr.bf16.mxu0 0
    %4950 = vmatpush1.bf16.msra.mxu0 0
    %4951 = vmatprep.subr.bf16.mxu0 0
    %4952 = vmatpush1.bf16.msra.mxu0 0
    %4953 = vmatprep.subr.bf16.mxu0 0
    %4954 = vmatpush1.bf16.msra.mxu0 0
    %4955 = vmatprep.subr.bf16.mxu0 0
    %4956 = vmatpush1.bf16.msra.mxu0 0
    %4957 = vmatprep.subr.bf16.mxu0 0
    %4958 = vmatpush1.bf16.msra.mxu0 0
    %4959 = vmatprep.subr.bf16.mxu0 0
    %4960 = vmatpush1.bf16.msra.mxu0 0
    %4961 = vmatprep.subr.bf16.mxu0 0
    %4962 = vmatpush1.bf16.msra.mxu0 0
    %4963 = vmatprep.mubr.bf16.mxu0 0
    %4964 = vmatmul.mubr.bf16.gmra.mrb[0].mxu0 %v4628
    %v4965 = vpop.f32.mrb[0].mxu0
    %v4966 = vadd.f32 %v4446, %v4965
    %v4967 = vpop.f32.mrb[0].mxu0
    %v4968 = vadd.f32 %v4450, %v4967
    %v4969 = vpop.f32.mrb[0].mxu0
    %v4970 = vadd.f32 %v4446, %v4969
    %v4971 = vpop.f32.mrb[0].mxu0
    %v4972 = vadd.f32 %v4450, %v4971
    %4973 = vdwg.mxu0
    %v4974 = vmax.f32 %v4665, 0.0
    %v4975 = vmax.f32 %v4667, 0.0
    %v4976 = vmax.f32 %v4708, 0.0
    %v4977 = vmax.f32 %v4710, 0.0
    %v4978 = vmax.f32 %v4751, 0.0
    %v4979 = vmax.f32 %v4753, 0.0
    %v4980 = vmax.f32 %v4794, 0.0
    %v4981 = vmax.f32 %v4796, 0.0
    %v4982 = vmax.f32 %v4837, 0.0
    %v4983 = vmax.f32 %v4839, 0.0
    %v4984 = vmax.f32 %v4880, 0.0
    %v4985 = vmax.f32 %v4882, 0.0
    %v4986 = vmax.f32 %v4923, 0.0
    %v4987 = vmax.f32 %v4925, 0.0
    %v4988 = vmax.f32 %v4966, 0.0
    %v4989 = vmax.f32 %v4968, 0.0
    %v4990 = vmax.f32 %v4669, 0.0
    %v4991 = vmax.f32 %v4671, 0.0
    %v4992 = vmax.f32 %v4712, 0.0
    %v4993 = vmax.f32 %v4714, 0.0
    %v4994 = vmax.f32 %v4755, 0.0
    %v4995 = vmax.f32 %v4757, 0.0
    %v4996 = vmax.f32 %v4798, 0.0
    %v4997 = vmax.f32 %v4800, 0.0
    %v4998 = vmax.f32 %v4841, 0.0
    %v4999 = vmax.f32 %v4843, 0.0
    %v5000 = vmax.f32 %v4884, 0.0
    %v5001 = vmax.f32 %v4886, 0.0
    %v5002 = vmax.f32 %v4927, 0.0
    %v5003 = vmax.f32 %v4929, 0.0
    %v5004 = vmax.f32 %v4970, 0.0
    %v5005 = vmax.f32 %v4972, 0.0
    %v5006 = vpack.c.bf16 %v4990, %v4974
    %v5007 = vpack.c.bf16 %v4991, %v4975
    %v5008 = vpack.c.bf16 %v4992, %v4976
    %v5009 = vpack.c.bf16 %v4993, %v4977
    %v5010 = vpack.c.bf16 %v4994, %v4978
    %v5011 = vpack.c.bf16 %v4995, %v4979
    %v5012 = vpack.c.bf16 %v4996, %v4980
    %v5013 = vpack.c.bf16 %v4997, %v4981
    %v5014 = vpack.c.bf16 %v4998, %v4982
    %v5015 = vpack.c.bf16 %v4999, %v4983
    %v5016 = vpack.c.bf16 %v5000, %v4984
    %v5017 = vpack.c.bf16 %v5001, %v4985
    %v5018 = vpack.c.bf16 %v5002, %v4986
    %v5019 = vpack.c.bf16 %v5003, %v4987
    %v5020 = vpack.c.bf16 %v5004, %v4988
    %v5021 = vpack.c.bf16 %v5005, %v4989
    %s5022 = scalar_lea.vmem %s9, 1024
    %v5023 = vld [vmem:[%s5022] sm:$0xf]
    %v5024 = vld [vmem:[%s5022 + $0x4] sm:$0xf]
    %v5025 = vld [vmem:[%s5022 + $0x8] sm:$0xf]
    %v5026 = vld [vmem:[%s5022 + $0xc] sm:$0xf]
    %v5027 = vld [vmem:[%s5022 + $0x10] sm:$0xf]
    %v5028 = vld [vmem:[%s5022 + $0x14] sm:$0xf]
    %v5029 = vld [vmem:[%s5022 + $0x18] sm:$0xf]
    %v5030 = vld [vmem:[%s5022 + $0x1c] sm:$0xf]
    %v5031 = vld [vmem:[%s5022 + $0x20] sm:$0xf]
    %v5032 = vld [vmem:[%s5022 + $0x24] sm:$0xf]
    %v5033 = vld [vmem:[%s5022 + $0x28] sm:$0xf]
    %v5034 = vld [vmem:[%s5022 + $0x2c] sm:$0xf]
    %v5035 = vld [vmem:[%s5022 + $0x30] sm:$0xf]
    %v5036 = vld [vmem:[%s5022 + $0x34] sm:$0xf]
    %v5037 = vld [vmem:[%s5022 + $0x38] sm:$0xf]
    %v5038 = vld [vmem:[%s5022 + $0x3c] sm:$0xf]
    %v5039 = vld [vmem:[%s5022 + $0x40] sm:$0xf]
    %v5040 = vld [vmem:[%s5022 + $0x44] sm:$0xf]
    %v5041 = vld [vmem:[%s5022 + $0x48] sm:$0xf]
    %v5042 = vld [vmem:[%s5022 + $0x4c] sm:$0xf]
    %v5043 = vld [vmem:[%s5022 + $0x50] sm:$0xf]
    %v5044 = vld [vmem:[%s5022 + $0x54] sm:$0xf]
    %v5045 = vld [vmem:[%s5022 + $0x58] sm:$0xf]
    %v5046 = vld [vmem:[%s5022 + $0x5c] sm:$0xf]
    %v5047 = vld [vmem:[%s5022 + $0x60] sm:$0xf]
    %v5048 = vld [vmem:[%s5022 + $0x64] sm:$0xf]
    %v5049 = vld [vmem:[%s5022 + $0x68] sm:$0xf]
    %v5050 = vld [vmem:[%s5022 + $0x6c] sm:$0xf]
    %v5051 = vld [vmem:[%s5022 + $0x70] sm:$0xf]
    %v5052 = vld [vmem:[%s5022 + $0x74] sm:$0xf]
    %v5053 = vld [vmem:[%s5022 + $0x78] sm:$0xf]
    %v5054 = vld [vmem:[%s5022 + $0x7c] sm:$0xf]
    %v5055 = vld [vmem:[%s5022 + $0x80] sm:$0xf]
    %v5056 = vld [vmem:[%s5022 + $0x84] sm:$0xf]
    %v5057 = vld [vmem:[%s5022 + $0x88] sm:$0xf]
    %v5058 = vld [vmem:[%s5022 + $0x8c] sm:$0xf]
    %v5059 = vld [vmem:[%s5022 + $0x90] sm:$0xf]
    %v5060 = vld [vmem:[%s5022 + $0x94] sm:$0xf]
    %v5061 = vld [vmem:[%s5022 + $0x98] sm:$0xf]
    %v5062 = vld [vmem:[%s5022 + $0x9c] sm:$0xf]
    %v5063 = vld [vmem:[%s5022 + $0xa0] sm:$0xf]
    %v5064 = vld [vmem:[%s5022 + $0xa4] sm:$0xf]
    %v5065 = vld [vmem:[%s5022 + $0xa8] sm:$0xf]
    %v5066 = vld [vmem:[%s5022 + $0xac] sm:$0xf]
    %v5067 = vld [vmem:[%s5022 + $0xb0] sm:$0xf]
    %v5068 = vld [vmem:[%s5022 + $0xb4] sm:$0xf]
    %v5069 = vld [vmem:[%s5022 + $0xb8] sm:$0xf]
    %v5070 = vld [vmem:[%s5022 + $0xbc] sm:$0xf]
    %v5071 = vld [vmem:[%s5022 + $0xc0] sm:$0xf]
    %v5072 = vld [vmem:[%s5022 + $0xc4] sm:$0xf]
    %v5073 = vld [vmem:[%s5022 + $0xc8] sm:$0xf]
    %v5074 = vld [vmem:[%s5022 + $0xcc] sm:$0xf]
    %v5075 = vld [vmem:[%s5022 + $0xd0] sm:$0xf]
    %v5076 = vld [vmem:[%s5022 + $0xd4] sm:$0xf]
    %v5077 = vld [vmem:[%s5022 + $0xd8] sm:$0xf]
    %v5078 = vld [vmem:[%s5022 + $0xdc] sm:$0xf]
    %v5079 = vld [vmem:[%s5022 + $0xe0] sm:$0xf]
    %v5080 = vld [vmem:[%s5022 + $0xe4] sm:$0xf]
    %v5081 = vld [vmem:[%s5022 + $0xe8] sm:$0xf]
    %v5082 = vld [vmem:[%s5022 + $0xec] sm:$0xf]
    %v5083 = vld [vmem:[%s5022 + $0xf0] sm:$0xf]
    %v5084 = vld [vmem:[%s5022 + $0xf4] sm:$0xf]
    %v5085 = vld [vmem:[%s5022 + $0xf8] sm:$0xf]
    %v5086 = vld [vmem:[%s5022 + $0xfc] sm:$0xf]
    %v5087 = vld [vmem:[%s5022 + $0x100] sm:$0xf]
    %v5088 = vld [vmem:[%s5022 + $0x104] sm:$0xf]
    %v5089 = vld [vmem:[%s5022 + $0x108] sm:$0xf]
    %v5090 = vld [vmem:[%s5022 + $0x10c] sm:$0xf]
    %v5091 = vld [vmem:[%s5022 + $0x110] sm:$0xf]
    %v5092 = vld [vmem:[%s5022 + $0x114] sm:$0xf]
    %v5093 = vld [vmem:[%s5022 + $0x118] sm:$0xf]
    %v5094 = vld [vmem:[%s5022 + $0x11c] sm:$0xf]
    %v5095 = vld [vmem:[%s5022 + $0x120] sm:$0xf]
    %v5096 = vld [vmem:[%s5022 + $0x124] sm:$0xf]
    %v5097 = vld [vmem:[%s5022 + $0x128] sm:$0xf]
    %v5098 = vld [vmem:[%s5022 + $0x12c] sm:$0xf]
    %v5099 = vld [vmem:[%s5022 + $0x130] sm:$0xf]
    %v5100 = vld [vmem:[%s5022 + $0x134] sm:$0xf]
    %v5101 = vld [vmem:[%s5022 + $0x138] sm:$0xf]
    %v5102 = vld [vmem:[%s5022 + $0x13c] sm:$0xf]
    %v5103 = vld [vmem:[%s5022 + $0x140] sm:$0xf]
    %v5104 = vld [vmem:[%s5022 + $0x144] sm:$0xf]
    %v5105 = vld [vmem:[%s5022 + $0x148] sm:$0xf]
    %v5106 = vld [vmem:[%s5022 + $0x14c] sm:$0xf]
    %v5107 = vld [vmem:[%s5022 + $0x150] sm:$0xf]
    %v5108 = vld [vmem:[%s5022 + $0x154] sm:$0xf]
    %v5109 = vld [vmem:[%s5022 + $0x158] sm:$0xf]
    %v5110 = vld [vmem:[%s5022 + $0x15c] sm:$0xf]
    %v5111 = vld [vmem:[%s5022 + $0x160] sm:$0xf]
    %v5112 = vld [vmem:[%s5022 + $0x164] sm:$0xf]
    %v5113 = vld [vmem:[%s5022 + $0x168] sm:$0xf]
    %v5114 = vld [vmem:[%s5022 + $0x16c] sm:$0xf]
    %v5115 = vld [vmem:[%s5022 + $0x170] sm:$0xf]
    %v5116 = vld [vmem:[%s5022 + $0x174] sm:$0xf]
    %v5117 = vld [vmem:[%s5022 + $0x178] sm:$0xf]
    %v5118 = vld [vmem:[%s5022 + $0x17c] sm:$0xf]
    %v5119 = vld [vmem:[%s5022 + $0x180] sm:$0xf]
    %v5120 = vld [vmem:[%s5022 + $0x184] sm:$0xf]
    %v5121 = vld [vmem:[%s5022 + $0x188] sm:$0xf]
    %v5122 = vld [vmem:[%s5022 + $0x18c] sm:$0xf]
    %v5123 = vld [vmem:[%s5022 + $0x190] sm:$0xf]
    %v5124 = vld [vmem:[%s5022 + $0x194] sm:$0xf]
    %v5125 = vld [vmem:[%s5022 + $0x198] sm:$0xf]
    %v5126 = vld [vmem:[%s5022 + $0x19c] sm:$0xf]
    %v5127 = vld [vmem:[%s5022 + $0x1a0] sm:$0xf]
    %v5128 = vld [vmem:[%s5022 + $0x1a4] sm:$0xf]
    %v5129 = vld [vmem:[%s5022 + $0x1a8] sm:$0xf]
    %v5130 = vld [vmem:[%s5022 + $0x1ac] sm:$0xf]
    %v5131 = vld [vmem:[%s5022 + $0x1b0] sm:$0xf]
    %v5132 = vld [vmem:[%s5022 + $0x1b4] sm:$0xf]
    %v5133 = vld [vmem:[%s5022 + $0x1b8] sm:$0xf]
    %v5134 = vld [vmem:[%s5022 + $0x1bc] sm:$0xf]
    %v5135 = vld [vmem:[%s5022 + $0x1c0] sm:$0xf]
    %v5136 = vld [vmem:[%s5022 + $0x1c4] sm:$0xf]
    %v5137 = vld [vmem:[%s5022 + $0x1c8] sm:$0xf]
    %v5138 = vld [vmem:[%s5022 + $0x1cc] sm:$0xf]
    %v5139 = vld [vmem:[%s5022 + $0x1d0] sm:$0xf]
    %v5140 = vld [vmem:[%s5022 + $0x1d4] sm:$0xf]
    %v5141 = vld [vmem:[%s5022 + $0x1d8] sm:$0xf]
    %v5142 = vld [vmem:[%s5022 + $0x1dc] sm:$0xf]
    %v5143 = vld [vmem:[%s5022 + $0x1e0] sm:$0xf]
    %v5144 = vld [vmem:[%s5022 + $0x1e4] sm:$0xf]
    %v5145 = vld [vmem:[%s5022 + $0x1e8] sm:$0xf]
    %v5146 = vld [vmem:[%s5022 + $0x1ec] sm:$0xf]
    %v5147 = vld [vmem:[%s5022 + $0x1f0] sm:$0xf]
    %v5148 = vld [vmem:[%s5022 + $0x1f4] sm:$0xf]
    %v5149 = vld [vmem:[%s5022 + $0x1f8] sm:$0xf]
    %v5150 = vld [vmem:[%s5022 + $0x1fc] sm:$0xf]
    %v5151 = vld [vmem:[%s5022 + $0x200] sm:$0xf]
    %v5152 = vld [vmem:[%s5022 + $0x204] sm:$0xf]
    %v5153 = vld [vmem:[%s5022 + $0x208] sm:$0xf]
    %v5154 = vld [vmem:[%s5022 + $0x20c] sm:$0xf]
    %v5155 = vld [vmem:[%s5022 + $0x210] sm:$0xf]
    %v5156 = vld [vmem:[%s5022 + $0x214] sm:$0xf]
    %v5157 = vld [vmem:[%s5022 + $0x218] sm:$0xf]
    %v5158 = vld [vmem:[%s5022 + $0x21c] sm:$0xf]
    %v5159 = vld [vmem:[%s5022 + $0x220] sm:$0xf]
    %v5160 = vld [vmem:[%s5022 + $0x224] sm:$0xf]
    %v5161 = vld [vmem:[%s5022 + $0x228] sm:$0xf]
    %v5162 = vld [vmem:[%s5022 + $0x22c] sm:$0xf]
    %v5163 = vld [vmem:[%s5022 + $0x230] sm:$0xf]
    %v5164 = vld [vmem:[%s5022 + $0x234] sm:$0xf]
    %v5165 = vld [vmem:[%s5022 + $0x238] sm:$0xf]
    %v5166 = vld [vmem:[%s5022 + $0x23c] sm:$0xf]
    %v5167 = vld [vmem:[%s5022 + $0x240] sm:$0xf]
    %v5168 = vld [vmem:[%s5022 + $0x244] sm:$0xf]
    %v5169 = vld [vmem:[%s5022 + $0x248] sm:$0xf]
    %v5170 = vld [vmem:[%s5022 + $0x24c] sm:$0xf]
    %v5171 = vld [vmem:[%s5022 + $0x250] sm:$0xf]
    %v5172 = vld [vmem:[%s5022 + $0x254] sm:$0xf]
    %v5173 = vld [vmem:[%s5022 + $0x258] sm:$0xf]
    %v5174 = vld [vmem:[%s5022 + $0x25c] sm:$0xf]
    %v5175 = vld [vmem:[%s5022 + $0x260] sm:$0xf]
    %v5176 = vld [vmem:[%s5022 + $0x264] sm:$0xf]
    %v5177 = vld [vmem:[%s5022 + $0x268] sm:$0xf]
    %v5178 = vld [vmem:[%s5022 + $0x26c] sm:$0xf]
    %v5179 = vld [vmem:[%s5022 + $0x270] sm:$0xf]
    %v5180 = vld [vmem:[%s5022 + $0x274] sm:$0xf]
    %v5181 = vld [vmem:[%s5022 + $0x278] sm:$0xf]
    %v5182 = vld [vmem:[%s5022 + $0x27c] sm:$0xf]
    %v5183 = vld [vmem:[%s5022 + $0x280] sm:$0xf]
    %v5184 = vld [vmem:[%s5022 + $0x284] sm:$0xf]
    %v5185 = vld [vmem:[%s5022 + $0x288] sm:$0xf]
    %v5186 = vld [vmem:[%s5022 + $0x28c] sm:$0xf]
    %v5187 = vld [vmem:[%s5022 + $0x290] sm:$0xf]
    %v5188 = vld [vmem:[%s5022 + $0x294] sm:$0xf]
    %v5189 = vld [vmem:[%s5022 + $0x298] sm:$0xf]
    %v5190 = vld [vmem:[%s5022 + $0x29c] sm:$0xf]
    %v5191 = vld [vmem:[%s5022 + $0x2a0] sm:$0xf]
    %v5192 = vld [vmem:[%s5022 + $0x2a4] sm:$0xf]
    %v5193 = vld [vmem:[%s5022 + $0x2a8] sm:$0xf]
    %v5194 = vld [vmem:[%s5022 + $0x2ac] sm:$0xf]
    %v5195 = vld [vmem:[%s5022 + $0x2b0] sm:$0xf]
    %v5196 = vld [vmem:[%s5022 + $0x2b4] sm:$0xf]
    %v5197 = vld [vmem:[%s5022 + $0x2b8] sm:$0xf]
    %v5198 = vld [vmem:[%s5022 + $0x2bc] sm:$0xf]
    %v5199 = vld [vmem:[%s5022 + $0x2c0] sm:$0xf]
    %v5200 = vld [vmem:[%s5022 + $0x2c4] sm:$0xf]
    %v5201 = vld [vmem:[%s5022 + $0x2c8] sm:$0xf]
    %v5202 = vld [vmem:[%s5022 + $0x2cc] sm:$0xf]
    %v5203 = vld [vmem:[%s5022 + $0x2d0] sm:$0xf]
    %v5204 = vld [vmem:[%s5022 + $0x2d4] sm:$0xf]
    %v5205 = vld [vmem:[%s5022 + $0x2d8] sm:$0xf]
    %v5206 = vld [vmem:[%s5022 + $0x2dc] sm:$0xf]
    %v5207 = vld [vmem:[%s5022 + $0x2e0] sm:$0xf]
    %v5208 = vld [vmem:[%s5022 + $0x2e4] sm:$0xf]
    %v5209 = vld [vmem:[%s5022 + $0x2e8] sm:$0xf]
    %v5210 = vld [vmem:[%s5022 + $0x2ec] sm:$0xf]
    %v5211 = vld [vmem:[%s5022 + $0x2f0] sm:$0xf]
    %v5212 = vld [vmem:[%s5022 + $0x2f4] sm:$0xf]
    %v5213 = vld [vmem:[%s5022 + $0x2f8] sm:$0xf]
    %v5214 = vld [vmem:[%s5022 + $0x2fc] sm:$0xf]
    %v5215 = vld [vmem:[%s5022 + $0x300] sm:$0xf]
    %v5216 = vld [vmem:[%s5022 + $0x304] sm:$0xf]
    %v5217 = vld [vmem:[%s5022 + $0x308] sm:$0xf]
    %v5218 = vld [vmem:[%s5022 + $0x30c] sm:$0xf]
    %v5219 = vld [vmem:[%s5022 + $0x310] sm:$0xf]
    %v5220 = vld [vmem:[%s5022 + $0x314] sm:$0xf]
    %v5221 = vld [vmem:[%s5022 + $0x318] sm:$0xf]
    %v5222 = vld [vmem:[%s5022 + $0x31c] sm:$0xf]
    %v5223 = vld [vmem:[%s5022 + $0x320] sm:$0xf]
    %v5224 = vld [vmem:[%s5022 + $0x324] sm:$0xf]
    %v5225 = vld [vmem:[%s5022 + $0x328] sm:$0xf]
    %v5226 = vld [vmem:[%s5022 + $0x32c] sm:$0xf]
    %v5227 = vld [vmem:[%s5022 + $0x330] sm:$0xf]
    %v5228 = vld [vmem:[%s5022 + $0x334] sm:$0xf]
    %v5229 = vld [vmem:[%s5022 + $0x338] sm:$0xf]
    %v5230 = vld [vmem:[%s5022 + $0x33c] sm:$0xf]
    %v5231 = vld [vmem:[%s5022 + $0x340] sm:$0xf]
    %v5232 = vld [vmem:[%s5022 + $0x344] sm:$0xf]
    %v5233 = vld [vmem:[%s5022 + $0x348] sm:$0xf]
    %v5234 = vld [vmem:[%s5022 + $0x34c] sm:$0xf]
    %v5235 = vld [vmem:[%s5022 + $0x350] sm:$0xf]
    %v5236 = vld [vmem:[%s5022 + $0x354] sm:$0xf]
    %v5237 = vld [vmem:[%s5022 + $0x358] sm:$0xf]
    %v5238 = vld [vmem:[%s5022 + $0x35c] sm:$0xf]
    %v5239 = vld [vmem:[%s5022 + $0x360] sm:$0xf]
    %v5240 = vld [vmem:[%s5022 + $0x364] sm:$0xf]
    %v5241 = vld [vmem:[%s5022 + $0x368] sm:$0xf]
    %v5242 = vld [vmem:[%s5022 + $0x36c] sm:$0xf]
    %v5243 = vld [vmem:[%s5022 + $0x370] sm:$0xf]
    %v5244 = vld [vmem:[%s5022 + $0x374] sm:$0xf]
    %v5245 = vld [vmem:[%s5022 + $0x378] sm:$0xf]
    %v5246 = vld [vmem:[%s5022 + $0x37c] sm:$0xf]
    %v5247 = vld [vmem:[%s5022 + $0x380] sm:$0xf]
    %v5248 = vld [vmem:[%s5022 + $0x384] sm:$0xf]
    %v5249 = vld [vmem:[%s5022 + $0x388] sm:$0xf]
    %v5250 = vld [vmem:[%s5022 + $0x38c] sm:$0xf]
    %v5251 = vld [vmem:[%s5022 + $0x390] sm:$0xf]
    %v5252 = vld [vmem:[%s5022 + $0x394] sm:$0xf]
    %v5253 = vld [vmem:[%s5022 + $0x398] sm:$0xf]
    %v5254 = vld [vmem:[%s5022 + $0x39c] sm:$0xf]
    %v5255 = vld [vmem:[%s5022 + $0x3a0] sm:$0xf]
    %v5256 = vld [vmem:[%s5022 + $0x3a4] sm:$0xf]
    %v5257 = vld [vmem:[%s5022 + $0x3a8] sm:$0xf]
    %v5258 = vld [vmem:[%s5022 + $0x3ac] sm:$0xf]
    %v5259 = vld [vmem:[%s5022 + $0x3b0] sm:$0xf]
    %v5260 = vld [vmem:[%s5022 + $0x3b4] sm:$0xf]
    %v5261 = vld [vmem:[%s5022 + $0x3b8] sm:$0xf]
    %v5262 = vld [vmem:[%s5022 + $0x3bc] sm:$0xf]
    %v5263 = vld [vmem:[%s5022 + $0x3c0] sm:$0xf]
    %v5264 = vld [vmem:[%s5022 + $0x3c4] sm:$0xf]
    %v5265 = vld [vmem:[%s5022 + $0x3c8] sm:$0xf]
    %v5266 = vld [vmem:[%s5022 + $0x3cc] sm:$0xf]
    %v5267 = vld [vmem:[%s5022 + $0x3d0] sm:$0xf]
    %v5268 = vld [vmem:[%s5022 + $0x3d4] sm:$0xf]
    %v5269 = vld [vmem:[%s5022 + $0x3d8] sm:$0xf]
    %v5270 = vld [vmem:[%s5022 + $0x3dc] sm:$0xf]
    %v5271 = vld [vmem:[%s5022 + $0x3e0] sm:$0xf]
    %v5272 = vld [vmem:[%s5022 + $0x3e4] sm:$0xf]
    %v5273 = vld [vmem:[%s5022 + $0x3e8] sm:$0xf]
    %v5274 = vld [vmem:[%s5022 + $0x3ec] sm:$0xf]
    %v5275 = vld [vmem:[%s5022 + $0x3f0] sm:$0xf]
    %v5276 = vld [vmem:[%s5022 + $0x3f4] sm:$0xf]
    %v5277 = vld [vmem:[%s5022 + $0x3f8] sm:$0xf]
    %v5278 = vld [vmem:[%s5022 + $0x3fc] sm:$0xf]
    %s5279 = scalar_lea.vmem %s10, 1
    %v5280 = vld [vmem:[%s5279] sm:$0x1]
    %v5282 = vlaneseq
    %v5283 = vshrl.u32 %v5282, 7
    %v5284 = vsub.s32 0, %v5283
    %v5285 = vrot.slane %v5280, %v5284
    %v5543 = vunpack.c.l.b16 %v5023
    %v5544 = vunpack.c.l.b16 %v5024
    %v5545 = vunpack.c.l.b16 %v5025
    %v5546 = vunpack.c.l.b16 %v5026
    %v5547 = vunpack.c.l.b16 %v5027
    %v5548 = vunpack.c.l.b16 %v5028
    %v5549 = vunpack.c.l.b16 %v5029
    %v5550 = vunpack.c.l.b16 %v5030
    %v5551 = vunpack.c.l.b16 %v5031
    %v5552 = vunpack.c.l.b16 %v5032
    %v5553 = vunpack.c.l.b16 %v5033
    %v5554 = vunpack.c.l.b16 %v5034
    %v5555 = vunpack.c.l.b16 %v5035
    %v5556 = vunpack.c.l.b16 %v5036
    %v5557 = vunpack.c.l.b16 %v5037
    %v5558 = vunpack.c.l.b16 %v5038
    %v5559 = vunpack.c.l.b16 %v5039
    %v5560 = vunpack.c.l.b16 %v5040
    %v5561 = vunpack.c.l.b16 %v5041
    %v5562 = vunpack.c.l.b16 %v5042
    %v5563 = vunpack.c.l.b16 %v5043
    %v5564 = vunpack.c.l.b16 %v5044
    %v5565 = vunpack.c.l.b16 %v5045
    %v5566 = vunpack.c.l.b16 %v5046
    %v5567 = vunpack.c.l.b16 %v5047
    %v5568 = vunpack.c.l.b16 %v5048
    %v5569 = vunpack.c.l.b16 %v5049
    %v5570 = vunpack.c.l.b16 %v5050
    %v5571 = vunpack.c.l.b16 %v5051
    %v5572 = vunpack.c.l.b16 %v5052
    %v5573 = vunpack.c.l.b16 %v5053
    %v5574 = vunpack.c.l.b16 %v5054
    %v5575 = vunpack.c.l.b16 %v5055
    %v5576 = vunpack.c.l.b16 %v5056
    %v5577 = vunpack.c.l.b16 %v5057
    %v5578 = vunpack.c.l.b16 %v5058
    %v5579 = vunpack.c.l.b16 %v5059
    %v5580 = vunpack.c.l.b16 %v5060
    %v5581 = vunpack.c.l.b16 %v5061
    %v5582 = vunpack.c.l.b16 %v5062
    %v5583 = vunpack.c.l.b16 %v5063
    %v5584 = vunpack.c.l.b16 %v5064
    %v5585 = vunpack.c.l.b16 %v5065
    %v5586 = vunpack.c.l.b16 %v5066
    %v5587 = vunpack.c.l.b16 %v5067
    %v5588 = vunpack.c.l.b16 %v5068
    %v5589 = vunpack.c.l.b16 %v5069
    %v5590 = vunpack.c.l.b16 %v5070
    %v5591 = vunpack.c.l.b16 %v5071
    %v5592 = vunpack.c.l.b16 %v5072
    %v5593 = vunpack.c.l.b16 %v5073
    %v5594 = vunpack.c.l.b16 %v5074
    %v5595 = vunpack.c.l.b16 %v5075
    %v5596 = vunpack.c.l.b16 %v5076
    %v5597 = vunpack.c.l.b16 %v5077
    %v5598 = vunpack.c.l.b16 %v5078
    %v5599 = vunpack.c.l.b16 %v5079
    %v5600 = vunpack.c.l.b16 %v5080
    %v5601 = vunpack.c.l.b16 %v5081
    %v5602 = vunpack.c.l.b16 %v5082
    %v5603 = vunpack.c.l.b16 %v5083
    %v5604 = vunpack.c.l.b16 %v5084
    %v5605 = vunpack.c.l.b16 %v5085
    %v5606 = vunpack.c.l.b16 %v5086
    %v5607 = vunpack.c.l.b16 %v5087
    %v5608 = vunpack.c.l.b16 %v5088
    %v5609 = vunpack.c.l.b16 %v5089
    %v5610 = vunpack.c.l.b16 %v5090
    %v5611 = vunpack.c.l.b16 %v5091
    %v5612 = vunpack.c.l.b16 %v5092
    %v5613 = vunpack.c.l.b16 %v5093
    %v5614 = vunpack.c.l.b16 %v5094
    %v5615 = vunpack.c.l.b16 %v5095
    %v5616 = vunpack.c.l.b16 %v5096
    %v5617 = vunpack.c.l.b16 %v5097
    %v5618 = vunpack.c.l.b16 %v5098
    %v5619 = vunpack.c.l.b16 %v5099
    %v5620 = vunpack.c.l.b16 %v5100
    %v5621 = vunpack.c.l.b16 %v5101
    %v5622 = vunpack.c.l.b16 %v5102
    %v5623 = vunpack.c.l.b16 %v5103
    %v5624 = vunpack.c.l.b16 %v5104
    %v5625 = vunpack.c.l.b16 %v5105
    %v5626 = vunpack.c.l.b16 %v5106
    %v5627 = vunpack.c.l.b16 %v5107
    %v5628 = vunpack.c.l.b16 %v5108
    %v5629 = vunpack.c.l.b16 %v5109
    %v5630 = vunpack.c.l.b16 %v5110
    %v5631 = vunpack.c.l.b16 %v5111
    %v5632 = vunpack.c.l.b16 %v5112
    %v5633 = vunpack.c.l.b16 %v5113
    %v5634 = vunpack.c.l.b16 %v5114
    %v5635 = vunpack.c.l.b16 %v5115
    %v5636 = vunpack.c.l.b16 %v5116
    %v5637 = vunpack.c.l.b16 %v5117
    %v5638 = vunpack.c.l.b16 %v5118
    %v5639 = vunpack.c.l.b16 %v5119
    %v5640 = vunpack.c.l.b16 %v5120
    %v5641 = vunpack.c.l.b16 %v5121
    %v5642 = vunpack.c.l.b16 %v5122
    %v5643 = vunpack.c.l.b16 %v5123
    %v5644 = vunpack.c.l.b16 %v5124
    %v5645 = vunpack.c.l.b16 %v5125
    %v5646 = vunpack.c.l.b16 %v5126
    %v5647 = vunpack.c.l.b16 %v5127
    %v5648 = vunpack.c.l.b16 %v5128
    %v5649 = vunpack.c.l.b16 %v5129
    %v5650 = vunpack.c.l.b16 %v5130
    %v5651 = vunpack.c.l.b16 %v5131
    %v5652 = vunpack.c.l.b16 %v5132
    %v5653 = vunpack.c.l.b16 %v5133
    %v5654 = vunpack.c.l.b16 %v5134
    %v5655 = vunpack.c.l.b16 %v5135
    %v5656 = vunpack.c.l.b16 %v5136
    %v5657 = vunpack.c.l.b16 %v5137
    %v5658 = vunpack.c.l.b16 %v5138
    %v5659 = vunpack.c.l.b16 %v5139
    %v5660 = vunpack.c.l.b16 %v5140
    %v5661 = vunpack.c.l.b16 %v5141
    %v5662 = vunpack.c.l.b16 %v5142
    %v5663 = vunpack.c.l.b16 %v5143
    %v5664 = vunpack.c.l.b16 %v5144
    %v5665 = vunpack.c.l.b16 %v5145
    %v5666 = vunpack.c.l.b16 %v5146
    %v5667 = vunpack.c.l.b16 %v5147
    %v5668 = vunpack.c.l.b16 %v5148
    %v5669 = vunpack.c.l.b16 %v5149
    %v5670 = vunpack.c.l.b16 %v5150
    %v5671 = vunpack.c.l.b16 %v5151
    %v5672 = vunpack.c.l.b16 %v5152
    %v5673 = vunpack.c.l.b16 %v5153
    %v5674 = vunpack.c.l.b16 %v5154
    %v5675 = vunpack.c.l.b16 %v5155
    %v5676 = vunpack.c.l.b16 %v5156
    %v5677 = vunpack.c.l.b16 %v5157
    %v5678 = vunpack.c.l.b16 %v5158
    %v5679 = vunpack.c.l.b16 %v5159
    %v5680 = vunpack.c.l.b16 %v5160
    %v5681 = vunpack.c.l.b16 %v5161
    %v5682 = vunpack.c.l.b16 %v5162
    %v5683 = vunpack.c.l.b16 %v5163
    %v5684 = vunpack.c.l.b16 %v5164
    %v5685 = vunpack.c.l.b16 %v5165
    %v5686 = vunpack.c.l.b16 %v5166
    %v5687 = vunpack.c.l.b16 %v5167
    %v5688 = vunpack.c.l.b16 %v5168
    %v5689 = vunpack.c.l.b16 %v5169
    %v5690 = vunpack.c.l.b16 %v5170
    %v5691 = vunpack.c.l.b16 %v5171
    %v5692 = vunpack.c.l.b16 %v5172
    %v5693 = vunpack.c.l.b16 %v5173
    %v5694 = vunpack.c.l.b16 %v5174
    %v5695 = vunpack.c.l.b16 %v5175
    %v5696 = vunpack.c.l.b16 %v5176
    %v5697 = vunpack.c.l.b16 %v5177
    %v5698 = vunpack.c.l.b16 %v5178
    %v5699 = vunpack.c.l.b16 %v5179
    %v5700 = vunpack.c.l.b16 %v5180
    %v5701 = vunpack.c.l.b16 %v5181
    %v5702 = vunpack.c.l.b16 %v5182
    %v5703 = vunpack.c.l.b16 %v5183
    %v5704 = vunpack.c.l.b16 %v5184
    %v5705 = vunpack.c.l.b16 %v5185
    %v5706 = vunpack.c.l.b16 %v5186
    %v5707 = vunpack.c.l.b16 %v5187
    %v5708 = vunpack.c.l.b16 %v5188
    %v5709 = vunpack.c.l.b16 %v5189
    %v5710 = vunpack.c.l.b16 %v5190
    %v5711 = vunpack.c.l.b16 %v5191
    %v5712 = vunpack.c.l.b16 %v5192
    %v5713 = vunpack.c.l.b16 %v5193
    %v5714 = vunpack.c.l.b16 %v5194
    %v5715 = vunpack.c.l.b16 %v5195
    %v5716 = vunpack.c.l.b16 %v5196
    %v5717 = vunpack.c.l.b16 %v5197
    %v5718 = vunpack.c.l.b16 %v5198
    %v5719 = vunpack.c.l.b16 %v5199
    %v5720 = vunpack.c.l.b16 %v5200
    %v5721 = vunpack.c.l.b16 %v5201
    %v5722 = vunpack.c.l.b16 %v5202
    %v5723 = vunpack.c.l.b16 %v5203
    %v5724 = vunpack.c.l.b16 %v5204
    %v5725 = vunpack.c.l.b16 %v5205
    %v5726 = vunpack.c.l.b16 %v5206
    %v5727 = vunpack.c.l.b16 %v5207
    %v5728 = vunpack.c.l.b16 %v5208
    %v5729 = vunpack.c.l.b16 %v5209
    %v5730 = vunpack.c.l.b16 %v5210
    %v5731 = vunpack.c.l.b16 %v5211
    %v5732 = vunpack.c.l.b16 %v5212
    %v5733 = vunpack.c.l.b16 %v5213
    %v5734 = vunpack.c.l.b16 %v5214
    %v5735 = vunpack.c.l.b16 %v5215
    %v5736 = vunpack.c.l.b16 %v5216
    %v5737 = vunpack.c.l.b16 %v5217
    %v5738 = vunpack.c.l.b16 %v5218
    %v5739 = vunpack.c.l.b16 %v5219
    %v5740 = vunpack.c.l.b16 %v5220
    %v5741 = vunpack.c.l.b16 %v5221
    %v5742 = vunpack.c.l.b16 %v5222
    %v5743 = vunpack.c.l.b16 %v5223
    %v5744 = vunpack.c.l.b16 %v5224
    %v5745 = vunpack.c.l.b16 %v5225
    %v5746 = vunpack.c.l.b16 %v5226
    %v5747 = vunpack.c.l.b16 %v5227
    %v5748 = vunpack.c.l.b16 %v5228
    %v5749 = vunpack.c.l.b16 %v5229
    %v5750 = vunpack.c.l.b16 %v5230
    %v5751 = vunpack.c.l.b16 %v5231
    %v5752 = vunpack.c.l.b16 %v5232
    %v5753 = vunpack.c.l.b16 %v5233
    %v5754 = vunpack.c.l.b16 %v5234
    %v5755 = vunpack.c.l.b16 %v5235
    %v5756 = vunpack.c.l.b16 %v5236
    %v5757 = vunpack.c.l.b16 %v5237
    %v5758 = vunpack.c.l.b16 %v5238
    %v5759 = vunpack.c.l.b16 %v5239
    %v5760 = vunpack.c.l.b16 %v5240
    %v5761 = vunpack.c.l.b16 %v5241
    %v5762 = vunpack.c.l.b16 %v5242
    %v5763 = vunpack.c.l.b16 %v5243
    %v5764 = vunpack.c.l.b16 %v5244
    %v5765 = vunpack.c.l.b16 %v5245
    %v5766 = vunpack.c.l.b16 %v5246
    %v5767 = vunpack.c.l.b16 %v5247
    %v5768 = vunpack.c.l.b16 %v5248
    %v5769 = vunpack.c.l.b16 %v5249
    %v5770 = vunpack.c.l.b16 %v5250
    %v5771 = vunpack.c.l.b16 %v5251
    %v5772 = vunpack.c.l.b16 %v5252
    %v5773 = vunpack.c.l.b16 %v5253
    %v5774 = vunpack.c.l.b16 %v5254
    %v5775 = vunpack.c.l.b16 %v5255
    %v5776 = vunpack.c.l.b16 %v5256
    %v5777 = vunpack.c.l.b16 %v5257
    %v5778 = vunpack.c.l.b16 %v5258
    %v5779 = vunpack.c.l.b16 %v5259
    %v5780 = vunpack.c.l.b16 %v5260
    %v5781 = vunpack.c.l.b16 %v5261
    %v5782 = vunpack.c.l.b16 %v5262
    %v5783 = vunpack.c.l.b16 %v5263
    %v5784 = vunpack.c.l.b16 %v5264
    %v5785 = vunpack.c.l.b16 %v5265
    %v5786 = vunpack.c.l.b16 %v5266
    %v5787 = vunpack.c.l.b16 %v5267
    %v5788 = vunpack.c.l.b16 %v5268
    %v5789 = vunpack.c.l.b16 %v5269
    %v5790 = vunpack.c.l.b16 %v5270
    %v5791 = vunpack.c.l.b16 %v5271
    %v5792 = vunpack.c.l.b16 %v5272
    %v5793 = vunpack.c.l.b16 %v5273
    %v5794 = vunpack.c.l.b16 %v5274
    %v5795 = vunpack.c.l.b16 %v5275
    %v5796 = vunpack.c.l.b16 %v5276
    %v5797 = vunpack.c.l.b16 %v5277
    %v5798 = vunpack.c.l.b16 %v5278
    %v5799 = vpack.c.b16 %v5544, %v5543
    %v5800 = vpack.c.b16 %v5546, %v5545
    %v5801 = vpack.c.b16 %v5548, %v5547
    %v5802 = vpack.c.b16 %v5550, %v5549
    %v5803 = vpack.c.b16 %v5552, %v5551
    %v5804 = vpack.c.b16 %v5554, %v5553
    %v5805 = vpack.c.b16 %v5556, %v5555
    %v5806 = vpack.c.b16 %v5558, %v5557
    %v5807 = vpack.c.b16 %v5560, %v5559
    %v5808 = vpack.c.b16 %v5562, %v5561
    %v5809 = vpack.c.b16 %v5564, %v5563
    %v5810 = vpack.c.b16 %v5566, %v5565
    %v5811 = vpack.c.b16 %v5568, %v5567
    %v5812 = vpack.c.b16 %v5570, %v5569
    %v5813 = vpack.c.b16 %v5572, %v5571
    %v5814 = vpack.c.b16 %v5574, %v5573
    %v5815 = vpack.c.b16 %v5576, %v5575
    %v5816 = vpack.c.b16 %v5578, %v5577
    %v5817 = vpack.c.b16 %v5580, %v5579
    %v5818 = vpack.c.b16 %v5582, %v5581
    %v5819 = vpack.c.b16 %v5584, %v5583
    %v5820 = vpack.c.b16 %v5586, %v5585
    %v5821 = vpack.c.b16 %v5588, %v5587
    %v5822 = vpack.c.b16 %v5590, %v5589
    %v5823 = vpack.c.b16 %v5592, %v5591
    %v5824 = vpack.c.b16 %v5594, %v5593
    %v5825 = vpack.c.b16 %v5596, %v5595
    %v5826 = vpack.c.b16 %v5598, %v5597
    %v5827 = vpack.c.b16 %v5600, %v5599
    %v5828 = vpack.c.b16 %v5602, %v5601
    %v5829 = vpack.c.b16 %v5604, %v5603
    %v5830 = vpack.c.b16 %v5606, %v5605
    %v5831 = vpack.c.b16 %v5608, %v5607
    %v5832 = vpack.c.b16 %v5610, %v5609
    %v5833 = vpack.c.b16 %v5612, %v5611
    %v5834 = vpack.c.b16 %v5614, %v5613
    %v5835 = vpack.c.b16 %v5616, %v5615
    %v5836 = vpack.c.b16 %v5618, %v5617
    %v5837 = vpack.c.b16 %v5620, %v5619
    %v5838 = vpack.c.b16 %v5622, %v5621
    %v5839 = vpack.c.b16 %v5624, %v5623
    %v5840 = vpack.c.b16 %v5626, %v5625
    %v5841 = vpack.c.b16 %v5628, %v5627
    %v5842 = vpack.c.b16 %v5630, %v5629
    %v5843 = vpack.c.b16 %v5632, %v5631
    %v5844 = vpack.c.b16 %v5634, %v5633
    %v5845 = vpack.c.b16 %v5636, %v5635
    %v5846 = vpack.c.b16 %v5638, %v5637
    %v5847 = vpack.c.b16 %v5640, %v5639
    %v5848 = vpack.c.b16 %v5642, %v5641
    %v5849 = vpack.c.b16 %v5644, %v5643
    %v5850 = vpack.c.b16 %v5646, %v5645
    %v5851 = vpack.c.b16 %v5648, %v5647
    %v5852 = vpack.c.b16 %v5650, %v5649
    %v5853 = vpack.c.b16 %v5652, %v5651
    %v5854 = vpack.c.b16 %v5654, %v5653
    %v5855 = vpack.c.b16 %v5656, %v5655
    %v5856 = vpack.c.b16 %v5658, %v5657
    %v5857 = vpack.c.b16 %v5660, %v5659
    %v5858 = vpack.c.b16 %v5662, %v5661
    %v5859 = vpack.c.b16 %v5664, %v5663
    %v5860 = vpack.c.b16 %v5666, %v5665
    %v5861 = vpack.c.b16 %v5668, %v5667
    %v5862 = vpack.c.b16 %v5670, %v5669
    %v5863 = vpack.c.b16 %v5672, %v5671
    %v5864 = vpack.c.b16 %v5674, %v5673
    %v5865 = vpack.c.b16 %v5676, %v5675
    %v5866 = vpack.c.b16 %v5678, %v5677
    %v5867 = vpack.c.b16 %v5680, %v5679
    %v5868 = vpack.c.b16 %v5682, %v5681
    %v5869 = vpack.c.b16 %v5684, %v5683
    %v5870 = vpack.c.b16 %v5686, %v5685
    %v5871 = vpack.c.b16 %v5688, %v5687
    %v5872 = vpack.c.b16 %v5690, %v5689
    %v5873 = vpack.c.b16 %v5692, %v5691
    %v5874 = vpack.c.b16 %v5694, %v5693
    %v5875 = vpack.c.b16 %v5696, %v5695
    %v5876 = vpack.c.b16 %v5698, %v5697
    %v5877 = vpack.c.b16 %v5700, %v5699
    %v5878 = vpack.c.b16 %v5702, %v5701
    %v5879 = vpack.c.b16 %v5704, %v5703
    %v5880 = vpack.c.b16 %v5706, %v5705
    %v5881 = vpack.c.b16 %v5708, %v5707
    %v5882 = vpack.c.b16 %v5710, %v5709
    %v5883 = vpack.c.b16 %v5712, %v5711
    %v5884 = vpack.c.b16 %v5714, %v5713
    %v5885 = vpack.c.b16 %v5716, %v5715
    %v5886 = vpack.c.b16 %v5718, %v5717
    %v5887 = vpack.c.b16 %v5720, %v5719
    %v5888 = vpack.c.b16 %v5722, %v5721
    %v5889 = vpack.c.b16 %v5724, %v5723
    %v5890 = vpack.c.b16 %v5726, %v5725
    %v5891 = vpack.c.b16 %v5728, %v5727
    %v5892 = vpack.c.b16 %v5730, %v5729
    %v5893 = vpack.c.b16 %v5732, %v5731
    %v5894 = vpack.c.b16 %v5734, %v5733
    %v5895 = vpack.c.b16 %v5736, %v5735
    %v5896 = vpack.c.b16 %v5738, %v5737
    %v5897 = vpack.c.b16 %v5740, %v5739
    %v5898 = vpack.c.b16 %v5742, %v5741
    %v5899 = vpack.c.b16 %v5744, %v5743
    %v5900 = vpack.c.b16 %v5746, %v5745
    %v5901 = vpack.c.b16 %v5748, %v5747
    %v5902 = vpack.c.b16 %v5750, %v5749
    %v5903 = vpack.c.b16 %v5752, %v5751
    %v5904 = vpack.c.b16 %v5754, %v5753
    %v5905 = vpack.c.b16 %v5756, %v5755
    %v5906 = vpack.c.b16 %v5758, %v5757
    %v5907 = vpack.c.b16 %v5760, %v5759
    %v5908 = vpack.c.b16 %v5762, %v5761
    %v5909 = vpack.c.b16 %v5764, %v5763
    %v5910 = vpack.c.b16 %v5766, %v5765
    %v5911 = vpack.c.b16 %v5768, %v5767
    %v5912 = vpack.c.b16 %v5770, %v5769
    %v5913 = vpack.c.b16 %v5772, %v5771
    %v5914 = vpack.c.b16 %v5774, %v5773
    %v5915 = vpack.c.b16 %v5776, %v5775
    %v5916 = vpack.c.b16 %v5778, %v5777
    %v5917 = vpack.c.b16 %v5780, %v5779
    %v5918 = vpack.c.b16 %v5782, %v5781
    %v5919 = vpack.c.b16 %v5784, %v5783
    %v5920 = vpack.c.b16 %v5786, %v5785
    %v5921 = vpack.c.b16 %v5788, %v5787
    %v5922 = vpack.c.b16 %v5790, %v5789
    %v5923 = vpack.c.b16 %v5792, %v5791
    %v5924 = vpack.c.b16 %v5794, %v5793
    %v5925 = vpack.c.b16 %v5796, %v5795
    %v5926 = vpack.c.b16 %v5798, %v5797
    %6055 = vmatprep.subr.bf16.mxu0 0
    %6056 = vmatpush1.bf16.msra.mxu0 %v5799
    %6057 = vmatprep.subr.bf16.mxu0 0
    %6058 = vmatpush1.bf16.msra.mxu0 %v5800
    %6059 = vmatprep.subr.bf16.mxu0 0
    %6060 = vmatpush1.bf16.msra.mxu0 %v5801
    %6061 = vmatprep.subr.bf16.mxu0 0
    %6062 = vmatpush1.bf16.msra.mxu0 %v5802
    %6063 = vmatprep.subr.bf16.mxu0 0
    %6064 = vmatpush1.bf16.msra.mxu0 %v5803
    %6065 = vmatprep.subr.bf16.mxu0 0
    %6066 = vmatpush1.bf16.msra.mxu0 %v5804
    %6067 = vmatprep.subr.bf16.mxu0 0
    %6068 = vmatpush1.bf16.msra.mxu0 %v5805
    %6069 = vmatprep.subr.bf16.mxu0 0
    %6070 = vmatpush1.bf16.msra.mxu0 %v5806
    %6071 = vmatprep.subr.bf16.mxu0 0
    %6072 = vmatpush1.bf16.msra.mxu0 %v5807
    %6073 = vmatprep.subr.bf16.mxu0 0
    %6074 = vmatpush1.bf16.msra.mxu0 %v5808
    %6075 = vmatprep.subr.bf16.mxu0 0
    %6076 = vmatpush1.bf16.msra.mxu0 %v5809
    %6077 = vmatprep.subr.bf16.mxu0 0
    %6078 = vmatpush1.bf16.msra.mxu0 %v5810
    %6079 = vmatprep.subr.bf16.mxu0 0
    %6080 = vmatpush1.bf16.msra.mxu0 %v5811
    %6081 = vmatprep.subr.bf16.mxu0 0
    %6082 = vmatpush1.bf16.msra.mxu0 %v5812
    %6083 = vmatprep.subr.bf16.mxu0 0
    %6084 = vmatpush1.bf16.msra.mxu0 %v5813
    %6085 = vmatprep.subr.bf16.mxu0 0
    %6086 = vmatpush1.bf16.msra.mxu0 %v5814
    %6087 = vmatprep.mubr.bf16.mxu0 %v5007
    %6088 = vmatmul.mubr.bf16.gmra.mrb[0].mxu0 %v5006
    %v6089 = vpop.f32.mrb[0].mxu0
    %v6090 = vadd.f32 %v5285, %v6089
    %v6091 = vpop.f32.mrb[0].mxu0
    %v6092 = vpop.f32.mrb[0].mxu0
    %v6093 = vadd.f32 %v5285, %v6092
    %v6094 = vpop.f32.mrb[0].mxu0
    %6095 = vdwg.mxu0
    %6096 = vmatprep.subr.bf16.mxu0 0
    %6097 = vmatpush1.bf16.msra.mxu0 %v5815
    %6098 = vmatprep.subr.bf16.mxu0 0
    %6099 = vmatpush1.bf16.msra.mxu0 %v5816
    %6100 = vmatprep.subr.bf16.mxu0 0
    %6101 = vmatpush1.bf16.msra.mxu0 %v5817
    %6102 = vmatprep.subr.bf16.mxu0 0
    %6103 = vmatpush1.bf16.msra.mxu0 %v5818
    %6104 = vmatprep.subr.bf16.mxu0 0
    %6105 = vmatpush1.bf16.msra.mxu0 %v5819
    %6106 = vmatprep.subr.bf16.mxu0 0
    %6107 = vmatpush1.bf16.msra.mxu0 %v5820
    %6108 = vmatprep.subr.bf16.mxu0 0
    %6109 = vmatpush1.bf16.msra.mxu0 %v5821
    %6110 = vmatprep.subr.bf16.mxu0 0
    %6111 = vmatpush1.bf16.msra.mxu0 %v5822
    %6112 = vmatprep.subr.bf16.mxu0 0
    %6113 = vmatpush1.bf16.msra.mxu0 %v5823
    %6114 = vmatprep.subr.bf16.mxu0 0
    %6115 = vmatpush1.bf16.msra.mxu0 %v5824
    %6116 = vmatprep.subr.bf16.mxu0 0
    %6117 = vmatpush1.bf16.msra.mxu0 %v5825
    %6118 = vmatprep.subr.bf16.mxu0 0
    %6119 = vmatpush1.bf16.msra.mxu0 %v5826
    %6120 = vmatprep.subr.bf16.mxu0 0
    %6121 = vmatpush1.bf16.msra.mxu0 %v5827
    %6122 = vmatprep.subr.bf16.mxu0 0
    %6123 = vmatpush1.bf16.msra.mxu0 %v5828
    %6124 = vmatprep.subr.bf16.mxu0 0
    %6125 = vmatpush1.bf16.msra.mxu0 %v5829
    %6126 = vmatprep.subr.bf16.mxu0 0
    %6127 = vmatpush1.bf16.msra.mxu0 %v5830
    %6128 = vmatprep.mubr.bf16.mxu0 %v5009
    %6129 = vmatmul.mubr.bf16.gmra.mrb[0].mxu0 %v5008
    %v6130 = vpop.f32.mrb[0].mxu0
    %v6131 = vadd.f32 %v6090, %v6130
    %v6132 = vpop.f32.mrb[0].mxu0
    %v6133 = vpop.f32.mrb[0].mxu0
    %v6134 = vadd.f32 %v6093, %v6133
    %v6135 = vpop.f32.mrb[0].mxu0
    %6136 = vdwg.mxu0
    %6137 = vmatprep.subr.bf16.mxu0 0
    %6138 = vmatpush1.bf16.msra.mxu0 %v5831
    %6139 = vmatprep.subr.bf16.mxu0 0
    %6140 = vmatpush1.bf16.msra.mxu0 %v5832
    %6141 = vmatprep.subr.bf16.mxu0 0
    %6142 = vmatpush1.bf16.msra.mxu0 %v5833
    %6143 = vmatprep.subr.bf16.mxu0 0
    %6144 = vmatpush1.bf16.msra.mxu0 %v5834
    %6145 = vmatprep.subr.bf16.mxu0 0
    %6146 = vmatpush1.bf16.msra.mxu0 %v5835
    %6147 = vmatprep.subr.bf16.mxu0 0
    %6148 = vmatpush1.bf16.msra.mxu0 %v5836
    %6149 = vmatprep.subr.bf16.mxu0 0
    %6150 = vmatpush1.bf16.msra.mxu0 %v5837
    %6151 = vmatprep.subr.bf16.mxu0 0
    %6152 = vmatpush1.bf16.msra.mxu0 %v5838
    %6153 = vmatprep.subr.bf16.mxu0 0
    %6154 = vmatpush1.bf16.msra.mxu0 %v5839
    %6155 = vmatprep.subr.bf16.mxu0 0
    %6156 = vmatpush1.bf16.msra.mxu0 %v5840
    %6157 = vmatprep.subr.bf16.mxu0 0
    %6158 = vmatpush1.bf16.msra.mxu0 %v5841
    %6159 = vmatprep.subr.bf16.mxu0 0
    %6160 = vmatpush1.bf16.msra.mxu0 %v5842
    %6161 = vmatprep.subr.bf16.mxu0 0
    %6162 = vmatpush1.bf16.msra.mxu0 %v5843
    %6163 = vmatprep.subr.bf16.mxu0 0
    %6164 = vmatpush1.bf16.msra.mxu0 %v5844
    %6165 = vmatprep.subr.bf16.mxu0 0
    %6166 = vmatpush1.bf16.msra.mxu0 %v5845
    %6167 = vmatprep.subr.bf16.mxu0 0
    %6168 = vmatpush1.bf16.msra.mxu0 %v5846
    %6169 = vmatprep.mubr.bf16.mxu0 %v5011
    %6170 = vmatmul.mubr.bf16.gmra.mrb[0].mxu0 %v5010
    %v6171 = vpop.f32.mrb[0].mxu0
    %v6172 = vadd.f32 %v6131, %v6171
    %v6173 = vpop.f32.mrb[0].mxu0
    %v6174 = vpop.f32.mrb[0].mxu0
    %v6175 = vadd.f32 %v6134, %v6174
    %v6176 = vpop.f32.mrb[0].mxu0
    %6177 = vdwg.mxu0
    %6178 = vmatprep.subr.bf16.mxu0 0
    %6179 = vmatpush1.bf16.msra.mxu0 %v5847
    %6180 = vmatprep.subr.bf16.mxu0 0
    %6181 = vmatpush1.bf16.msra.mxu0 %v5848
    %6182 = vmatprep.subr.bf16.mxu0 0
    %6183 = vmatpush1.bf16.msra.mxu0 %v5849
    %6184 = vmatprep.subr.bf16.mxu0 0
    %6185 = vmatpush1.bf16.msra.mxu0 %v5850
    %6186 = vmatprep.subr.bf16.mxu0 0
    %6187 = vmatpush1.bf16.msra.mxu0 %v5851
    %6188 = vmatprep.subr.bf16.mxu0 0
    %6189 = vmatpush1.bf16.msra.mxu0 %v5852
    %6190 = vmatprep.subr.bf16.mxu0 0
    %6191 = vmatpush1.bf16.msra.mxu0 %v5853
    %6192 = vmatprep.subr.bf16.mxu0 0
    %6193 = vmatpush1.bf16.msra.mxu0 %v5854
    %6194 = vmatprep.subr.bf16.mxu0 0
    %6195 = vmatpush1.bf16.msra.mxu0 %v5855
    %6196 = vmatprep.subr.bf16.mxu0 0
    %6197 = vmatpush1.bf16.msra.mxu0 %v5856
    %6198 = vmatprep.subr.bf16.mxu0 0
    %6199 = vmatpush1.bf16.msra.mxu0 %v5857
    %6200 = vmatprep.subr.bf16.mxu0 0
    %6201 = vmatpush1.bf16.msra.mxu0 %v5858
    %6202 = vmatprep.subr.bf16.mxu0 0
    %6203 = vmatpush1.bf16.msra.mxu0 %v5859
    %6204 = vmatprep.subr.bf16.mxu0 0
    %6205 = vmatpush1.bf16.msra.mxu0 %v5860
    %6206 = vmatprep.subr.bf16.mxu0 0
    %6207 = vmatpush1.bf16.msra.mxu0 %v5861
    %6208 = vmatprep.subr.bf16.mxu0 0
    %6209 = vmatpush1.bf16.msra.mxu0 %v5862
    %6210 = vmatprep.mubr.bf16.mxu0 %v5013
    %6211 = vmatmul.mubr.bf16.gmra.mrb[0].mxu0 %v5012
    %v6212 = vpop.f32.mrb[0].mxu0
    %v6213 = vadd.f32 %v6172, %v6212
    %v6214 = vpop.f32.mrb[0].mxu0
    %v6215 = vpop.f32.mrb[0].mxu0
    %v6216 = vadd.f32 %v6175, %v6215
    %v6217 = vpop.f32.mrb[0].mxu0
    %6218 = vdwg.mxu0
    %6219 = vmatprep.subr.bf16.mxu0 0
    %6220 = vmatpush1.bf16.msra.mxu0 %v5863
    %6221 = vmatprep.subr.bf16.mxu0 0
    %6222 = vmatpush1.bf16.msra.mxu0 %v5864
    %6223 = vmatprep.subr.bf16.mxu0 0
    %6224 = vmatpush1.bf16.msra.mxu0 %v5865
    %6225 = vmatprep.subr.bf16.mxu0 0
    %6226 = vmatpush1.bf16.msra.mxu0 %v5866
    %6227 = vmatprep.subr.bf16.mxu0 0
    %6228 = vmatpush1.bf16.msra.mxu0 %v5867
    %6229 = vmatprep.subr.bf16.mxu0 0
    %6230 = vmatpush1.bf16.msra.mxu0 %v5868
    %6231 = vmatprep.subr.bf16.mxu0 0
    %6232 = vmatpush1.bf16.msra.mxu0 %v5869
    %6233 = vmatprep.subr.bf16.mxu0 0
    %6234 = vmatpush1.bf16.msra.mxu0 %v5870
    %6235 = vmatprep.subr.bf16.mxu0 0
    %6236 = vmatpush1.bf16.msra.mxu0 %v5871
    %6237 = vmatprep.subr.bf16.mxu0 0
    %6238 = vmatpush1.bf16.msra.mxu0 %v5872
    %6239 = vmatprep.subr.bf16.mxu0 0
    %6240 = vmatpush1.bf16.msra.mxu0 %v5873
    %6241 = vmatprep.subr.bf16.mxu0 0
    %6242 = vmatpush1.bf16.msra.mxu0 %v5874
    %6243 = vmatprep.subr.bf16.mxu0 0
    %6244 = vmatpush1.bf16.msra.mxu0 %v5875
    %6245 = vmatprep.subr.bf16.mxu0 0
    %6246 = vmatpush1.bf16.msra.mxu0 %v5876
    %6247 = vmatprep.subr.bf16.mxu0 0
    %6248 = vmatpush1.bf16.msra.mxu0 %v5877
    %6249 = vmatprep.subr.bf16.mxu0 0
    %6250 = vmatpush1.bf16.msra.mxu0 %v5878
    %6251 = vmatprep.mubr.bf16.mxu0 %v5015
    %6252 = vmatmul.mubr.bf16.gmra.mrb[0].mxu0 %v5014
    %v6253 = vpop.f32.mrb[0].mxu0
    %v6254 = vadd.f32 %v6213, %v6253
    %v6255 = vpop.f32.mrb[0].mxu0
    %v6256 = vpop.f32.mrb[0].mxu0
    %v6257 = vadd.f32 %v6216, %v6256
    %v6258 = vpop.f32.mrb[0].mxu0
    %6259 = vdwg.mxu0
    %6260 = vmatprep.subr.bf16.mxu0 0
    %6261 = vmatpush1.bf16.msra.mxu0 %v5879
    %6262 = vmatprep.subr.bf16.mxu0 0
    %6263 = vmatpush1.bf16.msra.mxu0 %v5880
    %6264 = vmatprep.subr.bf16.mxu0 0
    %6265 = vmatpush1.bf16.msra.mxu0 %v5881
    %6266 = vmatprep.subr.bf16.mxu0 0
    %6267 = vmatpush1.bf16.msra.mxu0 %v5882
    %6268 = vmatprep.subr.bf16.mxu0 0
    %6269 = vmatpush1.bf16.msra.mxu0 %v5883
    %6270 = vmatprep.subr.bf16.mxu0 0
    %6271 = vmatpush1.bf16.msra.mxu0 %v5884
    %6272 = vmatprep.subr.bf16.mxu0 0
    %6273 = vmatpush1.bf16.msra.mxu0 %v5885
    %6274 = vmatprep.subr.bf16.mxu0 0
    %6275 = vmatpush1.bf16.msra.mxu0 %v5886
    %6276 = vmatprep.subr.bf16.mxu0 0
    %6277 = vmatpush1.bf16.msra.mxu0 %v5887
    %6278 = vmatprep.subr.bf16.mxu0 0
    %6279 = vmatpush1.bf16.msra.mxu0 %v5888
    %6280 = vmatprep.subr.bf16.mxu0 0
    %6281 = vmatpush1.bf16.msra.mxu0 %v5889
    %6282 = vmatprep.subr.bf16.mxu0 0
    %6283 = vmatpush1.bf16.msra.mxu0 %v5890
    %6284 = vmatprep.subr.bf16.mxu0 0
    %6285 = vmatpush1.bf16.msra.mxu0 %v5891
    %6286 = vmatprep.subr.bf16.mxu0 0
    %6287 = vmatpush1.bf16.msra.mxu0 %v5892
    %6288 = vmatprep.subr.bf16.mxu0 0
    %6289 = vmatpush1.bf16.msra.mxu0 %v5893
    %6290 = vmatprep.subr.bf16.mxu0 0
    %6291 = vmatpush1.bf16.msra.mxu0 %v5894
    %6292 = vmatprep.mubr.bf16.mxu0 %v5017
    %6293 = vmatmul.mubr.bf16.gmra.mrb[0].mxu0 %v5016
    %v6294 = vpop.f32.mrb[0].mxu0
    %v6295 = vadd.f32 %v6254, %v6294
    %v6296 = vpop.f32.mrb[0].mxu0
    %v6297 = vpop.f32.mrb[0].mxu0
    %v6298 = vadd.f32 %v6257, %v6297
    %v6299 = vpop.f32.mrb[0].mxu0
    %6300 = vdwg.mxu0
    %6301 = vmatprep.subr.bf16.mxu0 0
    %6302 = vmatpush1.bf16.msra.mxu0 %v5895
    %6303 = vmatprep.subr.bf16.mxu0 0
    %6304 = vmatpush1.bf16.msra.mxu0 %v5896
    %6305 = vmatprep.subr.bf16.mxu0 0
    %6306 = vmatpush1.bf16.msra.mxu0 %v5897
    %6307 = vmatprep.subr.bf16.mxu0 0
    %6308 = vmatpush1.bf16.msra.mxu0 %v5898
    %6309 = vmatprep.subr.bf16.mxu0 0
    %6310 = vmatpush1.bf16.msra.mxu0 %v5899
    %6311 = vmatprep.subr.bf16.mxu0 0
    %6312 = vmatpush1.bf16.msra.mxu0 %v5900
    %6313 = vmatprep.subr.bf16.mxu0 0
    %6314 = vmatpush1.bf16.msra.mxu0 %v5901
    %6315 = vmatprep.subr.bf16.mxu0 0
    %6316 = vmatpush1.bf16.msra.mxu0 %v5902
    %6317 = vmatprep.subr.bf16.mxu0 0
    %6318 = vmatpush1.bf16.msra.mxu0 %v5903
    %6319 = vmatprep.subr.bf16.mxu0 0
    %6320 = vmatpush1.bf16.msra.mxu0 %v5904
    %6321 = vmatprep.subr.bf16.mxu0 0
    %6322 = vmatpush1.bf16.msra.mxu0 %v5905
    %6323 = vmatprep.subr.bf16.mxu0 0
    %6324 = vmatpush1.bf16.msra.mxu0 %v5906
    %6325 = vmatprep.subr.bf16.mxu0 0
    %6326 = vmatpush1.bf16.msra.mxu0 %v5907
    %6327 = vmatprep.subr.bf16.mxu0 0
    %6328 = vmatpush1.bf16.msra.mxu0 %v5908
    %6329 = vmatprep.subr.bf16.mxu0 0
    %6330 = vmatpush1.bf16.msra.mxu0 %v5909
    %6331 = vmatprep.subr.bf16.mxu0 0
    %6332 = vmatpush1.bf16.msra.mxu0 %v5910
    %6333 = vmatprep.mubr.bf16.mxu0 %v5019
    %6334 = vmatmul.mubr.bf16.gmra.mrb[0].mxu0 %v5018
    %v6335 = vpop.f32.mrb[0].mxu0
    %v6336 = vadd.f32 %v6295, %v6335
    %v6337 = vpop.f32.mrb[0].mxu0
    %v6338 = vpop.f32.mrb[0].mxu0
    %v6339 = vadd.f32 %v6298, %v6338
    %v6340 = vpop.f32.mrb[0].mxu0
    %6341 = vdwg.mxu0
    %6342 = vmatprep.subr.bf16.mxu0 0
    %6343 = vmatpush1.bf16.msra.mxu0 %v5911
    %6344 = vmatprep.subr.bf16.mxu0 0
    %6345 = vmatpush1.bf16.msra.mxu0 %v5912
    %6346 = vmatprep.subr.bf16.mxu0 0
    %6347 = vmatpush1.bf16.msra.mxu0 %v5913
    %6348 = vmatprep.subr.bf16.mxu0 0
    %6349 = vmatpush1.bf16.msra.mxu0 %v5914
    %6350 = vmatprep.subr.bf16.mxu0 0
    %6351 = vmatpush1.bf16.msra.mxu0 %v5915
    %6352 = vmatprep.subr.bf16.mxu0 0
    %6353 = vmatpush1.bf16.msra.mxu0 %v5916
    %6354 = vmatprep.subr.bf16.mxu0 0
    %6355 = vmatpush1.bf16.msra.mxu0 %v5917
    %6356 = vmatprep.subr.bf16.mxu0 0
    %6357 = vmatpush1.bf16.msra.mxu0 %v5918
    %6358 = vmatprep.subr.bf16.mxu0 0
    %6359 = vmatpush1.bf16.msra.mxu0 %v5919
    %6360 = vmatprep.subr.bf16.mxu0 0
    %6361 = vmatpush1.bf16.msra.mxu0 %v5920
    %6362 = vmatprep.subr.bf16.mxu0 0
    %6363 = vmatpush1.bf16.msra.mxu0 %v5921
    %6364 = vmatprep.subr.bf16.mxu0 0
    %6365 = vmatpush1.bf16.msra.mxu0 %v5922
    %6366 = vmatprep.subr.bf16.mxu0 0
    %6367 = vmatpush1.bf16.msra.mxu0 %v5923
    %6368 = vmatprep.subr.bf16.mxu0 0
    %6369 = vmatpush1.bf16.msra.mxu0 %v5924
    %6370 = vmatprep.subr.bf16.mxu0 0
    %6371 = vmatpush1.bf16.msra.mxu0 %v5925
    %6372 = vmatprep.subr.bf16.mxu0 0
    %6373 = vmatpush1.bf16.msra.mxu0 %v5926
    %6374 = vmatprep.mubr.bf16.mxu0 %v5021
    %6375 = vmatmul.mubr.bf16.gmra.mrb[0].mxu0 %v5020
    %v6376 = vpop.f32.mrb[0].mxu0
    %v6377 = vadd.f32 %v6336, %v6376
    %v6378 = vpop.f32.mrb[0].mxu0
    %v6379 = vpop.f32.mrb[0].mxu0
    %v6380 = vadd.f32 %v6339, %v6379
    %v6381 = vpop.f32.mrb[0].mxu0
    %6382 = vdwg.mxu0
    %v6383 = vadd.f32 %v6377, %v4346
    %v6384 = vadd.f32 %v6380, %v4347
    %s6385 = scalar_lea.vmem %s11, 1
    %v6386 = vld [vmem:[%s6385] sm:$0x1]
    %s6387 = scalar_lea.vmem %s12, 1
    %v6388 = vld [vmem:[%s6387] sm:$0x1]
    %v6389 = vsel %vm78, %v6383, 0.0
    %6390 = vadd.xlane.f32.xlu0 %v6389
    %v6391 = vpop.xlane.xlu0 %6390
    %v6392 = vsel %vm78, %v6384, 0.0
    %6393 = vadd.xlane.f32.xlu0 %v6392
    %v6394 = vpop.xlane.xlu0 %6393
    %v6395 = vmul.f32 %v6391, %v1126
    %v6396 = vmul.f32 %v6394, %v1126
    %v6397 = vsub.f32 %v6383, %v6395
    %v6398 = vsub.f32 %v6384, %v6396
    %v6399 = vmul.f32 %v6397, %v6397
    %v6400 = vmul.f32 %v6398, %v6398
    %v6401 = vsel %vm78, %v6399, 0.0
    %6402 = vadd.xlane.f32.xlu0 %v6401
    %v6403 = vpop.xlane.xlu0 %6402
    %v6404 = vsel %vm78, %v6400, 0.0
    %6405 = vadd.xlane.f32.xlu0 %v6404
    %v6406 = vpop.xlane.xlu0 %6405
    %v6407 = vmul.f32 %v6403, %v1126
    %v6408 = vmul.f32 %v6406, %v1126
    %v6409 = vadd.f32 %v6407, 1e-05
    %v6410 = vadd.f32 %v6408, 1e-05
    %v6411 = vrsqrt.pop %v6409
    %v6412 = vrsqrt.pop %v6410
    %v6413 = vmul.f32 %v6397, %v6411
    %v6414 = vmul.f32 %v6398, %v6412
    %v6416 = vlaneseq
    %v6417 = vshrl.u32 %v6416, 7
    %v6418 = vsub.s32 0, %v6417
    %v6419 = vrot.slane %v6386, %v6418
    %v6421 = vmul.f32 %v6413, %v6419
    %v6422 = vmul.f32 %v6414, %v6419
    %v6424 = vlaneseq
    %v6425 = vshrl.u32 %v6424, 7
    %v6426 = vsub.s32 0, %v6425
    %v6427 = vrot.slane %v6388, %v6426
    %v6429 = vadd.f32 %v6421, %v6427
    %v6430 = vadd.f32 %v6422, %v6427
    %v6431 = vadd.f32 %v6429, %v6430
    %v6432 = vmul.f32 %v6431, 0.5
    %v6433 = vpack.c.bf16 %v6432, %v6432
    %v6434 = vld [vmem:[%s13] sm:$0xf]
    %v6435 = vld [vmem:[%s13 + $0x4] sm:$0xf]
    %v6436 = vld [vmem:[%s13 + $0x8] sm:$0xf]
    %v6437 = vld [vmem:[%s13 + $0xc] sm:$0xf]
    %v6438 = vld [vmem:[%s14] sm:$0x1]
    %v6440 = vlaneseq
    %v6441 = vshrl.u32 %v6440, 7
    %v6442 = vsub.s32 0, %v6441
    %v6443 = vrot.slane %v6438, %v6442
    %v6449 = vunpack.c.l.b16 %v6434
    %v6450 = vunpack.c.l.b16 %v6435
    %v6451 = vunpack.c.l.b16 %v6436
    %v6452 = vunpack.c.l.b16 %v6437
    %v6453 = vpack.c.b16 %v6450, %v6449
    %v6454 = vpack.c.b16 %v6452, %v6451
    %v6458 = vsel %vm78, %v6433, 0
    %6460 = vmatprep.subr.bf16.mxu0 0
    %6461 = vmatpush1.bf16.msra.mxu0 %v6453
    %6462 = vmatprep.subr.bf16.mxu0 0
    %6463 = vmatpush1.bf16.msra.mxu0 %v6454
    %6464 = vmatprep.subr.bf16.mxu0 0
    %6465 = vmatpush1.bf16.msra.mxu0 0
    %6466 = vmatprep.subr.bf16.mxu0 0
    %6467 = vmatpush1.bf16.msra.mxu0 0
    %6468 = vmatprep.subr.bf16.mxu0 0
    %6469 = vmatpush1.bf16.msra.mxu0 0
    %6470 = vmatprep.subr.bf16.mxu0 0
    %6471 = vmatpush1.bf16.msra.mxu0 0
    %6472 = vmatprep.subr.bf16.mxu0 0
    %6473 = vmatpush1.bf16.msra.mxu0 0
    %6474 = vmatprep.subr.bf16.mxu0 0
    %6475 = vmatpush1.bf16.msra.mxu0 0
    %6476 = vmatprep.subr.bf16.mxu0 0
    %6477 = vmatpush1.bf16.msra.mxu0 0
    %6478 = vmatprep.subr.bf16.mxu0 0
    %6479 = vmatpush1.bf16.msra.mxu0 0
    %6480 = vmatprep.subr.bf16.mxu0 0
    %6481 = vmatpush1.bf16.msra.mxu0 0
    %6482 = vmatprep.subr.bf16.mxu0 0
    %6483 = vmatpush1.bf16.msra.mxu0 0
    %6484 = vmatprep.subr.bf16.mxu0 0
    %6485 = vmatpush1.bf16.msra.mxu0 0
    %6486 = vmatprep.subr.bf16.mxu0 0
    %6487 = vmatpush1.bf16.msra.mxu0 0
    %6488 = vmatprep.subr.bf16.mxu0 0
    %6489 = vmatpush1.bf16.msra.mxu0 0
    %6490 = vmatprep.subr.bf16.mxu0 0
    %6491 = vmatpush1.bf16.msra.mxu0 0
    %6492 = vmatprep.mubr.bf16.mxu0 0
    %6493 = vmatmul.mubr.bf16.gmra.mrb[0].mxu0 %v6458
    %v6494 = vpop.f32.mrb[0].mxu0
    %v6495 = vadd.f32 %v6443, %v6494
    %v6496 = vpop.f32.mrb[0].mxu0
    %v6497 = vpop.f32.mrb[0].mxu0
    %v6498 = vpop.f32.mrb[0].mxu0
    %6499 = vdwg.mxu0
    %6500 = vst [vmem:[#allocation3] sm:$0xff] %v6495
    // Predicated region
    $region62: #{transformer_model_forward.1} parent=1 // pred_check
      _
    $region63: #{transformer_model_forward.1} parent=1 // pred_check_branch
      %6502 = sbr.rel (0) target = $region65
    $region64: #{transformer_model_forward.1} parent=1 // pred_region
      %s6504 = ssub.s32 128, 128
      %6505 = vsyncadd [#allocation4], %s6504
      %s6507 = sshll.u32 [#allocation3], 4
      %s6508 = int_to_ptr.vmem [resolvable:$true] %s6507
      %6510 = dma.vmem_to_hbm [thread:$0]  %s6508, 128, %s15, [#allocation4]
    $region65: #{transformer_model_forward.1} parent=1 // pred_fallthru
      _
    // Predicated region
    $region66: #{transformer_model_forward.1} parent=1 // pred_check
      _
    $region67: #{transformer_model_forward.1} parent=1 // pred_check_branch
      %6512 = sbr.rel (0) target = $region69
    $region68: #{transformer_model_forward.1} parent=1 // pred_region
      %6513 = dma.done [#allocation4], 128
    $region69: #{transformer_model_forward.1} parent=1 // pred_fallthru
      _
    %6514 = vsyncpa [#allocation4], 1

</llo_original>
